<compile_context>
chip_gen: v7x
topology: tpu7x:2x2x1
jax: 0.10.0
libtpu: 0.0.40
codegen_flags: <defaults>
</compile_context>

<pallas_src>
import jax
import jax.numpy as jnp
import numpy as np
from jax.experimental import pallas as pl
from jax.experimental.pallas import tpu as pltpu


# ----------------------------------------------------------------------------------------------
# trace-time constant matrices (numpy): deconv tap assembly composed with bilinear 2x upsample
# ----------------------------------------------------------------------------------------------
def _upsample_matrix(size_in):
    """(size_in, 2*size_in): 1-D bilinear 2x upsample weights, align_corners=False (PyTorch)."""
    size_out = 2 * size_in
    u = np.zeros((size_in, size_out), np.float32)
    for o in range(size_out):
        src = max((o + 0.5) / 2.0 - 0.5, 0.0)
        i0 = min(int(np.floor(src)), size_in - 1)
        i1 = min(i0 + 1, size_in - 1)
        lam = src - i0
        u[i0, o] += 1.0 - lam
        u[i1, o] += lam
    return u


def _deconv_assembly_matrix(size_in, tap):
    """(size_in, 2*size_in) 0/1 matrix: ConvTranspose(k=4,s=2,p=1) tap -> output position.
    Out-of-range taps are dropped, which is exactly the deconv zero padding."""
    size_out = 2 * size_in
    a = np.zeros((size_in, size_out), np.float32)
    for i in range(size_in):
        o = 2 * i - 1 + tap
        if 0 <= o < size_out:
            a[i, o] = 1.0
    return a


def _axis_resampling(size_in):
    """(4, size_in, 4*size_in): per-tap (deconv assembly ∘ bilinear 2x) along one spatial axis."""
    u = _upsample_matrix(2 * size_in)
    return np.stack([_deconv_assembly_matrix(size_in, t) @ u for t in range(4)], axis=0)


def _h_resampling_blockdiag(h, k):
    """(K*4H, 4*H*K): block-diagonal-over-k H-axis resampling.

    Columns indexed (ih, kh, k'), rows indexed (k, p):
        LH[k*4H + p, ih*4K + kh*K + k] = R_h[kh][ih, p]
    so  LH @ acc  (acc rows (ih,kh,k), lanes q)  ==  out rows (k,p), lanes q.
    """
    rh = _axis_resampling(h)                      # (4, H, 4H)
    h4 = 4 * h
    lh = np.zeros((k * h4, h * 4 * k), np.float32)
    for kh in range(4):
        for ih in range(h):
            col_base = ih * 4 * k + kh * k
            for kk in range(k):
                lh[kk * h4:(kk + 1) * h4, col_base + kk] = rh[kh, ih, :]
    return lh


# ----------------------------------------------------------------------------------------------
# fused Pallas kernel (one ROI per grid step)
# ----------------------------------------------------------------------------------------------
def _make_kernel(c, h, w, k):
    gk = 4 * k                  # lanes per kw block: (kh, k)
    h4, w4 = 4 * h, 4 * w

    def kernel(x_ref, w_ref, rw_ref, lh_ref, b_ref, o_ref):
        # x_ref : (1, C, H*W)             w_ref : (16K, C)   rows ordered (kw, kh, k)
        # rw_ref: (4, W, 4W)              lh_ref: (K*4H, 4*H*K)  cols ordered (ih, kh, k)
        # b_ref : (K, 1, 1)               o_ref : (1, K, 4H, 4W)  (== NCHW slab)
        xc = x_ref[0]                                                   # (C, H*W)

        # all 16 ConvTranspose taps via a single channel-contraction matmul
        t0 = jnp.dot(w_ref[...], xc, preferred_element_type=jnp.float32)   # (16K, H*W)
        t = t0.T                                                            # (H*W, 16K)

        # W axis: tap scatter + zero pad + bilinear 2x + interleave == dot with R_w[kw]
        acc = None
        for kw in range(4):
            blk = t[:, kw * gk:(kw + 1) * gk]                # (H*W, 4K), lanes (kh, k)
            b4 = jnp.swapaxes(blk.reshape(h, w, gk), 1, 2)   # (H, 4K, W)
            b2 = b4.reshape(h * gk, w)                       # rows (ih, kh, k)
            term = jnp.dot(b2, rw_ref[kw],
                           preferred_element_type=jnp.float32)   # (H*4K, 4W)
            acc = term if acc is None else acc + term

        # H axis: one block-diagonal MXU dot produces rows (k, p) directly
        z = jnp.dot(lh_ref[...], acc, preferred_element_type=jnp.float32)   # (K*4H, 4W)

        o_ref[0] = (z.reshape(k, h4, w4) + b_ref[...]).astype(o_ref.dtype)

    return kernel


def keypoint_rcnn_predictor_forward(x_nchw, weight, bias):
    """x_nchw: (N, C, H, W); weight: (C, K, 4, 4) torch ConvTranspose2d layout; bias: (K,).
    Returns (N, K, 4H, 4W) == KeypointRCNNPredictor.forward(x)."""
    n, c, h, w = x_nchw.shape
    k = weight.shape[1]
    hw = h * w
    h4, w4 = 4 * h, 4 * w

    # free reshape of contiguous NCHW (no pad, no transpose, no extra HBM pass)
    x_flat = x_nchw.reshape(n, c, hw).astype(jnp.float32)

    # (16K, C) weight matrix, row index = (kw, kh, k)
    w_mat = jnp.transpose(weight.astype(jnp.float32), (3, 2, 1, 0)).reshape(16 * k, c)

    # per-axis resampling constants (numpy at trace time, fetched into VMEM once)
    rw = jnp.asarray(_axis_resampling(w))                    # (4, W, 4W)
    lh = jnp.asarray(_h_resampling_blockdiag(h, k))          # (K*4H, 4*H*K)
    b3 = bias.astype(jnp.float32).reshape(k, 1, 1)

    kernel = _make_kernel(c, h, w, k)
    return pl.pallas_call(
        kernel,
        out_shape=jax.ShapeDtypeStruct((n, k, h4, w4), jnp.float32),
        grid=(n,),
        in_specs=[
            pl.BlockSpec((1, c, hw), lambda g: (g, 0, 0)),
            pl.BlockSpec((16 * k, c), lambda g: (0, 0)),
            pl.BlockSpec((4, w, w4), lambda g: (0, 0, 0)),
            pl.BlockSpec((k * h4, 4 * h * k), lambda g: (0, 0)),
            pl.BlockSpec((k, 1, 1), lambda g: (0, 0, 0)),
        ],
        out_specs=pl.BlockSpec((1, k, h4, w4), lambda g: (g, 0, 0, 0)),
        compiler_params=pltpu.CompilerParams(dimension_semantics=("parallel",)),
    )(x_flat, w_mat, rw, lh, b3)


# ------------------------- pure-numpy reference check (float64) -------------------------
def _reference(x_nchw, weight, bias):
    x = np.asarray(x_nchw, np.float64)
    w = np.asarray(weight, np.float64)
    b = np.asarray(bias, np.float64)
    N, C, H, W = x.shape
    K = w.shape[1]
    stride, pad, kk = 2, 1, 4
    Ho, Wo = 2 * H, 2 * W
    y = np.zeros((N, K, Ho, Wo), np.float64) + b[None, :, None, None]
    for kh in range(kk):
        for kw in range(kk):
            for ih in range(H):
                oh = ih * stride - pad + kh
                if not (0 <= oh < Ho):
                    continue
                for iw in range(W):
                    ow = iw * stride - pad + kw
                    if not (0 <= ow < Wo):
                        continue
                    y[:, :, oh, ow] += np.einsum('nc,ck->nk', x[:, :, ih, iw], w[:, :, kh, kw])

    def idx_w(out_size, in_size):
        o = np.arange(out_size)
        src = np.maximum((o + 0.5) / 2.0 - 0.5, 0.0)
        i0 = np.minimum(np.floor(src).astype(np.int64), in_size - 1)
        i1 = np.minimum(i0 + 1, in_size - 1)
        return i0, i1, src - i0

    r0, r1, rl = idx_w(2 * Ho, Ho)
    c0, c1, cl = idx_w(2 * Wo, Wo)
    rows = y[:, :, r0, :] * (1 - rl)[None, None, :, None] + y[:, :, r1, :] * rl[None, None, :, None]
    out = rows[:, :, :, c0] * (1 - cl)[None, None, None, :] + rows[:, :, :, c1] * cl[None, None, None, :]
    return out


if __name__ == "__main__":
    key = jax.random.PRNGKey(0)
    N, C, H, W = 2, 4, 16, 16     # batch (ROIs), in_channels, spatial
    K = 8                          # num_keypoints (small synthetic; real model uses 17)

    kx, kw_key, kb_key = jax.random.split(key, 3)
    x = jax.random.normal(kx, (N, C, H, W), jnp.float32)

    # kaiming_normal_(mode='fan_out', nonlinearity='relu') on weight (C, K, 4, 4)
    fan_out = C * 4 * 4
    std = float(np.sqrt(2.0 / fan_out))
    weight = jax.random.normal(kw_key, (C, K, 4, 4), jnp.float32) * std
    # module init is zero bias; use a small nonzero bias here to exercise the bias path
    bias = 0.1 * jax.random.normal(kb_key, (K,), jnp.float32)

    out = jax.jit(keypoint_rcnn_predictor_forward)(x, weight, bias)
    out = jax.block_until_ready(out)
    assert out.shape == (N, K, 4 * H, 4 * W), out.shape

    ref = _reference(np.asarray(x), np.asarray(weight), np.asarray(bias))
    np.testing.assert_allclose(np.asarray(out), ref, rtol=1e-4, atol=1e-4)
    print("KERNEL_OK")
</pallas_src>

<mosaic_0001>
module attributes {stable_mosaic.version = 11 : i64} {
  func.func @kernel(%arg0: i32, %arg1: memref<1x4x256xf32, #tpu.memory_space<vmem>>, %arg2: memref<128x4xf32, #tpu.memory_space<vmem>>, %arg3: memref<4x16x64xf32, #tpu.memory_space<vmem>>, %arg4: memref<512x512xf32, #tpu.memory_space<vmem>>, %arg5: memref<8x1x1xf32, #tpu.memory_space<vmem>>, %arg6: memref<1x8x64x64xf32, #tpu.memory_space<vmem>>) attributes {dimension_semantics = [#tpu.dimension_semantics<parallel>], iteration_bounds = array<i64: 2>, scalar_prefetch = 0 : i64, scratch_operands = 0 : i64, tpu.core_type = #tpu.core_type<tc>, window_params = [{transform_indices = @transform_0, window_bounds = array<i64: 1, 4, 256>}, {pipeline_mode = #tpu.pipeline_mode<synchronous>, transform_indices = @transform_1, window_bounds = array<i64: 128, 4>}, {pipeline_mode = #tpu.pipeline_mode<synchronous>, transform_indices = @transform_2, window_bounds = array<i64: 4, 16, 64>}, {pipeline_mode = #tpu.pipeline_mode<synchronous>, transform_indices = @transform_3, window_bounds = array<i64: 512, 512>}, {pipeline_mode = #tpu.pipeline_mode<synchronous>, transform_indices = @transform_4, window_bounds = array<i64: 8, 1, 1>}, {transform_indices = @transform_5, window_bounds = array<i64: 1, 8, 64, 64>}]} {
    %c0 = arith.constant 0 : index
    %c0_0 = arith.constant 0 : index
    %c0_1 = arith.constant 0 : index
    %0 = vector.load %arg1[%c0, %c0_0, %c0_1] : memref<1x4x256xf32, #tpu.memory_space<vmem>>, vector<1x4x256xf32>
    %1 = vector.shape_cast %0 : vector<1x4x256xf32> to vector<4x256xf32>
    %c0_2 = arith.constant 0 : index
    %c0_3 = arith.constant 0 : index
    %2 = vector.load %arg2[%c0_2, %c0_3] : memref<128x4xf32, #tpu.memory_space<vmem>>, vector<128x4xf32>
    %cst = arith.constant dense<0.000000e+00> : vector<128x256xf32>
    %3 = tpu.matmul %2, %1, %cst {dimension_numbers = #tpu.dot_dimension_numbers<[1], [0], [0], [1], [0, 0, 1, 1], [], []>} : vector<128x4xf32>, vector<4x256xf32>, vector<128x256xf32> -> vector<128x256xf32>
    %4 = tpu.transpose %3, [1, 0] : vector<128x256xf32> -> vector<256x128xf32>
    %5 = vector.extract_strided_slice %4 {offsets = [0, 0], sizes = [256, 32], strides = [1, 1]} : vector<256x128xf32> to vector<256x32xf32>
    %6 = vector.shape_cast %5 : vector<256x32xf32> to vector<16x16x32xf32>
    %7 = tpu.transpose %6, [0, 2, 1] : vector<16x16x32xf32> -> vector<16x32x16xf32>
    %8 = vector.shape_cast %7 : vector<16x32x16xf32> to vector<512x16xf32>
    %c0_4 = arith.constant 0 : index
    %c0_5 = arith.constant 0 : index
    %c0_6 = arith.constant 0 : index
    %9 = vector.load %arg3[%c0_4, %c0_5, %c0_6] : memref<4x16x64xf32, #tpu.memory_space<vmem>>, vector<1x16x64xf32>
    %10 = vector.shape_cast %9 : vector<1x16x64xf32> to vector<16x64xf32>
    %cst_7 = arith.constant dense<0.000000e+00> : vector<512x64xf32>
    %11 = tpu.matmul %8, %10, %cst_7 {dimension_numbers = #tpu.dot_dimension_numbers<[1], [0], [0], [1], [0, 0, 1, 1], [], []>} : vector<512x16xf32>, vector<16x64xf32>, vector<512x64xf32> -> vector<512x64xf32>
    %12 = vector.extract_strided_slice %4 {offsets = [0, 32], sizes = [256, 32], strides = [1, 1]} : vector<256x128xf32> to vector<256x32xf32>
    %13 = vector.shape_cast %12 : vector<256x32xf32> to vector<16x16x32xf32>
    %14 = tpu.transpose %13, [0, 2, 1] : vector<16x16x32xf32> -> vector<16x32x16xf32>
    %15 = vector.shape_cast %14 : vector<16x32x16xf32> to vector<512x16xf32>
    %c1 = arith.constant 1 : index
    %c0_8 = arith.constant 0 : index
    %c0_9 = arith.constant 0 : index
    %16 = vector.load %arg3[%c1, %c0_8, %c0_9] : memref<4x16x64xf32, #tpu.memory_space<vmem>>, vector<1x16x64xf32>
    %17 = vector.shape_cast %16 : vector<1x16x64xf32> to vector<16x64xf32>
    %cst_10 = arith.constant dense<0.000000e+00> : vector<512x64xf32>
    %18 = tpu.matmul %15, %17, %cst_10 {dimension_numbers = #tpu.dot_dimension_numbers<[1], [0], [0], [1], [0, 0, 1, 1], [], []>} : vector<512x16xf32>, vector<16x64xf32>, vector<512x64xf32> -> vector<512x64xf32>
    %19 = arith.addf %11, %18 : vector<512x64xf32>
    %20 = vector.extract_strided_slice %4 {offsets = [0, 64], sizes = [256, 32], strides = [1, 1]} : vector<256x128xf32> to vector<256x32xf32>
    %21 = vector.shape_cast %20 : vector<256x32xf32> to vector<16x16x32xf32>
    %22 = tpu.transpose %21, [0, 2, 1] : vector<16x16x32xf32> -> vector<16x32x16xf32>
    %23 = vector.shape_cast %22 : vector<16x32x16xf32> to vector<512x16xf32>
    %c2 = arith.constant 2 : index
    %c0_11 = arith.constant 0 : index
    %c0_12 = arith.constant 0 : index
    %24 = vector.load %arg3[%c2, %c0_11, %c0_12] : memref<4x16x64xf32, #tpu.memory_space<vmem>>, vector<1x16x64xf32>
    %25 = vector.shape_cast %24 : vector<1x16x64xf32> to vector<16x64xf32>
    %cst_13 = arith.constant dense<0.000000e+00> : vector<512x64xf32>
    %26 = tpu.matmul %23, %25, %cst_13 {dimension_numbers = #tpu.dot_dimension_numbers<[1], [0], [0], [1], [0, 0, 1, 1], [], []>} : vector<512x16xf32>, vector<16x64xf32>, vector<512x64xf32> -> vector<512x64xf32>
    %27 = arith.addf %19, %26 : vector<512x64xf32>
    %28 = vector.extract_strided_slice %4 {offsets = [0, 96], sizes = [256, 32], strides = [1, 1]} : vector<256x128xf32> to vector<256x32xf32>
    %29 = vector.shape_cast %28 : vector<256x32xf32> to vector<16x16x32xf32>
    %30 = tpu.transpose %29, [0, 2, 1] : vector<16x16x32xf32> -> vector<16x32x16xf32>
    %31 = vector.shape_cast %30 : vector<16x32x16xf32> to vector<512x16xf32>
    %c3 = arith.constant 3 : index
    %c0_14 = arith.constant 0 : index
    %c0_15 = arith.constant 0 : index
    %32 = vector.load %arg3[%c3, %c0_14, %c0_15] : memref<4x16x64xf32, #tpu.memory_space<vmem>>, vector<1x16x64xf32>
    %33 = vector.shape_cast %32 : vector<1x16x64xf32> to vector<16x64xf32>
    %cst_16 = arith.constant dense<0.000000e+00> : vector<512x64xf32>
    %34 = tpu.matmul %31, %33, %cst_16 {dimension_numbers = #tpu.dot_dimension_numbers<[1], [0], [0], [1], [0, 0, 1, 1], [], []>} : vector<512x16xf32>, vector<16x64xf32>, vector<512x64xf32> -> vector<512x64xf32>
    %35 = arith.addf %27, %34 : vector<512x64xf32>
    %c0_17 = arith.constant 0 : index
    %c0_18 = arith.constant 0 : index
    %36 = vector.load %arg4[%c0_17, %c0_18] : memref<512x512xf32, #tpu.memory_space<vmem>>, vector<512x512xf32>
    %cst_19 = arith.constant dense<0.000000e+00> : vector<512x64xf32>
    %37 = tpu.matmul %36, %35, %cst_19 {dimension_numbers = #tpu.dot_dimension_numbers<[1], [0], [0], [1], [0, 0, 1, 1], [], []>} : vector<512x512xf32>, vector<512x64xf32>, vector<512x64xf32> -> vector<512x64xf32>
    %38 = vector.shape_cast %37 : vector<512x64xf32> to vector<8x64x64xf32>
    %c0_20 = arith.constant 0 : index
    %c0_21 = arith.constant 0 : index
    %c0_22 = arith.constant 0 : index
    %39 = vector.load %arg5[%c0_20, %c0_21, %c0_22] : memref<8x1x1xf32, #tpu.memory_space<vmem>>, vector<8x1x1xf32>
    %40 = vector.broadcast %39 : vector<8x1x1xf32> to vector<8x64x64xf32>
    %41 = arith.addf %38, %40 : vector<8x64x64xf32>
    %c0_23 = arith.constant 0 : index
    %c0_24 = arith.constant 0 : index
    %c0_25 = arith.constant 0 : index
    %c0_26 = arith.constant 0 : index
    %42 = vector.load %arg6[%c0_23, %c0_24, %c0_25, %c0_26] : memref<1x8x64x64xf32, #tpu.memory_space<vmem>>, vector<1x8x64x64xf32>
    %43 = vector.shape_cast %42 : vector<1x8x64x64xf32> to vector<8x64x64xf32>
    %44 = vector.shape_cast %41 : vector<8x64x64xf32> to vector<1x8x64x64xf32>
    tpu.vector_store %arg6[%c0_23, %c0_24, %c0_25, %c0_26], %44 {strides = array<i32>} : memref<1x8x64x64xf32, #tpu.memory_space<vmem>>, vector<1x8x64x64xf32>,
    return
  }
  func.func @transform_0(%arg0: i32) -> (i32, i32, i32) {
    %c0_i32 = arith.constant 0 : i32
    %c0_i32_0 = arith.constant 0 : i32
    %c0_i32_1 = arith.constant 0 : i32
    return %arg0, %c0_i32, %c0_i32_0 : i32, i32, i32
  }
  func.func @transform_1(%arg0: i32) -> (i32, i32) {
    %c0_i32 = arith.constant 0 : i32
    %c0_i32_0 = arith.constant 0 : i32
    %c0_i32_1 = arith.constant 0 : i32
    return %c0_i32, %c0_i32_0 : i32, i32
  }
  func.func @transform_2(%arg0: i32) -> (i32, i32, i32) {
    %c0_i32 = arith.constant 0 : i32
    %c0_i32_0 = arith.constant 0 : i32
    %c0_i32_1 = arith.constant 0 : i32
    %c0_i32_2 = arith.constant 0 : i32
    return %c0_i32, %c0_i32_0, %c0_i32_1 : i32, i32, i32
  }
  func.func @transform_3(%arg0: i32) -> (i32, i32) {
    %c0_i32 = arith.constant 0 : i32
    %c0_i32_0 = arith.constant 0 : i32
    %c0_i32_1 = arith.constant 0 : i32
    return %c0_i32, %c0_i32_0 : i32, i32
  }
  func.func @transform_4(%arg0: i32) -> (i32, i32, i32) {
    %c0_i32 = arith.constant 0 : i32
    %c0_i32_0 = arith.constant 0 : i32
    %c0_i32_1 = arith.constant 0 : i32
    %c0_i32_2 = arith.constant 0 : i32
    return %c0_i32, %c0_i32_0, %c0_i32_1 : i32, i32, i32
  }
  func.func @transform_5(%arg0: i32) -> (i32, i32, i32, i32) {
    %c0_i32 = arith.constant 0 : i32
    %c0_i32_0 = arith.constant 0 : i32
    %c0_i32_1 = arith.constant 0 : i32
    %c0_i32_2 = arith.constant 0 : i32
    return %arg0, %c0_i32, %c0_i32_0, %c0_i32_1 : i32, i32, i32, i32
  }
}

</mosaic_0001>

<llo_original>
// kernel: keypoint_rcnn_predictor_forward.1
$region0: #{keypoint_rcnn_predictor_forward.1}
  #allocation0 [shape = 'u32[]', space=smem, size = 0x4, offset = 0x4, fixed_abs, tag = 'smem constant byte address 0x4 - core index']
  #allocation1 [shape = 'u32[144,128]{1,0:T(1,128)}', space=vmem, size = 0x12000, scoped, tag = 'internal scratch']
  %s0 = inlined_call_operand.vmem [shape: f32[2,4,256], index: 0, kind: input, shape index: {}]
  %s1 = inlined_call_operand.vmem [shape: f32[128,4], index: 1, kind: input, shape index: {}]
  %s2 = inlined_call_operand.vmem [shape: f32[4,16,64], index: 2, kind: input, shape index: {}]
  %s3 = inlined_call_operand.hbm [shape: f32[512,512], index: 3, kind: input, shape index: {}]
  %s4 = inlined_call_operand.vmem [shape: f32[8,1,1], index: 4, kind: input, shape index: {}]
  %s5 = inlined_call_operand.hbm [shape: f32[2,8,64,64], index: 5, kind: output, shape index: {}]
  %s6 = sld [smem:[#allocation0]]
  $region57: #{keypoint_rcnn_predictor_forward.1} parent=0
    _
  %s8 = ssub.s32 1, %s6
  %s9 = scalar_select 0, %s8, %s6
  $region1: #{keypoint_rcnn_predictor_forward.1} parent=0
    #allocation2 [shape = 'u8[1048576]{0}', space=vmem, size = 0x100000, scoped, tag = 'input window, operand 3, single buffered']
    #allocation3 [shape = 's32[2]{0}', space=sflag, size = 0x8, scoped, tag = 'scoped memory for keypoint_rcnn_predictor_forward.1']
    #allocation4 [shape = 's32[2]{0}', space=sflag, size = 0x8, scoped, tag = 'scoped memory for keypoint_rcnn_predictor_forward.1']
    #allocation5 [shape = 'u8[524288]{0}', space=vmem, size = 0x80000, scoped, tag = 'output window, operand 0']
    %10 = vsyncpa [#allocation3], 0
    %11 = vsyncpa [#allocation4], 0
    %s12 = scalar_lea.sflag [#allocation4], 1
    %13 = vsyncpa %s12, 0
    loop: start=0, step=1, limit=4
    $region2: #{keypoint_rcnn_predictor_forward.1} parent=1 // loop_pre_header
      _
    $region3: #{keypoint_rcnn_predictor_forward.1} parent=1 // loop_header
      %s15 = sphi 0, %s19
      %p16 = scmp.ge.s32.totalorder %s15, 4
      %s25 = sphi 0, %s27
      %s28 = sphi 0, %s25
      %s29 = sphi 0, %s28
      %s45 = sphi 0, %s29
      %s49 = sphi 0, %s49
      %s51 = sphi 0, %s49
      %s52 = sphi 0, %s51
      %s66 = sphi 0, %s52
      %s70 = sphi 0, %s70
      %s72 = sphi 0, %s70
      %s73 = sphi 0, %s72
      %s87 = sphi 0, %s73
      %s91 = sphi 0, %s91
      %s93 = sphi 0, %s91
      %s94 = sphi 0, %s93
      %s108 = sphi 0, %s94
      %s112 = sphi 0, %s112
      %s114 = sphi 0, %s112
      %s115 = sphi 0, %s114
      %s129 = sphi 0, %s115
      %s135 = sphi 0, %s137
      %s138 = sphi 0, %s135
      %s139 = sphi 0, %s138
      %s155 = sphi 0, %s139
    $region4: #{keypoint_rcnn_predictor_forward.1} parent=1 // loop_header_branch
      %18 = sbr.rel (%p16) target = $region8
    $region5: #{keypoint_rcnn_predictor_forward.1} parent=1 // loop_body
      %s20 = ssub.s32 %s15, 1
      %s21 = ssub.s32 %s15, 2
      %s22 = sadd.s32 %s15, 1
      %s23 = ssub.s32 %s15, %s22
      %p24 = scmp.eq.s32.totalorder %s23, 0
      %s26 = sadd.s32 %s25, 1
      %s27 = scalar_select %p24, %s25, %s26
      %p30 = pneg %p24
      %p31 = scmp.eq.s32.totalorder %s15, 1
      %p32 = por %p30, %p31
      %p33 = scmp.ne.s32.totalorder %s25, %s28
      %p34 = scmp.eq.s32.totalorder %s15, 0
      %p35 = por %p33, %p34
      %p36 = scmp.ne.s32.totalorder %s25, %s28
      %p37 = scmp.eq.s32.totalorder %s20, 1
      %p38 = por %p36, %p37
      %p39 = scmp.ne.s32.totalorder %s28, %s29
      %p40 = scmp.eq.s32.totalorder %s20, 0
      %p41 = por %p39, %p40
      %p42 = scmp.ne.s32.totalorder %s28, %s29
      %p43 = scmp.eq.s32.totalorder %s21, 1
      %p44 = por %p42, %p43
      %p46 = scmp.ne.s32.totalorder %s29, %s45
      %p47 = scmp.eq.s32.totalorder %s21, 0
      %p48 = por %p46, %p47
      %s50 = sadd.s32 %s49, 1
      %p53 = scmp.eq.s32.totalorder %s15, 1
      %p54 = scmp.ne.s32.totalorder %s49, %s51
      %p55 = scmp.eq.s32.totalorder %s15, 0
      %p56 = por %p54, %p55
      %p57 = scmp.ne.s32.totalorder %s49, %s51
      %p58 = scmp.eq.s32.totalorder %s20, 1
      %p59 = por %p57, %p58
      %p60 = scmp.ne.s32.totalorder %s51, %s52
      %p61 = scmp.eq.s32.totalorder %s20, 0
      %p62 = por %p60, %p61
      %p63 = scmp.ne.s32.totalorder %s51, %s52
      %p64 = scmp.eq.s32.totalorder %s21, 1
      %p65 = por %p63, %p64
      %p67 = scmp.ne.s32.totalorder %s52, %s66
      %p68 = scmp.eq.s32.totalorder %s21, 0
      %p69 = por %p67, %p68
      %s71 = sadd.s32 %s70, 1
      %p74 = scmp.eq.s32.totalorder %s15, 1
      %p75 = scmp.ne.s32.totalorder %s70, %s72
      %p76 = scmp.eq.s32.totalorder %s15, 0
      %p77 = por %p75, %p76
      %p78 = scmp.ne.s32.totalorder %s70, %s72
      %p79 = scmp.eq.s32.totalorder %s20, 1
      %p80 = por %p78, %p79
      %p81 = scmp.ne.s32.totalorder %s72, %s73
      %p82 = scmp.eq.s32.totalorder %s20, 0
      %p83 = por %p81, %p82
      %p84 = scmp.ne.s32.totalorder %s72, %s73
      %p85 = scmp.eq.s32.totalorder %s21, 1
      %p86 = por %p84, %p85
      %p88 = scmp.ne.s32.totalorder %s73, %s87
      %p89 = scmp.eq.s32.totalorder %s21, 0
      %p90 = por %p88, %p89
      %s92 = sadd.s32 %s91, 1
      %p95 = scmp.eq.s32.totalorder %s15, 1
      %p96 = scmp.ne.s32.totalorder %s91, %s93
      %p97 = scmp.eq.s32.totalorder %s15, 0
      %p98 = por %p96, %p97
      %p99 = scmp.ne.s32.totalorder %s91, %s93
      %p100 = scmp.eq.s32.totalorder %s20, 1
      %p101 = por %p99, %p100
      %p102 = scmp.ne.s32.totalorder %s93, %s94
      %p103 = scmp.eq.s32.totalorder %s20, 0
      %p104 = por %p102, %p103
      %p105 = scmp.ne.s32.totalorder %s93, %s94
      %p106 = scmp.eq.s32.totalorder %s21, 1
      %p107 = por %p105, %p106
      %p109 = scmp.ne.s32.totalorder %s94, %s108
      %p110 = scmp.eq.s32.totalorder %s21, 0
      %p111 = por %p109, %p110
      %s113 = sadd.s32 %s112, 1
      %p116 = scmp.eq.s32.totalorder %s15, 1
      %p117 = scmp.ne.s32.totalorder %s112, %s114
      %p118 = scmp.eq.s32.totalorder %s15, 0
      %p119 = por %p117, %p118
      %p120 = scmp.ne.s32.totalorder %s112, %s114
      %p121 = scmp.eq.s32.totalorder %s20, 1
      %p122 = por %p120, %p121
      %p123 = scmp.ne.s32.totalorder %s114, %s115
      %p124 = scmp.eq.s32.totalorder %s20, 0
      %p125 = por %p123, %p124
      %p126 = scmp.ne.s32.totalorder %s114, %s115
      %p127 = scmp.eq.s32.totalorder %s21, 1
      %p128 = por %p126, %p127
      %p130 = scmp.ne.s32.totalorder %s115, %s129
      %p131 = scmp.eq.s32.totalorder %s21, 0
      %p132 = por %p130, %p131
      %s133 = ssub.s32 %s15, %s22
      %p134 = scmp.eq.s32.totalorder %s133, 0
      %s136 = sadd.s32 %s135, 1
      %s137 = scalar_select %p134, %s135, %s136
      %p140 = pneg %p134
      %p141 = scmp.eq.s32.totalorder %s15, 1
      %p142 = por %p140, %p141
      %p143 = scmp.ne.s32.totalorder %s135, %s138
      %p144 = scmp.eq.s32.totalorder %s15, 0
      %p145 = por %p143, %p144
      %p146 = scmp.ne.s32.totalorder %s135, %s138
      %p147 = scmp.eq.s32.totalorder %s20, 1
      %p148 = por %p146, %p147
      %p149 = scmp.ne.s32.totalorder %s138, %s139
      %p150 = scmp.eq.s32.totalorder %s20, 0
      %p151 = por %p149, %p150
      %p152 = scmp.ne.s32.totalorder %s138, %s139
      %p153 = scmp.eq.s32.totalorder %s21, 1
      %p154 = por %p152, %p153
      %p156 = scmp.ne.s32.totalorder %s139, %s155
      %p157 = scmp.eq.s32.totalorder %s21, 0
      %p158 = por %p156, %p157
      %p159 = scmp.le.s32.totalorder 1, %s15
      %p160 = scmp.lt.s32.totalorder %s15, 3
      %p161 = pnand %p159, %p160
      %p162 = pneg %p161
      // Predicated region
      $region9: #{keypoint_rcnn_predictor_forward.1} parent=5 // pred_check
        _
      $region10: #{keypoint_rcnn_predictor_forward.1} parent=5 // pred_check_branch
        %164 = sbr.rel (%p161) target = $region12
      $region11: #{keypoint_rcnn_predictor_forward.1} parent=5 // pred_region
        %s165 = ssub.s32 %s15, 1
        // Predicated region
        $region13: #{keypoint_rcnn_predictor_forward.1} parent=11 // pred_check
          %p166 = pneg %p62
        $region14: #{keypoint_rcnn_predictor_forward.1} parent=11 // pred_check_branch
          %168 = sbr.rel (%p166) target = $region16
        $region15: #{keypoint_rcnn_predictor_forward.1} parent=11 // pred_region
          _
        $region16: #{keypoint_rcnn_predictor_forward.1} parent=11 // pred_fallthru
          _
        // Predicated region
        $region17: #{keypoint_rcnn_predictor_forward.1} parent=11 // pred_check
          %p169 = pneg %p83
        $region18: #{keypoint_rcnn_predictor_forward.1} parent=11 // pred_check_branch
          %171 = sbr.rel (%p169) target = $region20
        $region19: #{keypoint_rcnn_predictor_forward.1} parent=11 // pred_region
          _
        $region20: #{keypoint_rcnn_predictor_forward.1} parent=11 // pred_fallthru
          _
        // Predicated region
        $region21: #{keypoint_rcnn_predictor_forward.1} parent=11 // pred_check
          %p172 = pneg %p104
        $region22: #{keypoint_rcnn_predictor_forward.1} parent=11 // pred_check_branch
          %174 = sbr.rel (%p172) target = $region24
        $region23: #{keypoint_rcnn_predictor_forward.1} parent=11 // pred_region
          %s176 = ssub.s32 32768, 32768
          %177 = vsyncadd [#allocation3], %s176
          %s178 = sshll.u32 [#allocation2], 4
          %s179 = int_to_ptr.vmem [resolvable:$true] %s178
          %184 = dma.hbm_to_vmem [thread:$0]  %s3, 32768, %s179, [#allocation3], 512, 512, 32
        $region24: #{keypoint_rcnn_predictor_forward.1} parent=11 // pred_fallthru
          _
        // Predicated region
        $region25: #{keypoint_rcnn_predictor_forward.1} parent=11 // pred_check
          %p185 = pneg %p125
        $region26: #{keypoint_rcnn_predictor_forward.1} parent=11 // pred_check_branch
          %187 = sbr.rel (%p185) target = $region28
        $region27: #{keypoint_rcnn_predictor_forward.1} parent=11 // pred_region
          _
        $region28: #{keypoint_rcnn_predictor_forward.1} parent=11 // pred_fallthru
          _
      $region12: #{keypoint_rcnn_predictor_forward.1} parent=5 // pred_fallthru
        _
      %p188 = scmp.lt.s32.totalorder %s15, 2
      // Predicated region
      $region29: #{keypoint_rcnn_predictor_forward.1} parent=5 // pred_check
        %p189 = pneg %p188
      $region30: #{keypoint_rcnn_predictor_forward.1} parent=5 // pred_check_branch
        %191 = sbr.rel (%p189) target = $region32
      $region31: #{keypoint_rcnn_predictor_forward.1} parent=5 // pred_region
        // Predicated region
        $region33: #{keypoint_rcnn_predictor_forward.1} parent=31 // pred_check
          %p192 = pneg %p35
        $region34: #{keypoint_rcnn_predictor_forward.1} parent=31 // pred_check_branch
          %194 = sbr.rel (%p192) target = $region36
        $region35: #{keypoint_rcnn_predictor_forward.1} parent=31 // pred_region
          %p195 = scmp.lt.s32.totalorder %s15, 1
          %s196 = scalar_select %p195, %s15, 1
          %s197 = smul.addr %s196, 2
          %s198 = smul.addr %s197, 4
          %s199 = scalar_lea.vmem %s0, %s198
        $region36: #{keypoint_rcnn_predictor_forward.1} parent=31 // pred_fallthru
          _
      $region32: #{keypoint_rcnn_predictor_forward.1} parent=5 // pred_fallthru
        _
      %p200 = scmp.le.s32.totalorder 1, %s15
      %p201 = scmp.lt.s32.totalorder %s15, 3
      %p202 = pnand %p200, %p201
      %p203 = pneg %p202
      // Predicated region
      $region37: #{keypoint_rcnn_predictor_forward.1} parent=5 // pred_check
        _
      $region38: #{keypoint_rcnn_predictor_forward.1} parent=5 // pred_check_branch
        %205 = sbr.rel (%p202) target = $region40
      $region39: #{keypoint_rcnn_predictor_forward.1} parent=5 // pred_region
        %s206 = ssub.s32 %s15, 1
        // Predicated region
        $region41: #{keypoint_rcnn_predictor_forward.1} parent=39 // pred_check
          %p207 = pneg %p104
        $region42: #{keypoint_rcnn_predictor_forward.1} parent=39 // pred_check_branch
          %209 = sbr.rel (%p207) target = $region44
        $region43: #{keypoint_rcnn_predictor_forward.1} parent=39 // pred_region
          %210 = dma.done [#allocation3], 32768
        $region44: #{keypoint_rcnn_predictor_forward.1} parent=39 // pred_fallthru
          _
        %p211 = scmp.lt.s32.totalorder %s20, 1
        %s212 = scalar_select %p211, %s20, 1
        %s213 = smul.addr %s212, 2
        %s214 = smul.addr %s213, 4
        %s215 = scalar_lea.vmem %s0, %s214
        %p216 = pneg %p41
        %p217 = pneg %p38
        %p218 = pneg %p62
        %p219 = pneg %p59
        %p220 = pneg %p83
        %p221 = pneg %p80
        %p222 = pneg %p104
        %p223 = pneg %p101
        %p224 = pneg %p125
        %p225 = pneg %p122
        %p226 = pneg %p151
        %p227 = pneg %p148
        %s228 = sand.u32 %s138, 1
        %s229 = scalar_lea.sflag [#allocation4], %s228
        %s230 = sand.u32 %s138, 1
        %s231 = smul.addr %s230, 512
        %s232 = scalar_lea.vmem [#allocation5], %s231
        %p233 = scmp.lt.s32.totalorder %s20, 1
        %s234 = scalar_select %p233, %s20, 1
        %s235 = smul.addr %s234, 2
        %s236 = smul.addr %s235, 4
        %s237 = scalar_lea.vmem %s0, %s236
        %v238 = vld [vmem:[%s237] sm:$0xff]
        %v239 = vld [vmem:[%s1] sm:$0xff]
        %v240 = vld [vmem:[%s1 + $0x8] sm:$0xff]
        %v241 = vld [vmem:[%s1 + $0x10] sm:$0xff]
        %v242 = vld [vmem:[%s1 + $0x18] sm:$0xff]
        %v243 = vld [vmem:[%s1 + $0x20] sm:$0xff]
        %v244 = vld [vmem:[%s1 + $0x28] sm:$0xff]
        %v245 = vld [vmem:[%s1 + $0x30] sm:$0xff]
        %v246 = vld [vmem:[%s1 + $0x38] sm:$0xff]
        %v247 = vld [vmem:[%s1 + $0x40] sm:$0xff]
        %v248 = vld [vmem:[%s1 + $0x48] sm:$0xff]
        %v249 = vld [vmem:[%s1 + $0x50] sm:$0xff]
        %v250 = vld [vmem:[%s1 + $0x58] sm:$0xff]
        %v251 = vld [vmem:[%s1 + $0x60] sm:$0xff]
        %v252 = vld [vmem:[%s1 + $0x68] sm:$0xff]
        %v253 = vld [vmem:[%s1 + $0x70] sm:$0xff]
        %v254 = vld [vmem:[%s1 + $0x78] sm:$0xff]
        %v256 = vcombine.high %v238, %v238
        %vm257 = vcmask 31744
        %v259 = vsel %vm257, %v239, 0
        %v262 = vsel %vm257, %v240, 0
        %v265 = vsel %vm257, %v241, 0
        %v268 = vsel %vm257, %v242, 0
        %v271 = vsel %vm257, %v243, 0
        %v274 = vsel %vm257, %v244, 0
        %v277 = vsel %vm257, %v245, 0
        %v280 = vsel %vm257, %v246, 0
        %v283 = vsel %vm257, %v247, 0
        %v286 = vsel %vm257, %v248, 0
        %v289 = vsel %vm257, %v249, 0
        %v292 = vsel %vm257, %v250, 0
        %v295 = vsel %vm257, %v251, 0
        %v298 = vsel %vm257, %v252, 0
        %v301 = vsel %vm257, %v253, 0
        %v304 = vsel %vm257, %v254, 0
        %vm306 = vcmask 1043456
        %v307 = vsel %vm306, %v238, 0
        %v309 = vsel %vm306, %v256, 0
        %311 = vmatprep.subr.mxu0 %v309
        %312 = vmatpush1.msra.mxu0 %v307
        %313 = vmatprep.subr.mxu0 0.0
        %314 = vmatpush1.msra.mxu0 0.0
        %315 = vmatprep.subr.mxu0 0.0
        %316 = vmatpush1.msra.mxu0 0.0
        %317 = vmatprep.subr.mxu0 0.0
        %318 = vmatpush1.msra.mxu0 0.0
        %319 = vmatprep.subr.mxu0 0.0
        %320 = vmatpush1.msra.mxu0 0.0
        %321 = vmatprep.subr.mxu0 0.0
        %322 = vmatpush1.msra.mxu0 0.0
        %323 = vmatprep.subr.mxu0 0.0
        %324 = vmatpush1.msra.mxu0 0.0
        %325 = vmatprep.subr.mxu0 0.0
        %326 = vmatpush1.msra.mxu0 0.0
        %327 = vmatprep.subr.mxu0 0.0
        %328 = vmatpush1.msra.mxu0 0.0
        %329 = vmatprep.subr.mxu0 0.0
        %330 = vmatpush1.msra.mxu0 0.0
        %331 = vmatprep.subr.mxu0 0.0
        %332 = vmatpush1.msra.mxu0 0.0
        %333 = vmatprep.subr.mxu0 0.0
        %334 = vmatpush1.msra.mxu0 0.0
        %335 = vmatprep.subr.mxu0 0.0
        %336 = vmatpush1.msra.mxu0 0.0
        %337 = vmatprep.subr.mxu0 0.0
        %338 = vmatpush1.msra.mxu0 0.0
        %339 = vmatprep.subr.mxu0 0.0
        %340 = vmatpush1.msra.mxu0 0.0
        %341 = vmatprep.subr.mxu0 0.0
        %342 = vmatpush1.msra.mxu0 0.0
        %343 = vmatprep.subr.mxu0 0.0
        %344 = vmatpush1.msra.mxu0 0.0
        %345 = vmatprep.subr.mxu0 0.0
        %346 = vmatpush1.msra.mxu0 0.0
        %347 = vmatprep.subr.mxu0 0.0
        %348 = vmatpush1.msra.mxu0 0.0
        %349 = vmatprep.subr.mxu0 0.0
        %350 = vmatpush1.msra.mxu0 0.0
        %351 = vmatprep.subr.mxu0 0.0
        %352 = vmatpush1.msra.mxu0 0.0
        %353 = vmatprep.subr.mxu0 0.0
        %354 = vmatpush1.msra.mxu0 0.0
        %355 = vmatprep.subr.mxu0 0.0
        %356 = vmatpush1.msra.mxu0 0.0
        %357 = vmatprep.subr.mxu0 0.0
        %358 = vmatpush1.msra.mxu0 0.0
        %359 = vmatprep.subr.mxu0 0.0
        %360 = vmatpush1.msra.mxu0 0.0
        %361 = vmatprep.subr.mxu0 0.0
        %362 = vmatpush1.msra.mxu0 0.0
        %363 = vmatprep.subr.mxu0 0.0
        %364 = vmatpush1.msra.mxu0 0.0
        %365 = vmatprep.subr.mxu0 0.0
        %366 = vmatpush1.msra.mxu0 0.0
        %367 = vmatprep.subr.mxu0 0.0
        %368 = vmatpush1.msra.mxu0 0.0
        %369 = vmatprep.subr.mxu0 0.0
        %370 = vmatpush1.msra.mxu0 0.0
        %371 = vmatprep.subr.mxu0 0.0
        %372 = vmatpush1.msra.mxu0 0.0
        %373 = vmatprep.subr.mxu0 0.0
        %374 = vmatpush1.msra.mxu0 0.0
        %375 = vmatprep.mubr.f32.mxu0 0.0
        %376 = vmatmul.mubr.f32.gmra.mrb[0].mxu0 %v259
        %v377 = vpop.f32.mrb[0].mxu0
        %v378 = vadd.f32 0.0, %v377
        %v379 = vpop.f32.mrb[0].mxu0
        %v380 = vadd.f32 0.0, %v379
        %381 = vmatprep.mubr.f32.mxu0 0.0
        %382 = vmatmul.mubr.f32.gmra.mrb[0].mxu0 %v262
        %v383 = vpop.f32.mrb[0].mxu0
        %v384 = vadd.f32 0.0, %v383
        %v385 = vpop.f32.mrb[0].mxu0
        %v386 = vadd.f32 0.0, %v385
        %387 = vmatprep.mubr.f32.mxu0 0.0
        %388 = vmatmul.mubr.f32.gmra.mrb[0].mxu0 %v265
        %v389 = vpop.f32.mrb[0].mxu0
        %v390 = vadd.f32 0.0, %v389
        %v391 = vpop.f32.mrb[0].mxu0
        %v392 = vadd.f32 0.0, %v391
        %393 = vmatprep.mubr.f32.mxu0 0.0
        %394 = vmatmul.mubr.f32.gmra.mrb[0].mxu0 %v268
        %v395 = vpop.f32.mrb[0].mxu0
        %v396 = vadd.f32 0.0, %v395
        %v397 = vpop.f32.mrb[0].mxu0
        %v398 = vadd.f32 0.0, %v397
        %399 = vmatprep.mubr.f32.mxu0 0.0
        %400 = vmatmul.mubr.f32.gmra.mrb[0].mxu0 %v271
        %v401 = vpop.f32.mrb[0].mxu0
        %v402 = vadd.f32 0.0, %v401
        %v403 = vpop.f32.mrb[0].mxu0
        %v404 = vadd.f32 0.0, %v403
        %405 = vmatprep.mubr.f32.mxu0 0.0
        %406 = vmatmul.mubr.f32.gmra.mrb[0].mxu0 %v274
        %v407 = vpop.f32.mrb[0].mxu0
        %v408 = vadd.f32 0.0, %v407
        %v409 = vpop.f32.mrb[0].mxu0
        %v410 = vadd.f32 0.0, %v409
        %411 = vmatprep.mubr.f32.mxu0 0.0
        %412 = vmatmul.mubr.f32.gmra.mrb[0].mxu0 %v277
        %v413 = vpop.f32.mrb[0].mxu0
        %v414 = vadd.f32 0.0, %v413
        %v415 = vpop.f32.mrb[0].mxu0
        %v416 = vadd.f32 0.0, %v415
        %417 = vmatprep.mubr.f32.mxu0 0.0
        %418 = vmatmul.mubr.f32.gmra.mrb[0].mxu0 %v280
        %v419 = vpop.f32.mrb[0].mxu0
        %v420 = vadd.f32 0.0, %v419
        %v421 = vpop.f32.mrb[0].mxu0
        %v422 = vadd.f32 0.0, %v421
        %423 = vmatprep.mubr.f32.mxu0 0.0
        %424 = vmatmul.mubr.f32.gmra.mrb[0].mxu0 %v283
        %v425 = vpop.f32.mrb[0].mxu0
        %v426 = vadd.f32 0.0, %v425
        %v427 = vpop.f32.mrb[0].mxu0
        %v428 = vadd.f32 0.0, %v427
        %429 = vmatprep.mubr.f32.mxu0 0.0
        %430 = vmatmul.mubr.f32.gmra.mrb[0].mxu0 %v286
        %v431 = vpop.f32.mrb[0].mxu0
        %v432 = vadd.f32 0.0, %v431
        %v433 = vpop.f32.mrb[0].mxu0
        %v434 = vadd.f32 0.0, %v433
        %435 = vmatprep.mubr.f32.mxu0 0.0
        %436 = vmatmul.mubr.f32.gmra.mrb[0].mxu0 %v289
        %v437 = vpop.f32.mrb[0].mxu0
        %v438 = vadd.f32 0.0, %v437
        %v439 = vpop.f32.mrb[0].mxu0
        %v440 = vadd.f32 0.0, %v439
        %441 = vmatprep.mubr.f32.mxu0 0.0
        %442 = vmatmul.mubr.f32.gmra.mrb[0].mxu0 %v292
        %v443 = vpop.f32.mrb[0].mxu0
        %v444 = vadd.f32 0.0, %v443
        %v445 = vpop.f32.mrb[0].mxu0
        %v446 = vadd.f32 0.0, %v445
        %447 = vmatprep.mubr.f32.mxu0 0.0
        %448 = vmatmul.mubr.f32.gmra.mrb[0].mxu0 %v295
        %v449 = vpop.f32.mrb[0].mxu0
        %v450 = vadd.f32 0.0, %v449
        %v451 = vpop.f32.mrb[0].mxu0
        %v452 = vadd.f32 0.0, %v451
        %453 = vmatprep.mubr.f32.mxu0 0.0
        %454 = vmatmul.mubr.f32.gmra.mrb[0].mxu0 %v298
        %v455 = vpop.f32.mrb[0].mxu0
        %v456 = vadd.f32 0.0, %v455
        %v457 = vpop.f32.mrb[0].mxu0
        %v458 = vadd.f32 0.0, %v457
        %459 = vmatprep.mubr.f32.mxu0 0.0
        %460 = vmatmul.mubr.f32.gmra.mrb[0].mxu0 %v301
        %v461 = vpop.f32.mrb[0].mxu0
        %v462 = vadd.f32 0.0, %v461
        %v463 = vpop.f32.mrb[0].mxu0
        %v464 = vadd.f32 0.0, %v463
        %465 = vmatprep.mubr.f32.mxu0 0.0
        %466 = vmatmul.mubr.f32.gmra.mrb[0].mxu0 %v304
        %v467 = vpop.f32.mrb[0].mxu0
        %v468 = vadd.f32 0.0, %v467
        %v469 = vpop.f32.mrb[0].mxu0
        %v470 = vadd.f32 0.0, %v469
        %471 = vdwg.mxu0
        %472 = vxpose.xlu0.b32.start [1/16] %v378, 128
        %473 = vxpose.xlu0.b32.cont [2/16] %v384, 128
        %474 = vxpose.xlu0.b32.cont [3/16] %v390, 128
        %475 = vxpose.xlu0.b32.cont [4/16] %v396, 128
        %476 = vxpose.xlu0.b32.cont [5/16] %v402, 128
        %477 = vxpose.xlu0.b32.cont [6/16] %v408, 128
        %478 = vxpose.xlu0.b32.cont [7/16] %v414, 128
        %479 = vxpose.xlu0.b32.cont [8/16] %v420, 128
        %480 = vxpose.xlu0.b32.cont [9/16] %v426, 128
        %481 = vxpose.xlu0.b32.cont [10/16] %v432, 128
        %482 = vxpose.xlu0.b32.cont [11/16] %v438, 128
        %483 = vxpose.xlu0.b32.cont [12/16] %v444, 128
        %484 = vxpose.xlu0.b32.cont [13/16] %v450, 128
        %485 = vxpose.xlu0.b32.cont [14/16] %v456, 128
        %486 = vxpose.xlu0.b32.cont [15/16] %v462, 128
        %487 = vxpose.xlu0.b32.end [16/16] %v468, 128
        %v488 = vpop.trf.xlu0
        %v489 = vpop.trf.xlu0
        %v490 = vpop.trf.xlu0
        %v491 = vpop.trf.xlu0
        %v492 = vpop.trf.xlu0
        %v493 = vpop.trf.xlu0
        %v494 = vpop.trf.xlu0
        %v495 = vpop.trf.xlu0
        %v496 = vpop.trf.xlu0
        %v497 = vpop.trf.xlu0
        %v498 = vpop.trf.xlu0
        %v499 = vpop.trf.xlu0
        %v500 = vpop.trf.xlu0
        %v501 = vpop.trf.xlu0
        %v502 = vpop.trf.xlu0
        %v503 = vpop.trf.xlu0
        %504 = vxpose.xlu0.b32.start [1/16] %v380, 128
        %505 = vxpose.xlu0.b32.cont [2/16] %v386, 128
        %506 = vxpose.xlu0.b32.cont [3/16] %v392, 128
        %507 = vxpose.xlu0.b32.cont [4/16] %v398, 128
        %508 = vxpose.xlu0.b32.cont [5/16] %v404, 128
        %509 = vxpose.xlu0.b32.cont [6/16] %v410, 128
        %510 = vxpose.xlu0.b32.cont [7/16] %v416, 128
        %511 = vxpose.xlu0.b32.cont [8/16] %v422, 128
        %512 = vxpose.xlu0.b32.cont [9/16] %v428, 128
        %513 = vxpose.xlu0.b32.cont [10/16] %v434, 128
        %514 = vxpose.xlu0.b32.cont [11/16] %v440, 128
        %515 = vxpose.xlu0.b32.cont [12/16] %v446, 128
        %516 = vxpose.xlu0.b32.cont [13/16] %v452, 128
        %517 = vxpose.xlu0.b32.cont [14/16] %v458, 128
        %518 = vxpose.xlu0.b32.cont [15/16] %v464, 128
        %519 = vxpose.xlu0.b32.end [16/16] %v470, 128
        %v520 = vpop.trf.xlu0
        %v521 = vpop.trf.xlu0
        %v522 = vpop.trf.xlu0
        %v523 = vpop.trf.xlu0
        %v524 = vpop.trf.xlu0
        %v525 = vpop.trf.xlu0
        %v526 = vpop.trf.xlu0
        %v527 = vpop.trf.xlu0
        %v528 = vpop.trf.xlu0
        %v529 = vpop.trf.xlu0
        %v530 = vpop.trf.xlu0
        %v531 = vpop.trf.xlu0
        %v532 = vpop.trf.xlu0
        %v533 = vpop.trf.xlu0
        %v534 = vpop.trf.xlu0
        %v535 = vpop.trf.xlu0
        %536 = vxpose.xlu0.b32.start [1/16] %v488, 128
        %537 = vxpose.xlu0.b32.cont [2/16] %v489, 128
        %538 = vxpose.xlu0.b32.cont [3/16] 0.0, 128
        %539 = vxpose.xlu0.b32.cont [4/16] 0.0, 128
        %540 = vxpose.xlu0.b32.cont [5/16] 0.0, 128
        %541 = vxpose.xlu0.b32.cont [6/16] 0.0, 128
        %542 = vxpose.xlu0.b32.cont [7/16] 0.0, 128
        %543 = vxpose.xlu0.b32.cont [8/16] 0.0, 128
        %544 = vxpose.xlu0.b32.cont [9/16] 0.0, 128
        %545 = vxpose.xlu0.b32.cont [10/16] 0.0, 128
        %546 = vxpose.xlu0.b32.cont [11/16] 0.0, 128
        %547 = vxpose.xlu0.b32.cont [12/16] 0.0, 128
        %548 = vxpose.xlu0.b32.cont [13/16] 0.0, 128
        %549 = vxpose.xlu0.b32.cont [14/16] 0.0, 128
        %550 = vxpose.xlu0.b32.cont [15/16] 0.0, 128
        %551 = vxpose.xlu0.b32.end [16/16] 0.0, 128
        %v552 = vpop.trf.xlu0
        %v553 = vpop.trf.xlu0
        %v554 = vpop.trf.xlu0
        %v555 = vpop.trf.xlu0
        %v556 = vpop.trf.xlu0
        %v557 = vpop.trf.xlu0
        %v558 = vpop.trf.xlu0
        %v559 = vpop.trf.xlu0
        %v560 = vpop.trf.xlu0
        %v561 = vpop.trf.xlu0
        %v562 = vpop.trf.xlu0
        %v563 = vpop.trf.xlu0
        %v564 = vpop.trf.xlu0
        %v565 = vpop.trf.xlu0
        %v566 = vpop.trf.xlu0
        %v567 = vpop.trf.xlu0
        %568 = vxpose.xlu0.b32.start [1/16] %v490, 128
        %569 = vxpose.xlu0.b32.cont [2/16] %v491, 128
        %570 = vxpose.xlu0.b32.cont [3/16] 0.0, 128
        %571 = vxpose.xlu0.b32.cont [4/16] 0.0, 128
        %572 = vxpose.xlu0.b32.cont [5/16] 0.0, 128
        %573 = vxpose.xlu0.b32.cont [6/16] 0.0, 128
        %574 = vxpose.xlu0.b32.cont [7/16] 0.0, 128
        %575 = vxpose.xlu0.b32.cont [8/16] 0.0, 128
        %576 = vxpose.xlu0.b32.cont [9/16] 0.0, 128
        %577 = vxpose.xlu0.b32.cont [10/16] 0.0, 128
        %578 = vxpose.xlu0.b32.cont [11/16] 0.0, 128
        %579 = vxpose.xlu0.b32.cont [12/16] 0.0, 128
        %580 = vxpose.xlu0.b32.cont [13/16] 0.0, 128
        %581 = vxpose.xlu0.b32.cont [14/16] 0.0, 128
        %582 = vxpose.xlu0.b32.cont [15/16] 0.0, 128
        %583 = vxpose.xlu0.b32.end [16/16] 0.0, 128
        %v584 = vpop.trf.xlu0
        %v585 = vpop.trf.xlu0
        %v586 = vpop.trf.xlu0
        %v587 = vpop.trf.xlu0
        %v588 = vpop.trf.xlu0
        %v589 = vpop.trf.xlu0
        %v590 = vpop.trf.xlu0
        %v591 = vpop.trf.xlu0
        %v592 = vpop.trf.xlu0
        %v593 = vpop.trf.xlu0
        %v594 = vpop.trf.xlu0
        %v595 = vpop.trf.xlu0
        %v596 = vpop.trf.xlu0
        %v597 = vpop.trf.xlu0
        %v598 = vpop.trf.xlu0
        %v599 = vpop.trf.xlu0
        %600 = vxpose.xlu0.b32.start [1/16] %v492, 128
        %601 = vxpose.xlu0.b32.cont [2/16] %v493, 128
        %602 = vxpose.xlu0.b32.cont [3/16] 0.0, 128
        %603 = vxpose.xlu0.b32.cont [4/16] 0.0, 128
        %604 = vxpose.xlu0.b32.cont [5/16] 0.0, 128
        %605 = vxpose.xlu0.b32.cont [6/16] 0.0, 128
        %606 = vxpose.xlu0.b32.cont [7/16] 0.0, 128
        %607 = vxpose.xlu0.b32.cont [8/16] 0.0, 128
        %608 = vxpose.xlu0.b32.cont [9/16] 0.0, 128
        %609 = vxpose.xlu0.b32.cont [10/16] 0.0, 128
        %610 = vxpose.xlu0.b32.cont [11/16] 0.0, 128
        %611 = vxpose.xlu0.b32.cont [12/16] 0.0, 128
        %612 = vxpose.xlu0.b32.cont [13/16] 0.0, 128
        %613 = vxpose.xlu0.b32.cont [14/16] 0.0, 128
        %614 = vxpose.xlu0.b32.cont [15/16] 0.0, 128
        %615 = vxpose.xlu0.b32.end [16/16] 0.0, 128
        %v616 = vpop.trf.xlu0
        %v617 = vpop.trf.xlu0
        %v618 = vpop.trf.xlu0
        %v619 = vpop.trf.xlu0
        %v620 = vpop.trf.xlu0
        %v621 = vpop.trf.xlu0
        %v622 = vpop.trf.xlu0
        %v623 = vpop.trf.xlu0
        %v624 = vpop.trf.xlu0
        %v625 = vpop.trf.xlu0
        %v626 = vpop.trf.xlu0
        %v627 = vpop.trf.xlu0
        %v628 = vpop.trf.xlu0
        %v629 = vpop.trf.xlu0
        %v630 = vpop.trf.xlu0
        %v631 = vpop.trf.xlu0
        %632 = vxpose.xlu0.b32.start [1/16] %v494, 128
        %633 = vxpose.xlu0.b32.cont [2/16] %v495, 128
        %634 = vxpose.xlu0.b32.cont [3/16] 0.0, 128
        %635 = vxpose.xlu0.b32.cont [4/16] 0.0, 128
        %636 = vxpose.xlu0.b32.cont [5/16] 0.0, 128
        %637 = vxpose.xlu0.b32.cont [6/16] 0.0, 128
        %638 = vxpose.xlu0.b32.cont [7/16] 0.0, 128
        %639 = vxpose.xlu0.b32.cont [8/16] 0.0, 128
        %640 = vxpose.xlu0.b32.cont [9/16] 0.0, 128
        %641 = vxpose.xlu0.b32.cont [10/16] 0.0, 128
        %642 = vxpose.xlu0.b32.cont [11/16] 0.0, 128
        %643 = vxpose.xlu0.b32.cont [12/16] 0.0, 128
        %644 = vxpose.xlu0.b32.cont [13/16] 0.0, 128
        %645 = vxpose.xlu0.b32.cont [14/16] 0.0, 128
        %646 = vxpose.xlu0.b32.cont [15/16] 0.0, 128
        %647 = vxpose.xlu0.b32.end [16/16] 0.0, 128
        %v648 = vpop.trf.xlu0
        %v649 = vpop.trf.xlu0
        %v650 = vpop.trf.xlu0
        %v651 = vpop.trf.xlu0
        %v652 = vpop.trf.xlu0
        %v653 = vpop.trf.xlu0
        %v654 = vpop.trf.xlu0
        %v655 = vpop.trf.xlu0
        %v656 = vpop.trf.xlu0
        %v657 = vpop.trf.xlu0
        %v658 = vpop.trf.xlu0
        %v659 = vpop.trf.xlu0
        %v660 = vpop.trf.xlu0
        %v661 = vpop.trf.xlu0
        %v662 = vpop.trf.xlu0
        %v663 = vpop.trf.xlu0
        %664 = vxpose.xlu0.b32.start [1/16] %v496, 128
        %665 = vxpose.xlu0.b32.cont [2/16] %v497, 128
        %666 = vxpose.xlu0.b32.cont [3/16] 0.0, 128
        %667 = vxpose.xlu0.b32.cont [4/16] 0.0, 128
        %668 = vxpose.xlu0.b32.cont [5/16] 0.0, 128
        %669 = vxpose.xlu0.b32.cont [6/16] 0.0, 128
        %670 = vxpose.xlu0.b32.cont [7/16] 0.0, 128
        %671 = vxpose.xlu0.b32.cont [8/16] 0.0, 128
        %672 = vxpose.xlu0.b32.cont [9/16] 0.0, 128
        %673 = vxpose.xlu0.b32.cont [10/16] 0.0, 128
        %674 = vxpose.xlu0.b32.cont [11/16] 0.0, 128
        %675 = vxpose.xlu0.b32.cont [12/16] 0.0, 128
        %676 = vxpose.xlu0.b32.cont [13/16] 0.0, 128
        %677 = vxpose.xlu0.b32.cont [14/16] 0.0, 128
        %678 = vxpose.xlu0.b32.cont [15/16] 0.0, 128
        %679 = vxpose.xlu0.b32.end [16/16] 0.0, 128
        %v680 = vpop.trf.xlu0
        %v681 = vpop.trf.xlu0
        %v682 = vpop.trf.xlu0
        %v683 = vpop.trf.xlu0
        %v684 = vpop.trf.xlu0
        %v685 = vpop.trf.xlu0
        %v686 = vpop.trf.xlu0
        %v687 = vpop.trf.xlu0
        %v688 = vpop.trf.xlu0
        %v689 = vpop.trf.xlu0
        %v690 = vpop.trf.xlu0
        %v691 = vpop.trf.xlu0
        %v692 = vpop.trf.xlu0
        %v693 = vpop.trf.xlu0
        %v694 = vpop.trf.xlu0
        %v695 = vpop.trf.xlu0
        %696 = vxpose.xlu0.b32.start [1/16] %v498, 128
        %697 = vxpose.xlu0.b32.cont [2/16] %v499, 128
        %698 = vxpose.xlu0.b32.cont [3/16] 0.0, 128
        %699 = vxpose.xlu0.b32.cont [4/16] 0.0, 128
        %700 = vxpose.xlu0.b32.cont [5/16] 0.0, 128
        %701 = vxpose.xlu0.b32.cont [6/16] 0.0, 128
        %702 = vxpose.xlu0.b32.cont [7/16] 0.0, 128
        %703 = vxpose.xlu0.b32.cont [8/16] 0.0, 128
        %704 = vxpose.xlu0.b32.cont [9/16] 0.0, 128
        %705 = vxpose.xlu0.b32.cont [10/16] 0.0, 128
        %706 = vxpose.xlu0.b32.cont [11/16] 0.0, 128
        %707 = vxpose.xlu0.b32.cont [12/16] 0.0, 128
        %708 = vxpose.xlu0.b32.cont [13/16] 0.0, 128
        %709 = vxpose.xlu0.b32.cont [14/16] 0.0, 128
        %710 = vxpose.xlu0.b32.cont [15/16] 0.0, 128
        %711 = vxpose.xlu0.b32.end [16/16] 0.0, 128
        %v712 = vpop.trf.xlu0
        %v713 = vpop.trf.xlu0
        %v714 = vpop.trf.xlu0
        %v715 = vpop.trf.xlu0
        %v716 = vpop.trf.xlu0
        %v717 = vpop.trf.xlu0
        %v718 = vpop.trf.xlu0
        %v719 = vpop.trf.xlu0
        %v720 = vpop.trf.xlu0
        %v721 = vpop.trf.xlu0
        %v722 = vpop.trf.xlu0
        %v723 = vpop.trf.xlu0
        %v724 = vpop.trf.xlu0
        %v725 = vpop.trf.xlu0
        %v726 = vpop.trf.xlu0
        %v727 = vpop.trf.xlu0
        %728 = vxpose.xlu0.b32.start [1/16] %v500, 128
        %729 = vxpose.xlu0.b32.cont [2/16] %v501, 128
        %730 = vxpose.xlu0.b32.cont [3/16] 0.0, 128
        %731 = vxpose.xlu0.b32.cont [4/16] 0.0, 128
        %732 = vxpose.xlu0.b32.cont [5/16] 0.0, 128
        %733 = vxpose.xlu0.b32.cont [6/16] 0.0, 128
        %734 = vxpose.xlu0.b32.cont [7/16] 0.0, 128
        %735 = vxpose.xlu0.b32.cont [8/16] 0.0, 128
        %736 = vxpose.xlu0.b32.cont [9/16] 0.0, 128
        %737 = vxpose.xlu0.b32.cont [10/16] 0.0, 128
        %738 = vxpose.xlu0.b32.cont [11/16] 0.0, 128
        %739 = vxpose.xlu0.b32.cont [12/16] 0.0, 128
        %740 = vxpose.xlu0.b32.cont [13/16] 0.0, 128
        %741 = vxpose.xlu0.b32.cont [14/16] 0.0, 128
        %742 = vxpose.xlu0.b32.cont [15/16] 0.0, 128
        %743 = vxpose.xlu0.b32.end [16/16] 0.0, 128
        %v744 = vpop.trf.xlu0
        %v745 = vpop.trf.xlu0
        %v746 = vpop.trf.xlu0
        %v747 = vpop.trf.xlu0
        %v748 = vpop.trf.xlu0
        %v749 = vpop.trf.xlu0
        %v750 = vpop.trf.xlu0
        %v751 = vpop.trf.xlu0
        %v752 = vpop.trf.xlu0
        %v753 = vpop.trf.xlu0
        %v754 = vpop.trf.xlu0
        %v755 = vpop.trf.xlu0
        %v756 = vpop.trf.xlu0
        %v757 = vpop.trf.xlu0
        %v758 = vpop.trf.xlu0
        %v759 = vpop.trf.xlu0
        %760 = vxpose.xlu0.b32.start [1/16] %v502, 128
        %761 = vxpose.xlu0.b32.cont [2/16] %v503, 128
        %762 = vxpose.xlu0.b32.cont [3/16] 0.0, 128
        %763 = vxpose.xlu0.b32.cont [4/16] 0.0, 128
        %764 = vxpose.xlu0.b32.cont [5/16] 0.0, 128
        %765 = vxpose.xlu0.b32.cont [6/16] 0.0, 128
        %766 = vxpose.xlu0.b32.cont [7/16] 0.0, 128
        %767 = vxpose.xlu0.b32.cont [8/16] 0.0, 128
        %768 = vxpose.xlu0.b32.cont [9/16] 0.0, 128
        %769 = vxpose.xlu0.b32.cont [10/16] 0.0, 128
        %770 = vxpose.xlu0.b32.cont [11/16] 0.0, 128
        %771 = vxpose.xlu0.b32.cont [12/16] 0.0, 128
        %772 = vxpose.xlu0.b32.cont [13/16] 0.0, 128
        %773 = vxpose.xlu0.b32.cont [14/16] 0.0, 128
        %774 = vxpose.xlu0.b32.cont [15/16] 0.0, 128
        %775 = vxpose.xlu0.b32.end [16/16] 0.0, 128
        %v776 = vpop.trf.xlu0
        %v777 = vpop.trf.xlu0
        %v778 = vpop.trf.xlu0
        %v779 = vpop.trf.xlu0
        %v780 = vpop.trf.xlu0
        %v781 = vpop.trf.xlu0
        %v782 = vpop.trf.xlu0
        %v783 = vpop.trf.xlu0
        %v784 = vpop.trf.xlu0
        %v785 = vpop.trf.xlu0
        %v786 = vpop.trf.xlu0
        %v787 = vpop.trf.xlu0
        %v788 = vpop.trf.xlu0
        %v789 = vpop.trf.xlu0
        %v790 = vpop.trf.xlu0
        %v791 = vpop.trf.xlu0
        %792 = vxpose.xlu0.b32.start [1/16] %v520, 128
        %793 = vxpose.xlu0.b32.cont [2/16] %v521, 128
        %794 = vxpose.xlu0.b32.cont [3/16] 0.0, 128
        %795 = vxpose.xlu0.b32.cont [4/16] 0.0, 128
        %796 = vxpose.xlu0.b32.cont [5/16] 0.0, 128
        %797 = vxpose.xlu0.b32.cont [6/16] 0.0, 128
        %798 = vxpose.xlu0.b32.cont [7/16] 0.0, 128
        %799 = vxpose.xlu0.b32.cont [8/16] 0.0, 128
        %800 = vxpose.xlu0.b32.cont [9/16] 0.0, 128
        %801 = vxpose.xlu0.b32.cont [10/16] 0.0, 128
        %802 = vxpose.xlu0.b32.cont [11/16] 0.0, 128
        %803 = vxpose.xlu0.b32.cont [12/16] 0.0, 128
        %804 = vxpose.xlu0.b32.cont [13/16] 0.0, 128
        %805 = vxpose.xlu0.b32.cont [14/16] 0.0, 128
        %806 = vxpose.xlu0.b32.cont [15/16] 0.0, 128
        %807 = vxpose.xlu0.b32.end [16/16] 0.0, 128
        %v808 = vpop.trf.xlu0
        %v809 = vpop.trf.xlu0
        %v810 = vpop.trf.xlu0
        %v811 = vpop.trf.xlu0
        %v812 = vpop.trf.xlu0
        %v813 = vpop.trf.xlu0
        %v814 = vpop.trf.xlu0
        %v815 = vpop.trf.xlu0
        %v816 = vpop.trf.xlu0
        %v817 = vpop.trf.xlu0
        %v818 = vpop.trf.xlu0
        %v819 = vpop.trf.xlu0
        %v820 = vpop.trf.xlu0
        %v821 = vpop.trf.xlu0
        %v822 = vpop.trf.xlu0
        %v823 = vpop.trf.xlu0
        %824 = vxpose.xlu0.b32.start [1/16] %v522, 128
        %825 = vxpose.xlu0.b32.cont [2/16] %v523, 128
        %826 = vxpose.xlu0.b32.cont [3/16] 0.0, 128
        %827 = vxpose.xlu0.b32.cont [4/16] 0.0, 128
        %828 = vxpose.xlu0.b32.cont [5/16] 0.0, 128
        %829 = vxpose.xlu0.b32.cont [6/16] 0.0, 128
        %830 = vxpose.xlu0.b32.cont [7/16] 0.0, 128
        %831 = vxpose.xlu0.b32.cont [8/16] 0.0, 128
        %832 = vxpose.xlu0.b32.cont [9/16] 0.0, 128
        %833 = vxpose.xlu0.b32.cont [10/16] 0.0, 128
        %834 = vxpose.xlu0.b32.cont [11/16] 0.0, 128
        %835 = vxpose.xlu0.b32.cont [12/16] 0.0, 128
        %836 = vxpose.xlu0.b32.cont [13/16] 0.0, 128
        %837 = vxpose.xlu0.b32.cont [14/16] 0.0, 128
        %838 = vxpose.xlu0.b32.cont [15/16] 0.0, 128
        %839 = vxpose.xlu0.b32.end [16/16] 0.0, 128
        %v840 = vpop.trf.xlu0
        %v841 = vpop.trf.xlu0
        %v842 = vpop.trf.xlu0
        %v843 = vpop.trf.xlu0
        %v844 = vpop.trf.xlu0
        %v845 = vpop.trf.xlu0
        %v846 = vpop.trf.xlu0
        %v847 = vpop.trf.xlu0
        %v848 = vpop.trf.xlu0
        %v849 = vpop.trf.xlu0
        %v850 = vpop.trf.xlu0
        %v851 = vpop.trf.xlu0
        %v852 = vpop.trf.xlu0
        %v853 = vpop.trf.xlu0
        %v854 = vpop.trf.xlu0
        %v855 = vpop.trf.xlu0
        %856 = vxpose.xlu0.b32.start [1/16] %v524, 128
        %857 = vxpose.xlu0.b32.cont [2/16] %v525, 128
        %858 = vxpose.xlu0.b32.cont [3/16] 0.0, 128
        %859 = vxpose.xlu0.b32.cont [4/16] 0.0, 128
        %860 = vxpose.xlu0.b32.cont [5/16] 0.0, 128
        %861 = vxpose.xlu0.b32.cont [6/16] 0.0, 128
        %862 = vxpose.xlu0.b32.cont [7/16] 0.0, 128
        %863 = vxpose.xlu0.b32.cont [8/16] 0.0, 128
        %864 = vxpose.xlu0.b32.cont [9/16] 0.0, 128
        %865 = vxpose.xlu0.b32.cont [10/16] 0.0, 128
        %866 = vxpose.xlu0.b32.cont [11/16] 0.0, 128
        %867 = vxpose.xlu0.b32.cont [12/16] 0.0, 128
        %868 = vxpose.xlu0.b32.cont [13/16] 0.0, 128
        %869 = vxpose.xlu0.b32.cont [14/16] 0.0, 128
        %870 = vxpose.xlu0.b32.cont [15/16] 0.0, 128
        %871 = vxpose.xlu0.b32.end [16/16] 0.0, 128
        %v872 = vpop.trf.xlu0
        %v873 = vpop.trf.xlu0
        %v874 = vpop.trf.xlu0
        %v875 = vpop.trf.xlu0
        %v876 = vpop.trf.xlu0
        %v877 = vpop.trf.xlu0
        %v878 = vpop.trf.xlu0
        %v879 = vpop.trf.xlu0
        %v880 = vpop.trf.xlu0
        %v881 = vpop.trf.xlu0
        %v882 = vpop.trf.xlu0
        %v883 = vpop.trf.xlu0
        %v884 = vpop.trf.xlu0
        %v885 = vpop.trf.xlu0
        %v886 = vpop.trf.xlu0
        %v887 = vpop.trf.xlu0
        %888 = vxpose.xlu0.b32.start [1/16] %v526, 128
        %889 = vxpose.xlu0.b32.cont [2/16] %v527, 128
        %890 = vxpose.xlu0.b32.cont [3/16] 0.0, 128
        %891 = vxpose.xlu0.b32.cont [4/16] 0.0, 128
        %892 = vxpose.xlu0.b32.cont [5/16] 0.0, 128
        %893 = vxpose.xlu0.b32.cont [6/16] 0.0, 128
        %894 = vxpose.xlu0.b32.cont [7/16] 0.0, 128
        %895 = vxpose.xlu0.b32.cont [8/16] 0.0, 128
        %896 = vxpose.xlu0.b32.cont [9/16] 0.0, 128
        %897 = vxpose.xlu0.b32.cont [10/16] 0.0, 128
        %898 = vxpose.xlu0.b32.cont [11/16] 0.0, 128
        %899 = vxpose.xlu0.b32.cont [12/16] 0.0, 128
        %900 = vxpose.xlu0.b32.cont [13/16] 0.0, 128
        %901 = vxpose.xlu0.b32.cont [14/16] 0.0, 128
        %902 = vxpose.xlu0.b32.cont [15/16] 0.0, 128
        %903 = vxpose.xlu0.b32.end [16/16] 0.0, 128
        %v904 = vpop.trf.xlu0
        %v905 = vpop.trf.xlu0
        %v906 = vpop.trf.xlu0
        %v907 = vpop.trf.xlu0
        %v908 = vpop.trf.xlu0
        %v909 = vpop.trf.xlu0
        %v910 = vpop.trf.xlu0
        %v911 = vpop.trf.xlu0
        %v912 = vpop.trf.xlu0
        %v913 = vpop.trf.xlu0
        %v914 = vpop.trf.xlu0
        %v915 = vpop.trf.xlu0
        %v916 = vpop.trf.xlu0
        %v917 = vpop.trf.xlu0
        %v918 = vpop.trf.xlu0
        %v919 = vpop.trf.xlu0
        %920 = vxpose.xlu0.b32.start [1/16] %v528, 128
        %921 = vxpose.xlu0.b32.cont [2/16] %v529, 128
        %922 = vxpose.xlu0.b32.cont [3/16] 0.0, 128
        %923 = vxpose.xlu0.b32.cont [4/16] 0.0, 128
        %924 = vxpose.xlu0.b32.cont [5/16] 0.0, 128
        %925 = vxpose.xlu0.b32.cont [6/16] 0.0, 128
        %926 = vxpose.xlu0.b32.cont [7/16] 0.0, 128
        %927 = vxpose.xlu0.b32.cont [8/16] 0.0, 128
        %928 = vxpose.xlu0.b32.cont [9/16] 0.0, 128
        %929 = vxpose.xlu0.b32.cont [10/16] 0.0, 128
        %930 = vxpose.xlu0.b32.cont [11/16] 0.0, 128
        %931 = vxpose.xlu0.b32.cont [12/16] 0.0, 128
        %932 = vxpose.xlu0.b32.cont [13/16] 0.0, 128
        %933 = vxpose.xlu0.b32.cont [14/16] 0.0, 128
        %934 = vxpose.xlu0.b32.cont [15/16] 0.0, 128
        %935 = vxpose.xlu0.b32.end [16/16] 0.0, 128
        %v936 = vpop.trf.xlu0
        %v937 = vpop.trf.xlu0
        %v938 = vpop.trf.xlu0
        %v939 = vpop.trf.xlu0
        %v940 = vpop.trf.xlu0
        %v941 = vpop.trf.xlu0
        %v942 = vpop.trf.xlu0
        %v943 = vpop.trf.xlu0
        %v944 = vpop.trf.xlu0
        %v945 = vpop.trf.xlu0
        %v946 = vpop.trf.xlu0
        %v947 = vpop.trf.xlu0
        %v948 = vpop.trf.xlu0
        %v949 = vpop.trf.xlu0
        %v950 = vpop.trf.xlu0
        %v951 = vpop.trf.xlu0
        %952 = vxpose.xlu0.b32.start [1/16] %v530, 128
        %953 = vxpose.xlu0.b32.cont [2/16] %v531, 128
        %954 = vxpose.xlu0.b32.cont [3/16] 0.0, 128
        %955 = vxpose.xlu0.b32.cont [4/16] 0.0, 128
        %956 = vxpose.xlu0.b32.cont [5/16] 0.0, 128
        %957 = vxpose.xlu0.b32.cont [6/16] 0.0, 128
        %958 = vxpose.xlu0.b32.cont [7/16] 0.0, 128
        %959 = vxpose.xlu0.b32.cont [8/16] 0.0, 128
        %960 = vxpose.xlu0.b32.cont [9/16] 0.0, 128
        %961 = vxpose.xlu0.b32.cont [10/16] 0.0, 128
        %962 = vxpose.xlu0.b32.cont [11/16] 0.0, 128
        %963 = vxpose.xlu0.b32.cont [12/16] 0.0, 128
        %964 = vxpose.xlu0.b32.cont [13/16] 0.0, 128
        %965 = vxpose.xlu0.b32.cont [14/16] 0.0, 128
        %966 = vxpose.xlu0.b32.cont [15/16] 0.0, 128
        %967 = vxpose.xlu0.b32.end [16/16] 0.0, 128
        %v968 = vpop.trf.xlu0
        %v969 = vpop.trf.xlu0
        %v970 = vpop.trf.xlu0
        %v971 = vpop.trf.xlu0
        %v972 = vpop.trf.xlu0
        %v973 = vpop.trf.xlu0
        %v974 = vpop.trf.xlu0
        %v975 = vpop.trf.xlu0
        %v976 = vpop.trf.xlu0
        %v977 = vpop.trf.xlu0
        %v978 = vpop.trf.xlu0
        %v979 = vpop.trf.xlu0
        %v980 = vpop.trf.xlu0
        %v981 = vpop.trf.xlu0
        %v982 = vpop.trf.xlu0
        %v983 = vpop.trf.xlu0
        %984 = vxpose.xlu0.b32.start [1/16] %v532, 128
        %985 = vxpose.xlu0.b32.cont [2/16] %v533, 128
        %986 = vxpose.xlu0.b32.cont [3/16] 0.0, 128
        %987 = vxpose.xlu0.b32.cont [4/16] 0.0, 128
        %988 = vxpose.xlu0.b32.cont [5/16] 0.0, 128
        %989 = vxpose.xlu0.b32.cont [6/16] 0.0, 128
        %990 = vxpose.xlu0.b32.cont [7/16] 0.0, 128
        %991 = vxpose.xlu0.b32.cont [8/16] 0.0, 128
        %992 = vxpose.xlu0.b32.cont [9/16] 0.0, 128
        %993 = vxpose.xlu0.b32.cont [10/16] 0.0, 128
        %994 = vxpose.xlu0.b32.cont [11/16] 0.0, 128
        %995 = vxpose.xlu0.b32.cont [12/16] 0.0, 128
        %996 = vxpose.xlu0.b32.cont [13/16] 0.0, 128
        %997 = vxpose.xlu0.b32.cont [14/16] 0.0, 128
        %998 = vxpose.xlu0.b32.cont [15/16] 0.0, 128
        %999 = vxpose.xlu0.b32.end [16/16] 0.0, 128
        %v1000 = vpop.trf.xlu0
        %v1001 = vpop.trf.xlu0
        %v1002 = vpop.trf.xlu0
        %v1003 = vpop.trf.xlu0
        %v1004 = vpop.trf.xlu0
        %v1005 = vpop.trf.xlu0
        %v1006 = vpop.trf.xlu0
        %v1007 = vpop.trf.xlu0
        %v1008 = vpop.trf.xlu0
        %v1009 = vpop.trf.xlu0
        %v1010 = vpop.trf.xlu0
        %v1011 = vpop.trf.xlu0
        %v1012 = vpop.trf.xlu0
        %v1013 = vpop.trf.xlu0
        %v1014 = vpop.trf.xlu0
        %v1015 = vpop.trf.xlu0
        %1016 = vxpose.xlu0.b32.start [1/16] %v534, 128
        %1017 = vxpose.xlu0.b32.cont [2/16] %v535, 128
        %1018 = vxpose.xlu0.b32.cont [3/16] 0.0, 128
        %1019 = vxpose.xlu0.b32.cont [4/16] 0.0, 128
        %1020 = vxpose.xlu0.b32.cont [5/16] 0.0, 128
        %1021 = vxpose.xlu0.b32.cont [6/16] 0.0, 128
        %1022 = vxpose.xlu0.b32.cont [7/16] 0.0, 128
        %1023 = vxpose.xlu0.b32.cont [8/16] 0.0, 128
        %1024 = vxpose.xlu0.b32.cont [9/16] 0.0, 128
        %1025 = vxpose.xlu0.b32.cont [10/16] 0.0, 128
        %1026 = vxpose.xlu0.b32.cont [11/16] 0.0, 128
        %1027 = vxpose.xlu0.b32.cont [12/16] 0.0, 128
        %1028 = vxpose.xlu0.b32.cont [13/16] 0.0, 128
        %1029 = vxpose.xlu0.b32.cont [14/16] 0.0, 128
        %1030 = vxpose.xlu0.b32.cont [15/16] 0.0, 128
        %1031 = vxpose.xlu0.b32.end [16/16] 0.0, 128
        %v1032 = vpop.trf.xlu0
        %v1033 = vpop.trf.xlu0
        %v1034 = vpop.trf.xlu0
        %v1035 = vpop.trf.xlu0
        %v1036 = vpop.trf.xlu0
        %v1037 = vpop.trf.xlu0
        %v1038 = vpop.trf.xlu0
        %v1039 = vpop.trf.xlu0
        %v1040 = vpop.trf.xlu0
        %v1041 = vpop.trf.xlu0
        %v1042 = vpop.trf.xlu0
        %v1043 = vpop.trf.xlu0
        %v1044 = vpop.trf.xlu0
        %v1045 = vpop.trf.xlu0
        %v1046 = vpop.trf.xlu0
        %v1047 = vpop.trf.xlu0
        %v1048 = vld [vmem:[%s2] sm:$0xff]
        %v1049 = vld [vmem:[%s2 + $0x8] sm:$0xff]
        %1082 = vrot.lane.b32.xlu0 %v488, 96
        %v1083 = vpop.permute.xlu0 %1082
        %1084 = vrot.lane.b32.xlu0 %v489, 96
        %v1085 = vpop.permute.xlu0 %1084
        %1086 = vrot.lane.b32.xlu0 %v490, 96
        %v1087 = vpop.permute.xlu0 %1086
        %1088 = vrot.lane.b32.xlu0 %v491, 96
        %v1089 = vpop.permute.xlu0 %1088
        %1090 = vrot.lane.b32.xlu0 %v492, 96
        %v1091 = vpop.permute.xlu0 %1090
        %1092 = vrot.lane.b32.xlu0 %v493, 96
        %v1093 = vpop.permute.xlu0 %1092
        %1094 = vrot.lane.b32.xlu0 %v494, 96
        %v1095 = vpop.permute.xlu0 %1094
        %1096 = vrot.lane.b32.xlu0 %v495, 96
        %v1097 = vpop.permute.xlu0 %1096
        %1098 = vrot.lane.b32.xlu0 %v496, 96
        %v1099 = vpop.permute.xlu0 %1098
        %1100 = vrot.lane.b32.xlu0 %v497, 96
        %v1101 = vpop.permute.xlu0 %1100
        %1102 = vrot.lane.b32.xlu0 %v498, 96
        %v1103 = vpop.permute.xlu0 %1102
        %1104 = vrot.lane.b32.xlu0 %v499, 96
        %v1105 = vpop.permute.xlu0 %1104
        %1106 = vrot.lane.b32.xlu0 %v500, 96
        %v1107 = vpop.permute.xlu0 %1106
        %1108 = vrot.lane.b32.xlu0 %v501, 96
        %v1109 = vpop.permute.xlu0 %1108
        %1110 = vrot.lane.b32.xlu0 %v502, 96
        %v1111 = vpop.permute.xlu0 %1110
        %1112 = vrot.lane.b32.xlu0 %v503, 96
        %v1113 = vpop.permute.xlu0 %1112
        %1114 = vrot.lane.b32.xlu0 %v520, 96
        %v1115 = vpop.permute.xlu0 %1114
        %1116 = vrot.lane.b32.xlu0 %v521, 96
        %v1117 = vpop.permute.xlu0 %1116
        %1118 = vrot.lane.b32.xlu0 %v522, 96
        %v1119 = vpop.permute.xlu0 %1118
        %1120 = vrot.lane.b32.xlu0 %v523, 96
        %v1121 = vpop.permute.xlu0 %1120
        %1122 = vrot.lane.b32.xlu0 %v524, 96
        %v1123 = vpop.permute.xlu0 %1122
        %1124 = vrot.lane.b32.xlu0 %v525, 96
        %v1125 = vpop.permute.xlu0 %1124
        %1126 = vrot.lane.b32.xlu0 %v526, 96
        %v1127 = vpop.permute.xlu0 %1126
        %1128 = vrot.lane.b32.xlu0 %v527, 96
        %v1129 = vpop.permute.xlu0 %1128
        %1130 = vrot.lane.b32.xlu0 %v528, 96
        %v1131 = vpop.permute.xlu0 %1130
        %1132 = vrot.lane.b32.xlu0 %v529, 96
        %v1133 = vpop.permute.xlu0 %1132
        %1134 = vrot.lane.b32.xlu0 %v530, 96
        %v1135 = vpop.permute.xlu0 %1134
        %1136 = vrot.lane.b32.xlu0 %v531, 96
        %v1137 = vpop.permute.xlu0 %1136
        %1138 = vrot.lane.b32.xlu0 %v532, 96
        %v1139 = vpop.permute.xlu0 %1138
        %1140 = vrot.lane.b32.xlu0 %v533, 96
        %v1141 = vpop.permute.xlu0 %1140
        %1142 = vrot.lane.b32.xlu0 %v534, 96
        %v1143 = vpop.permute.xlu0 %1142
        %1144 = vrot.lane.b32.xlu0 %v535, 96
        %v1145 = vpop.permute.xlu0 %1144
        %1178 = vxpose.xlu0.b32.start [1/16] %v1083, 128
        %1179 = vxpose.xlu0.b32.cont [2/16] %v1085, 128
        %1180 = vxpose.xlu0.b32.cont [3/16] 0.0, 128
        %1181 = vxpose.xlu0.b32.cont [4/16] 0.0, 128
        %1182 = vxpose.xlu0.b32.cont [5/16] 0.0, 128
        %1183 = vxpose.xlu0.b32.cont [6/16] 0.0, 128
        %1184 = vxpose.xlu0.b32.cont [7/16] 0.0, 128
        %1185 = vxpose.xlu0.b32.cont [8/16] 0.0, 128
        %1186 = vxpose.xlu0.b32.cont [9/16] 0.0, 128
        %1187 = vxpose.xlu0.b32.cont [10/16] 0.0, 128
        %1188 = vxpose.xlu0.b32.cont [11/16] 0.0, 128
        %1189 = vxpose.xlu0.b32.cont [12/16] 0.0, 128
        %1190 = vxpose.xlu0.b32.cont [13/16] 0.0, 128
        %1191 = vxpose.xlu0.b32.cont [14/16] 0.0, 128
        %1192 = vxpose.xlu0.b32.cont [15/16] 0.0, 128
        %1193 = vxpose.xlu0.b32.end [16/16] 0.0, 128
        %v1194 = vpop.trf.xlu0
        %v1195 = vpop.trf.xlu0
        %v1196 = vpop.trf.xlu0
        %v1197 = vpop.trf.xlu0
        %v1198 = vpop.trf.xlu0
        %v1199 = vpop.trf.xlu0
        %v1200 = vpop.trf.xlu0
        %v1201 = vpop.trf.xlu0
        %v1202 = vpop.trf.xlu0
        %v1203 = vpop.trf.xlu0
        %v1204 = vpop.trf.xlu0
        %v1205 = vpop.trf.xlu0
        %v1206 = vpop.trf.xlu0
        %v1207 = vpop.trf.xlu0
        %v1208 = vpop.trf.xlu0
        %v1209 = vpop.trf.xlu0
        %1210 = vxpose.xlu0.b32.start [1/16] %v1087, 128
        %1211 = vxpose.xlu0.b32.cont [2/16] %v1089, 128
        %1212 = vxpose.xlu0.b32.cont [3/16] 0.0, 128
        %1213 = vxpose.xlu0.b32.cont [4/16] 0.0, 128
        %1214 = vxpose.xlu0.b32.cont [5/16] 0.0, 128
        %1215 = vxpose.xlu0.b32.cont [6/16] 0.0, 128
        %1216 = vxpose.xlu0.b32.cont [7/16] 0.0, 128
        %1217 = vxpose.xlu0.b32.cont [8/16] 0.0, 128
        %1218 = vxpose.xlu0.b32.cont [9/16] 0.0, 128
        %1219 = vxpose.xlu0.b32.cont [10/16] 0.0, 128
        %1220 = vxpose.xlu0.b32.cont [11/16] 0.0, 128
        %1221 = vxpose.xlu0.b32.cont [12/16] 0.0, 128
        %1222 = vxpose.xlu0.b32.cont [13/16] 0.0, 128
        %1223 = vxpose.xlu0.b32.cont [14/16] 0.0, 128
        %1224 = vxpose.xlu0.b32.cont [15/16] 0.0, 128
        %1225 = vxpose.xlu0.b32.end [16/16] 0.0, 128
        %v1226 = vpop.trf.xlu0
        %v1227 = vpop.trf.xlu0
        %v1228 = vpop.trf.xlu0
        %v1229 = vpop.trf.xlu0
        %v1230 = vpop.trf.xlu0
        %v1231 = vpop.trf.xlu0
        %v1232 = vpop.trf.xlu0
        %v1233 = vpop.trf.xlu0
        %v1234 = vpop.trf.xlu0
        %v1235 = vpop.trf.xlu0
        %v1236 = vpop.trf.xlu0
        %v1237 = vpop.trf.xlu0
        %v1238 = vpop.trf.xlu0
        %v1239 = vpop.trf.xlu0
        %v1240 = vpop.trf.xlu0
        %v1241 = vpop.trf.xlu0
        %1242 = vxpose.xlu0.b32.start [1/16] %v1091, 128
        %1243 = vxpose.xlu0.b32.cont [2/16] %v1093, 128
        %1244 = vxpose.xlu0.b32.cont [3/16] 0.0, 128
        %1245 = vxpose.xlu0.b32.cont [4/16] 0.0, 128
        %1246 = vxpose.xlu0.b32.cont [5/16] 0.0, 128
        %1247 = vxpose.xlu0.b32.cont [6/16] 0.0, 128
        %1248 = vxpose.xlu0.b32.cont [7/16] 0.0, 128
        %1249 = vxpose.xlu0.b32.cont [8/16] 0.0, 128
        %1250 = vxpose.xlu0.b32.cont [9/16] 0.0, 128
        %1251 = vxpose.xlu0.b32.cont [10/16] 0.0, 128
        %1252 = vxpose.xlu0.b32.cont [11/16] 0.0, 128
        %1253 = vxpose.xlu0.b32.cont [12/16] 0.0, 128
        %1254 = vxpose.xlu0.b32.cont [13/16] 0.0, 128
        %1255 = vxpose.xlu0.b32.cont [14/16] 0.0, 128
        %1256 = vxpose.xlu0.b32.cont [15/16] 0.0, 128
        %1257 = vxpose.xlu0.b32.end [16/16] 0.0, 128
        %v1258 = vpop.trf.xlu0
        %v1259 = vpop.trf.xlu0
        %v1260 = vpop.trf.xlu0
        %v1261 = vpop.trf.xlu0
        %v1262 = vpop.trf.xlu0
        %v1263 = vpop.trf.xlu0
        %v1264 = vpop.trf.xlu0
        %v1265 = vpop.trf.xlu0
        %v1266 = vpop.trf.xlu0
        %v1267 = vpop.trf.xlu0
        %v1268 = vpop.trf.xlu0
        %v1269 = vpop.trf.xlu0
        %v1270 = vpop.trf.xlu0
        %v1271 = vpop.trf.xlu0
        %v1272 = vpop.trf.xlu0
        %v1273 = vpop.trf.xlu0
        %1274 = vxpose.xlu0.b32.start [1/16] %v1095, 128
        %1275 = vxpose.xlu0.b32.cont [2/16] %v1097, 128
        %1276 = vxpose.xlu0.b32.cont [3/16] 0.0, 128
        %1277 = vxpose.xlu0.b32.cont [4/16] 0.0, 128
        %1278 = vxpose.xlu0.b32.cont [5/16] 0.0, 128
        %1279 = vxpose.xlu0.b32.cont [6/16] 0.0, 128
        %1280 = vxpose.xlu0.b32.cont [7/16] 0.0, 128
        %1281 = vxpose.xlu0.b32.cont [8/16] 0.0, 128
        %1282 = vxpose.xlu0.b32.cont [9/16] 0.0, 128
        %1283 = vxpose.xlu0.b32.cont [10/16] 0.0, 128
        %1284 = vxpose.xlu0.b32.cont [11/16] 0.0, 128
        %1285 = vxpose.xlu0.b32.cont [12/16] 0.0, 128
        %1286 = vxpose.xlu0.b32.cont [13/16] 0.0, 128
        %1287 = vxpose.xlu0.b32.cont [14/16] 0.0, 128
        %1288 = vxpose.xlu0.b32.cont [15/16] 0.0, 128
        %1289 = vxpose.xlu0.b32.end [16/16] 0.0, 128
        %v1290 = vpop.trf.xlu0
        %v1291 = vpop.trf.xlu0
        %v1292 = vpop.trf.xlu0
        %v1293 = vpop.trf.xlu0
        %v1294 = vpop.trf.xlu0
        %v1295 = vpop.trf.xlu0
        %v1296 = vpop.trf.xlu0
        %v1297 = vpop.trf.xlu0
        %v1298 = vpop.trf.xlu0
        %v1299 = vpop.trf.xlu0
        %v1300 = vpop.trf.xlu0
        %v1301 = vpop.trf.xlu0
        %v1302 = vpop.trf.xlu0
        %v1303 = vpop.trf.xlu0
        %v1304 = vpop.trf.xlu0
        %v1305 = vpop.trf.xlu0
        %1306 = vxpose.xlu0.b32.start [1/16] %v1099, 128
        %1307 = vxpose.xlu0.b32.cont [2/16] %v1101, 128
        %1308 = vxpose.xlu0.b32.cont [3/16] 0.0, 128
        %1309 = vxpose.xlu0.b32.cont [4/16] 0.0, 128
        %1310 = vxpose.xlu0.b32.cont [5/16] 0.0, 128
        %1311 = vxpose.xlu0.b32.cont [6/16] 0.0, 128
        %1312 = vxpose.xlu0.b32.cont [7/16] 0.0, 128
        %1313 = vxpose.xlu0.b32.cont [8/16] 0.0, 128
        %1314 = vxpose.xlu0.b32.cont [9/16] 0.0, 128
        %1315 = vxpose.xlu0.b32.cont [10/16] 0.0, 128
        %1316 = vxpose.xlu0.b32.cont [11/16] 0.0, 128
        %1317 = vxpose.xlu0.b32.cont [12/16] 0.0, 128
        %1318 = vxpose.xlu0.b32.cont [13/16] 0.0, 128
        %1319 = vxpose.xlu0.b32.cont [14/16] 0.0, 128
        %1320 = vxpose.xlu0.b32.cont [15/16] 0.0, 128
        %1321 = vxpose.xlu0.b32.end [16/16] 0.0, 128
        %v1322 = vpop.trf.xlu0
        %v1323 = vpop.trf.xlu0
        %v1324 = vpop.trf.xlu0
        %v1325 = vpop.trf.xlu0
        %v1326 = vpop.trf.xlu0
        %v1327 = vpop.trf.xlu0
        %v1328 = vpop.trf.xlu0
        %v1329 = vpop.trf.xlu0
        %v1330 = vpop.trf.xlu0
        %v1331 = vpop.trf.xlu0
        %v1332 = vpop.trf.xlu0
        %v1333 = vpop.trf.xlu0
        %v1334 = vpop.trf.xlu0
        %v1335 = vpop.trf.xlu0
        %v1336 = vpop.trf.xlu0
        %v1337 = vpop.trf.xlu0
        %1338 = vxpose.xlu0.b32.start [1/16] %v1103, 128
        %1339 = vxpose.xlu0.b32.cont [2/16] %v1105, 128
        %1340 = vxpose.xlu0.b32.cont [3/16] 0.0, 128
        %1341 = vxpose.xlu0.b32.cont [4/16] 0.0, 128
        %1342 = vxpose.xlu0.b32.cont [5/16] 0.0, 128
        %1343 = vxpose.xlu0.b32.cont [6/16] 0.0, 128
        %1344 = vxpose.xlu0.b32.cont [7/16] 0.0, 128
        %1345 = vxpose.xlu0.b32.cont [8/16] 0.0, 128
        %1346 = vxpose.xlu0.b32.cont [9/16] 0.0, 128
        %1347 = vxpose.xlu0.b32.cont [10/16] 0.0, 128
        %1348 = vxpose.xlu0.b32.cont [11/16] 0.0, 128
        %1349 = vxpose.xlu0.b32.cont [12/16] 0.0, 128
        %1350 = vxpose.xlu0.b32.cont [13/16] 0.0, 128
        %1351 = vxpose.xlu0.b32.cont [14/16] 0.0, 128
        %1352 = vxpose.xlu0.b32.cont [15/16] 0.0, 128
        %1353 = vxpose.xlu0.b32.end [16/16] 0.0, 128
        %v1354 = vpop.trf.xlu0
        %v1355 = vpop.trf.xlu0
        %v1356 = vpop.trf.xlu0
        %v1357 = vpop.trf.xlu0
        %v1358 = vpop.trf.xlu0
        %v1359 = vpop.trf.xlu0
        %v1360 = vpop.trf.xlu0
        %v1361 = vpop.trf.xlu0
        %v1362 = vpop.trf.xlu0
        %v1363 = vpop.trf.xlu0
        %v1364 = vpop.trf.xlu0
        %v1365 = vpop.trf.xlu0
        %v1366 = vpop.trf.xlu0
        %v1367 = vpop.trf.xlu0
        %v1368 = vpop.trf.xlu0
        %v1369 = vpop.trf.xlu0
        %1370 = vxpose.xlu0.b32.start [1/16] %v1107, 128
        %1371 = vxpose.xlu0.b32.cont [2/16] %v1109, 128
        %1372 = vxpose.xlu0.b32.cont [3/16] 0.0, 128
        %1373 = vxpose.xlu0.b32.cont [4/16] 0.0, 128
        %1374 = vxpose.xlu0.b32.cont [5/16] 0.0, 128
        %1375 = vxpose.xlu0.b32.cont [6/16] 0.0, 128
        %1376 = vxpose.xlu0.b32.cont [7/16] 0.0, 128
        %1377 = vxpose.xlu0.b32.cont [8/16] 0.0, 128
        %1378 = vxpose.xlu0.b32.cont [9/16] 0.0, 128
        %1379 = vxpose.xlu0.b32.cont [10/16] 0.0, 128
        %1380 = vxpose.xlu0.b32.cont [11/16] 0.0, 128
        %1381 = vxpose.xlu0.b32.cont [12/16] 0.0, 128
        %1382 = vxpose.xlu0.b32.cont [13/16] 0.0, 128
        %1383 = vxpose.xlu0.b32.cont [14/16] 0.0, 128
        %1384 = vxpose.xlu0.b32.cont [15/16] 0.0, 128
        %1385 = vxpose.xlu0.b32.end [16/16] 0.0, 128
        %v1386 = vpop.trf.xlu0
        %v1387 = vpop.trf.xlu0
        %v1388 = vpop.trf.xlu0
        %v1389 = vpop.trf.xlu0
        %v1390 = vpop.trf.xlu0
        %v1391 = vpop.trf.xlu0
        %v1392 = vpop.trf.xlu0
        %v1393 = vpop.trf.xlu0
        %v1394 = vpop.trf.xlu0
        %v1395 = vpop.trf.xlu0
        %v1396 = vpop.trf.xlu0
        %v1397 = vpop.trf.xlu0
        %v1398 = vpop.trf.xlu0
        %v1399 = vpop.trf.xlu0
        %v1400 = vpop.trf.xlu0
        %v1401 = vpop.trf.xlu0
        %1402 = vxpose.xlu0.b32.start [1/16] %v1111, 128
        %1403 = vxpose.xlu0.b32.cont [2/16] %v1113, 128
        %1404 = vxpose.xlu0.b32.cont [3/16] 0.0, 128
        %1405 = vxpose.xlu0.b32.cont [4/16] 0.0, 128
        %1406 = vxpose.xlu0.b32.cont [5/16] 0.0, 128
        %1407 = vxpose.xlu0.b32.cont [6/16] 0.0, 128
        %1408 = vxpose.xlu0.b32.cont [7/16] 0.0, 128
        %1409 = vxpose.xlu0.b32.cont [8/16] 0.0, 128
        %1410 = vxpose.xlu0.b32.cont [9/16] 0.0, 128
        %1411 = vxpose.xlu0.b32.cont [10/16] 0.0, 128
        %1412 = vxpose.xlu0.b32.cont [11/16] 0.0, 128
        %1413 = vxpose.xlu0.b32.cont [12/16] 0.0, 128
        %1414 = vxpose.xlu0.b32.cont [13/16] 0.0, 128
        %1415 = vxpose.xlu0.b32.cont [14/16] 0.0, 128
        %1416 = vxpose.xlu0.b32.cont [15/16] 0.0, 128
        %1417 = vxpose.xlu0.b32.end [16/16] 0.0, 128
        %v1418 = vpop.trf.xlu0
        %v1419 = vpop.trf.xlu0
        %v1420 = vpop.trf.xlu0
        %v1421 = vpop.trf.xlu0
        %v1422 = vpop.trf.xlu0
        %v1423 = vpop.trf.xlu0
        %v1424 = vpop.trf.xlu0
        %v1425 = vpop.trf.xlu0
        %v1426 = vpop.trf.xlu0
        %v1427 = vpop.trf.xlu0
        %v1428 = vpop.trf.xlu0
        %v1429 = vpop.trf.xlu0
        %v1430 = vpop.trf.xlu0
        %v1431 = vpop.trf.xlu0
        %v1432 = vpop.trf.xlu0
        %v1433 = vpop.trf.xlu0
        %1434 = vxpose.xlu0.b32.start [1/16] %v1115, 128
        %1435 = vxpose.xlu0.b32.cont [2/16] %v1117, 128
        %1436 = vxpose.xlu0.b32.cont [3/16] 0.0, 128
        %1437 = vxpose.xlu0.b32.cont [4/16] 0.0, 128
        %1438 = vxpose.xlu0.b32.cont [5/16] 0.0, 128
        %1439 = vxpose.xlu0.b32.cont [6/16] 0.0, 128
        %1440 = vxpose.xlu0.b32.cont [7/16] 0.0, 128
        %1441 = vxpose.xlu0.b32.cont [8/16] 0.0, 128
        %1442 = vxpose.xlu0.b32.cont [9/16] 0.0, 128
        %1443 = vxpose.xlu0.b32.cont [10/16] 0.0, 128
        %1444 = vxpose.xlu0.b32.cont [11/16] 0.0, 128
        %1445 = vxpose.xlu0.b32.cont [12/16] 0.0, 128
        %1446 = vxpose.xlu0.b32.cont [13/16] 0.0, 128
        %1447 = vxpose.xlu0.b32.cont [14/16] 0.0, 128
        %1448 = vxpose.xlu0.b32.cont [15/16] 0.0, 128
        %1449 = vxpose.xlu0.b32.end [16/16] 0.0, 128
        %v1450 = vpop.trf.xlu0
        %v1451 = vpop.trf.xlu0
        %v1452 = vpop.trf.xlu0
        %v1453 = vpop.trf.xlu0
        %v1454 = vpop.trf.xlu0
        %v1455 = vpop.trf.xlu0
        %v1456 = vpop.trf.xlu0
        %v1457 = vpop.trf.xlu0
        %v1458 = vpop.trf.xlu0
        %v1459 = vpop.trf.xlu0
        %v1460 = vpop.trf.xlu0
        %v1461 = vpop.trf.xlu0
        %v1462 = vpop.trf.xlu0
        %v1463 = vpop.trf.xlu0
        %v1464 = vpop.trf.xlu0
        %v1465 = vpop.trf.xlu0
        %1466 = vxpose.xlu0.b32.start [1/16] %v1119, 128
        %1467 = vxpose.xlu0.b32.cont [2/16] %v1121, 128
        %1468 = vxpose.xlu0.b32.cont [3/16] 0.0, 128
        %1469 = vxpose.xlu0.b32.cont [4/16] 0.0, 128
        %1470 = vxpose.xlu0.b32.cont [5/16] 0.0, 128
        %1471 = vxpose.xlu0.b32.cont [6/16] 0.0, 128
        %1472 = vxpose.xlu0.b32.cont [7/16] 0.0, 128
        %1473 = vxpose.xlu0.b32.cont [8/16] 0.0, 128
        %1474 = vxpose.xlu0.b32.cont [9/16] 0.0, 128
        %1475 = vxpose.xlu0.b32.cont [10/16] 0.0, 128
        %1476 = vxpose.xlu0.b32.cont [11/16] 0.0, 128
        %1477 = vxpose.xlu0.b32.cont [12/16] 0.0, 128
        %1478 = vxpose.xlu0.b32.cont [13/16] 0.0, 128
        %1479 = vxpose.xlu0.b32.cont [14/16] 0.0, 128
        %1480 = vxpose.xlu0.b32.cont [15/16] 0.0, 128
        %1481 = vxpose.xlu0.b32.end [16/16] 0.0, 128
        %v1482 = vpop.trf.xlu0
        %v1483 = vpop.trf.xlu0
        %v1484 = vpop.trf.xlu0
        %v1485 = vpop.trf.xlu0
        %v1486 = vpop.trf.xlu0
        %v1487 = vpop.trf.xlu0
        %v1488 = vpop.trf.xlu0
        %v1489 = vpop.trf.xlu0
        %v1490 = vpop.trf.xlu0
        %v1491 = vpop.trf.xlu0
        %v1492 = vpop.trf.xlu0
        %v1493 = vpop.trf.xlu0
        %v1494 = vpop.trf.xlu0
        %v1495 = vpop.trf.xlu0
        %v1496 = vpop.trf.xlu0
        %v1497 = vpop.trf.xlu0
        %1498 = vxpose.xlu0.b32.start [1/16] %v1123, 128
        %1499 = vxpose.xlu0.b32.cont [2/16] %v1125, 128
        %1500 = vxpose.xlu0.b32.cont [3/16] 0.0, 128
        %1501 = vxpose.xlu0.b32.cont [4/16] 0.0, 128
        %1502 = vxpose.xlu0.b32.cont [5/16] 0.0, 128
        %1503 = vxpose.xlu0.b32.cont [6/16] 0.0, 128
        %1504 = vxpose.xlu0.b32.cont [7/16] 0.0, 128
        %1505 = vxpose.xlu0.b32.cont [8/16] 0.0, 128
        %1506 = vxpose.xlu0.b32.cont [9/16] 0.0, 128
        %1507 = vxpose.xlu0.b32.cont [10/16] 0.0, 128
        %1508 = vxpose.xlu0.b32.cont [11/16] 0.0, 128
        %1509 = vxpose.xlu0.b32.cont [12/16] 0.0, 128
        %1510 = vxpose.xlu0.b32.cont [13/16] 0.0, 128
        %1511 = vxpose.xlu0.b32.cont [14/16] 0.0, 128
        %1512 = vxpose.xlu0.b32.cont [15/16] 0.0, 128
        %1513 = vxpose.xlu0.b32.end [16/16] 0.0, 128
        %v1514 = vpop.trf.xlu0
        %v1515 = vpop.trf.xlu0
        %v1516 = vpop.trf.xlu0
        %v1517 = vpop.trf.xlu0
        %v1518 = vpop.trf.xlu0
        %v1519 = vpop.trf.xlu0
        %v1520 = vpop.trf.xlu0
        %v1521 = vpop.trf.xlu0
        %v1522 = vpop.trf.xlu0
        %v1523 = vpop.trf.xlu0
        %v1524 = vpop.trf.xlu0
        %v1525 = vpop.trf.xlu0
        %v1526 = vpop.trf.xlu0
        %v1527 = vpop.trf.xlu0
        %v1528 = vpop.trf.xlu0
        %v1529 = vpop.trf.xlu0
        %1530 = vxpose.xlu0.b32.start [1/16] %v1127, 128
        %1531 = vxpose.xlu0.b32.cont [2/16] %v1129, 128
        %1532 = vxpose.xlu0.b32.cont [3/16] 0.0, 128
        %1533 = vxpose.xlu0.b32.cont [4/16] 0.0, 128
        %1534 = vxpose.xlu0.b32.cont [5/16] 0.0, 128
        %1535 = vxpose.xlu0.b32.cont [6/16] 0.0, 128
        %1536 = vxpose.xlu0.b32.cont [7/16] 0.0, 128
        %1537 = vxpose.xlu0.b32.cont [8/16] 0.0, 128
        %1538 = vxpose.xlu0.b32.cont [9/16] 0.0, 128
        %1539 = vxpose.xlu0.b32.cont [10/16] 0.0, 128
        %1540 = vxpose.xlu0.b32.cont [11/16] 0.0, 128
        %1541 = vxpose.xlu0.b32.cont [12/16] 0.0, 128
        %1542 = vxpose.xlu0.b32.cont [13/16] 0.0, 128
        %1543 = vxpose.xlu0.b32.cont [14/16] 0.0, 128
        %1544 = vxpose.xlu0.b32.cont [15/16] 0.0, 128
        %1545 = vxpose.xlu0.b32.end [16/16] 0.0, 128
        %v1546 = vpop.trf.xlu0
        %v1547 = vpop.trf.xlu0
        %v1548 = vpop.trf.xlu0
        %v1549 = vpop.trf.xlu0
        %v1550 = vpop.trf.xlu0
        %v1551 = vpop.trf.xlu0
        %v1552 = vpop.trf.xlu0
        %v1553 = vpop.trf.xlu0
        %v1554 = vpop.trf.xlu0
        %v1555 = vpop.trf.xlu0
        %v1556 = vpop.trf.xlu0
        %v1557 = vpop.trf.xlu0
        %v1558 = vpop.trf.xlu0
        %v1559 = vpop.trf.xlu0
        %v1560 = vpop.trf.xlu0
        %v1561 = vpop.trf.xlu0
        %1562 = vxpose.xlu0.b32.start [1/16] %v1131, 128
        %1563 = vxpose.xlu0.b32.cont [2/16] %v1133, 128
        %1564 = vxpose.xlu0.b32.cont [3/16] 0.0, 128
        %1565 = vxpose.xlu0.b32.cont [4/16] 0.0, 128
        %1566 = vxpose.xlu0.b32.cont [5/16] 0.0, 128
        %1567 = vxpose.xlu0.b32.cont [6/16] 0.0, 128
        %1568 = vxpose.xlu0.b32.cont [7/16] 0.0, 128
        %1569 = vxpose.xlu0.b32.cont [8/16] 0.0, 128
        %1570 = vxpose.xlu0.b32.cont [9/16] 0.0, 128
        %1571 = vxpose.xlu0.b32.cont [10/16] 0.0, 128
        %1572 = vxpose.xlu0.b32.cont [11/16] 0.0, 128
        %1573 = vxpose.xlu0.b32.cont [12/16] 0.0, 128
        %1574 = vxpose.xlu0.b32.cont [13/16] 0.0, 128
        %1575 = vxpose.xlu0.b32.cont [14/16] 0.0, 128
        %1576 = vxpose.xlu0.b32.cont [15/16] 0.0, 128
        %1577 = vxpose.xlu0.b32.end [16/16] 0.0, 128
        %v1578 = vpop.trf.xlu0
        %v1579 = vpop.trf.xlu0
        %v1580 = vpop.trf.xlu0
        %v1581 = vpop.trf.xlu0
        %v1582 = vpop.trf.xlu0
        %v1583 = vpop.trf.xlu0
        %v1584 = vpop.trf.xlu0
        %v1585 = vpop.trf.xlu0
        %v1586 = vpop.trf.xlu0
        %v1587 = vpop.trf.xlu0
        %v1588 = vpop.trf.xlu0
        %v1589 = vpop.trf.xlu0
        %v1590 = vpop.trf.xlu0
        %v1591 = vpop.trf.xlu0
        %v1592 = vpop.trf.xlu0
        %v1593 = vpop.trf.xlu0
        %1594 = vxpose.xlu0.b32.start [1/16] %v1135, 128
        %1595 = vxpose.xlu0.b32.cont [2/16] %v1137, 128
        %1596 = vxpose.xlu0.b32.cont [3/16] 0.0, 128
        %1597 = vxpose.xlu0.b32.cont [4/16] 0.0, 128
        %1598 = vxpose.xlu0.b32.cont [5/16] 0.0, 128
        %1599 = vxpose.xlu0.b32.cont [6/16] 0.0, 128
        %1600 = vxpose.xlu0.b32.cont [7/16] 0.0, 128
        %1601 = vxpose.xlu0.b32.cont [8/16] 0.0, 128
        %1602 = vxpose.xlu0.b32.cont [9/16] 0.0, 128
        %1603 = vxpose.xlu0.b32.cont [10/16] 0.0, 128
        %1604 = vxpose.xlu0.b32.cont [11/16] 0.0, 128
        %1605 = vxpose.xlu0.b32.cont [12/16] 0.0, 128
        %1606 = vxpose.xlu0.b32.cont [13/16] 0.0, 128
        %1607 = vxpose.xlu0.b32.cont [14/16] 0.0, 128
        %1608 = vxpose.xlu0.b32.cont [15/16] 0.0, 128
        %1609 = vxpose.xlu0.b32.end [16/16] 0.0, 128
        %v1610 = vpop.trf.xlu0
        %v1611 = vpop.trf.xlu0
        %v1612 = vpop.trf.xlu0
        %v1613 = vpop.trf.xlu0
        %v1614 = vpop.trf.xlu0
        %v1615 = vpop.trf.xlu0
        %v1616 = vpop.trf.xlu0
        %v1617 = vpop.trf.xlu0
        %v1618 = vpop.trf.xlu0
        %v1619 = vpop.trf.xlu0
        %v1620 = vpop.trf.xlu0
        %v1621 = vpop.trf.xlu0
        %v1622 = vpop.trf.xlu0
        %v1623 = vpop.trf.xlu0
        %v1624 = vpop.trf.xlu0
        %v1625 = vpop.trf.xlu0
        %1626 = vxpose.xlu0.b32.start [1/16] %v1139, 128
        %1627 = vxpose.xlu0.b32.cont [2/16] %v1141, 128
        %1628 = vxpose.xlu0.b32.cont [3/16] 0.0, 128
        %1629 = vxpose.xlu0.b32.cont [4/16] 0.0, 128
        %1630 = vxpose.xlu0.b32.cont [5/16] 0.0, 128
        %1631 = vxpose.xlu0.b32.cont [6/16] 0.0, 128
        %1632 = vxpose.xlu0.b32.cont [7/16] 0.0, 128
        %1633 = vxpose.xlu0.b32.cont [8/16] 0.0, 128
        %1634 = vxpose.xlu0.b32.cont [9/16] 0.0, 128
        %1635 = vxpose.xlu0.b32.cont [10/16] 0.0, 128
        %1636 = vxpose.xlu0.b32.cont [11/16] 0.0, 128
        %1637 = vxpose.xlu0.b32.cont [12/16] 0.0, 128
        %1638 = vxpose.xlu0.b32.cont [13/16] 0.0, 128
        %1639 = vxpose.xlu0.b32.cont [14/16] 0.0, 128
        %1640 = vxpose.xlu0.b32.cont [15/16] 0.0, 128
        %1641 = vxpose.xlu0.b32.end [16/16] 0.0, 128
        %v1642 = vpop.trf.xlu0
        %v1643 = vpop.trf.xlu0
        %v1644 = vpop.trf.xlu0
        %v1645 = vpop.trf.xlu0
        %v1646 = vpop.trf.xlu0
        %v1647 = vpop.trf.xlu0
        %v1648 = vpop.trf.xlu0
        %v1649 = vpop.trf.xlu0
        %v1650 = vpop.trf.xlu0
        %v1651 = vpop.trf.xlu0
        %v1652 = vpop.trf.xlu0
        %v1653 = vpop.trf.xlu0
        %v1654 = vpop.trf.xlu0
        %v1655 = vpop.trf.xlu0
        %v1656 = vpop.trf.xlu0
        %v1657 = vpop.trf.xlu0
        %1658 = vxpose.xlu0.b32.start [1/16] %v1143, 128
        %1659 = vxpose.xlu0.b32.cont [2/16] %v1145, 128
        %1660 = vxpose.xlu0.b32.cont [3/16] 0.0, 128
        %1661 = vxpose.xlu0.b32.cont [4/16] 0.0, 128
        %1662 = vxpose.xlu0.b32.cont [5/16] 0.0, 128
        %1663 = vxpose.xlu0.b32.cont [6/16] 0.0, 128
        %1664 = vxpose.xlu0.b32.cont [7/16] 0.0, 128
        %1665 = vxpose.xlu0.b32.cont [8/16] 0.0, 128
        %1666 = vxpose.xlu0.b32.cont [9/16] 0.0, 128
        %1667 = vxpose.xlu0.b32.cont [10/16] 0.0, 128
        %1668 = vxpose.xlu0.b32.cont [11/16] 0.0, 128
        %1669 = vxpose.xlu0.b32.cont [12/16] 0.0, 128
        %1670 = vxpose.xlu0.b32.cont [13/16] 0.0, 128
        %1671 = vxpose.xlu0.b32.cont [14/16] 0.0, 128
        %1672 = vxpose.xlu0.b32.cont [15/16] 0.0, 128
        %1673 = vxpose.xlu0.b32.end [16/16] 0.0, 128
        %v1674 = vpop.trf.xlu0
        %v1675 = vpop.trf.xlu0
        %v1676 = vpop.trf.xlu0
        %v1677 = vpop.trf.xlu0
        %v1678 = vpop.trf.xlu0
        %v1679 = vpop.trf.xlu0
        %v1680 = vpop.trf.xlu0
        %v1681 = vpop.trf.xlu0
        %v1682 = vpop.trf.xlu0
        %v1683 = vpop.trf.xlu0
        %v1684 = vpop.trf.xlu0
        %v1685 = vpop.trf.xlu0
        %v1686 = vpop.trf.xlu0
        %v1687 = vpop.trf.xlu0
        %v1688 = vpop.trf.xlu0
        %v1689 = vpop.trf.xlu0
        %s1690 = scalar_lea.vmem %s2, 16
        %v1691 = vld [vmem:[%s1690] sm:$0xff]
        %v1692 = vld [vmem:[%s1690 + $0x8] sm:$0xff]
        %vm1693 = vcmask 130048
        %v1695 = vsel %vm1693, %v1194, 0
        %v1698 = vsel %vm1693, %v1195, 0
        %v1701 = vsel %vm1693, %v1196, 0
        %v1704 = vsel %vm1693, %v1197, 0
        %v1707 = vsel %vm1693, %v1226, 0
        %v1710 = vsel %vm1693, %v1227, 0
        %v1713 = vsel %vm1693, %v1228, 0
        %v1716 = vsel %vm1693, %v1229, 0
        %v1719 = vsel %vm1693, %v1258, 0
        %v1722 = vsel %vm1693, %v1259, 0
        %v1725 = vsel %vm1693, %v1260, 0
        %v1728 = vsel %vm1693, %v1261, 0
        %v1731 = vsel %vm1693, %v1290, 0
        %v1734 = vsel %vm1693, %v1291, 0
        %v1737 = vsel %vm1693, %v1292, 0
        %v1740 = vsel %vm1693, %v1293, 0
        %v1743 = vsel %vm1693, %v1322, 0
        %v1746 = vsel %vm1693, %v1323, 0
        %v1749 = vsel %vm1693, %v1324, 0
        %v1752 = vsel %vm1693, %v1325, 0
        %v1755 = vsel %vm1693, %v1354, 0
        %v1758 = vsel %vm1693, %v1355, 0
        %v1761 = vsel %vm1693, %v1356, 0
        %v1764 = vsel %vm1693, %v1357, 0
        %v1767 = vsel %vm1693, %v1386, 0
        %v1770 = vsel %vm1693, %v1387, 0
        %v1773 = vsel %vm1693, %v1388, 0
        %v1776 = vsel %vm1693, %v1389, 0
        %v1779 = vsel %vm1693, %v1418, 0
        %v1782 = vsel %vm1693, %v1419, 0
        %v1785 = vsel %vm1693, %v1420, 0
        %v1788 = vsel %vm1693, %v1421, 0
        %v1791 = vsel %vm1693, %v1450, 0
        %v1794 = vsel %vm1693, %v1451, 0
        %v1797 = vsel %vm1693, %v1452, 0
        %v1800 = vsel %vm1693, %v1453, 0
        %v1803 = vsel %vm1693, %v1482, 0
        %v1806 = vsel %vm1693, %v1483, 0
        %v1809 = vsel %vm1693, %v1484, 0
        %v1812 = vsel %vm1693, %v1485, 0
        %v1815 = vsel %vm1693, %v1514, 0
        %v1818 = vsel %vm1693, %v1515, 0
        %v1821 = vsel %vm1693, %v1516, 0
        %v1824 = vsel %vm1693, %v1517, 0
        %v1827 = vsel %vm1693, %v1546, 0
        %v1830 = vsel %vm1693, %v1547, 0
        %v1833 = vsel %vm1693, %v1548, 0
        %v1836 = vsel %vm1693, %v1549, 0
        %v1839 = vsel %vm1693, %v1578, 0
        %v1842 = vsel %vm1693, %v1579, 0
        %v1845 = vsel %vm1693, %v1580, 0
        %v1848 = vsel %vm1693, %v1581, 0
        %v1851 = vsel %vm1693, %v1610, 0
        %v1854 = vsel %vm1693, %v1611, 0
        %v1857 = vsel %vm1693, %v1612, 0
        %v1860 = vsel %vm1693, %v1613, 0
        %v1863 = vsel %vm1693, %v1642, 0
        %v1866 = vsel %vm1693, %v1643, 0
        %v1869 = vsel %vm1693, %v1644, 0
        %v1872 = vsel %vm1693, %v1645, 0
        %v1875 = vsel %vm1693, %v1674, 0
        %v1878 = vsel %vm1693, %v1675, 0
        %v1881 = vsel %vm1693, %v1676, 0
        %v1884 = vsel %vm1693, %v1677, 0
        %1886 = vmatprep.subr.mxu0 0.0
        %1887 = vmatpush1.msra.mxu0 %v1691
        %1888 = vmatprep.subr.mxu0 0.0
        %1889 = vmatpush1.msra.mxu0 %v1692
        %1890 = vmatprep.subr.mxu0 0.0
        %1891 = vmatpush1.msra.mxu0 0.0
        %1892 = vmatprep.subr.mxu0 0.0
        %1893 = vmatpush1.msra.mxu0 0.0
        %1894 = vmatprep.subr.mxu0 0.0
        %1895 = vmatpush1.msra.mxu0 0.0
        %1896 = vmatprep.subr.mxu0 0.0
        %1897 = vmatpush1.msra.mxu0 0.0
        %1898 = vmatprep.subr.mxu0 0.0
        %1899 = vmatpush1.msra.mxu0 0.0
        %1900 = vmatprep.subr.mxu0 0.0
        %1901 = vmatpush1.msra.mxu0 0.0
        %1902 = vmatprep.subr.mxu0 0.0
        %1903 = vmatpush1.msra.mxu0 0.0
        %1904 = vmatprep.subr.mxu0 0.0
        %1905 = vmatpush1.msra.mxu0 0.0
        %1906 = vmatprep.subr.mxu0 0.0
        %1907 = vmatpush1.msra.mxu0 0.0
        %1908 = vmatprep.subr.mxu0 0.0
        %1909 = vmatpush1.msra.mxu0 0.0
        %1910 = vmatprep.subr.mxu0 0.0
        %1911 = vmatpush1.msra.mxu0 0.0
        %1912 = vmatprep.subr.mxu0 0.0
        %1913 = vmatpush1.msra.mxu0 0.0
        %1914 = vmatprep.subr.mxu0 0.0
        %1915 = vmatpush1.msra.mxu0 0.0
        %1916 = vmatprep.subr.mxu0 0.0
        %1917 = vmatpush1.msra.mxu0 0.0
        %1918 = vmatprep.subr.mxu0 0.0
        %1919 = vmatpush1.msra.mxu0 0.0
        %1920 = vmatprep.subr.mxu0 0.0
        %1921 = vmatpush1.msra.mxu0 0.0
        %1922 = vmatprep.subr.mxu0 0.0
        %1923 = vmatpush1.msra.mxu0 0.0
        %1924 = vmatprep.subr.mxu0 0.0
        %1925 = vmatpush1.msra.mxu0 0.0
        %1926 = vmatprep.subr.mxu0 0.0
        %1927 = vmatpush1.msra.mxu0 0.0
        %1928 = vmatprep.subr.mxu0 0.0
        %1929 = vmatpush1.msra.mxu0 0.0
        %1930 = vmatprep.subr.mxu0 0.0
        %1931 = vmatpush1.msra.mxu0 0.0
        %1932 = vmatprep.subr.mxu0 0.0
        %1933 = vmatpush1.msra.mxu0 0.0
        %1934 = vmatprep.subr.mxu0 0.0
        %1935 = vmatpush1.msra.mxu0 0.0
        %1936 = vmatprep.subr.mxu0 0.0
        %1937 = vmatpush1.msra.mxu0 0.0
        %1938 = vmatprep.subr.mxu0 0.0
        %1939 = vmatpush1.msra.mxu0 0.0
        %1940 = vmatprep.subr.mxu0 0.0
        %1941 = vmatpush1.msra.mxu0 0.0
        %1942 = vmatprep.subr.mxu0 0.0
        %1943 = vmatpush1.msra.mxu0 0.0
        %1944 = vmatprep.subr.mxu0 0.0
        %1945 = vmatpush1.msra.mxu0 0.0
        %1946 = vmatprep.subr.mxu0 0.0
        %1947 = vmatpush1.msra.mxu0 0.0
        %1948 = vmatprep.subr.mxu0 0.0
        %1949 = vmatpush1.msra.mxu0 0.0
        %1950 = vmatprep.mubr.f32.mxu0 0.0
        %1951 = vmatmul.mubr.f32.gmra.mrb[0].mxu0 %v1695
        %v1952 = vpop.f32.mrb[0].mxu0
        %v1953 = vadd.f32 0.0, %v1952
        %v1954 = vpop.f32.mrb[0].mxu0
        %1955 = vmatprep.mubr.f32.mxu0 0.0
        %1956 = vmatmul.mubr.f32.gmra.mrb[0].mxu0 %v1698
        %v1957 = vpop.f32.mrb[0].mxu0
        %v1958 = vadd.f32 0.0, %v1957
        %v1959 = vpop.f32.mrb[0].mxu0
        %1960 = vmatprep.mubr.f32.mxu0 0.0
        %1961 = vmatmul.mubr.f32.gmra.mrb[0].mxu0 %v1701
        %v1962 = vpop.f32.mrb[0].mxu0
        %v1963 = vadd.f32 0.0, %v1962
        %v1964 = vpop.f32.mrb[0].mxu0
        %1965 = vmatprep.mubr.f32.mxu0 0.0
        %1966 = vmatmul.mubr.f32.gmra.mrb[0].mxu0 %v1704
        %v1967 = vpop.f32.mrb[0].mxu0
        %v1968 = vadd.f32 0.0, %v1967
        %v1969 = vpop.f32.mrb[0].mxu0
        %1970 = vmatprep.mubr.f32.mxu0 0.0
        %1971 = vmatmul.mubr.f32.gmra.mrb[0].mxu0 %v1707
        %v1972 = vpop.f32.mrb[0].mxu0
        %v1973 = vadd.f32 0.0, %v1972
        %v1974 = vpop.f32.mrb[0].mxu0
        %1975 = vmatprep.mubr.f32.mxu0 0.0
        %1976 = vmatmul.mubr.f32.gmra.mrb[0].mxu0 %v1710
        %v1977 = vpop.f32.mrb[0].mxu0
        %v1978 = vadd.f32 0.0, %v1977
        %v1979 = vpop.f32.mrb[0].mxu0
        %1980 = vmatprep.mubr.f32.mxu0 0.0
        %1981 = vmatmul.mubr.f32.gmra.mrb[0].mxu0 %v1713
        %v1982 = vpop.f32.mrb[0].mxu0
        %v1983 = vadd.f32 0.0, %v1982
        %v1984 = vpop.f32.mrb[0].mxu0
        %1985 = vmatprep.mubr.f32.mxu0 0.0
        %1986 = vmatmul.mubr.f32.gmra.mrb[0].mxu0 %v1716
        %v1987 = vpop.f32.mrb[0].mxu0
        %v1988 = vadd.f32 0.0, %v1987
        %v1989 = vpop.f32.mrb[0].mxu0
        %1990 = vmatprep.mubr.f32.mxu0 0.0
        %1991 = vmatmul.mubr.f32.gmra.mrb[0].mxu0 %v1719
        %v1992 = vpop.f32.mrb[0].mxu0
        %v1993 = vadd.f32 0.0, %v1992
        %v1994 = vpop.f32.mrb[0].mxu0
        %1995 = vmatprep.mubr.f32.mxu0 0.0
        %1996 = vmatmul.mubr.f32.gmra.mrb[0].mxu0 %v1722
        %v1997 = vpop.f32.mrb[0].mxu0
        %v1998 = vadd.f32 0.0, %v1997
        %v1999 = vpop.f32.mrb[0].mxu0
        %2000 = vmatprep.mubr.f32.mxu0 0.0
        %2001 = vmatmul.mubr.f32.gmra.mrb[0].mxu0 %v1725
        %v2002 = vpop.f32.mrb[0].mxu0
        %v2003 = vadd.f32 0.0, %v2002
        %v2004 = vpop.f32.mrb[0].mxu0
        %2005 = vmatprep.mubr.f32.mxu0 0.0
        %2006 = vmatmul.mubr.f32.gmra.mrb[0].mxu0 %v1728
        %v2007 = vpop.f32.mrb[0].mxu0
        %v2008 = vadd.f32 0.0, %v2007
        %v2009 = vpop.f32.mrb[0].mxu0
        %2010 = vmatprep.mubr.f32.mxu0 0.0
        %2011 = vmatmul.mubr.f32.gmra.mrb[0].mxu0 %v1731
        %v2012 = vpop.f32.mrb[0].mxu0
        %v2013 = vadd.f32 0.0, %v2012
        %v2014 = vpop.f32.mrb[0].mxu0
        %2015 = vmatprep.mubr.f32.mxu0 0.0
        %2016 = vmatmul.mubr.f32.gmra.mrb[0].mxu0 %v1734
        %v2017 = vpop.f32.mrb[0].mxu0
        %v2018 = vadd.f32 0.0, %v2017
        %v2019 = vpop.f32.mrb[0].mxu0
        %2020 = vmatprep.mubr.f32.mxu0 0.0
        %2021 = vmatmul.mubr.f32.gmra.mrb[0].mxu0 %v1737
        %v2022 = vpop.f32.mrb[0].mxu0
        %v2023 = vadd.f32 0.0, %v2022
        %v2024 = vpop.f32.mrb[0].mxu0
        %2025 = vmatprep.mubr.f32.mxu0 0.0
        %2026 = vmatmul.mubr.f32.gmra.mrb[0].mxu0 %v1740
        %v2027 = vpop.f32.mrb[0].mxu0
        %v2028 = vadd.f32 0.0, %v2027
        %v2029 = vpop.f32.mrb[0].mxu0
        %2030 = vmatprep.mubr.f32.mxu0 0.0
        %2031 = vmatmul.mubr.f32.gmra.mrb[0].mxu0 %v1743
        %v2032 = vpop.f32.mrb[0].mxu0
        %v2033 = vadd.f32 0.0, %v2032
        %v2034 = vpop.f32.mrb[0].mxu0
        %2035 = vmatprep.mubr.f32.mxu0 0.0
        %2036 = vmatmul.mubr.f32.gmra.mrb[0].mxu0 %v1746
        %v2037 = vpop.f32.mrb[0].mxu0
        %v2038 = vadd.f32 0.0, %v2037
        %v2039 = vpop.f32.mrb[0].mxu0
        %2040 = vmatprep.mubr.f32.mxu0 0.0
        %2041 = vmatmul.mubr.f32.gmra.mrb[0].mxu0 %v1749
        %v2042 = vpop.f32.mrb[0].mxu0
        %v2043 = vadd.f32 0.0, %v2042
        %v2044 = vpop.f32.mrb[0].mxu0
        %2045 = vmatprep.mubr.f32.mxu0 0.0
        %2046 = vmatmul.mubr.f32.gmra.mrb[0].mxu0 %v1752
        %v2047 = vpop.f32.mrb[0].mxu0
        %v2048 = vadd.f32 0.0, %v2047
        %v2049 = vpop.f32.mrb[0].mxu0
        %2050 = vmatprep.mubr.f32.mxu0 0.0
        %2051 = vmatmul.mubr.f32.gmra.mrb[0].mxu0 %v1755
        %v2052 = vpop.f32.mrb[0].mxu0
        %v2053 = vadd.f32 0.0, %v2052
        %v2054 = vpop.f32.mrb[0].mxu0
        %2055 = vmatprep.mubr.f32.mxu0 0.0
        %2056 = vmatmul.mubr.f32.gmra.mrb[0].mxu0 %v1758
        %v2057 = vpop.f32.mrb[0].mxu0
        %v2058 = vadd.f32 0.0, %v2057
        %v2059 = vpop.f32.mrb[0].mxu0
        %2060 = vmatprep.mubr.f32.mxu0 0.0
        %2061 = vmatmul.mubr.f32.gmra.mrb[0].mxu0 %v1761
        %v2062 = vpop.f32.mrb[0].mxu0
        %v2063 = vadd.f32 0.0, %v2062
        %v2064 = vpop.f32.mrb[0].mxu0
        %2065 = vmatprep.mubr.f32.mxu0 0.0
        %2066 = vmatmul.mubr.f32.gmra.mrb[0].mxu0 %v1764
        %v2067 = vpop.f32.mrb[0].mxu0
        %v2068 = vadd.f32 0.0, %v2067
        %v2069 = vpop.f32.mrb[0].mxu0
        %2070 = vmatprep.mubr.f32.mxu0 0.0
        %2071 = vmatmul.mubr.f32.gmra.mrb[0].mxu0 %v1767
        %v2072 = vpop.f32.mrb[0].mxu0
        %v2073 = vadd.f32 0.0, %v2072
        %v2074 = vpop.f32.mrb[0].mxu0
        %2075 = vmatprep.mubr.f32.mxu0 0.0
        %2076 = vmatmul.mubr.f32.gmra.mrb[0].mxu0 %v1770
        %v2077 = vpop.f32.mrb[0].mxu0
        %v2078 = vadd.f32 0.0, %v2077
        %v2079 = vpop.f32.mrb[0].mxu0
        %2080 = vmatprep.mubr.f32.mxu0 0.0
        %2081 = vmatmul.mubr.f32.gmra.mrb[0].mxu0 %v1773
        %v2082 = vpop.f32.mrb[0].mxu0
        %v2083 = vadd.f32 0.0, %v2082
        %v2084 = vpop.f32.mrb[0].mxu0
        %2085 = vmatprep.mubr.f32.mxu0 0.0
        %2086 = vmatmul.mubr.f32.gmra.mrb[0].mxu0 %v1776
        %v2087 = vpop.f32.mrb[0].mxu0
        %v2088 = vadd.f32 0.0, %v2087
        %v2089 = vpop.f32.mrb[0].mxu0
        %2090 = vmatprep.mubr.f32.mxu0 0.0
        %2091 = vmatmul.mubr.f32.gmra.mrb[0].mxu0 %v1779
        %v2092 = vpop.f32.mrb[0].mxu0
        %v2093 = vadd.f32 0.0, %v2092
        %v2094 = vpop.f32.mrb[0].mxu0
        %2095 = vmatprep.mubr.f32.mxu0 0.0
        %2096 = vmatmul.mubr.f32.gmra.mrb[0].mxu0 %v1782
        %v2097 = vpop.f32.mrb[0].mxu0
        %v2098 = vadd.f32 0.0, %v2097
        %v2099 = vpop.f32.mrb[0].mxu0
        %2100 = vmatprep.mubr.f32.mxu0 0.0
        %2101 = vmatmul.mubr.f32.gmra.mrb[0].mxu0 %v1785
        %v2102 = vpop.f32.mrb[0].mxu0
        %v2103 = vadd.f32 0.0, %v2102
        %v2104 = vpop.f32.mrb[0].mxu0
        %2105 = vmatprep.mubr.f32.mxu0 0.0
        %2106 = vmatmul.mubr.f32.gmra.mrb[0].mxu0 %v1788
        %v2107 = vpop.f32.mrb[0].mxu0
        %v2108 = vadd.f32 0.0, %v2107
        %v2109 = vpop.f32.mrb[0].mxu0
        %2110 = vmatprep.mubr.f32.mxu0 0.0
        %2111 = vmatmul.mubr.f32.gmra.mrb[0].mxu0 %v1791
        %v2112 = vpop.f32.mrb[0].mxu0
        %v2113 = vadd.f32 0.0, %v2112
        %v2114 = vpop.f32.mrb[0].mxu0
        %2115 = vmatprep.mubr.f32.mxu0 0.0
        %2116 = vmatmul.mubr.f32.gmra.mrb[0].mxu0 %v1794
        %v2117 = vpop.f32.mrb[0].mxu0
        %v2118 = vadd.f32 0.0, %v2117
        %v2119 = vpop.f32.mrb[0].mxu0
        %2120 = vmatprep.mubr.f32.mxu0 0.0
        %2121 = vmatmul.mubr.f32.gmra.mrb[0].mxu0 %v1797
        %v2122 = vpop.f32.mrb[0].mxu0
        %v2123 = vadd.f32 0.0, %v2122
        %v2124 = vpop.f32.mrb[0].mxu0
        %2125 = vmatprep.mubr.f32.mxu0 0.0
        %2126 = vmatmul.mubr.f32.gmra.mrb[0].mxu0 %v1800
        %v2127 = vpop.f32.mrb[0].mxu0
        %v2128 = vadd.f32 0.0, %v2127
        %v2129 = vpop.f32.mrb[0].mxu0
        %2130 = vmatprep.mubr.f32.mxu0 0.0
        %2131 = vmatmul.mubr.f32.gmra.mrb[0].mxu0 %v1803
        %v2132 = vpop.f32.mrb[0].mxu0
        %v2133 = vadd.f32 0.0, %v2132
        %v2134 = vpop.f32.mrb[0].mxu0
        %2135 = vmatprep.mubr.f32.mxu0 0.0
        %2136 = vmatmul.mubr.f32.gmra.mrb[0].mxu0 %v1806
        %v2137 = vpop.f32.mrb[0].mxu0
        %v2138 = vadd.f32 0.0, %v2137
        %v2139 = vpop.f32.mrb[0].mxu0
        %2140 = vmatprep.mubr.f32.mxu0 0.0
        %2141 = vmatmul.mubr.f32.gmra.mrb[0].mxu0 %v1809
        %v2142 = vpop.f32.mrb[0].mxu0
        %v2143 = vadd.f32 0.0, %v2142
        %v2144 = vpop.f32.mrb[0].mxu0
        %2145 = vmatprep.mubr.f32.mxu0 0.0
        %2146 = vmatmul.mubr.f32.gmra.mrb[0].mxu0 %v1812
        %v2147 = vpop.f32.mrb[0].mxu0
        %v2148 = vadd.f32 0.0, %v2147
        %v2149 = vpop.f32.mrb[0].mxu0
        %2150 = vmatprep.mubr.f32.mxu0 0.0
        %2151 = vmatmul.mubr.f32.gmra.mrb[0].mxu0 %v1815
        %v2152 = vpop.f32.mrb[0].mxu0
        %v2153 = vadd.f32 0.0, %v2152
        %v2154 = vpop.f32.mrb[0].mxu0
        %2155 = vmatprep.mubr.f32.mxu0 0.0
        %2156 = vmatmul.mubr.f32.gmra.mrb[0].mxu0 %v1818
        %v2157 = vpop.f32.mrb[0].mxu0
        %v2158 = vadd.f32 0.0, %v2157
        %v2159 = vpop.f32.mrb[0].mxu0
        %2160 = vmatprep.mubr.f32.mxu0 0.0
        %2161 = vmatmul.mubr.f32.gmra.mrb[0].mxu0 %v1821
        %v2162 = vpop.f32.mrb[0].mxu0
        %v2163 = vadd.f32 0.0, %v2162
        %v2164 = vpop.f32.mrb[0].mxu0
        %2165 = vmatprep.mubr.f32.mxu0 0.0
        %2166 = vmatmul.mubr.f32.gmra.mrb[0].mxu0 %v1824
        %v2167 = vpop.f32.mrb[0].mxu0
        %v2168 = vadd.f32 0.0, %v2167
        %v2169 = vpop.f32.mrb[0].mxu0
        %2170 = vmatprep.mubr.f32.mxu0 0.0
        %2171 = vmatmul.mubr.f32.gmra.mrb[0].mxu0 %v1827
        %v2172 = vpop.f32.mrb[0].mxu0
        %v2173 = vadd.f32 0.0, %v2172
        %v2174 = vpop.f32.mrb[0].mxu0
        %2175 = vmatprep.mubr.f32.mxu0 0.0
        %2176 = vmatmul.mubr.f32.gmra.mrb[0].mxu0 %v1830
        %v2177 = vpop.f32.mrb[0].mxu0
        %v2178 = vadd.f32 0.0, %v2177
        %v2179 = vpop.f32.mrb[0].mxu0
        %2180 = vmatprep.mubr.f32.mxu0 0.0
        %2181 = vmatmul.mubr.f32.gmra.mrb[0].mxu0 %v1833
        %v2182 = vpop.f32.mrb[0].mxu0
        %v2183 = vadd.f32 0.0, %v2182
        %v2184 = vpop.f32.mrb[0].mxu0
        %2185 = vmatprep.mubr.f32.mxu0 0.0
        %2186 = vmatmul.mubr.f32.gmra.mrb[0].mxu0 %v1836
        %v2187 = vpop.f32.mrb[0].mxu0
        %v2188 = vadd.f32 0.0, %v2187
        %v2189 = vpop.f32.mrb[0].mxu0
        %2190 = vmatprep.mubr.f32.mxu0 0.0
        %2191 = vmatmul.mubr.f32.gmra.mrb[0].mxu0 %v1839
        %v2192 = vpop.f32.mrb[0].mxu0
        %v2193 = vadd.f32 0.0, %v2192
        %v2194 = vpop.f32.mrb[0].mxu0
        %2195 = vmatprep.mubr.f32.mxu0 0.0
        %2196 = vmatmul.mubr.f32.gmra.mrb[0].mxu0 %v1842
        %v2197 = vpop.f32.mrb[0].mxu0
        %v2198 = vadd.f32 0.0, %v2197
        %v2199 = vpop.f32.mrb[0].mxu0
        %2200 = vmatprep.mubr.f32.mxu0 0.0
        %2201 = vmatmul.mubr.f32.gmra.mrb[0].mxu0 %v1845
        %v2202 = vpop.f32.mrb[0].mxu0
        %v2203 = vadd.f32 0.0, %v2202
        %v2204 = vpop.f32.mrb[0].mxu0
        %2205 = vmatprep.mubr.f32.mxu0 0.0
        %2206 = vmatmul.mubr.f32.gmra.mrb[0].mxu0 %v1848
        %v2207 = vpop.f32.mrb[0].mxu0
        %v2208 = vadd.f32 0.0, %v2207
        %v2209 = vpop.f32.mrb[0].mxu0
        %2210 = vmatprep.mubr.f32.mxu0 0.0
        %2211 = vmatmul.mubr.f32.gmra.mrb[0].mxu0 %v1851
        %v2212 = vpop.f32.mrb[0].mxu0
        %v2213 = vadd.f32 0.0, %v2212
        %v2214 = vpop.f32.mrb[0].mxu0
        %2215 = vmatprep.mubr.f32.mxu0 0.0
        %2216 = vmatmul.mubr.f32.gmra.mrb[0].mxu0 %v1854
        %v2217 = vpop.f32.mrb[0].mxu0
        %v2218 = vadd.f32 0.0, %v2217
        %v2219 = vpop.f32.mrb[0].mxu0
        %2220 = vmatprep.mubr.f32.mxu0 0.0
        %2221 = vmatmul.mubr.f32.gmra.mrb[0].mxu0 %v1857
        %v2222 = vpop.f32.mrb[0].mxu0
        %v2223 = vadd.f32 0.0, %v2222
        %v2224 = vpop.f32.mrb[0].mxu0
        %2225 = vmatprep.mubr.f32.mxu0 0.0
        %2226 = vmatmul.mubr.f32.gmra.mrb[0].mxu0 %v1860
        %v2227 = vpop.f32.mrb[0].mxu0
        %v2228 = vadd.f32 0.0, %v2227
        %v2229 = vpop.f32.mrb[0].mxu0
        %2230 = vmatprep.mubr.f32.mxu0 0.0
        %2231 = vmatmul.mubr.f32.gmra.mrb[0].mxu0 %v1863
        %v2232 = vpop.f32.mrb[0].mxu0
        %v2233 = vadd.f32 0.0, %v2232
        %v2234 = vpop.f32.mrb[0].mxu0
        %2235 = vmatprep.mubr.f32.mxu0 0.0
        %2236 = vmatmul.mubr.f32.gmra.mrb[0].mxu0 %v1866
        %v2237 = vpop.f32.mrb[0].mxu0
        %v2238 = vadd.f32 0.0, %v2237
        %v2239 = vpop.f32.mrb[0].mxu0
        %2240 = vmatprep.mubr.f32.mxu0 0.0
        %2241 = vmatmul.mubr.f32.gmra.mrb[0].mxu0 %v1869
        %v2242 = vpop.f32.mrb[0].mxu0
        %v2243 = vadd.f32 0.0, %v2242
        %v2244 = vpop.f32.mrb[0].mxu0
        %2245 = vmatprep.mubr.f32.mxu0 0.0
        %2246 = vmatmul.mubr.f32.gmra.mrb[0].mxu0 %v1872
        %v2247 = vpop.f32.mrb[0].mxu0
        %v2248 = vadd.f32 0.0, %v2247
        %v2249 = vpop.f32.mrb[0].mxu0
        %2250 = vmatprep.mubr.f32.mxu0 0.0
        %2251 = vmatmul.mubr.f32.gmra.mrb[0].mxu0 %v1875
        %v2252 = vpop.f32.mrb[0].mxu0
        %v2253 = vadd.f32 0.0, %v2252
        %v2254 = vpop.f32.mrb[0].mxu0
        %2255 = vmatprep.mubr.f32.mxu0 0.0
        %2256 = vmatmul.mubr.f32.gmra.mrb[0].mxu0 %v1878
        %v2257 = vpop.f32.mrb[0].mxu0
        %v2258 = vadd.f32 0.0, %v2257
        %v2259 = vpop.f32.mrb[0].mxu0
        %2260 = vmatprep.mubr.f32.mxu0 0.0
        %2261 = vmatmul.mubr.f32.gmra.mrb[0].mxu0 %v1881
        %v2262 = vpop.f32.mrb[0].mxu0
        %v2263 = vadd.f32 0.0, %v2262
        %v2264 = vpop.f32.mrb[0].mxu0
        %2265 = vmatprep.mubr.f32.mxu0 0.0
        %2266 = vmatmul.mubr.f32.gmra.mrb[0].mxu0 %v1884
        %v2267 = vpop.f32.mrb[0].mxu0
        %v2268 = vadd.f32 0.0, %v2267
        %v2269 = vpop.f32.mrb[0].mxu0
        %2270 = vdwg.mxu0
        %v2272 = vsel %vm1693, %v552, 0
        %v2275 = vsel %vm1693, %v553, 0
        %v2278 = vsel %vm1693, %v554, 0
        %v2281 = vsel %vm1693, %v555, 0
        %v2284 = vsel %vm1693, %v584, 0
        %v2287 = vsel %vm1693, %v585, 0
        %v2290 = vsel %vm1693, %v586, 0
        %v2293 = vsel %vm1693, %v587, 0
        %v2296 = vsel %vm1693, %v616, 0
        %v2299 = vsel %vm1693, %v617, 0
        %v2302 = vsel %vm1693, %v618, 0
        %v2305 = vsel %vm1693, %v619, 0
        %v2308 = vsel %vm1693, %v648, 0
        %v2311 = vsel %vm1693, %v649, 0
        %v2314 = vsel %vm1693, %v650, 0
        %v2317 = vsel %vm1693, %v651, 0
        %v2320 = vsel %vm1693, %v680, 0
        %v2323 = vsel %vm1693, %v681, 0
        %v2326 = vsel %vm1693, %v682, 0
        %v2329 = vsel %vm1693, %v683, 0
        %v2332 = vsel %vm1693, %v712, 0
        %v2335 = vsel %vm1693, %v713, 0
        %v2338 = vsel %vm1693, %v714, 0
        %v2341 = vsel %vm1693, %v715, 0
        %v2344 = vsel %vm1693, %v744, 0
        %v2347 = vsel %vm1693, %v745, 0
        %v2350 = vsel %vm1693, %v746, 0
        %v2353 = vsel %vm1693, %v747, 0
        %v2356 = vsel %vm1693, %v776, 0
        %v2359 = vsel %vm1693, %v777, 0
        %v2362 = vsel %vm1693, %v778, 0
        %v2365 = vsel %vm1693, %v779, 0
        %v2368 = vsel %vm1693, %v808, 0
        %v2371 = vsel %vm1693, %v809, 0
        %v2374 = vsel %vm1693, %v810, 0
        %v2377 = vsel %vm1693, %v811, 0
        %v2380 = vsel %vm1693, %v840, 0
        %v2383 = vsel %vm1693, %v841, 0
        %v2386 = vsel %vm1693, %v842, 0
        %v2389 = vsel %vm1693, %v843, 0
        %v2392 = vsel %vm1693, %v872, 0
        %v2395 = vsel %vm1693, %v873, 0
        %v2398 = vsel %vm1693, %v874, 0
        %v2401 = vsel %vm1693, %v875, 0
        %v2404 = vsel %vm1693, %v904, 0
        %v2407 = vsel %vm1693, %v905, 0
        %v2410 = vsel %vm1693, %v906, 0
        %v2413 = vsel %vm1693, %v907, 0
        %v2416 = vsel %vm1693, %v936, 0
        %v2419 = vsel %vm1693, %v937, 0
        %v2422 = vsel %vm1693, %v938, 0
        %v2425 = vsel %vm1693, %v939, 0
        %v2428 = vsel %vm1693, %v968, 0
        %v2431 = vsel %vm1693, %v969, 0
        %v2434 = vsel %vm1693, %v970, 0
        %v2437 = vsel %vm1693, %v971, 0
        %v2440 = vsel %vm1693, %v1000, 0
        %v2443 = vsel %vm1693, %v1001, 0
        %v2446 = vsel %vm1693, %v1002, 0
        %v2449 = vsel %vm1693, %v1003, 0
        %v2452 = vsel %vm1693, %v1032, 0
        %v2455 = vsel %vm1693, %v1033, 0
        %v2458 = vsel %vm1693, %v1034, 0
        %v2461 = vsel %vm1693, %v1035, 0
        %2463 = vmatprep.subr.mxu0 0.0
        %2464 = vmatpush1.msra.mxu0 %v1048
        %2465 = vmatprep.subr.mxu0 0.0
        %2466 = vmatpush1.msra.mxu0 %v1049
        %2467 = vmatprep.subr.mxu0 0.0
        %2468 = vmatpush1.msra.mxu0 0.0
        %2469 = vmatprep.subr.mxu0 0.0
        %2470 = vmatpush1.msra.mxu0 0.0
        %2471 = vmatprep.subr.mxu0 0.0
        %2472 = vmatpush1.msra.mxu0 0.0
        %2473 = vmatprep.subr.mxu0 0.0
        %2474 = vmatpush1.msra.mxu0 0.0
        %2475 = vmatprep.subr.mxu0 0.0
        %2476 = vmatpush1.msra.mxu0 0.0
        %2477 = vmatprep.subr.mxu0 0.0
        %2478 = vmatpush1.msra.mxu0 0.0
        %2479 = vmatprep.subr.mxu0 0.0
        %2480 = vmatpush1.msra.mxu0 0.0
        %2481 = vmatprep.subr.mxu0 0.0
        %2482 = vmatpush1.msra.mxu0 0.0
        %2483 = vmatprep.subr.mxu0 0.0
        %2484 = vmatpush1.msra.mxu0 0.0
        %2485 = vmatprep.subr.mxu0 0.0
        %2486 = vmatpush1.msra.mxu0 0.0
        %2487 = vmatprep.subr.mxu0 0.0
        %2488 = vmatpush1.msra.mxu0 0.0
        %2489 = vmatprep.subr.mxu0 0.0
        %2490 = vmatpush1.msra.mxu0 0.0
        %2491 = vmatprep.subr.mxu0 0.0
        %2492 = vmatpush1.msra.mxu0 0.0
        %2493 = vmatprep.subr.mxu0 0.0
        %2494 = vmatpush1.msra.mxu0 0.0
        %2495 = vmatprep.subr.mxu0 0.0
        %2496 = vmatpush1.msra.mxu0 0.0
        %2497 = vmatprep.subr.mxu0 0.0
        %2498 = vmatpush1.msra.mxu0 0.0
        %2499 = vmatprep.subr.mxu0 0.0
        %2500 = vmatpush1.msra.mxu0 0.0
        %2501 = vmatprep.subr.mxu0 0.0
        %2502 = vmatpush1.msra.mxu0 0.0
        %2503 = vmatprep.subr.mxu0 0.0
        %2504 = vmatpush1.msra.mxu0 0.0
        %2505 = vmatprep.subr.mxu0 0.0
        %2506 = vmatpush1.msra.mxu0 0.0
        %2507 = vmatprep.subr.mxu0 0.0
        %2508 = vmatpush1.msra.mxu0 0.0
        %2509 = vmatprep.subr.mxu0 0.0
        %2510 = vmatpush1.msra.mxu0 0.0
        %2511 = vmatprep.subr.mxu0 0.0
        %2512 = vmatpush1.msra.mxu0 0.0
        %2513 = vmatprep.subr.mxu0 0.0
        %2514 = vmatpush1.msra.mxu0 0.0
        %2515 = vmatprep.subr.mxu0 0.0
        %2516 = vmatpush1.msra.mxu0 0.0
        %2517 = vmatprep.subr.mxu0 0.0
        %2518 = vmatpush1.msra.mxu0 0.0
        %2519 = vmatprep.subr.mxu0 0.0
        %2520 = vmatpush1.msra.mxu0 0.0
        %2521 = vmatprep.subr.mxu0 0.0
        %2522 = vmatpush1.msra.mxu0 0.0
        %2523 = vmatprep.subr.mxu0 0.0
        %2524 = vmatpush1.msra.mxu0 0.0
        %2525 = vmatprep.subr.mxu0 0.0
        %2526 = vmatpush1.msra.mxu0 0.0
        %2527 = vmatprep.mubr.f32.mxu0 0.0
        %2528 = vmatmul.mubr.f32.gmra.mrb[0].mxu0 %v2272
        %v2529 = vpop.f32.mrb[0].mxu0
        %v2530 = vadd.f32 %v1953, %v2529
        %v2531 = vpop.f32.mrb[0].mxu0
        %2532 = vmatprep.mubr.f32.mxu0 0.0
        %2533 = vmatmul.mubr.f32.gmra.mrb[0].mxu0 %v2275
        %v2534 = vpop.f32.mrb[0].mxu0
        %v2535 = vadd.f32 %v1958, %v2534
        %v2536 = vpop.f32.mrb[0].mxu0
        %2537 = vmatprep.mubr.f32.mxu0 0.0
        %2538 = vmatmul.mubr.f32.gmra.mrb[0].mxu0 %v2278
        %v2539 = vpop.f32.mrb[0].mxu0
        %v2540 = vadd.f32 %v1963, %v2539
        %v2541 = vpop.f32.mrb[0].mxu0
        %2542 = vmatprep.mubr.f32.mxu0 0.0
        %2543 = vmatmul.mubr.f32.gmra.mrb[0].mxu0 %v2281
        %v2544 = vpop.f32.mrb[0].mxu0
        %v2545 = vadd.f32 %v1968, %v2544
        %v2546 = vpop.f32.mrb[0].mxu0
        %2547 = vmatprep.mubr.f32.mxu0 0.0
        %2548 = vmatmul.mubr.f32.gmra.mrb[0].mxu0 %v2284
        %v2549 = vpop.f32.mrb[0].mxu0
        %v2550 = vadd.f32 %v1973, %v2549
        %v2551 = vpop.f32.mrb[0].mxu0
        %2552 = vmatprep.mubr.f32.mxu0 0.0
        %2553 = vmatmul.mubr.f32.gmra.mrb[0].mxu0 %v2287
        %v2554 = vpop.f32.mrb[0].mxu0
        %v2555 = vadd.f32 %v1978, %v2554
        %v2556 = vpop.f32.mrb[0].mxu0
        %2557 = vmatprep.mubr.f32.mxu0 0.0
        %2558 = vmatmul.mubr.f32.gmra.mrb[0].mxu0 %v2290
        %v2559 = vpop.f32.mrb[0].mxu0
        %v2560 = vadd.f32 %v1983, %v2559
        %v2561 = vpop.f32.mrb[0].mxu0
        %2562 = vmatprep.mubr.f32.mxu0 0.0
        %2563 = vmatmul.mubr.f32.gmra.mrb[0].mxu0 %v2293
        %v2564 = vpop.f32.mrb[0].mxu0
        %v2565 = vadd.f32 %v1988, %v2564
        %v2566 = vpop.f32.mrb[0].mxu0
        %2567 = vmatprep.mubr.f32.mxu0 0.0
        %2568 = vmatmul.mubr.f32.gmra.mrb[0].mxu0 %v2296
        %v2569 = vpop.f32.mrb[0].mxu0
        %v2570 = vadd.f32 %v1993, %v2569
        %v2571 = vpop.f32.mrb[0].mxu0
        %2572 = vmatprep.mubr.f32.mxu0 0.0
        %2573 = vmatmul.mubr.f32.gmra.mrb[0].mxu0 %v2299
        %v2574 = vpop.f32.mrb[0].mxu0
        %v2575 = vadd.f32 %v1998, %v2574
        %v2576 = vpop.f32.mrb[0].mxu0
        %2577 = vmatprep.mubr.f32.mxu0 0.0
        %2578 = vmatmul.mubr.f32.gmra.mrb[0].mxu0 %v2302
        %v2579 = vpop.f32.mrb[0].mxu0
        %v2580 = vadd.f32 %v2003, %v2579
        %v2581 = vpop.f32.mrb[0].mxu0
        %2582 = vmatprep.mubr.f32.mxu0 0.0
        %2583 = vmatmul.mubr.f32.gmra.mrb[0].mxu0 %v2305
        %v2584 = vpop.f32.mrb[0].mxu0
        %v2585 = vadd.f32 %v2008, %v2584
        %v2586 = vpop.f32.mrb[0].mxu0
        %2587 = vmatprep.mubr.f32.mxu0 0.0
        %2588 = vmatmul.mubr.f32.gmra.mrb[0].mxu0 %v2308
        %v2589 = vpop.f32.mrb[0].mxu0
        %v2590 = vadd.f32 %v2013, %v2589
        %v2591 = vpop.f32.mrb[0].mxu0
        %2592 = vmatprep.mubr.f32.mxu0 0.0
        %2593 = vmatmul.mubr.f32.gmra.mrb[0].mxu0 %v2311
        %v2594 = vpop.f32.mrb[0].mxu0
        %v2595 = vadd.f32 %v2018, %v2594
        %v2596 = vpop.f32.mrb[0].mxu0
        %2597 = vmatprep.mubr.f32.mxu0 0.0
        %2598 = vmatmul.mubr.f32.gmra.mrb[0].mxu0 %v2314
        %v2599 = vpop.f32.mrb[0].mxu0
        %v2600 = vadd.f32 %v2023, %v2599
        %v2601 = vpop.f32.mrb[0].mxu0
        %2602 = vmatprep.mubr.f32.mxu0 0.0
        %2603 = vmatmul.mubr.f32.gmra.mrb[0].mxu0 %v2317
        %v2604 = vpop.f32.mrb[0].mxu0
        %v2605 = vadd.f32 %v2028, %v2604
        %v2606 = vpop.f32.mrb[0].mxu0
        %2607 = vmatprep.mubr.f32.mxu0 0.0
        %2608 = vmatmul.mubr.f32.gmra.mrb[0].mxu0 %v2320
        %v2609 = vpop.f32.mrb[0].mxu0
        %v2610 = vadd.f32 %v2033, %v2609
        %v2611 = vpop.f32.mrb[0].mxu0
        %2612 = vmatprep.mubr.f32.mxu0 0.0
        %2613 = vmatmul.mubr.f32.gmra.mrb[0].mxu0 %v2323
        %v2614 = vpop.f32.mrb[0].mxu0
        %v2615 = vadd.f32 %v2038, %v2614
        %v2616 = vpop.f32.mrb[0].mxu0
        %2617 = vmatprep.mubr.f32.mxu0 0.0
        %2618 = vmatmul.mubr.f32.gmra.mrb[0].mxu0 %v2326
        %v2619 = vpop.f32.mrb[0].mxu0
        %v2620 = vadd.f32 %v2043, %v2619
        %v2621 = vpop.f32.mrb[0].mxu0
        %2622 = vmatprep.mubr.f32.mxu0 0.0
        %2623 = vmatmul.mubr.f32.gmra.mrb[0].mxu0 %v2329
        %v2624 = vpop.f32.mrb[0].mxu0
        %v2625 = vadd.f32 %v2048, %v2624
        %v2626 = vpop.f32.mrb[0].mxu0
        %2627 = vmatprep.mubr.f32.mxu0 0.0
        %2628 = vmatmul.mubr.f32.gmra.mrb[0].mxu0 %v2332
        %v2629 = vpop.f32.mrb[0].mxu0
        %v2630 = vadd.f32 %v2053, %v2629
        %v2631 = vpop.f32.mrb[0].mxu0
        %2632 = vmatprep.mubr.f32.mxu0 0.0
        %2633 = vmatmul.mubr.f32.gmra.mrb[0].mxu0 %v2335
        %v2634 = vpop.f32.mrb[0].mxu0
        %v2635 = vadd.f32 %v2058, %v2634
        %v2636 = vpop.f32.mrb[0].mxu0
        %2637 = vmatprep.mubr.f32.mxu0 0.0
        %2638 = vmatmul.mubr.f32.gmra.mrb[0].mxu0 %v2338
        %v2639 = vpop.f32.mrb[0].mxu0
        %v2640 = vadd.f32 %v2063, %v2639
        %v2641 = vpop.f32.mrb[0].mxu0
        %2642 = vmatprep.mubr.f32.mxu0 0.0
        %2643 = vmatmul.mubr.f32.gmra.mrb[0].mxu0 %v2341
        %v2644 = vpop.f32.mrb[0].mxu0
        %v2645 = vadd.f32 %v2068, %v2644
        %v2646 = vpop.f32.mrb[0].mxu0
        %2647 = vmatprep.mubr.f32.mxu0 0.0
        %2648 = vmatmul.mubr.f32.gmra.mrb[0].mxu0 %v2344
        %v2649 = vpop.f32.mrb[0].mxu0
        %v2650 = vadd.f32 %v2073, %v2649
        %v2651 = vpop.f32.mrb[0].mxu0
        %2652 = vmatprep.mubr.f32.mxu0 0.0
        %2653 = vmatmul.mubr.f32.gmra.mrb[0].mxu0 %v2347
        %v2654 = vpop.f32.mrb[0].mxu0
        %v2655 = vadd.f32 %v2078, %v2654
        %v2656 = vpop.f32.mrb[0].mxu0
        %2657 = vmatprep.mubr.f32.mxu0 0.0
        %2658 = vmatmul.mubr.f32.gmra.mrb[0].mxu0 %v2350
        %v2659 = vpop.f32.mrb[0].mxu0
        %v2660 = vadd.f32 %v2083, %v2659
        %v2661 = vpop.f32.mrb[0].mxu0
        %2662 = vmatprep.mubr.f32.mxu0 0.0
        %2663 = vmatmul.mubr.f32.gmra.mrb[0].mxu0 %v2353
        %v2664 = vpop.f32.mrb[0].mxu0
        %v2665 = vadd.f32 %v2088, %v2664
        %v2666 = vpop.f32.mrb[0].mxu0
        %2667 = vmatprep.mubr.f32.mxu0 0.0
        %2668 = vmatmul.mubr.f32.gmra.mrb[0].mxu0 %v2356
        %v2669 = vpop.f32.mrb[0].mxu0
        %v2670 = vadd.f32 %v2093, %v2669
        %v2671 = vpop.f32.mrb[0].mxu0
        %2672 = vmatprep.mubr.f32.mxu0 0.0
        %2673 = vmatmul.mubr.f32.gmra.mrb[0].mxu0 %v2359
        %v2674 = vpop.f32.mrb[0].mxu0
        %v2675 = vadd.f32 %v2098, %v2674
        %v2676 = vpop.f32.mrb[0].mxu0
        %2677 = vmatprep.mubr.f32.mxu0 0.0
        %2678 = vmatmul.mubr.f32.gmra.mrb[0].mxu0 %v2362
        %v2679 = vpop.f32.mrb[0].mxu0
        %v2680 = vadd.f32 %v2103, %v2679
        %v2681 = vpop.f32.mrb[0].mxu0
        %2682 = vmatprep.mubr.f32.mxu0 0.0
        %2683 = vmatmul.mubr.f32.gmra.mrb[0].mxu0 %v2365
        %v2684 = vpop.f32.mrb[0].mxu0
        %v2685 = vadd.f32 %v2108, %v2684
        %v2686 = vpop.f32.mrb[0].mxu0
        %2687 = vmatprep.mubr.f32.mxu0 0.0
        %2688 = vmatmul.mubr.f32.gmra.mrb[0].mxu0 %v2368
        %v2689 = vpop.f32.mrb[0].mxu0
        %v2690 = vadd.f32 %v2113, %v2689
        %v2691 = vpop.f32.mrb[0].mxu0
        %2692 = vmatprep.mubr.f32.mxu0 0.0
        %2693 = vmatmul.mubr.f32.gmra.mrb[0].mxu0 %v2371
        %v2694 = vpop.f32.mrb[0].mxu0
        %v2695 = vadd.f32 %v2118, %v2694
        %v2696 = vpop.f32.mrb[0].mxu0
        %2697 = vmatprep.mubr.f32.mxu0 0.0
        %2698 = vmatmul.mubr.f32.gmra.mrb[0].mxu0 %v2374
        %v2699 = vpop.f32.mrb[0].mxu0
        %v2700 = vadd.f32 %v2123, %v2699
        %v2701 = vpop.f32.mrb[0].mxu0
        %2702 = vmatprep.mubr.f32.mxu0 0.0
        %2703 = vmatmul.mubr.f32.gmra.mrb[0].mxu0 %v2377
        %v2704 = vpop.f32.mrb[0].mxu0
        %v2705 = vadd.f32 %v2128, %v2704
        %v2706 = vpop.f32.mrb[0].mxu0
        %2707 = vmatprep.mubr.f32.mxu0 0.0
        %2708 = vmatmul.mubr.f32.gmra.mrb[0].mxu0 %v2380
        %v2709 = vpop.f32.mrb[0].mxu0
        %v2710 = vadd.f32 %v2133, %v2709
        %v2711 = vpop.f32.mrb[0].mxu0
        %2712 = vmatprep.mubr.f32.mxu0 0.0
        %2713 = vmatmul.mubr.f32.gmra.mrb[0].mxu0 %v2383
        %v2714 = vpop.f32.mrb[0].mxu0
        %v2715 = vadd.f32 %v2138, %v2714
        %v2716 = vpop.f32.mrb[0].mxu0
        %2717 = vmatprep.mubr.f32.mxu0 0.0
        %2718 = vmatmul.mubr.f32.gmra.mrb[0].mxu0 %v2386
        %v2719 = vpop.f32.mrb[0].mxu0
        %v2720 = vadd.f32 %v2143, %v2719
        %v2721 = vpop.f32.mrb[0].mxu0
        %2722 = vmatprep.mubr.f32.mxu0 0.0
        %2723 = vmatmul.mubr.f32.gmra.mrb[0].mxu0 %v2389
        %v2724 = vpop.f32.mrb[0].mxu0
        %v2725 = vadd.f32 %v2148, %v2724
        %v2726 = vpop.f32.mrb[0].mxu0
        %2727 = vmatprep.mubr.f32.mxu0 0.0
        %2728 = vmatmul.mubr.f32.gmra.mrb[0].mxu0 %v2392
        %v2729 = vpop.f32.mrb[0].mxu0
        %v2730 = vadd.f32 %v2153, %v2729
        %v2731 = vpop.f32.mrb[0].mxu0
        %2732 = vmatprep.mubr.f32.mxu0 0.0
        %2733 = vmatmul.mubr.f32.gmra.mrb[0].mxu0 %v2395
        %v2734 = vpop.f32.mrb[0].mxu0
        %v2735 = vadd.f32 %v2158, %v2734
        %v2736 = vpop.f32.mrb[0].mxu0
        %2737 = vmatprep.mubr.f32.mxu0 0.0
        %2738 = vmatmul.mubr.f32.gmra.mrb[0].mxu0 %v2398
        %v2739 = vpop.f32.mrb[0].mxu0
        %v2740 = vadd.f32 %v2163, %v2739
        %v2741 = vpop.f32.mrb[0].mxu0
        %2742 = vmatprep.mubr.f32.mxu0 0.0
        %2743 = vmatmul.mubr.f32.gmra.mrb[0].mxu0 %v2401
        %v2744 = vpop.f32.mrb[0].mxu0
        %v2745 = vadd.f32 %v2168, %v2744
        %v2746 = vpop.f32.mrb[0].mxu0
        %2747 = vmatprep.mubr.f32.mxu0 0.0
        %2748 = vmatmul.mubr.f32.gmra.mrb[0].mxu0 %v2404
        %v2749 = vpop.f32.mrb[0].mxu0
        %v2750 = vadd.f32 %v2173, %v2749
        %v2751 = vpop.f32.mrb[0].mxu0
        %2752 = vmatprep.mubr.f32.mxu0 0.0
        %2753 = vmatmul.mubr.f32.gmra.mrb[0].mxu0 %v2407
        %v2754 = vpop.f32.mrb[0].mxu0
        %v2755 = vadd.f32 %v2178, %v2754
        %v2756 = vpop.f32.mrb[0].mxu0
        %2757 = vmatprep.mubr.f32.mxu0 0.0
        %2758 = vmatmul.mubr.f32.gmra.mrb[0].mxu0 %v2410
        %v2759 = vpop.f32.mrb[0].mxu0
        %v2760 = vadd.f32 %v2183, %v2759
        %v2761 = vpop.f32.mrb[0].mxu0
        %2762 = vmatprep.mubr.f32.mxu0 0.0
        %2763 = vmatmul.mubr.f32.gmra.mrb[0].mxu0 %v2413
        %v2764 = vpop.f32.mrb[0].mxu0
        %v2765 = vadd.f32 %v2188, %v2764
        %v2766 = vpop.f32.mrb[0].mxu0
        %2767 = vmatprep.mubr.f32.mxu0 0.0
        %2768 = vmatmul.mubr.f32.gmra.mrb[0].mxu0 %v2416
        %v2769 = vpop.f32.mrb[0].mxu0
        %v2770 = vadd.f32 %v2193, %v2769
        %v2771 = vpop.f32.mrb[0].mxu0
        %2772 = vmatprep.mubr.f32.mxu0 0.0
        %2773 = vmatmul.mubr.f32.gmra.mrb[0].mxu0 %v2419
        %v2774 = vpop.f32.mrb[0].mxu0
        %v2775 = vadd.f32 %v2198, %v2774
        %v2776 = vpop.f32.mrb[0].mxu0
        %2777 = vmatprep.mubr.f32.mxu0 0.0
        %2778 = vmatmul.mubr.f32.gmra.mrb[0].mxu0 %v2422
        %v2779 = vpop.f32.mrb[0].mxu0
        %v2780 = vadd.f32 %v2203, %v2779
        %v2781 = vpop.f32.mrb[0].mxu0
        %2782 = vmatprep.mubr.f32.mxu0 0.0
        %2783 = vmatmul.mubr.f32.gmra.mrb[0].mxu0 %v2425
        %v2784 = vpop.f32.mrb[0].mxu0
        %v2785 = vadd.f32 %v2208, %v2784
        %v2786 = vpop.f32.mrb[0].mxu0
        %2787 = vmatprep.mubr.f32.mxu0 0.0
        %2788 = vmatmul.mubr.f32.gmra.mrb[0].mxu0 %v2428
        %v2789 = vpop.f32.mrb[0].mxu0
        %v2790 = vadd.f32 %v2213, %v2789
        %v2791 = vpop.f32.mrb[0].mxu0
        %2792 = vmatprep.mubr.f32.mxu0 0.0
        %2793 = vmatmul.mubr.f32.gmra.mrb[0].mxu0 %v2431
        %v2794 = vpop.f32.mrb[0].mxu0
        %v2795 = vadd.f32 %v2218, %v2794
        %v2796 = vpop.f32.mrb[0].mxu0
        %2797 = vmatprep.mubr.f32.mxu0 0.0
        %2798 = vmatmul.mubr.f32.gmra.mrb[0].mxu0 %v2434
        %v2799 = vpop.f32.mrb[0].mxu0
        %v2800 = vadd.f32 %v2223, %v2799
        %v2801 = vpop.f32.mrb[0].mxu0
        %2802 = vmatprep.mubr.f32.mxu0 0.0
        %2803 = vmatmul.mubr.f32.gmra.mrb[0].mxu0 %v2437
        %v2804 = vpop.f32.mrb[0].mxu0
        %v2805 = vadd.f32 %v2228, %v2804
        %v2806 = vpop.f32.mrb[0].mxu0
        %2807 = vmatprep.mubr.f32.mxu0 0.0
        %2808 = vmatmul.mubr.f32.gmra.mrb[0].mxu0 %v2440
        %v2809 = vpop.f32.mrb[0].mxu0
        %v2810 = vadd.f32 %v2233, %v2809
        %v2811 = vpop.f32.mrb[0].mxu0
        %2812 = vmatprep.mubr.f32.mxu0 0.0
        %2813 = vmatmul.mubr.f32.gmra.mrb[0].mxu0 %v2443
        %v2814 = vpop.f32.mrb[0].mxu0
        %v2815 = vadd.f32 %v2238, %v2814
        %v2816 = vpop.f32.mrb[0].mxu0
        %2817 = vmatprep.mubr.f32.mxu0 0.0
        %2818 = vmatmul.mubr.f32.gmra.mrb[0].mxu0 %v2446
        %v2819 = vpop.f32.mrb[0].mxu0
        %v2820 = vadd.f32 %v2243, %v2819
        %v2821 = vpop.f32.mrb[0].mxu0
        %2822 = vmatprep.mubr.f32.mxu0 0.0
        %2823 = vmatmul.mubr.f32.gmra.mrb[0].mxu0 %v2449
        %v2824 = vpop.f32.mrb[0].mxu0
        %v2825 = vadd.f32 %v2248, %v2824
        %v2826 = vpop.f32.mrb[0].mxu0
        %2827 = vmatprep.mubr.f32.mxu0 0.0
        %2828 = vmatmul.mubr.f32.gmra.mrb[0].mxu0 %v2452
        %v2829 = vpop.f32.mrb[0].mxu0
        %v2830 = vadd.f32 %v2253, %v2829
        %v2831 = vpop.f32.mrb[0].mxu0
        %2832 = vmatprep.mubr.f32.mxu0 0.0
        %2833 = vmatmul.mubr.f32.gmra.mrb[0].mxu0 %v2455
        %v2834 = vpop.f32.mrb[0].mxu0
        %v2835 = vadd.f32 %v2258, %v2834
        %v2836 = vpop.f32.mrb[0].mxu0
        %2837 = vmatprep.mubr.f32.mxu0 0.0
        %2838 = vmatmul.mubr.f32.gmra.mrb[0].mxu0 %v2458
        %v2839 = vpop.f32.mrb[0].mxu0
        %v2840 = vadd.f32 %v2263, %v2839
        %v2841 = vpop.f32.mrb[0].mxu0
        %2842 = vmatprep.mubr.f32.mxu0 0.0
        %2843 = vmatmul.mubr.f32.gmra.mrb[0].mxu0 %v2461
        %v2844 = vpop.f32.mrb[0].mxu0
        %v2845 = vadd.f32 %v2268, %v2844
        %v2846 = vpop.f32.mrb[0].mxu0
        %2847 = vdwg.mxu0
        %2848 = vrot.lane.b32.xlu0 %v488, 64
        %v2849 = vpop.permute.xlu0 %2848
        %2850 = vrot.lane.b32.xlu0 %v489, 64
        %v2851 = vpop.permute.xlu0 %2850
        %2852 = vrot.lane.b32.xlu0 %v490, 64
        %v2853 = vpop.permute.xlu0 %2852
        %2854 = vrot.lane.b32.xlu0 %v491, 64
        %v2855 = vpop.permute.xlu0 %2854
        %2856 = vrot.lane.b32.xlu0 %v492, 64
        %v2857 = vpop.permute.xlu0 %2856
        %2858 = vrot.lane.b32.xlu0 %v493, 64
        %v2859 = vpop.permute.xlu0 %2858
        %2860 = vrot.lane.b32.xlu0 %v494, 64
        %v2861 = vpop.permute.xlu0 %2860
        %2862 = vrot.lane.b32.xlu0 %v495, 64
        %v2863 = vpop.permute.xlu0 %2862
        %2864 = vrot.lane.b32.xlu0 %v496, 64
        %v2865 = vpop.permute.xlu0 %2864
        %2866 = vrot.lane.b32.xlu0 %v497, 64
        %v2867 = vpop.permute.xlu0 %2866
        %2868 = vrot.lane.b32.xlu0 %v498, 64
        %v2869 = vpop.permute.xlu0 %2868
        %2870 = vrot.lane.b32.xlu0 %v499, 64
        %v2871 = vpop.permute.xlu0 %2870
        %2872 = vrot.lane.b32.xlu0 %v500, 64
        %v2873 = vpop.permute.xlu0 %2872
        %2874 = vrot.lane.b32.xlu0 %v501, 64
        %v2875 = vpop.permute.xlu0 %2874
        %2876 = vrot.lane.b32.xlu0 %v502, 64
        %v2877 = vpop.permute.xlu0 %2876
        %2878 = vrot.lane.b32.xlu0 %v503, 64
        %v2879 = vpop.permute.xlu0 %2878
        %2880 = vrot.lane.b32.xlu0 %v520, 64
        %v2881 = vpop.permute.xlu0 %2880
        %2882 = vrot.lane.b32.xlu0 %v521, 64
        %v2883 = vpop.permute.xlu0 %2882
        %2884 = vrot.lane.b32.xlu0 %v522, 64
        %v2885 = vpop.permute.xlu0 %2884
        %2886 = vrot.lane.b32.xlu0 %v523, 64
        %v2887 = vpop.permute.xlu0 %2886
        %2888 = vrot.lane.b32.xlu0 %v524, 64
        %v2889 = vpop.permute.xlu0 %2888
        %2890 = vrot.lane.b32.xlu0 %v525, 64
        %v2891 = vpop.permute.xlu0 %2890
        %2892 = vrot.lane.b32.xlu0 %v526, 64
        %v2893 = vpop.permute.xlu0 %2892
        %2894 = vrot.lane.b32.xlu0 %v527, 64
        %v2895 = vpop.permute.xlu0 %2894
        %2896 = vrot.lane.b32.xlu0 %v528, 64
        %v2897 = vpop.permute.xlu0 %2896
        %2898 = vrot.lane.b32.xlu0 %v529, 64
        %v2899 = vpop.permute.xlu0 %2898
        %2900 = vrot.lane.b32.xlu0 %v530, 64
        %v2901 = vpop.permute.xlu0 %2900
        %2902 = vrot.lane.b32.xlu0 %v531, 64
        %v2903 = vpop.permute.xlu0 %2902
        %2904 = vrot.lane.b32.xlu0 %v532, 64
        %v2905 = vpop.permute.xlu0 %2904
        %2906 = vrot.lane.b32.xlu0 %v533, 64
        %v2907 = vpop.permute.xlu0 %2906
        %2908 = vrot.lane.b32.xlu0 %v534, 64
        %v2909 = vpop.permute.xlu0 %2908
        %2910 = vrot.lane.b32.xlu0 %v535, 64
        %v2911 = vpop.permute.xlu0 %2910
        %2944 = vxpose.xlu0.b32.start [1/16] %v2849, 128
        %2945 = vxpose.xlu0.b32.cont [2/16] %v2851, 128
        %2946 = vxpose.xlu0.b32.cont [3/16] 0.0, 128
        %2947 = vxpose.xlu0.b32.cont [4/16] 0.0, 128
        %2948 = vxpose.xlu0.b32.cont [5/16] 0.0, 128
        %2949 = vxpose.xlu0.b32.cont [6/16] 0.0, 128
        %2950 = vxpose.xlu0.b32.cont [7/16] 0.0, 128
        %2951 = vxpose.xlu0.b32.cont [8/16] 0.0, 128
        %2952 = vxpose.xlu0.b32.cont [9/16] 0.0, 128
        %2953 = vxpose.xlu0.b32.cont [10/16] 0.0, 128
        %2954 = vxpose.xlu0.b32.cont [11/16] 0.0, 128
        %2955 = vxpose.xlu0.b32.cont [12/16] 0.0, 128
        %2956 = vxpose.xlu0.b32.cont [13/16] 0.0, 128
        %2957 = vxpose.xlu0.b32.cont [14/16] 0.0, 128
        %2958 = vxpose.xlu0.b32.cont [15/16] 0.0, 128
        %2959 = vxpose.xlu0.b32.end [16/16] 0.0, 128
        %v2960 = vpop.trf.xlu0
        %v2961 = vpop.trf.xlu0
        %v2962 = vpop.trf.xlu0
        %v2963 = vpop.trf.xlu0
        %v2964 = vpop.trf.xlu0
        %v2965 = vpop.trf.xlu0
        %v2966 = vpop.trf.xlu0
        %v2967 = vpop.trf.xlu0
        %v2968 = vpop.trf.xlu0
        %v2969 = vpop.trf.xlu0
        %v2970 = vpop.trf.xlu0
        %v2971 = vpop.trf.xlu0
        %v2972 = vpop.trf.xlu0
        %v2973 = vpop.trf.xlu0
        %v2974 = vpop.trf.xlu0
        %v2975 = vpop.trf.xlu0
        %2976 = vxpose.xlu0.b32.start [1/16] %v2853, 128
        %2977 = vxpose.xlu0.b32.cont [2/16] %v2855, 128
        %2978 = vxpose.xlu0.b32.cont [3/16] 0.0, 128
        %2979 = vxpose.xlu0.b32.cont [4/16] 0.0, 128
        %2980 = vxpose.xlu0.b32.cont [5/16] 0.0, 128
        %2981 = vxpose.xlu0.b32.cont [6/16] 0.0, 128
        %2982 = vxpose.xlu0.b32.cont [7/16] 0.0, 128
        %2983 = vxpose.xlu0.b32.cont [8/16] 0.0, 128
        %2984 = vxpose.xlu0.b32.cont [9/16] 0.0, 128
        %2985 = vxpose.xlu0.b32.cont [10/16] 0.0, 128
        %2986 = vxpose.xlu0.b32.cont [11/16] 0.0, 128
        %2987 = vxpose.xlu0.b32.cont [12/16] 0.0, 128
        %2988 = vxpose.xlu0.b32.cont [13/16] 0.0, 128
        %2989 = vxpose.xlu0.b32.cont [14/16] 0.0, 128
        %2990 = vxpose.xlu0.b32.cont [15/16] 0.0, 128
        %2991 = vxpose.xlu0.b32.end [16/16] 0.0, 128
        %v2992 = vpop.trf.xlu0
        %v2993 = vpop.trf.xlu0
        %v2994 = vpop.trf.xlu0
        %v2995 = vpop.trf.xlu0
        %v2996 = vpop.trf.xlu0
        %v2997 = vpop.trf.xlu0
        %v2998 = vpop.trf.xlu0
        %v2999 = vpop.trf.xlu0
        %v3000 = vpop.trf.xlu0
        %v3001 = vpop.trf.xlu0
        %v3002 = vpop.trf.xlu0
        %v3003 = vpop.trf.xlu0
        %v3004 = vpop.trf.xlu0
        %v3005 = vpop.trf.xlu0
        %v3006 = vpop.trf.xlu0
        %v3007 = vpop.trf.xlu0
        %3008 = vxpose.xlu0.b32.start [1/16] %v2857, 128
        %3009 = vxpose.xlu0.b32.cont [2/16] %v2859, 128
        %3010 = vxpose.xlu0.b32.cont [3/16] 0.0, 128
        %3011 = vxpose.xlu0.b32.cont [4/16] 0.0, 128
        %3012 = vxpose.xlu0.b32.cont [5/16] 0.0, 128
        %3013 = vxpose.xlu0.b32.cont [6/16] 0.0, 128
        %3014 = vxpose.xlu0.b32.cont [7/16] 0.0, 128
        %3015 = vxpose.xlu0.b32.cont [8/16] 0.0, 128
        %3016 = vxpose.xlu0.b32.cont [9/16] 0.0, 128
        %3017 = vxpose.xlu0.b32.cont [10/16] 0.0, 128
        %3018 = vxpose.xlu0.b32.cont [11/16] 0.0, 128
        %3019 = vxpose.xlu0.b32.cont [12/16] 0.0, 128
        %3020 = vxpose.xlu0.b32.cont [13/16] 0.0, 128
        %3021 = vxpose.xlu0.b32.cont [14/16] 0.0, 128
        %3022 = vxpose.xlu0.b32.cont [15/16] 0.0, 128
        %3023 = vxpose.xlu0.b32.end [16/16] 0.0, 128
        %v3024 = vpop.trf.xlu0
        %v3025 = vpop.trf.xlu0
        %v3026 = vpop.trf.xlu0
        %v3027 = vpop.trf.xlu0
        %v3028 = vpop.trf.xlu0
        %v3029 = vpop.trf.xlu0
        %v3030 = vpop.trf.xlu0
        %v3031 = vpop.trf.xlu0
        %v3032 = vpop.trf.xlu0
        %v3033 = vpop.trf.xlu0
        %v3034 = vpop.trf.xlu0
        %v3035 = vpop.trf.xlu0
        %v3036 = vpop.trf.xlu0
        %v3037 = vpop.trf.xlu0
        %v3038 = vpop.trf.xlu0
        %v3039 = vpop.trf.xlu0
        %3040 = vxpose.xlu0.b32.start [1/16] %v2861, 128
        %3041 = vxpose.xlu0.b32.cont [2/16] %v2863, 128
        %3042 = vxpose.xlu0.b32.cont [3/16] 0.0, 128
        %3043 = vxpose.xlu0.b32.cont [4/16] 0.0, 128
        %3044 = vxpose.xlu0.b32.cont [5/16] 0.0, 128
        %3045 = vxpose.xlu0.b32.cont [6/16] 0.0, 128
        %3046 = vxpose.xlu0.b32.cont [7/16] 0.0, 128
        %3047 = vxpose.xlu0.b32.cont [8/16] 0.0, 128
        %3048 = vxpose.xlu0.b32.cont [9/16] 0.0, 128
        %3049 = vxpose.xlu0.b32.cont [10/16] 0.0, 128
        %3050 = vxpose.xlu0.b32.cont [11/16] 0.0, 128
        %3051 = vxpose.xlu0.b32.cont [12/16] 0.0, 128
        %3052 = vxpose.xlu0.b32.cont [13/16] 0.0, 128
        %3053 = vxpose.xlu0.b32.cont [14/16] 0.0, 128
        %3054 = vxpose.xlu0.b32.cont [15/16] 0.0, 128
        %3055 = vxpose.xlu0.b32.end [16/16] 0.0, 128
        %v3056 = vpop.trf.xlu0
        %v3057 = vpop.trf.xlu0
        %v3058 = vpop.trf.xlu0
        %v3059 = vpop.trf.xlu0
        %v3060 = vpop.trf.xlu0
        %v3061 = vpop.trf.xlu0
        %v3062 = vpop.trf.xlu0
        %v3063 = vpop.trf.xlu0
        %v3064 = vpop.trf.xlu0
        %v3065 = vpop.trf.xlu0
        %v3066 = vpop.trf.xlu0
        %v3067 = vpop.trf.xlu0
        %v3068 = vpop.trf.xlu0
        %v3069 = vpop.trf.xlu0
        %v3070 = vpop.trf.xlu0
        %v3071 = vpop.trf.xlu0
        %3072 = vxpose.xlu0.b32.start [1/16] %v2865, 128
        %3073 = vxpose.xlu0.b32.cont [2/16] %v2867, 128
        %3074 = vxpose.xlu0.b32.cont [3/16] 0.0, 128
        %3075 = vxpose.xlu0.b32.cont [4/16] 0.0, 128
        %3076 = vxpose.xlu0.b32.cont [5/16] 0.0, 128
        %3077 = vxpose.xlu0.b32.cont [6/16] 0.0, 128
        %3078 = vxpose.xlu0.b32.cont [7/16] 0.0, 128
        %3079 = vxpose.xlu0.b32.cont [8/16] 0.0, 128
        %3080 = vxpose.xlu0.b32.cont [9/16] 0.0, 128
        %3081 = vxpose.xlu0.b32.cont [10/16] 0.0, 128
        %3082 = vxpose.xlu0.b32.cont [11/16] 0.0, 128
        %3083 = vxpose.xlu0.b32.cont [12/16] 0.0, 128
        %3084 = vxpose.xlu0.b32.cont [13/16] 0.0, 128
        %3085 = vxpose.xlu0.b32.cont [14/16] 0.0, 128
        %3086 = vxpose.xlu0.b32.cont [15/16] 0.0, 128
        %3087 = vxpose.xlu0.b32.end [16/16] 0.0, 128
        %v3088 = vpop.trf.xlu0
        %v3089 = vpop.trf.xlu0
        %v3090 = vpop.trf.xlu0
        %v3091 = vpop.trf.xlu0
        %v3092 = vpop.trf.xlu0
        %v3093 = vpop.trf.xlu0
        %v3094 = vpop.trf.xlu0
        %v3095 = vpop.trf.xlu0
        %v3096 = vpop.trf.xlu0
        %v3097 = vpop.trf.xlu0
        %v3098 = vpop.trf.xlu0
        %v3099 = vpop.trf.xlu0
        %v3100 = vpop.trf.xlu0
        %v3101 = vpop.trf.xlu0
        %v3102 = vpop.trf.xlu0
        %v3103 = vpop.trf.xlu0
        %3104 = vxpose.xlu0.b32.start [1/16] %v2869, 128
        %3105 = vxpose.xlu0.b32.cont [2/16] %v2871, 128
        %3106 = vxpose.xlu0.b32.cont [3/16] 0.0, 128
        %3107 = vxpose.xlu0.b32.cont [4/16] 0.0, 128
        %3108 = vxpose.xlu0.b32.cont [5/16] 0.0, 128
        %3109 = vxpose.xlu0.b32.cont [6/16] 0.0, 128
        %3110 = vxpose.xlu0.b32.cont [7/16] 0.0, 128
        %3111 = vxpose.xlu0.b32.cont [8/16] 0.0, 128
        %3112 = vxpose.xlu0.b32.cont [9/16] 0.0, 128
        %3113 = vxpose.xlu0.b32.cont [10/16] 0.0, 128
        %3114 = vxpose.xlu0.b32.cont [11/16] 0.0, 128
        %3115 = vxpose.xlu0.b32.cont [12/16] 0.0, 128
        %3116 = vxpose.xlu0.b32.cont [13/16] 0.0, 128
        %3117 = vxpose.xlu0.b32.cont [14/16] 0.0, 128
        %3118 = vxpose.xlu0.b32.cont [15/16] 0.0, 128
        %3119 = vxpose.xlu0.b32.end [16/16] 0.0, 128
        %v3120 = vpop.trf.xlu0
        %v3121 = vpop.trf.xlu0
        %v3122 = vpop.trf.xlu0
        %v3123 = vpop.trf.xlu0
        %v3124 = vpop.trf.xlu0
        %v3125 = vpop.trf.xlu0
        %v3126 = vpop.trf.xlu0
        %v3127 = vpop.trf.xlu0
        %v3128 = vpop.trf.xlu0
        %v3129 = vpop.trf.xlu0
        %v3130 = vpop.trf.xlu0
        %v3131 = vpop.trf.xlu0
        %v3132 = vpop.trf.xlu0
        %v3133 = vpop.trf.xlu0
        %v3134 = vpop.trf.xlu0
        %v3135 = vpop.trf.xlu0
        %3136 = vxpose.xlu0.b32.start [1/16] %v2873, 128
        %3137 = vxpose.xlu0.b32.cont [2/16] %v2875, 128
        %3138 = vxpose.xlu0.b32.cont [3/16] 0.0, 128
        %3139 = vxpose.xlu0.b32.cont [4/16] 0.0, 128
        %3140 = vxpose.xlu0.b32.cont [5/16] 0.0, 128
        %3141 = vxpose.xlu0.b32.cont [6/16] 0.0, 128
        %3142 = vxpose.xlu0.b32.cont [7/16] 0.0, 128
        %3143 = vxpose.xlu0.b32.cont [8/16] 0.0, 128
        %3144 = vxpose.xlu0.b32.cont [9/16] 0.0, 128
        %3145 = vxpose.xlu0.b32.cont [10/16] 0.0, 128
        %3146 = vxpose.xlu0.b32.cont [11/16] 0.0, 128
        %3147 = vxpose.xlu0.b32.cont [12/16] 0.0, 128
        %3148 = vxpose.xlu0.b32.cont [13/16] 0.0, 128
        %3149 = vxpose.xlu0.b32.cont [14/16] 0.0, 128
        %3150 = vxpose.xlu0.b32.cont [15/16] 0.0, 128
        %3151 = vxpose.xlu0.b32.end [16/16] 0.0, 128
        %v3152 = vpop.trf.xlu0
        %v3153 = vpop.trf.xlu0
        %v3154 = vpop.trf.xlu0
        %v3155 = vpop.trf.xlu0
        %v3156 = vpop.trf.xlu0
        %v3157 = vpop.trf.xlu0
        %v3158 = vpop.trf.xlu0
        %v3159 = vpop.trf.xlu0
        %v3160 = vpop.trf.xlu0
        %v3161 = vpop.trf.xlu0
        %v3162 = vpop.trf.xlu0
        %v3163 = vpop.trf.xlu0
        %v3164 = vpop.trf.xlu0
        %v3165 = vpop.trf.xlu0
        %v3166 = vpop.trf.xlu0
        %v3167 = vpop.trf.xlu0
        %3168 = vxpose.xlu0.b32.start [1/16] %v2877, 128
        %3169 = vxpose.xlu0.b32.cont [2/16] %v2879, 128
        %3170 = vxpose.xlu0.b32.cont [3/16] 0.0, 128
        %3171 = vxpose.xlu0.b32.cont [4/16] 0.0, 128
        %3172 = vxpose.xlu0.b32.cont [5/16] 0.0, 128
        %3173 = vxpose.xlu0.b32.cont [6/16] 0.0, 128
        %3174 = vxpose.xlu0.b32.cont [7/16] 0.0, 128
        %3175 = vxpose.xlu0.b32.cont [8/16] 0.0, 128
        %3176 = vxpose.xlu0.b32.cont [9/16] 0.0, 128
        %3177 = vxpose.xlu0.b32.cont [10/16] 0.0, 128
        %3178 = vxpose.xlu0.b32.cont [11/16] 0.0, 128
        %3179 = vxpose.xlu0.b32.cont [12/16] 0.0, 128
        %3180 = vxpose.xlu0.b32.cont [13/16] 0.0, 128
        %3181 = vxpose.xlu0.b32.cont [14/16] 0.0, 128
        %3182 = vxpose.xlu0.b32.cont [15/16] 0.0, 128
        %3183 = vxpose.xlu0.b32.end [16/16] 0.0, 128
        %v3184 = vpop.trf.xlu0
        %v3185 = vpop.trf.xlu0
        %v3186 = vpop.trf.xlu0
        %v3187 = vpop.trf.xlu0
        %v3188 = vpop.trf.xlu0
        %v3189 = vpop.trf.xlu0
        %v3190 = vpop.trf.xlu0
        %v3191 = vpop.trf.xlu0
        %v3192 = vpop.trf.xlu0
        %v3193 = vpop.trf.xlu0
        %v3194 = vpop.trf.xlu0
        %v3195 = vpop.trf.xlu0
        %v3196 = vpop.trf.xlu0
        %v3197 = vpop.trf.xlu0
        %v3198 = vpop.trf.xlu0
        %v3199 = vpop.trf.xlu0
        %3200 = vxpose.xlu0.b32.start [1/16] %v2881, 128
        %3201 = vxpose.xlu0.b32.cont [2/16] %v2883, 128
        %3202 = vxpose.xlu0.b32.cont [3/16] 0.0, 128
        %3203 = vxpose.xlu0.b32.cont [4/16] 0.0, 128
        %3204 = vxpose.xlu0.b32.cont [5/16] 0.0, 128
        %3205 = vxpose.xlu0.b32.cont [6/16] 0.0, 128
        %3206 = vxpose.xlu0.b32.cont [7/16] 0.0, 128
        %3207 = vxpose.xlu0.b32.cont [8/16] 0.0, 128
        %3208 = vxpose.xlu0.b32.cont [9/16] 0.0, 128
        %3209 = vxpose.xlu0.b32.cont [10/16] 0.0, 128
        %3210 = vxpose.xlu0.b32.cont [11/16] 0.0, 128
        %3211 = vxpose.xlu0.b32.cont [12/16] 0.0, 128
        %3212 = vxpose.xlu0.b32.cont [13/16] 0.0, 128
        %3213 = vxpose.xlu0.b32.cont [14/16] 0.0, 128
        %3214 = vxpose.xlu0.b32.cont [15/16] 0.0, 128
        %3215 = vxpose.xlu0.b32.end [16/16] 0.0, 128
        %v3216 = vpop.trf.xlu0
        %v3217 = vpop.trf.xlu0
        %v3218 = vpop.trf.xlu0
        %v3219 = vpop.trf.xlu0
        %v3220 = vpop.trf.xlu0
        %v3221 = vpop.trf.xlu0
        %v3222 = vpop.trf.xlu0
        %v3223 = vpop.trf.xlu0
        %v3224 = vpop.trf.xlu0
        %v3225 = vpop.trf.xlu0
        %v3226 = vpop.trf.xlu0
        %v3227 = vpop.trf.xlu0
        %v3228 = vpop.trf.xlu0
        %v3229 = vpop.trf.xlu0
        %v3230 = vpop.trf.xlu0
        %v3231 = vpop.trf.xlu0
        %3232 = vxpose.xlu0.b32.start [1/16] %v2885, 128
        %3233 = vxpose.xlu0.b32.cont [2/16] %v2887, 128
        %3234 = vxpose.xlu0.b32.cont [3/16] 0.0, 128
        %3235 = vxpose.xlu0.b32.cont [4/16] 0.0, 128
        %3236 = vxpose.xlu0.b32.cont [5/16] 0.0, 128
        %3237 = vxpose.xlu0.b32.cont [6/16] 0.0, 128
        %3238 = vxpose.xlu0.b32.cont [7/16] 0.0, 128
        %3239 = vxpose.xlu0.b32.cont [8/16] 0.0, 128
        %3240 = vxpose.xlu0.b32.cont [9/16] 0.0, 128
        %3241 = vxpose.xlu0.b32.cont [10/16] 0.0, 128
        %3242 = vxpose.xlu0.b32.cont [11/16] 0.0, 128
        %3243 = vxpose.xlu0.b32.cont [12/16] 0.0, 128
        %3244 = vxpose.xlu0.b32.cont [13/16] 0.0, 128
        %3245 = vxpose.xlu0.b32.cont [14/16] 0.0, 128
        %3246 = vxpose.xlu0.b32.cont [15/16] 0.0, 128
        %3247 = vxpose.xlu0.b32.end [16/16] 0.0, 128
        %v3248 = vpop.trf.xlu0
        %v3249 = vpop.trf.xlu0
        %v3250 = vpop.trf.xlu0
        %v3251 = vpop.trf.xlu0
        %v3252 = vpop.trf.xlu0
        %v3253 = vpop.trf.xlu0
        %v3254 = vpop.trf.xlu0
        %v3255 = vpop.trf.xlu0
        %v3256 = vpop.trf.xlu0
        %v3257 = vpop.trf.xlu0
        %v3258 = vpop.trf.xlu0
        %v3259 = vpop.trf.xlu0
        %v3260 = vpop.trf.xlu0
        %v3261 = vpop.trf.xlu0
        %v3262 = vpop.trf.xlu0
        %v3263 = vpop.trf.xlu0
        %3264 = vxpose.xlu0.b32.start [1/16] %v2889, 128
        %3265 = vxpose.xlu0.b32.cont [2/16] %v2891, 128
        %3266 = vxpose.xlu0.b32.cont [3/16] 0.0, 128
        %3267 = vxpose.xlu0.b32.cont [4/16] 0.0, 128
        %3268 = vxpose.xlu0.b32.cont [5/16] 0.0, 128
        %3269 = vxpose.xlu0.b32.cont [6/16] 0.0, 128
        %3270 = vxpose.xlu0.b32.cont [7/16] 0.0, 128
        %3271 = vxpose.xlu0.b32.cont [8/16] 0.0, 128
        %3272 = vxpose.xlu0.b32.cont [9/16] 0.0, 128
        %3273 = vxpose.xlu0.b32.cont [10/16] 0.0, 128
        %3274 = vxpose.xlu0.b32.cont [11/16] 0.0, 128
        %3275 = vxpose.xlu0.b32.cont [12/16] 0.0, 128
        %3276 = vxpose.xlu0.b32.cont [13/16] 0.0, 128
        %3277 = vxpose.xlu0.b32.cont [14/16] 0.0, 128
        %3278 = vxpose.xlu0.b32.cont [15/16] 0.0, 128
        %3279 = vxpose.xlu0.b32.end [16/16] 0.0, 128
        %v3280 = vpop.trf.xlu0
        %v3281 = vpop.trf.xlu0
        %v3282 = vpop.trf.xlu0
        %v3283 = vpop.trf.xlu0
        %v3284 = vpop.trf.xlu0
        %v3285 = vpop.trf.xlu0
        %v3286 = vpop.trf.xlu0
        %v3287 = vpop.trf.xlu0
        %v3288 = vpop.trf.xlu0
        %v3289 = vpop.trf.xlu0
        %v3290 = vpop.trf.xlu0
        %v3291 = vpop.trf.xlu0
        %v3292 = vpop.trf.xlu0
        %v3293 = vpop.trf.xlu0
        %v3294 = vpop.trf.xlu0
        %v3295 = vpop.trf.xlu0
        %3296 = vxpose.xlu0.b32.start [1/16] %v2893, 128
        %3297 = vxpose.xlu0.b32.cont [2/16] %v2895, 128
        %3298 = vxpose.xlu0.b32.cont [3/16] 0.0, 128
        %3299 = vxpose.xlu0.b32.cont [4/16] 0.0, 128
        %3300 = vxpose.xlu0.b32.cont [5/16] 0.0, 128
        %3301 = vxpose.xlu0.b32.cont [6/16] 0.0, 128
        %3302 = vxpose.xlu0.b32.cont [7/16] 0.0, 128
        %3303 = vxpose.xlu0.b32.cont [8/16] 0.0, 128
        %3304 = vxpose.xlu0.b32.cont [9/16] 0.0, 128
        %3305 = vxpose.xlu0.b32.cont [10/16] 0.0, 128
        %3306 = vxpose.xlu0.b32.cont [11/16] 0.0, 128
        %3307 = vxpose.xlu0.b32.cont [12/16] 0.0, 128
        %3308 = vxpose.xlu0.b32.cont [13/16] 0.0, 128
        %3309 = vxpose.xlu0.b32.cont [14/16] 0.0, 128
        %3310 = vxpose.xlu0.b32.cont [15/16] 0.0, 128
        %3311 = vxpose.xlu0.b32.end [16/16] 0.0, 128
        %v3312 = vpop.trf.xlu0
        %v3313 = vpop.trf.xlu0
        %v3314 = vpop.trf.xlu0
        %v3315 = vpop.trf.xlu0
        %v3316 = vpop.trf.xlu0
        %v3317 = vpop.trf.xlu0
        %v3318 = vpop.trf.xlu0
        %v3319 = vpop.trf.xlu0
        %v3320 = vpop.trf.xlu0
        %v3321 = vpop.trf.xlu0
        %v3322 = vpop.trf.xlu0
        %v3323 = vpop.trf.xlu0
        %v3324 = vpop.trf.xlu0
        %v3325 = vpop.trf.xlu0
        %v3326 = vpop.trf.xlu0
        %v3327 = vpop.trf.xlu0
        %3328 = vxpose.xlu0.b32.start [1/16] %v2897, 128
        %3329 = vxpose.xlu0.b32.cont [2/16] %v2899, 128
        %3330 = vxpose.xlu0.b32.cont [3/16] 0.0, 128
        %3331 = vxpose.xlu0.b32.cont [4/16] 0.0, 128
        %3332 = vxpose.xlu0.b32.cont [5/16] 0.0, 128
        %3333 = vxpose.xlu0.b32.cont [6/16] 0.0, 128
        %3334 = vxpose.xlu0.b32.cont [7/16] 0.0, 128
        %3335 = vxpose.xlu0.b32.cont [8/16] 0.0, 128
        %3336 = vxpose.xlu0.b32.cont [9/16] 0.0, 128
        %3337 = vxpose.xlu0.b32.cont [10/16] 0.0, 128
        %3338 = vxpose.xlu0.b32.cont [11/16] 0.0, 128
        %3339 = vxpose.xlu0.b32.cont [12/16] 0.0, 128
        %3340 = vxpose.xlu0.b32.cont [13/16] 0.0, 128
        %3341 = vxpose.xlu0.b32.cont [14/16] 0.0, 128
        %3342 = vxpose.xlu0.b32.cont [15/16] 0.0, 128
        %3343 = vxpose.xlu0.b32.end [16/16] 0.0, 128
        %v3344 = vpop.trf.xlu0
        %v3345 = vpop.trf.xlu0
        %v3346 = vpop.trf.xlu0
        %v3347 = vpop.trf.xlu0
        %v3348 = vpop.trf.xlu0
        %v3349 = vpop.trf.xlu0
        %v3350 = vpop.trf.xlu0
        %v3351 = vpop.trf.xlu0
        %v3352 = vpop.trf.xlu0
        %v3353 = vpop.trf.xlu0
        %v3354 = vpop.trf.xlu0
        %v3355 = vpop.trf.xlu0
        %v3356 = vpop.trf.xlu0
        %v3357 = vpop.trf.xlu0
        %v3358 = vpop.trf.xlu0
        %v3359 = vpop.trf.xlu0
        %3360 = vxpose.xlu0.b32.start [1/16] %v2901, 128
        %3361 = vxpose.xlu0.b32.cont [2/16] %v2903, 128
        %3362 = vxpose.xlu0.b32.cont [3/16] 0.0, 128
        %3363 = vxpose.xlu0.b32.cont [4/16] 0.0, 128
        %3364 = vxpose.xlu0.b32.cont [5/16] 0.0, 128
        %3365 = vxpose.xlu0.b32.cont [6/16] 0.0, 128
        %3366 = vxpose.xlu0.b32.cont [7/16] 0.0, 128
        %3367 = vxpose.xlu0.b32.cont [8/16] 0.0, 128
        %3368 = vxpose.xlu0.b32.cont [9/16] 0.0, 128
        %3369 = vxpose.xlu0.b32.cont [10/16] 0.0, 128
        %3370 = vxpose.xlu0.b32.cont [11/16] 0.0, 128
        %3371 = vxpose.xlu0.b32.cont [12/16] 0.0, 128
        %3372 = vxpose.xlu0.b32.cont [13/16] 0.0, 128
        %3373 = vxpose.xlu0.b32.cont [14/16] 0.0, 128
        %3374 = vxpose.xlu0.b32.cont [15/16] 0.0, 128
        %3375 = vxpose.xlu0.b32.end [16/16] 0.0, 128
        %v3376 = vpop.trf.xlu0
        %v3377 = vpop.trf.xlu0
        %v3378 = vpop.trf.xlu0
        %v3379 = vpop.trf.xlu0
        %v3380 = vpop.trf.xlu0
        %v3381 = vpop.trf.xlu0
        %v3382 = vpop.trf.xlu0
        %v3383 = vpop.trf.xlu0
        %v3384 = vpop.trf.xlu0
        %v3385 = vpop.trf.xlu0
        %v3386 = vpop.trf.xlu0
        %v3387 = vpop.trf.xlu0
        %v3388 = vpop.trf.xlu0
        %v3389 = vpop.trf.xlu0
        %v3390 = vpop.trf.xlu0
        %v3391 = vpop.trf.xlu0
        %3392 = vxpose.xlu0.b32.start [1/16] %v2905, 128
        %3393 = vxpose.xlu0.b32.cont [2/16] %v2907, 128
        %3394 = vxpose.xlu0.b32.cont [3/16] 0.0, 128
        %3395 = vxpose.xlu0.b32.cont [4/16] 0.0, 128
        %3396 = vxpose.xlu0.b32.cont [5/16] 0.0, 128
        %3397 = vxpose.xlu0.b32.cont [6/16] 0.0, 128
        %3398 = vxpose.xlu0.b32.cont [7/16] 0.0, 128
        %3399 = vxpose.xlu0.b32.cont [8/16] 0.0, 128
        %3400 = vxpose.xlu0.b32.cont [9/16] 0.0, 128
        %3401 = vxpose.xlu0.b32.cont [10/16] 0.0, 128
        %3402 = vxpose.xlu0.b32.cont [11/16] 0.0, 128
        %3403 = vxpose.xlu0.b32.cont [12/16] 0.0, 128
        %3404 = vxpose.xlu0.b32.cont [13/16] 0.0, 128
        %3405 = vxpose.xlu0.b32.cont [14/16] 0.0, 128
        %3406 = vxpose.xlu0.b32.cont [15/16] 0.0, 128
        %3407 = vxpose.xlu0.b32.end [16/16] 0.0, 128
        %v3408 = vpop.trf.xlu0
        %v3409 = vpop.trf.xlu0
        %v3410 = vpop.trf.xlu0
        %v3411 = vpop.trf.xlu0
        %v3412 = vpop.trf.xlu0
        %v3413 = vpop.trf.xlu0
        %v3414 = vpop.trf.xlu0
        %v3415 = vpop.trf.xlu0
        %v3416 = vpop.trf.xlu0
        %v3417 = vpop.trf.xlu0
        %v3418 = vpop.trf.xlu0
        %v3419 = vpop.trf.xlu0
        %v3420 = vpop.trf.xlu0
        %v3421 = vpop.trf.xlu0
        %v3422 = vpop.trf.xlu0
        %v3423 = vpop.trf.xlu0
        %3424 = vxpose.xlu0.b32.start [1/16] %v2909, 128
        %3425 = vxpose.xlu0.b32.cont [2/16] %v2911, 128
        %3426 = vxpose.xlu0.b32.cont [3/16] 0.0, 128
        %3427 = vxpose.xlu0.b32.cont [4/16] 0.0, 128
        %3428 = vxpose.xlu0.b32.cont [5/16] 0.0, 128
        %3429 = vxpose.xlu0.b32.cont [6/16] 0.0, 128
        %3430 = vxpose.xlu0.b32.cont [7/16] 0.0, 128
        %3431 = vxpose.xlu0.b32.cont [8/16] 0.0, 128
        %3432 = vxpose.xlu0.b32.cont [9/16] 0.0, 128
        %3433 = vxpose.xlu0.b32.cont [10/16] 0.0, 128
        %3434 = vxpose.xlu0.b32.cont [11/16] 0.0, 128
        %3435 = vxpose.xlu0.b32.cont [12/16] 0.0, 128
        %3436 = vxpose.xlu0.b32.cont [13/16] 0.0, 128
        %3437 = vxpose.xlu0.b32.cont [14/16] 0.0, 128
        %3438 = vxpose.xlu0.b32.cont [15/16] 0.0, 128
        %3439 = vxpose.xlu0.b32.end [16/16] 0.0, 128
        %v3440 = vpop.trf.xlu0
        %v3441 = vpop.trf.xlu0
        %v3442 = vpop.trf.xlu0
        %v3443 = vpop.trf.xlu0
        %v3444 = vpop.trf.xlu0
        %v3445 = vpop.trf.xlu0
        %v3446 = vpop.trf.xlu0
        %v3447 = vpop.trf.xlu0
        %v3448 = vpop.trf.xlu0
        %v3449 = vpop.trf.xlu0
        %v3450 = vpop.trf.xlu0
        %v3451 = vpop.trf.xlu0
        %v3452 = vpop.trf.xlu0
        %v3453 = vpop.trf.xlu0
        %v3454 = vpop.trf.xlu0
        %v3455 = vpop.trf.xlu0
        %s3456 = scalar_lea.vmem %s2, 32
        %v3457 = vld [vmem:[%s3456] sm:$0xff]
        %v3458 = vld [vmem:[%s3456 + $0x8] sm:$0xff]
        %v3460 = vsel %vm1693, %v2960, 0
        %v3463 = vsel %vm1693, %v2961, 0
        %v3466 = vsel %vm1693, %v2962, 0
        %v3469 = vsel %vm1693, %v2963, 0
        %v3472 = vsel %vm1693, %v2992, 0
        %v3475 = vsel %vm1693, %v2993, 0
        %v3478 = vsel %vm1693, %v2994, 0
        %v3481 = vsel %vm1693, %v2995, 0
        %v3484 = vsel %vm1693, %v3024, 0
        %v3487 = vsel %vm1693, %v3025, 0
        %v3490 = vsel %vm1693, %v3026, 0
        %v3493 = vsel %vm1693, %v3027, 0
        %v3496 = vsel %vm1693, %v3056, 0
        %v3499 = vsel %vm1693, %v3057, 0
        %v3502 = vsel %vm1693, %v3058, 0
        %v3505 = vsel %vm1693, %v3059, 0
        %v3508 = vsel %vm1693, %v3088, 0
        %v3511 = vsel %vm1693, %v3089, 0
        %v3514 = vsel %vm1693, %v3090, 0
        %v3517 = vsel %vm1693, %v3091, 0
        %v3520 = vsel %vm1693, %v3120, 0
        %v3523 = vsel %vm1693, %v3121, 0
        %v3526 = vsel %vm1693, %v3122, 0
        %v3529 = vsel %vm1693, %v3123, 0
        %v3532 = vsel %vm1693, %v3152, 0
        %v3535 = vsel %vm1693, %v3153, 0
        %v3538 = vsel %vm1693, %v3154, 0
        %v3541 = vsel %vm1693, %v3155, 0
        %v3544 = vsel %vm1693, %v3184, 0
        %v3547 = vsel %vm1693, %v3185, 0
        %v3550 = vsel %vm1693, %v3186, 0
        %v3553 = vsel %vm1693, %v3187, 0
        %v3556 = vsel %vm1693, %v3216, 0
        %v3559 = vsel %vm1693, %v3217, 0
        %v3562 = vsel %vm1693, %v3218, 0
        %v3565 = vsel %vm1693, %v3219, 0
        %v3568 = vsel %vm1693, %v3248, 0
        %v3571 = vsel %vm1693, %v3249, 0
        %v3574 = vsel %vm1693, %v3250, 0
        %v3577 = vsel %vm1693, %v3251, 0
        %v3580 = vsel %vm1693, %v3280, 0
        %v3583 = vsel %vm1693, %v3281, 0
        %v3586 = vsel %vm1693, %v3282, 0
        %v3589 = vsel %vm1693, %v3283, 0
        %v3592 = vsel %vm1693, %v3312, 0
        %v3595 = vsel %vm1693, %v3313, 0
        %v3598 = vsel %vm1693, %v3314, 0
        %v3601 = vsel %vm1693, %v3315, 0
        %v3604 = vsel %vm1693, %v3344, 0
        %v3607 = vsel %vm1693, %v3345, 0
        %v3610 = vsel %vm1693, %v3346, 0
        %v3613 = vsel %vm1693, %v3347, 0
        %v3616 = vsel %vm1693, %v3376, 0
        %v3619 = vsel %vm1693, %v3377, 0
        %v3622 = vsel %vm1693, %v3378, 0
        %v3625 = vsel %vm1693, %v3379, 0
        %v3628 = vsel %vm1693, %v3408, 0
        %v3631 = vsel %vm1693, %v3409, 0
        %v3634 = vsel %vm1693, %v3410, 0
        %v3637 = vsel %vm1693, %v3411, 0
        %v3640 = vsel %vm1693, %v3440, 0
        %v3643 = vsel %vm1693, %v3441, 0
        %v3646 = vsel %vm1693, %v3442, 0
        %v3649 = vsel %vm1693, %v3443, 0
        %3651 = vmatprep.subr.mxu0 0.0
        %3652 = vmatpush1.msra.mxu0 %v3457
        %3653 = vmatprep.subr.mxu0 0.0
        %3654 = vmatpush1.msra.mxu0 %v3458
        %3655 = vmatprep.subr.mxu0 0.0
        %3656 = vmatpush1.msra.mxu0 0.0
        %3657 = vmatprep.subr.mxu0 0.0
        %3658 = vmatpush1.msra.mxu0 0.0
        %3659 = vmatprep.subr.mxu0 0.0
        %3660 = vmatpush1.msra.mxu0 0.0
        %3661 = vmatprep.subr.mxu0 0.0
        %3662 = vmatpush1.msra.mxu0 0.0
        %3663 = vmatprep.subr.mxu0 0.0
        %3664 = vmatpush1.msra.mxu0 0.0
        %3665 = vmatprep.subr.mxu0 0.0
        %3666 = vmatpush1.msra.mxu0 0.0
        %3667 = vmatprep.subr.mxu0 0.0
        %3668 = vmatpush1.msra.mxu0 0.0
        %3669 = vmatprep.subr.mxu0 0.0
        %3670 = vmatpush1.msra.mxu0 0.0
        %3671 = vmatprep.subr.mxu0 0.0
        %3672 = vmatpush1.msra.mxu0 0.0
        %3673 = vmatprep.subr.mxu0 0.0
        %3674 = vmatpush1.msra.mxu0 0.0
        %3675 = vmatprep.subr.mxu0 0.0
        %3676 = vmatpush1.msra.mxu0 0.0
        %3677 = vmatprep.subr.mxu0 0.0
        %3678 = vmatpush1.msra.mxu0 0.0
        %3679 = vmatprep.subr.mxu0 0.0
        %3680 = vmatpush1.msra.mxu0 0.0
        %3681 = vmatprep.subr.mxu0 0.0
        %3682 = vmatpush1.msra.mxu0 0.0
        %3683 = vmatprep.subr.mxu0 0.0
        %3684 = vmatpush1.msra.mxu0 0.0
        %3685 = vmatprep.subr.mxu0 0.0
        %3686 = vmatpush1.msra.mxu0 0.0
        %3687 = vmatprep.subr.mxu0 0.0
        %3688 = vmatpush1.msra.mxu0 0.0
        %3689 = vmatprep.subr.mxu0 0.0
        %3690 = vmatpush1.msra.mxu0 0.0
        %3691 = vmatprep.subr.mxu0 0.0
        %3692 = vmatpush1.msra.mxu0 0.0
        %3693 = vmatprep.subr.mxu0 0.0
        %3694 = vmatpush1.msra.mxu0 0.0
        %3695 = vmatprep.subr.mxu0 0.0
        %3696 = vmatpush1.msra.mxu0 0.0
        %3697 = vmatprep.subr.mxu0 0.0
        %3698 = vmatpush1.msra.mxu0 0.0
        %3699 = vmatprep.subr.mxu0 0.0
        %3700 = vmatpush1.msra.mxu0 0.0
        %3701 = vmatprep.subr.mxu0 0.0
        %3702 = vmatpush1.msra.mxu0 0.0
        %3703 = vmatprep.subr.mxu0 0.0
        %3704 = vmatpush1.msra.mxu0 0.0
        %3705 = vmatprep.subr.mxu0 0.0
        %3706 = vmatpush1.msra.mxu0 0.0
        %3707 = vmatprep.subr.mxu0 0.0
        %3708 = vmatpush1.msra.mxu0 0.0
        %3709 = vmatprep.subr.mxu0 0.0
        %3710 = vmatpush1.msra.mxu0 0.0
        %3711 = vmatprep.subr.mxu0 0.0
        %3712 = vmatpush1.msra.mxu0 0.0
        %3713 = vmatprep.subr.mxu0 0.0
        %3714 = vmatpush1.msra.mxu0 0.0
        %3715 = vmatprep.mubr.f32.mxu0 0.0
        %3716 = vmatmul.mubr.f32.gmra.mrb[0].mxu0 %v3460
        %v3717 = vpop.f32.mrb[0].mxu0
        %v3718 = vadd.f32 0.0, %v3717
        %v3719 = vpop.f32.mrb[0].mxu0
        %3720 = vmatprep.mubr.f32.mxu0 0.0
        %3721 = vmatmul.mubr.f32.gmra.mrb[0].mxu0 %v3463
        %v3722 = vpop.f32.mrb[0].mxu0
        %v3723 = vadd.f32 0.0, %v3722
        %v3724 = vpop.f32.mrb[0].mxu0
        %3725 = vmatprep.mubr.f32.mxu0 0.0
        %3726 = vmatmul.mubr.f32.gmra.mrb[0].mxu0 %v3466
        %v3727 = vpop.f32.mrb[0].mxu0
        %v3728 = vadd.f32 0.0, %v3727
        %v3729 = vpop.f32.mrb[0].mxu0
        %3730 = vmatprep.mubr.f32.mxu0 0.0
        %3731 = vmatmul.mubr.f32.gmra.mrb[0].mxu0 %v3469
        %v3732 = vpop.f32.mrb[0].mxu0
        %v3733 = vadd.f32 0.0, %v3732
        %v3734 = vpop.f32.mrb[0].mxu0
        %3735 = vmatprep.mubr.f32.mxu0 0.0
        %3736 = vmatmul.mubr.f32.gmra.mrb[0].mxu0 %v3472
        %v3737 = vpop.f32.mrb[0].mxu0
        %v3738 = vadd.f32 0.0, %v3737
        %v3739 = vpop.f32.mrb[0].mxu0
        %3740 = vmatprep.mubr.f32.mxu0 0.0
        %3741 = vmatmul.mubr.f32.gmra.mrb[0].mxu0 %v3475
        %v3742 = vpop.f32.mrb[0].mxu0
        %v3743 = vadd.f32 0.0, %v3742
        %v3744 = vpop.f32.mrb[0].mxu0
        %3745 = vmatprep.mubr.f32.mxu0 0.0
        %3746 = vmatmul.mubr.f32.gmra.mrb[0].mxu0 %v3478
        %v3747 = vpop.f32.mrb[0].mxu0
        %v3748 = vadd.f32 0.0, %v3747
        %v3749 = vpop.f32.mrb[0].mxu0
        %3750 = vmatprep.mubr.f32.mxu0 0.0
        %3751 = vmatmul.mubr.f32.gmra.mrb[0].mxu0 %v3481
        %v3752 = vpop.f32.mrb[0].mxu0
        %v3753 = vadd.f32 0.0, %v3752
        %v3754 = vpop.f32.mrb[0].mxu0
        %3755 = vmatprep.mubr.f32.mxu0 0.0
        %3756 = vmatmul.mubr.f32.gmra.mrb[0].mxu0 %v3484
        %v3757 = vpop.f32.mrb[0].mxu0
        %v3758 = vadd.f32 0.0, %v3757
        %v3759 = vpop.f32.mrb[0].mxu0
        %3760 = vmatprep.mubr.f32.mxu0 0.0
        %3761 = vmatmul.mubr.f32.gmra.mrb[0].mxu0 %v3487
        %v3762 = vpop.f32.mrb[0].mxu0
        %v3763 = vadd.f32 0.0, %v3762
        %v3764 = vpop.f32.mrb[0].mxu0
        %3765 = vmatprep.mubr.f32.mxu0 0.0
        %3766 = vmatmul.mubr.f32.gmra.mrb[0].mxu0 %v3490
        %v3767 = vpop.f32.mrb[0].mxu0
        %v3768 = vadd.f32 0.0, %v3767
        %v3769 = vpop.f32.mrb[0].mxu0
        %3770 = vmatprep.mubr.f32.mxu0 0.0
        %3771 = vmatmul.mubr.f32.gmra.mrb[0].mxu0 %v3493
        %v3772 = vpop.f32.mrb[0].mxu0
        %v3773 = vadd.f32 0.0, %v3772
        %v3774 = vpop.f32.mrb[0].mxu0
        %3775 = vmatprep.mubr.f32.mxu0 0.0
        %3776 = vmatmul.mubr.f32.gmra.mrb[0].mxu0 %v3496
        %v3777 = vpop.f32.mrb[0].mxu0
        %v3778 = vadd.f32 0.0, %v3777
        %v3779 = vpop.f32.mrb[0].mxu0
        %3780 = vmatprep.mubr.f32.mxu0 0.0
        %3781 = vmatmul.mubr.f32.gmra.mrb[0].mxu0 %v3499
        %v3782 = vpop.f32.mrb[0].mxu0
        %v3783 = vadd.f32 0.0, %v3782
        %v3784 = vpop.f32.mrb[0].mxu0
        %3785 = vmatprep.mubr.f32.mxu0 0.0
        %3786 = vmatmul.mubr.f32.gmra.mrb[0].mxu0 %v3502
        %v3787 = vpop.f32.mrb[0].mxu0
        %v3788 = vadd.f32 0.0, %v3787
        %v3789 = vpop.f32.mrb[0].mxu0
        %3790 = vmatprep.mubr.f32.mxu0 0.0
        %3791 = vmatmul.mubr.f32.gmra.mrb[0].mxu0 %v3505
        %v3792 = vpop.f32.mrb[0].mxu0
        %v3793 = vadd.f32 0.0, %v3792
        %v3794 = vpop.f32.mrb[0].mxu0
        %3795 = vmatprep.mubr.f32.mxu0 0.0
        %3796 = vmatmul.mubr.f32.gmra.mrb[0].mxu0 %v3508
        %v3797 = vpop.f32.mrb[0].mxu0
        %v3798 = vadd.f32 0.0, %v3797
        %v3799 = vpop.f32.mrb[0].mxu0
        %3800 = vmatprep.mubr.f32.mxu0 0.0
        %3801 = vmatmul.mubr.f32.gmra.mrb[0].mxu0 %v3511
        %v3802 = vpop.f32.mrb[0].mxu0
        %v3803 = vadd.f32 0.0, %v3802
        %v3804 = vpop.f32.mrb[0].mxu0
        %3805 = vmatprep.mubr.f32.mxu0 0.0
        %3806 = vmatmul.mubr.f32.gmra.mrb[0].mxu0 %v3514
        %v3807 = vpop.f32.mrb[0].mxu0
        %v3808 = vadd.f32 0.0, %v3807
        %v3809 = vpop.f32.mrb[0].mxu0
        %3810 = vmatprep.mubr.f32.mxu0 0.0
        %3811 = vmatmul.mubr.f32.gmra.mrb[0].mxu0 %v3517
        %v3812 = vpop.f32.mrb[0].mxu0
        %v3813 = vadd.f32 0.0, %v3812
        %v3814 = vpop.f32.mrb[0].mxu0
        %3815 = vmatprep.mubr.f32.mxu0 0.0
        %3816 = vmatmul.mubr.f32.gmra.mrb[0].mxu0 %v3520
        %v3817 = vpop.f32.mrb[0].mxu0
        %v3818 = vadd.f32 0.0, %v3817
        %v3819 = vpop.f32.mrb[0].mxu0
        %3820 = vmatprep.mubr.f32.mxu0 0.0
        %3821 = vmatmul.mubr.f32.gmra.mrb[0].mxu0 %v3523
        %v3822 = vpop.f32.mrb[0].mxu0
        %v3823 = vadd.f32 0.0, %v3822
        %v3824 = vpop.f32.mrb[0].mxu0
        %3825 = vmatprep.mubr.f32.mxu0 0.0
        %3826 = vmatmul.mubr.f32.gmra.mrb[0].mxu0 %v3526
        %v3827 = vpop.f32.mrb[0].mxu0
        %v3828 = vadd.f32 0.0, %v3827
        %v3829 = vpop.f32.mrb[0].mxu0
        %3830 = vmatprep.mubr.f32.mxu0 0.0
        %3831 = vmatmul.mubr.f32.gmra.mrb[0].mxu0 %v3529
        %v3832 = vpop.f32.mrb[0].mxu0
        %v3833 = vadd.f32 0.0, %v3832
        %v3834 = vpop.f32.mrb[0].mxu0
        %3835 = vmatprep.mubr.f32.mxu0 0.0
        %3836 = vmatmul.mubr.f32.gmra.mrb[0].mxu0 %v3532
        %v3837 = vpop.f32.mrb[0].mxu0
        %v3838 = vadd.f32 0.0, %v3837
        %v3839 = vpop.f32.mrb[0].mxu0
        %3840 = vmatprep.mubr.f32.mxu0 0.0
        %3841 = vmatmul.mubr.f32.gmra.mrb[0].mxu0 %v3535
        %v3842 = vpop.f32.mrb[0].mxu0
        %v3843 = vadd.f32 0.0, %v3842
        %v3844 = vpop.f32.mrb[0].mxu0
        %3845 = vmatprep.mubr.f32.mxu0 0.0
        %3846 = vmatmul.mubr.f32.gmra.mrb[0].mxu0 %v3538
        %v3847 = vpop.f32.mrb[0].mxu0
        %v3848 = vadd.f32 0.0, %v3847
        %v3849 = vpop.f32.mrb[0].mxu0
        %3850 = vmatprep.mubr.f32.mxu0 0.0
        %3851 = vmatmul.mubr.f32.gmra.mrb[0].mxu0 %v3541
        %v3852 = vpop.f32.mrb[0].mxu0
        %v3853 = vadd.f32 0.0, %v3852
        %v3854 = vpop.f32.mrb[0].mxu0
        %3855 = vmatprep.mubr.f32.mxu0 0.0
        %3856 = vmatmul.mubr.f32.gmra.mrb[0].mxu0 %v3544
        %v3857 = vpop.f32.mrb[0].mxu0
        %v3858 = vadd.f32 0.0, %v3857
        %v3859 = vpop.f32.mrb[0].mxu0
        %3860 = vmatprep.mubr.f32.mxu0 0.0
        %3861 = vmatmul.mubr.f32.gmra.mrb[0].mxu0 %v3547
        %v3862 = vpop.f32.mrb[0].mxu0
        %v3863 = vadd.f32 0.0, %v3862
        %v3864 = vpop.f32.mrb[0].mxu0
        %3865 = vmatprep.mubr.f32.mxu0 0.0
        %3866 = vmatmul.mubr.f32.gmra.mrb[0].mxu0 %v3550
        %v3867 = vpop.f32.mrb[0].mxu0
        %v3868 = vadd.f32 0.0, %v3867
        %v3869 = vpop.f32.mrb[0].mxu0
        %3870 = vmatprep.mubr.f32.mxu0 0.0
        %3871 = vmatmul.mubr.f32.gmra.mrb[0].mxu0 %v3553
        %v3872 = vpop.f32.mrb[0].mxu0
        %v3873 = vadd.f32 0.0, %v3872
        %v3874 = vpop.f32.mrb[0].mxu0
        %3875 = vmatprep.mubr.f32.mxu0 0.0
        %3876 = vmatmul.mubr.f32.gmra.mrb[0].mxu0 %v3556
        %v3877 = vpop.f32.mrb[0].mxu0
        %v3878 = vadd.f32 0.0, %v3877
        %v3879 = vpop.f32.mrb[0].mxu0
        %3880 = vmatprep.mubr.f32.mxu0 0.0
        %3881 = vmatmul.mubr.f32.gmra.mrb[0].mxu0 %v3559
        %v3882 = vpop.f32.mrb[0].mxu0
        %v3883 = vadd.f32 0.0, %v3882
        %v3884 = vpop.f32.mrb[0].mxu0
        %3885 = vmatprep.mubr.f32.mxu0 0.0
        %3886 = vmatmul.mubr.f32.gmra.mrb[0].mxu0 %v3562
        %v3887 = vpop.f32.mrb[0].mxu0
        %v3888 = vadd.f32 0.0, %v3887
        %v3889 = vpop.f32.mrb[0].mxu0
        %3890 = vmatprep.mubr.f32.mxu0 0.0
        %3891 = vmatmul.mubr.f32.gmra.mrb[0].mxu0 %v3565
        %v3892 = vpop.f32.mrb[0].mxu0
        %v3893 = vadd.f32 0.0, %v3892
        %v3894 = vpop.f32.mrb[0].mxu0
        %3895 = vmatprep.mubr.f32.mxu0 0.0
        %3896 = vmatmul.mubr.f32.gmra.mrb[0].mxu0 %v3568
        %v3897 = vpop.f32.mrb[0].mxu0
        %v3898 = vadd.f32 0.0, %v3897
        %v3899 = vpop.f32.mrb[0].mxu0
        %3900 = vmatprep.mubr.f32.mxu0 0.0
        %3901 = vmatmul.mubr.f32.gmra.mrb[0].mxu0 %v3571
        %v3902 = vpop.f32.mrb[0].mxu0
        %v3903 = vadd.f32 0.0, %v3902
        %v3904 = vpop.f32.mrb[0].mxu0
        %3905 = vmatprep.mubr.f32.mxu0 0.0
        %3906 = vmatmul.mubr.f32.gmra.mrb[0].mxu0 %v3574
        %v3907 = vpop.f32.mrb[0].mxu0
        %v3908 = vadd.f32 0.0, %v3907
        %v3909 = vpop.f32.mrb[0].mxu0
        %3910 = vmatprep.mubr.f32.mxu0 0.0
        %3911 = vmatmul.mubr.f32.gmra.mrb[0].mxu0 %v3577
        %v3912 = vpop.f32.mrb[0].mxu0
        %v3913 = vadd.f32 0.0, %v3912
        %v3914 = vpop.f32.mrb[0].mxu0
        %3915 = vmatprep.mubr.f32.mxu0 0.0
        %3916 = vmatmul.mubr.f32.gmra.mrb[0].mxu0 %v3580
        %v3917 = vpop.f32.mrb[0].mxu0
        %v3918 = vadd.f32 0.0, %v3917
        %v3919 = vpop.f32.mrb[0].mxu0
        %3920 = vmatprep.mubr.f32.mxu0 0.0
        %3921 = vmatmul.mubr.f32.gmra.mrb[0].mxu0 %v3583
        %v3922 = vpop.f32.mrb[0].mxu0
        %v3923 = vadd.f32 0.0, %v3922
        %v3924 = vpop.f32.mrb[0].mxu0
        %3925 = vmatprep.mubr.f32.mxu0 0.0
        %3926 = vmatmul.mubr.f32.gmra.mrb[0].mxu0 %v3586
        %v3927 = vpop.f32.mrb[0].mxu0
        %v3928 = vadd.f32 0.0, %v3927
        %v3929 = vpop.f32.mrb[0].mxu0
        %3930 = vmatprep.mubr.f32.mxu0 0.0
        %3931 = vmatmul.mubr.f32.gmra.mrb[0].mxu0 %v3589
        %v3932 = vpop.f32.mrb[0].mxu0
        %v3933 = vadd.f32 0.0, %v3932
        %v3934 = vpop.f32.mrb[0].mxu0
        %3935 = vmatprep.mubr.f32.mxu0 0.0
        %3936 = vmatmul.mubr.f32.gmra.mrb[0].mxu0 %v3592
        %v3937 = vpop.f32.mrb[0].mxu0
        %v3938 = vadd.f32 0.0, %v3937
        %v3939 = vpop.f32.mrb[0].mxu0
        %3940 = vmatprep.mubr.f32.mxu0 0.0
        %3941 = vmatmul.mubr.f32.gmra.mrb[0].mxu0 %v3595
        %v3942 = vpop.f32.mrb[0].mxu0
        %v3943 = vadd.f32 0.0, %v3942
        %v3944 = vpop.f32.mrb[0].mxu0
        %3945 = vmatprep.mubr.f32.mxu0 0.0
        %3946 = vmatmul.mubr.f32.gmra.mrb[0].mxu0 %v3598
        %v3947 = vpop.f32.mrb[0].mxu0
        %v3948 = vadd.f32 0.0, %v3947
        %v3949 = vpop.f32.mrb[0].mxu0
        %3950 = vmatprep.mubr.f32.mxu0 0.0
        %3951 = vmatmul.mubr.f32.gmra.mrb[0].mxu0 %v3601
        %v3952 = vpop.f32.mrb[0].mxu0
        %v3953 = vadd.f32 0.0, %v3952
        %v3954 = vpop.f32.mrb[0].mxu0
        %3955 = vmatprep.mubr.f32.mxu0 0.0
        %3956 = vmatmul.mubr.f32.gmra.mrb[0].mxu0 %v3604
        %v3957 = vpop.f32.mrb[0].mxu0
        %v3958 = vadd.f32 0.0, %v3957
        %v3959 = vpop.f32.mrb[0].mxu0
        %3960 = vmatprep.mubr.f32.mxu0 0.0
        %3961 = vmatmul.mubr.f32.gmra.mrb[0].mxu0 %v3607
        %v3962 = vpop.f32.mrb[0].mxu0
        %v3963 = vadd.f32 0.0, %v3962
        %v3964 = vpop.f32.mrb[0].mxu0
        %3965 = vmatprep.mubr.f32.mxu0 0.0
        %3966 = vmatmul.mubr.f32.gmra.mrb[0].mxu0 %v3610
        %v3967 = vpop.f32.mrb[0].mxu0
        %v3968 = vadd.f32 0.0, %v3967
        %v3969 = vpop.f32.mrb[0].mxu0
        %3970 = vmatprep.mubr.f32.mxu0 0.0
        %3971 = vmatmul.mubr.f32.gmra.mrb[0].mxu0 %v3613
        %v3972 = vpop.f32.mrb[0].mxu0
        %v3973 = vadd.f32 0.0, %v3972
        %v3974 = vpop.f32.mrb[0].mxu0
        %3975 = vmatprep.mubr.f32.mxu0 0.0
        %3976 = vmatmul.mubr.f32.gmra.mrb[0].mxu0 %v3616
        %v3977 = vpop.f32.mrb[0].mxu0
        %v3978 = vadd.f32 0.0, %v3977
        %v3979 = vpop.f32.mrb[0].mxu0
        %3980 = vmatprep.mubr.f32.mxu0 0.0
        %3981 = vmatmul.mubr.f32.gmra.mrb[0].mxu0 %v3619
        %v3982 = vpop.f32.mrb[0].mxu0
        %v3983 = vadd.f32 0.0, %v3982
        %v3984 = vpop.f32.mrb[0].mxu0
        %3985 = vmatprep.mubr.f32.mxu0 0.0
        %3986 = vmatmul.mubr.f32.gmra.mrb[0].mxu0 %v3622
        %v3987 = vpop.f32.mrb[0].mxu0
        %v3988 = vadd.f32 0.0, %v3987
        %v3989 = vpop.f32.mrb[0].mxu0
        %3990 = vmatprep.mubr.f32.mxu0 0.0
        %3991 = vmatmul.mubr.f32.gmra.mrb[0].mxu0 %v3625
        %v3992 = vpop.f32.mrb[0].mxu0
        %v3993 = vadd.f32 0.0, %v3992
        %v3994 = vpop.f32.mrb[0].mxu0
        %3995 = vmatprep.mubr.f32.mxu0 0.0
        %3996 = vmatmul.mubr.f32.gmra.mrb[0].mxu0 %v3628
        %v3997 = vpop.f32.mrb[0].mxu0
        %v3998 = vadd.f32 0.0, %v3997
        %v3999 = vpop.f32.mrb[0].mxu0
        %4000 = vmatprep.mubr.f32.mxu0 0.0
        %4001 = vmatmul.mubr.f32.gmra.mrb[0].mxu0 %v3631
        %v4002 = vpop.f32.mrb[0].mxu0
        %v4003 = vadd.f32 0.0, %v4002
        %v4004 = vpop.f32.mrb[0].mxu0
        %4005 = vmatprep.mubr.f32.mxu0 0.0
        %4006 = vmatmul.mubr.f32.gmra.mrb[0].mxu0 %v3634
        %v4007 = vpop.f32.mrb[0].mxu0
        %v4008 = vadd.f32 0.0, %v4007
        %v4009 = vpop.f32.mrb[0].mxu0
        %4010 = vmatprep.mubr.f32.mxu0 0.0
        %4011 = vmatmul.mubr.f32.gmra.mrb[0].mxu0 %v3637
        %v4012 = vpop.f32.mrb[0].mxu0
        %v4013 = vadd.f32 0.0, %v4012
        %v4014 = vpop.f32.mrb[0].mxu0
        %4015 = vmatprep.mubr.f32.mxu0 0.0
        %4016 = vmatmul.mubr.f32.gmra.mrb[0].mxu0 %v3640
        %v4017 = vpop.f32.mrb[0].mxu0
        %v4018 = vadd.f32 0.0, %v4017
        %v4019 = vpop.f32.mrb[0].mxu0
        %4020 = vmatprep.mubr.f32.mxu0 0.0
        %4021 = vmatmul.mubr.f32.gmra.mrb[0].mxu0 %v3643
        %v4022 = vpop.f32.mrb[0].mxu0
        %v4023 = vadd.f32 0.0, %v4022
        %v4024 = vpop.f32.mrb[0].mxu0
        %4025 = vmatprep.mubr.f32.mxu0 0.0
        %4026 = vmatmul.mubr.f32.gmra.mrb[0].mxu0 %v3646
        %v4027 = vpop.f32.mrb[0].mxu0
        %v4028 = vadd.f32 0.0, %v4027
        %v4029 = vpop.f32.mrb[0].mxu0
        %4030 = vmatprep.mubr.f32.mxu0 0.0
        %4031 = vmatmul.mubr.f32.gmra.mrb[0].mxu0 %v3649
        %v4032 = vpop.f32.mrb[0].mxu0
        %v4033 = vadd.f32 0.0, %v4032
        %v4034 = vpop.f32.mrb[0].mxu0
        %4035 = vdwg.mxu0
        %v4036 = vadd.f32 %v2530, %v3718
        %v4037 = vadd.f32 %v2535, %v3723
        %v4038 = vadd.f32 %v2540, %v3728
        %v4039 = vadd.f32 %v2545, %v3733
        %v4040 = vadd.f32 %v2550, %v3738
        %v4041 = vadd.f32 %v2555, %v3743
        %v4042 = vadd.f32 %v2560, %v3748
        %v4043 = vadd.f32 %v2565, %v3753
        %v4044 = vadd.f32 %v2570, %v3758
        %v4045 = vadd.f32 %v2575, %v3763
        %v4046 = vadd.f32 %v2580, %v3768
        %v4047 = vadd.f32 %v2585, %v3773
        %v4048 = vadd.f32 %v2590, %v3778
        %v4049 = vadd.f32 %v2595, %v3783
        %v4050 = vadd.f32 %v2600, %v3788
        %v4051 = vadd.f32 %v2605, %v3793
        %v4052 = vadd.f32 %v2610, %v3798
        %v4053 = vadd.f32 %v2615, %v3803
        %v4054 = vadd.f32 %v2620, %v3808
        %v4055 = vadd.f32 %v2625, %v3813
        %v4056 = vadd.f32 %v2630, %v3818
        %v4057 = vadd.f32 %v2635, %v3823
        %v4058 = vadd.f32 %v2640, %v3828
        %v4059 = vadd.f32 %v2645, %v3833
        %v4060 = vadd.f32 %v2650, %v3838
        %v4061 = vadd.f32 %v2655, %v3843
        %v4062 = vadd.f32 %v2660, %v3848
        %v4063 = vadd.f32 %v2665, %v3853
        %v4064 = vadd.f32 %v2670, %v3858
        %v4065 = vadd.f32 %v2675, %v3863
        %v4066 = vadd.f32 %v2680, %v3868
        %v4067 = vadd.f32 %v2685, %v3873
        %v4068 = vadd.f32 %v2690, %v3878
        %v4069 = vadd.f32 %v2695, %v3883
        %v4070 = vadd.f32 %v2700, %v3888
        %v4071 = vadd.f32 %v2705, %v3893
        %v4072 = vadd.f32 %v2710, %v3898
        %v4073 = vadd.f32 %v2715, %v3903
        %v4074 = vadd.f32 %v2720, %v3908
        %v4075 = vadd.f32 %v2725, %v3913
        %v4076 = vadd.f32 %v2730, %v3918
        %v4077 = vadd.f32 %v2735, %v3923
        %v4078 = vadd.f32 %v2740, %v3928
        %v4079 = vadd.f32 %v2745, %v3933
        %v4080 = vadd.f32 %v2750, %v3938
        %v4081 = vadd.f32 %v2755, %v3943
        %v4082 = vadd.f32 %v2760, %v3948
        %v4083 = vadd.f32 %v2765, %v3953
        %v4084 = vadd.f32 %v2770, %v3958
        %v4085 = vadd.f32 %v2775, %v3963
        %v4086 = vadd.f32 %v2780, %v3968
        %v4087 = vadd.f32 %v2785, %v3973
        %v4088 = vadd.f32 %v2790, %v3978
        %v4089 = vadd.f32 %v2795, %v3983
        %v4090 = vadd.f32 %v2800, %v3988
        %v4091 = vadd.f32 %v2805, %v3993
        %v4092 = vadd.f32 %v2810, %v3998
        %v4093 = vadd.f32 %v2815, %v4003
        %v4094 = vadd.f32 %v2820, %v4008
        %v4095 = vadd.f32 %v2825, %v4013
        %v4096 = vadd.f32 %v2830, %v4018
        %v4097 = vadd.f32 %v2835, %v4023
        %v4098 = vadd.f32 %v2840, %v4028
        %v4099 = vadd.f32 %v2845, %v4033
        %4100 = vrot.lane.b32.xlu0 %v488, 32
        %v4101 = vpop.permute.xlu0 %4100
        %4102 = vrot.lane.b32.xlu0 %v489, 32
        %v4103 = vpop.permute.xlu0 %4102
        %4104 = vrot.lane.b32.xlu0 %v490, 32
        %v4105 = vpop.permute.xlu0 %4104
        %4106 = vrot.lane.b32.xlu0 %v491, 32
        %v4107 = vpop.permute.xlu0 %4106
        %4108 = vrot.lane.b32.xlu0 %v492, 32
        %v4109 = vpop.permute.xlu0 %4108
        %4110 = vrot.lane.b32.xlu0 %v493, 32
        %v4111 = vpop.permute.xlu0 %4110
        %4112 = vrot.lane.b32.xlu0 %v494, 32
        %v4113 = vpop.permute.xlu0 %4112
        %4114 = vrot.lane.b32.xlu0 %v495, 32
        %v4115 = vpop.permute.xlu0 %4114
        %4116 = vrot.lane.b32.xlu0 %v496, 32
        %v4117 = vpop.permute.xlu0 %4116
        %4118 = vrot.lane.b32.xlu0 %v497, 32
        %v4119 = vpop.permute.xlu0 %4118
        %4120 = vrot.lane.b32.xlu0 %v498, 32
        %v4121 = vpop.permute.xlu0 %4120
        %4122 = vrot.lane.b32.xlu0 %v499, 32
        %v4123 = vpop.permute.xlu0 %4122
        %4124 = vrot.lane.b32.xlu0 %v500, 32
        %v4125 = vpop.permute.xlu0 %4124
        %4126 = vrot.lane.b32.xlu0 %v501, 32
        %v4127 = vpop.permute.xlu0 %4126
        %4128 = vrot.lane.b32.xlu0 %v502, 32
        %v4129 = vpop.permute.xlu0 %4128
        %4130 = vrot.lane.b32.xlu0 %v503, 32
        %v4131 = vpop.permute.xlu0 %4130
        %4132 = vrot.lane.b32.xlu0 %v520, 32
        %v4133 = vpop.permute.xlu0 %4132
        %4134 = vrot.lane.b32.xlu0 %v521, 32
        %v4135 = vpop.permute.xlu0 %4134
        %4136 = vrot.lane.b32.xlu0 %v522, 32
        %v4137 = vpop.permute.xlu0 %4136
        %4138 = vrot.lane.b32.xlu0 %v523, 32
        %v4139 = vpop.permute.xlu0 %4138
        %4140 = vrot.lane.b32.xlu0 %v524, 32
        %v4141 = vpop.permute.xlu0 %4140
        %4142 = vrot.lane.b32.xlu0 %v525, 32
        %v4143 = vpop.permute.xlu0 %4142
        %4144 = vrot.lane.b32.xlu0 %v526, 32
        %v4145 = vpop.permute.xlu0 %4144
        %4146 = vrot.lane.b32.xlu0 %v527, 32
        %v4147 = vpop.permute.xlu0 %4146
        %4148 = vrot.lane.b32.xlu0 %v528, 32
        %v4149 = vpop.permute.xlu0 %4148
        %4150 = vrot.lane.b32.xlu0 %v529, 32
        %v4151 = vpop.permute.xlu0 %4150
        %4152 = vrot.lane.b32.xlu0 %v530, 32
        %v4153 = vpop.permute.xlu0 %4152
        %4154 = vrot.lane.b32.xlu0 %v531, 32
        %v4155 = vpop.permute.xlu0 %4154
        %4156 = vrot.lane.b32.xlu0 %v532, 32
        %v4157 = vpop.permute.xlu0 %4156
        %4158 = vrot.lane.b32.xlu0 %v533, 32
        %v4159 = vpop.permute.xlu0 %4158
        %4160 = vrot.lane.b32.xlu0 %v534, 32
        %v4161 = vpop.permute.xlu0 %4160
        %4162 = vrot.lane.b32.xlu0 %v535, 32
        %v4163 = vpop.permute.xlu0 %4162
        %4196 = vxpose.xlu0.b32.start [1/16] %v4101, 128
        %4197 = vxpose.xlu0.b32.cont [2/16] %v4103, 128
        %4198 = vxpose.xlu0.b32.cont [3/16] 0.0, 128
        %4199 = vxpose.xlu0.b32.cont [4/16] 0.0, 128
        %4200 = vxpose.xlu0.b32.cont [5/16] 0.0, 128
        %4201 = vxpose.xlu0.b32.cont [6/16] 0.0, 128
        %4202 = vxpose.xlu0.b32.cont [7/16] 0.0, 128
        %4203 = vxpose.xlu0.b32.cont [8/16] 0.0, 128
        %4204 = vxpose.xlu0.b32.cont [9/16] 0.0, 128
        %4205 = vxpose.xlu0.b32.cont [10/16] 0.0, 128
        %4206 = vxpose.xlu0.b32.cont [11/16] 0.0, 128
        %4207 = vxpose.xlu0.b32.cont [12/16] 0.0, 128
        %4208 = vxpose.xlu0.b32.cont [13/16] 0.0, 128
        %4209 = vxpose.xlu0.b32.cont [14/16] 0.0, 128
        %4210 = vxpose.xlu0.b32.cont [15/16] 0.0, 128
        %4211 = vxpose.xlu0.b32.end [16/16] 0.0, 128
        %v4212 = vpop.trf.xlu0
        %v4213 = vpop.trf.xlu0
        %v4214 = vpop.trf.xlu0
        %v4215 = vpop.trf.xlu0
        %v4216 = vpop.trf.xlu0
        %v4217 = vpop.trf.xlu0
        %v4218 = vpop.trf.xlu0
        %v4219 = vpop.trf.xlu0
        %v4220 = vpop.trf.xlu0
        %v4221 = vpop.trf.xlu0
        %v4222 = vpop.trf.xlu0
        %v4223 = vpop.trf.xlu0
        %v4224 = vpop.trf.xlu0
        %v4225 = vpop.trf.xlu0
        %v4226 = vpop.trf.xlu0
        %v4227 = vpop.trf.xlu0
        %4228 = vxpose.xlu0.b32.start [1/16] %v4105, 128
        %4229 = vxpose.xlu0.b32.cont [2/16] %v4107, 128
        %4230 = vxpose.xlu0.b32.cont [3/16] 0.0, 128
        %4231 = vxpose.xlu0.b32.cont [4/16] 0.0, 128
        %4232 = vxpose.xlu0.b32.cont [5/16] 0.0, 128
        %4233 = vxpose.xlu0.b32.cont [6/16] 0.0, 128
        %4234 = vxpose.xlu0.b32.cont [7/16] 0.0, 128
        %4235 = vxpose.xlu0.b32.cont [8/16] 0.0, 128
        %4236 = vxpose.xlu0.b32.cont [9/16] 0.0, 128
        %4237 = vxpose.xlu0.b32.cont [10/16] 0.0, 128
        %4238 = vxpose.xlu0.b32.cont [11/16] 0.0, 128
        %4239 = vxpose.xlu0.b32.cont [12/16] 0.0, 128
        %4240 = vxpose.xlu0.b32.cont [13/16] 0.0, 128
        %4241 = vxpose.xlu0.b32.cont [14/16] 0.0, 128
        %4242 = vxpose.xlu0.b32.cont [15/16] 0.0, 128
        %4243 = vxpose.xlu0.b32.end [16/16] 0.0, 128
        %v4244 = vpop.trf.xlu0
        %v4245 = vpop.trf.xlu0
        %v4246 = vpop.trf.xlu0
        %v4247 = vpop.trf.xlu0
        %v4248 = vpop.trf.xlu0
        %v4249 = vpop.trf.xlu0
        %v4250 = vpop.trf.xlu0
        %v4251 = vpop.trf.xlu0
        %v4252 = vpop.trf.xlu0
        %v4253 = vpop.trf.xlu0
        %v4254 = vpop.trf.xlu0
        %v4255 = vpop.trf.xlu0
        %v4256 = vpop.trf.xlu0
        %v4257 = vpop.trf.xlu0
        %v4258 = vpop.trf.xlu0
        %v4259 = vpop.trf.xlu0
        %4260 = vxpose.xlu0.b32.start [1/16] %v4109, 128
        %4261 = vxpose.xlu0.b32.cont [2/16] %v4111, 128
        %4262 = vxpose.xlu0.b32.cont [3/16] 0.0, 128
        %4263 = vxpose.xlu0.b32.cont [4/16] 0.0, 128
        %4264 = vxpose.xlu0.b32.cont [5/16] 0.0, 128
        %4265 = vxpose.xlu0.b32.cont [6/16] 0.0, 128
        %4266 = vxpose.xlu0.b32.cont [7/16] 0.0, 128
        %4267 = vxpose.xlu0.b32.cont [8/16] 0.0, 128
        %4268 = vxpose.xlu0.b32.cont [9/16] 0.0, 128
        %4269 = vxpose.xlu0.b32.cont [10/16] 0.0, 128
        %4270 = vxpose.xlu0.b32.cont [11/16] 0.0, 128
        %4271 = vxpose.xlu0.b32.cont [12/16] 0.0, 128
        %4272 = vxpose.xlu0.b32.cont [13/16] 0.0, 128
        %4273 = vxpose.xlu0.b32.cont [14/16] 0.0, 128
        %4274 = vxpose.xlu0.b32.cont [15/16] 0.0, 128
        %4275 = vxpose.xlu0.b32.end [16/16] 0.0, 128
        %v4276 = vpop.trf.xlu0
        %v4277 = vpop.trf.xlu0
        %v4278 = vpop.trf.xlu0
        %v4279 = vpop.trf.xlu0
        %v4280 = vpop.trf.xlu0
        %v4281 = vpop.trf.xlu0
        %v4282 = vpop.trf.xlu0
        %v4283 = vpop.trf.xlu0
        %v4284 = vpop.trf.xlu0
        %v4285 = vpop.trf.xlu0
        %v4286 = vpop.trf.xlu0
        %v4287 = vpop.trf.xlu0
        %v4288 = vpop.trf.xlu0
        %v4289 = vpop.trf.xlu0
        %v4290 = vpop.trf.xlu0
        %v4291 = vpop.trf.xlu0
        %4292 = vxpose.xlu0.b32.start [1/16] %v4113, 128
        %4293 = vxpose.xlu0.b32.cont [2/16] %v4115, 128
        %4294 = vxpose.xlu0.b32.cont [3/16] 0.0, 128
        %4295 = vxpose.xlu0.b32.cont [4/16] 0.0, 128
        %4296 = vxpose.xlu0.b32.cont [5/16] 0.0, 128
        %4297 = vxpose.xlu0.b32.cont [6/16] 0.0, 128
        %4298 = vxpose.xlu0.b32.cont [7/16] 0.0, 128
        %4299 = vxpose.xlu0.b32.cont [8/16] 0.0, 128
        %4300 = vxpose.xlu0.b32.cont [9/16] 0.0, 128
        %4301 = vxpose.xlu0.b32.cont [10/16] 0.0, 128
        %4302 = vxpose.xlu0.b32.cont [11/16] 0.0, 128
        %4303 = vxpose.xlu0.b32.cont [12/16] 0.0, 128
        %4304 = vxpose.xlu0.b32.cont [13/16] 0.0, 128
        %4305 = vxpose.xlu0.b32.cont [14/16] 0.0, 128
        %4306 = vxpose.xlu0.b32.cont [15/16] 0.0, 128
        %4307 = vxpose.xlu0.b32.end [16/16] 0.0, 128
        %v4308 = vpop.trf.xlu0
        %v4309 = vpop.trf.xlu0
        %v4310 = vpop.trf.xlu0
        %v4311 = vpop.trf.xlu0
        %v4312 = vpop.trf.xlu0
        %v4313 = vpop.trf.xlu0
        %v4314 = vpop.trf.xlu0
        %v4315 = vpop.trf.xlu0
        %v4316 = vpop.trf.xlu0
        %v4317 = vpop.trf.xlu0
        %v4318 = vpop.trf.xlu0
        %v4319 = vpop.trf.xlu0
        %v4320 = vpop.trf.xlu0
        %v4321 = vpop.trf.xlu0
        %v4322 = vpop.trf.xlu0
        %v4323 = vpop.trf.xlu0
        %4324 = vxpose.xlu0.b32.start [1/16] %v4117, 128
        %4325 = vxpose.xlu0.b32.cont [2/16] %v4119, 128
        %4326 = vxpose.xlu0.b32.cont [3/16] 0.0, 128
        %4327 = vxpose.xlu0.b32.cont [4/16] 0.0, 128
        %4328 = vxpose.xlu0.b32.cont [5/16] 0.0, 128
        %4329 = vxpose.xlu0.b32.cont [6/16] 0.0, 128
        %4330 = vxpose.xlu0.b32.cont [7/16] 0.0, 128
        %4331 = vxpose.xlu0.b32.cont [8/16] 0.0, 128
        %4332 = vxpose.xlu0.b32.cont [9/16] 0.0, 128
        %4333 = vxpose.xlu0.b32.cont [10/16] 0.0, 128
        %4334 = vxpose.xlu0.b32.cont [11/16] 0.0, 128
        %4335 = vxpose.xlu0.b32.cont [12/16] 0.0, 128
        %4336 = vxpose.xlu0.b32.cont [13/16] 0.0, 128
        %4337 = vxpose.xlu0.b32.cont [14/16] 0.0, 128
        %4338 = vxpose.xlu0.b32.cont [15/16] 0.0, 128
        %4339 = vxpose.xlu0.b32.end [16/16] 0.0, 128
        %v4340 = vpop.trf.xlu0
        %v4341 = vpop.trf.xlu0
        %v4342 = vpop.trf.xlu0
        %v4343 = vpop.trf.xlu0
        %v4344 = vpop.trf.xlu0
        %v4345 = vpop.trf.xlu0
        %v4346 = vpop.trf.xlu0
        %v4347 = vpop.trf.xlu0
        %v4348 = vpop.trf.xlu0
        %v4349 = vpop.trf.xlu0
        %v4350 = vpop.trf.xlu0
        %v4351 = vpop.trf.xlu0
        %v4352 = vpop.trf.xlu0
        %v4353 = vpop.trf.xlu0
        %v4354 = vpop.trf.xlu0
        %v4355 = vpop.trf.xlu0
        %4356 = vxpose.xlu0.b32.start [1/16] %v4121, 128
        %4357 = vxpose.xlu0.b32.cont [2/16] %v4123, 128
        %4358 = vxpose.xlu0.b32.cont [3/16] 0.0, 128
        %4359 = vxpose.xlu0.b32.cont [4/16] 0.0, 128
        %4360 = vxpose.xlu0.b32.cont [5/16] 0.0, 128
        %4361 = vxpose.xlu0.b32.cont [6/16] 0.0, 128
        %4362 = vxpose.xlu0.b32.cont [7/16] 0.0, 128
        %4363 = vxpose.xlu0.b32.cont [8/16] 0.0, 128
        %4364 = vxpose.xlu0.b32.cont [9/16] 0.0, 128
        %4365 = vxpose.xlu0.b32.cont [10/16] 0.0, 128
        %4366 = vxpose.xlu0.b32.cont [11/16] 0.0, 128
        %4367 = vxpose.xlu0.b32.cont [12/16] 0.0, 128
        %4368 = vxpose.xlu0.b32.cont [13/16] 0.0, 128
        %4369 = vxpose.xlu0.b32.cont [14/16] 0.0, 128
        %4370 = vxpose.xlu0.b32.cont [15/16] 0.0, 128
        %4371 = vxpose.xlu0.b32.end [16/16] 0.0, 128
        %v4372 = vpop.trf.xlu0
        %v4373 = vpop.trf.xlu0
        %v4374 = vpop.trf.xlu0
        %v4375 = vpop.trf.xlu0
        %v4376 = vpop.trf.xlu0
        %v4377 = vpop.trf.xlu0
        %v4378 = vpop.trf.xlu0
        %v4379 = vpop.trf.xlu0
        %v4380 = vpop.trf.xlu0
        %v4381 = vpop.trf.xlu0
        %v4382 = vpop.trf.xlu0
        %v4383 = vpop.trf.xlu0
        %v4384 = vpop.trf.xlu0
        %v4385 = vpop.trf.xlu0
        %v4386 = vpop.trf.xlu0
        %v4387 = vpop.trf.xlu0
        %4388 = vxpose.xlu0.b32.start [1/16] %v4125, 128
        %4389 = vxpose.xlu0.b32.cont [2/16] %v4127, 128
        %4390 = vxpose.xlu0.b32.cont [3/16] 0.0, 128
        %4391 = vxpose.xlu0.b32.cont [4/16] 0.0, 128
        %4392 = vxpose.xlu0.b32.cont [5/16] 0.0, 128
        %4393 = vxpose.xlu0.b32.cont [6/16] 0.0, 128
        %4394 = vxpose.xlu0.b32.cont [7/16] 0.0, 128
        %4395 = vxpose.xlu0.b32.cont [8/16] 0.0, 128
        %4396 = vxpose.xlu0.b32.cont [9/16] 0.0, 128
        %4397 = vxpose.xlu0.b32.cont [10/16] 0.0, 128
        %4398 = vxpose.xlu0.b32.cont [11/16] 0.0, 128
        %4399 = vxpose.xlu0.b32.cont [12/16] 0.0, 128
        %4400 = vxpose.xlu0.b32.cont [13/16] 0.0, 128
        %4401 = vxpose.xlu0.b32.cont [14/16] 0.0, 128
        %4402 = vxpose.xlu0.b32.cont [15/16] 0.0, 128
        %4403 = vxpose.xlu0.b32.end [16/16] 0.0, 128
        %v4404 = vpop.trf.xlu0
        %v4405 = vpop.trf.xlu0
        %v4406 = vpop.trf.xlu0
        %v4407 = vpop.trf.xlu0
        %v4408 = vpop.trf.xlu0
        %v4409 = vpop.trf.xlu0
        %v4410 = vpop.trf.xlu0
        %v4411 = vpop.trf.xlu0
        %v4412 = vpop.trf.xlu0
        %v4413 = vpop.trf.xlu0
        %v4414 = vpop.trf.xlu0
        %v4415 = vpop.trf.xlu0
        %v4416 = vpop.trf.xlu0
        %v4417 = vpop.trf.xlu0
        %v4418 = vpop.trf.xlu0
        %v4419 = vpop.trf.xlu0
        %4420 = vxpose.xlu0.b32.start [1/16] %v4129, 128
        %4421 = vxpose.xlu0.b32.cont [2/16] %v4131, 128
        %4422 = vxpose.xlu0.b32.cont [3/16] 0.0, 128
        %4423 = vxpose.xlu0.b32.cont [4/16] 0.0, 128
        %4424 = vxpose.xlu0.b32.cont [5/16] 0.0, 128
        %4425 = vxpose.xlu0.b32.cont [6/16] 0.0, 128
        %4426 = vxpose.xlu0.b32.cont [7/16] 0.0, 128
        %4427 = vxpose.xlu0.b32.cont [8/16] 0.0, 128
        %4428 = vxpose.xlu0.b32.cont [9/16] 0.0, 128
        %4429 = vxpose.xlu0.b32.cont [10/16] 0.0, 128
        %4430 = vxpose.xlu0.b32.cont [11/16] 0.0, 128
        %4431 = vxpose.xlu0.b32.cont [12/16] 0.0, 128
        %4432 = vxpose.xlu0.b32.cont [13/16] 0.0, 128
        %4433 = vxpose.xlu0.b32.cont [14/16] 0.0, 128
        %4434 = vxpose.xlu0.b32.cont [15/16] 0.0, 128
        %4435 = vxpose.xlu0.b32.end [16/16] 0.0, 128
        %v4436 = vpop.trf.xlu0
        %v4437 = vpop.trf.xlu0
        %v4438 = vpop.trf.xlu0
        %v4439 = vpop.trf.xlu0
        %v4440 = vpop.trf.xlu0
        %v4441 = vpop.trf.xlu0
        %v4442 = vpop.trf.xlu0
        %v4443 = vpop.trf.xlu0
        %v4444 = vpop.trf.xlu0
        %v4445 = vpop.trf.xlu0
        %v4446 = vpop.trf.xlu0
        %v4447 = vpop.trf.xlu0
        %v4448 = vpop.trf.xlu0
        %v4449 = vpop.trf.xlu0
        %v4450 = vpop.trf.xlu0
        %v4451 = vpop.trf.xlu0
        %4452 = vxpose.xlu0.b32.start [1/16] %v4133, 128
        %4453 = vxpose.xlu0.b32.cont [2/16] %v4135, 128
        %4454 = vxpose.xlu0.b32.cont [3/16] 0.0, 128
        %4455 = vxpose.xlu0.b32.cont [4/16] 0.0, 128
        %4456 = vxpose.xlu0.b32.cont [5/16] 0.0, 128
        %4457 = vxpose.xlu0.b32.cont [6/16] 0.0, 128
        %4458 = vxpose.xlu0.b32.cont [7/16] 0.0, 128
        %4459 = vxpose.xlu0.b32.cont [8/16] 0.0, 128
        %4460 = vxpose.xlu0.b32.cont [9/16] 0.0, 128
        %4461 = vxpose.xlu0.b32.cont [10/16] 0.0, 128
        %4462 = vxpose.xlu0.b32.cont [11/16] 0.0, 128
        %4463 = vxpose.xlu0.b32.cont [12/16] 0.0, 128
        %4464 = vxpose.xlu0.b32.cont [13/16] 0.0, 128
        %4465 = vxpose.xlu0.b32.cont [14/16] 0.0, 128
        %4466 = vxpose.xlu0.b32.cont [15/16] 0.0, 128
        %4467 = vxpose.xlu0.b32.end [16/16] 0.0, 128
        %v4468 = vpop.trf.xlu0
        %v4469 = vpop.trf.xlu0
        %v4470 = vpop.trf.xlu0
        %v4471 = vpop.trf.xlu0
        %v4472 = vpop.trf.xlu0
        %v4473 = vpop.trf.xlu0
        %v4474 = vpop.trf.xlu0
        %v4475 = vpop.trf.xlu0
        %v4476 = vpop.trf.xlu0
        %v4477 = vpop.trf.xlu0
        %v4478 = vpop.trf.xlu0
        %v4479 = vpop.trf.xlu0
        %v4480 = vpop.trf.xlu0
        %v4481 = vpop.trf.xlu0
        %v4482 = vpop.trf.xlu0
        %v4483 = vpop.trf.xlu0
        %4484 = vxpose.xlu0.b32.start [1/16] %v4137, 128
        %4485 = vxpose.xlu0.b32.cont [2/16] %v4139, 128
        %4486 = vxpose.xlu0.b32.cont [3/16] 0.0, 128
        %4487 = vxpose.xlu0.b32.cont [4/16] 0.0, 128
        %4488 = vxpose.xlu0.b32.cont [5/16] 0.0, 128
        %4489 = vxpose.xlu0.b32.cont [6/16] 0.0, 128
        %4490 = vxpose.xlu0.b32.cont [7/16] 0.0, 128
        %4491 = vxpose.xlu0.b32.cont [8/16] 0.0, 128
        %4492 = vxpose.xlu0.b32.cont [9/16] 0.0, 128
        %4493 = vxpose.xlu0.b32.cont [10/16] 0.0, 128
        %4494 = vxpose.xlu0.b32.cont [11/16] 0.0, 128
        %4495 = vxpose.xlu0.b32.cont [12/16] 0.0, 128
        %4496 = vxpose.xlu0.b32.cont [13/16] 0.0, 128
        %4497 = vxpose.xlu0.b32.cont [14/16] 0.0, 128
        %4498 = vxpose.xlu0.b32.cont [15/16] 0.0, 128
        %4499 = vxpose.xlu0.b32.end [16/16] 0.0, 128
        %v4500 = vpop.trf.xlu0
        %v4501 = vpop.trf.xlu0
        %v4502 = vpop.trf.xlu0
        %v4503 = vpop.trf.xlu0
        %v4504 = vpop.trf.xlu0
        %v4505 = vpop.trf.xlu0
        %v4506 = vpop.trf.xlu0
        %v4507 = vpop.trf.xlu0
        %v4508 = vpop.trf.xlu0
        %v4509 = vpop.trf.xlu0
        %v4510 = vpop.trf.xlu0
        %v4511 = vpop.trf.xlu0
        %v4512 = vpop.trf.xlu0
        %v4513 = vpop.trf.xlu0
        %v4514 = vpop.trf.xlu0
        %v4515 = vpop.trf.xlu0
        %4516 = vxpose.xlu0.b32.start [1/16] %v4141, 128
        %4517 = vxpose.xlu0.b32.cont [2/16] %v4143, 128
        %4518 = vxpose.xlu0.b32.cont [3/16] 0.0, 128
        %4519 = vxpose.xlu0.b32.cont [4/16] 0.0, 128
        %4520 = vxpose.xlu0.b32.cont [5/16] 0.0, 128
        %4521 = vxpose.xlu0.b32.cont [6/16] 0.0, 128
        %4522 = vxpose.xlu0.b32.cont [7/16] 0.0, 128
        %4523 = vxpose.xlu0.b32.cont [8/16] 0.0, 128
        %4524 = vxpose.xlu0.b32.cont [9/16] 0.0, 128
        %4525 = vxpose.xlu0.b32.cont [10/16] 0.0, 128
        %4526 = vxpose.xlu0.b32.cont [11/16] 0.0, 128
        %4527 = vxpose.xlu0.b32.cont [12/16] 0.0, 128
        %4528 = vxpose.xlu0.b32.cont [13/16] 0.0, 128
        %4529 = vxpose.xlu0.b32.cont [14/16] 0.0, 128
        %4530 = vxpose.xlu0.b32.cont [15/16] 0.0, 128
        %4531 = vxpose.xlu0.b32.end [16/16] 0.0, 128
        %v4532 = vpop.trf.xlu0
        %v4533 = vpop.trf.xlu0
        %v4534 = vpop.trf.xlu0
        %v4535 = vpop.trf.xlu0
        %v4536 = vpop.trf.xlu0
        %v4537 = vpop.trf.xlu0
        %v4538 = vpop.trf.xlu0
        %v4539 = vpop.trf.xlu0
        %v4540 = vpop.trf.xlu0
        %v4541 = vpop.trf.xlu0
        %v4542 = vpop.trf.xlu0
        %v4543 = vpop.trf.xlu0
        %v4544 = vpop.trf.xlu0
        %v4545 = vpop.trf.xlu0
        %v4546 = vpop.trf.xlu0
        %v4547 = vpop.trf.xlu0
        %4548 = vxpose.xlu0.b32.start [1/16] %v4145, 128
        %4549 = vxpose.xlu0.b32.cont [2/16] %v4147, 128
        %4550 = vxpose.xlu0.b32.cont [3/16] 0.0, 128
        %4551 = vxpose.xlu0.b32.cont [4/16] 0.0, 128
        %4552 = vxpose.xlu0.b32.cont [5/16] 0.0, 128
        %4553 = vxpose.xlu0.b32.cont [6/16] 0.0, 128
        %4554 = vxpose.xlu0.b32.cont [7/16] 0.0, 128
        %4555 = vxpose.xlu0.b32.cont [8/16] 0.0, 128
        %4556 = vxpose.xlu0.b32.cont [9/16] 0.0, 128
        %4557 = vxpose.xlu0.b32.cont [10/16] 0.0, 128
        %4558 = vxpose.xlu0.b32.cont [11/16] 0.0, 128
        %4559 = vxpose.xlu0.b32.cont [12/16] 0.0, 128
        %4560 = vxpose.xlu0.b32.cont [13/16] 0.0, 128
        %4561 = vxpose.xlu0.b32.cont [14/16] 0.0, 128
        %4562 = vxpose.xlu0.b32.cont [15/16] 0.0, 128
        %4563 = vxpose.xlu0.b32.end [16/16] 0.0, 128
        %v4564 = vpop.trf.xlu0
        %v4565 = vpop.trf.xlu0
        %v4566 = vpop.trf.xlu0
        %v4567 = vpop.trf.xlu0
        %v4568 = vpop.trf.xlu0
        %v4569 = vpop.trf.xlu0
        %v4570 = vpop.trf.xlu0
        %v4571 = vpop.trf.xlu0
        %v4572 = vpop.trf.xlu0
        %v4573 = vpop.trf.xlu0
        %v4574 = vpop.trf.xlu0
        %v4575 = vpop.trf.xlu0
        %v4576 = vpop.trf.xlu0
        %v4577 = vpop.trf.xlu0
        %v4578 = vpop.trf.xlu0
        %v4579 = vpop.trf.xlu0
        %4580 = vxpose.xlu0.b32.start [1/16] %v4149, 128
        %4581 = vxpose.xlu0.b32.cont [2/16] %v4151, 128
        %4582 = vxpose.xlu0.b32.cont [3/16] 0.0, 128
        %4583 = vxpose.xlu0.b32.cont [4/16] 0.0, 128
        %4584 = vxpose.xlu0.b32.cont [5/16] 0.0, 128
        %4585 = vxpose.xlu0.b32.cont [6/16] 0.0, 128
        %4586 = vxpose.xlu0.b32.cont [7/16] 0.0, 128
        %4587 = vxpose.xlu0.b32.cont [8/16] 0.0, 128
        %4588 = vxpose.xlu0.b32.cont [9/16] 0.0, 128
        %4589 = vxpose.xlu0.b32.cont [10/16] 0.0, 128
        %4590 = vxpose.xlu0.b32.cont [11/16] 0.0, 128
        %4591 = vxpose.xlu0.b32.cont [12/16] 0.0, 128
        %4592 = vxpose.xlu0.b32.cont [13/16] 0.0, 128
        %4593 = vxpose.xlu0.b32.cont [14/16] 0.0, 128
        %4594 = vxpose.xlu0.b32.cont [15/16] 0.0, 128
        %4595 = vxpose.xlu0.b32.end [16/16] 0.0, 128
        %v4596 = vpop.trf.xlu0
        %v4597 = vpop.trf.xlu0
        %v4598 = vpop.trf.xlu0
        %v4599 = vpop.trf.xlu0
        %v4600 = vpop.trf.xlu0
        %v4601 = vpop.trf.xlu0
        %v4602 = vpop.trf.xlu0
        %v4603 = vpop.trf.xlu0
        %v4604 = vpop.trf.xlu0
        %v4605 = vpop.trf.xlu0
        %v4606 = vpop.trf.xlu0
        %v4607 = vpop.trf.xlu0
        %v4608 = vpop.trf.xlu0
        %v4609 = vpop.trf.xlu0
        %v4610 = vpop.trf.xlu0
        %v4611 = vpop.trf.xlu0
        %4612 = vxpose.xlu0.b32.start [1/16] %v4153, 128
        %4613 = vxpose.xlu0.b32.cont [2/16] %v4155, 128
        %4614 = vxpose.xlu0.b32.cont [3/16] 0.0, 128
        %4615 = vxpose.xlu0.b32.cont [4/16] 0.0, 128
        %4616 = vxpose.xlu0.b32.cont [5/16] 0.0, 128
        %4617 = vxpose.xlu0.b32.cont [6/16] 0.0, 128
        %4618 = vxpose.xlu0.b32.cont [7/16] 0.0, 128
        %4619 = vxpose.xlu0.b32.cont [8/16] 0.0, 128
        %4620 = vxpose.xlu0.b32.cont [9/16] 0.0, 128
        %4621 = vxpose.xlu0.b32.cont [10/16] 0.0, 128
        %4622 = vxpose.xlu0.b32.cont [11/16] 0.0, 128
        %4623 = vxpose.xlu0.b32.cont [12/16] 0.0, 128
        %4624 = vxpose.xlu0.b32.cont [13/16] 0.0, 128
        %4625 = vxpose.xlu0.b32.cont [14/16] 0.0, 128
        %4626 = vxpose.xlu0.b32.cont [15/16] 0.0, 128
        %4627 = vxpose.xlu0.b32.end [16/16] 0.0, 128
        %v4628 = vpop.trf.xlu0
        %v4629 = vpop.trf.xlu0
        %v4630 = vpop.trf.xlu0
        %v4631 = vpop.trf.xlu0
        %v4632 = vpop.trf.xlu0
        %v4633 = vpop.trf.xlu0
        %v4634 = vpop.trf.xlu0
        %v4635 = vpop.trf.xlu0
        %v4636 = vpop.trf.xlu0
        %v4637 = vpop.trf.xlu0
        %v4638 = vpop.trf.xlu0
        %v4639 = vpop.trf.xlu0
        %v4640 = vpop.trf.xlu0
        %v4641 = vpop.trf.xlu0
        %v4642 = vpop.trf.xlu0
        %v4643 = vpop.trf.xlu0
        %4644 = vxpose.xlu0.b32.start [1/16] %v4157, 128
        %4645 = vxpose.xlu0.b32.cont [2/16] %v4159, 128
        %4646 = vxpose.xlu0.b32.cont [3/16] 0.0, 128
        %4647 = vxpose.xlu0.b32.cont [4/16] 0.0, 128
        %4648 = vxpose.xlu0.b32.cont [5/16] 0.0, 128
        %4649 = vxpose.xlu0.b32.cont [6/16] 0.0, 128
        %4650 = vxpose.xlu0.b32.cont [7/16] 0.0, 128
        %4651 = vxpose.xlu0.b32.cont [8/16] 0.0, 128
        %4652 = vxpose.xlu0.b32.cont [9/16] 0.0, 128
        %4653 = vxpose.xlu0.b32.cont [10/16] 0.0, 128
        %4654 = vxpose.xlu0.b32.cont [11/16] 0.0, 128
        %4655 = vxpose.xlu0.b32.cont [12/16] 0.0, 128
        %4656 = vxpose.xlu0.b32.cont [13/16] 0.0, 128
        %4657 = vxpose.xlu0.b32.cont [14/16] 0.0, 128
        %4658 = vxpose.xlu0.b32.cont [15/16] 0.0, 128
        %4659 = vxpose.xlu0.b32.end [16/16] 0.0, 128
        %v4660 = vpop.trf.xlu0
        %v4661 = vpop.trf.xlu0
        %v4662 = vpop.trf.xlu0
        %v4663 = vpop.trf.xlu0
        %v4664 = vpop.trf.xlu0
        %v4665 = vpop.trf.xlu0
        %v4666 = vpop.trf.xlu0
        %v4667 = vpop.trf.xlu0
        %v4668 = vpop.trf.xlu0
        %v4669 = vpop.trf.xlu0
        %v4670 = vpop.trf.xlu0
        %v4671 = vpop.trf.xlu0
        %v4672 = vpop.trf.xlu0
        %v4673 = vpop.trf.xlu0
        %v4674 = vpop.trf.xlu0
        %v4675 = vpop.trf.xlu0
        %4676 = vxpose.xlu0.b32.start [1/16] %v4161, 128
        %4677 = vxpose.xlu0.b32.cont [2/16] %v4163, 128
        %4678 = vxpose.xlu0.b32.cont [3/16] 0.0, 128
        %4679 = vxpose.xlu0.b32.cont [4/16] 0.0, 128
        %4680 = vxpose.xlu0.b32.cont [5/16] 0.0, 128
        %4681 = vxpose.xlu0.b32.cont [6/16] 0.0, 128
        %4682 = vxpose.xlu0.b32.cont [7/16] 0.0, 128
        %4683 = vxpose.xlu0.b32.cont [8/16] 0.0, 128
        %4684 = vxpose.xlu0.b32.cont [9/16] 0.0, 128
        %4685 = vxpose.xlu0.b32.cont [10/16] 0.0, 128
        %4686 = vxpose.xlu0.b32.cont [11/16] 0.0, 128
        %4687 = vxpose.xlu0.b32.cont [12/16] 0.0, 128
        %4688 = vxpose.xlu0.b32.cont [13/16] 0.0, 128
        %4689 = vxpose.xlu0.b32.cont [14/16] 0.0, 128
        %4690 = vxpose.xlu0.b32.cont [15/16] 0.0, 128
        %4691 = vxpose.xlu0.b32.end [16/16] 0.0, 128
        %v4692 = vpop.trf.xlu0
        %v4693 = vpop.trf.xlu0
        %v4694 = vpop.trf.xlu0
        %v4695 = vpop.trf.xlu0
        %v4696 = vpop.trf.xlu0
        %v4697 = vpop.trf.xlu0
        %v4698 = vpop.trf.xlu0
        %v4699 = vpop.trf.xlu0
        %v4700 = vpop.trf.xlu0
        %v4701 = vpop.trf.xlu0
        %v4702 = vpop.trf.xlu0
        %v4703 = vpop.trf.xlu0
        %v4704 = vpop.trf.xlu0
        %v4705 = vpop.trf.xlu0
        %v4706 = vpop.trf.xlu0
        %v4707 = vpop.trf.xlu0
        %s4708 = scalar_lea.vmem %s2, 48
        %v4709 = vld [vmem:[%s4708] sm:$0xff]
        %v4710 = vld [vmem:[%s4708 + $0x8] sm:$0xff]
        %v4712 = vsel %vm1693, %v4212, 0
        %v4715 = vsel %vm1693, %v4213, 0
        %v4718 = vsel %vm1693, %v4214, 0
        %v4721 = vsel %vm1693, %v4215, 0
        %v4724 = vsel %vm1693, %v4244, 0
        %v4727 = vsel %vm1693, %v4245, 0
        %v4730 = vsel %vm1693, %v4246, 0
        %v4733 = vsel %vm1693, %v4247, 0
        %v4736 = vsel %vm1693, %v4276, 0
        %v4739 = vsel %vm1693, %v4277, 0
        %v4742 = vsel %vm1693, %v4278, 0
        %v4745 = vsel %vm1693, %v4279, 0
        %v4748 = vsel %vm1693, %v4308, 0
        %v4751 = vsel %vm1693, %v4309, 0
        %v4754 = vsel %vm1693, %v4310, 0
        %v4757 = vsel %vm1693, %v4311, 0
        %v4760 = vsel %vm1693, %v4340, 0
        %v4763 = vsel %vm1693, %v4341, 0
        %v4766 = vsel %vm1693, %v4342, 0
        %v4769 = vsel %vm1693, %v4343, 0
        %v4772 = vsel %vm1693, %v4372, 0
        %v4775 = vsel %vm1693, %v4373, 0
        %v4778 = vsel %vm1693, %v4374, 0
        %v4781 = vsel %vm1693, %v4375, 0
        %v4784 = vsel %vm1693, %v4404, 0
        %v4787 = vsel %vm1693, %v4405, 0
        %v4790 = vsel %vm1693, %v4406, 0
        %v4793 = vsel %vm1693, %v4407, 0
        %v4796 = vsel %vm1693, %v4436, 0
        %v4799 = vsel %vm1693, %v4437, 0
        %v4802 = vsel %vm1693, %v4438, 0
        %v4805 = vsel %vm1693, %v4439, 0
        %v4808 = vsel %vm1693, %v4468, 0
        %v4811 = vsel %vm1693, %v4469, 0
        %v4814 = vsel %vm1693, %v4470, 0
        %v4817 = vsel %vm1693, %v4471, 0
        %v4820 = vsel %vm1693, %v4500, 0
        %v4823 = vsel %vm1693, %v4501, 0
        %v4826 = vsel %vm1693, %v4502, 0
        %v4829 = vsel %vm1693, %v4503, 0
        %v4832 = vsel %vm1693, %v4532, 0
        %v4835 = vsel %vm1693, %v4533, 0
        %v4838 = vsel %vm1693, %v4534, 0
        %v4841 = vsel %vm1693, %v4535, 0
        %v4844 = vsel %vm1693, %v4564, 0
        %v4847 = vsel %vm1693, %v4565, 0
        %v4850 = vsel %vm1693, %v4566, 0
        %v4853 = vsel %vm1693, %v4567, 0
        %v4856 = vsel %vm1693, %v4596, 0
        %v4859 = vsel %vm1693, %v4597, 0
        %v4862 = vsel %vm1693, %v4598, 0
        %v4865 = vsel %vm1693, %v4599, 0
        %v4868 = vsel %vm1693, %v4628, 0
        %v4871 = vsel %vm1693, %v4629, 0
        %v4874 = vsel %vm1693, %v4630, 0
        %v4877 = vsel %vm1693, %v4631, 0
        %v4880 = vsel %vm1693, %v4660, 0
        %v4883 = vsel %vm1693, %v4661, 0
        %v4886 = vsel %vm1693, %v4662, 0
        %v4889 = vsel %vm1693, %v4663, 0
        %v4892 = vsel %vm1693, %v4692, 0
        %v4895 = vsel %vm1693, %v4693, 0
        %v4898 = vsel %vm1693, %v4694, 0
        %v4901 = vsel %vm1693, %v4695, 0
        %4903 = vmatprep.subr.mxu0 0.0
        %4904 = vmatpush1.msra.mxu0 %v4709
        %4905 = vmatprep.subr.mxu0 0.0
        %4906 = vmatpush1.msra.mxu0 %v4710
        %4907 = vmatprep.subr.mxu0 0.0
        %4908 = vmatpush1.msra.mxu0 0.0
        %4909 = vmatprep.subr.mxu0 0.0
        %4910 = vmatpush1.msra.mxu0 0.0
        %4911 = vmatprep.subr.mxu0 0.0
        %4912 = vmatpush1.msra.mxu0 0.0
        %4913 = vmatprep.subr.mxu0 0.0
        %4914 = vmatpush1.msra.mxu0 0.0
        %4915 = vmatprep.subr.mxu0 0.0
        %4916 = vmatpush1.msra.mxu0 0.0
        %4917 = vmatprep.subr.mxu0 0.0
        %4918 = vmatpush1.msra.mxu0 0.0
        %4919 = vmatprep.subr.mxu0 0.0
        %4920 = vmatpush1.msra.mxu0 0.0
        %4921 = vmatprep.subr.mxu0 0.0
        %4922 = vmatpush1.msra.mxu0 0.0
        %4923 = vmatprep.subr.mxu0 0.0
        %4924 = vmatpush1.msra.mxu0 0.0
        %4925 = vmatprep.subr.mxu0 0.0
        %4926 = vmatpush1.msra.mxu0 0.0
        %4927 = vmatprep.subr.mxu0 0.0
        %4928 = vmatpush1.msra.mxu0 0.0
        %4929 = vmatprep.subr.mxu0 0.0
        %4930 = vmatpush1.msra.mxu0 0.0
        %4931 = vmatprep.subr.mxu0 0.0
        %4932 = vmatpush1.msra.mxu0 0.0
        %4933 = vmatprep.subr.mxu0 0.0
        %4934 = vmatpush1.msra.mxu0 0.0
        %4935 = vmatprep.subr.mxu0 0.0
        %4936 = vmatpush1.msra.mxu0 0.0
        %4937 = vmatprep.subr.mxu0 0.0
        %4938 = vmatpush1.msra.mxu0 0.0
        %4939 = vmatprep.subr.mxu0 0.0
        %4940 = vmatpush1.msra.mxu0 0.0
        %4941 = vmatprep.subr.mxu0 0.0
        %4942 = vmatpush1.msra.mxu0 0.0
        %4943 = vmatprep.subr.mxu0 0.0
        %4944 = vmatpush1.msra.mxu0 0.0
        %4945 = vmatprep.subr.mxu0 0.0
        %4946 = vmatpush1.msra.mxu0 0.0
        %4947 = vmatprep.subr.mxu0 0.0
        %4948 = vmatpush1.msra.mxu0 0.0
        %4949 = vmatprep.subr.mxu0 0.0
        %4950 = vmatpush1.msra.mxu0 0.0
        %4951 = vmatprep.subr.mxu0 0.0
        %4952 = vmatpush1.msra.mxu0 0.0
        %4953 = vmatprep.subr.mxu0 0.0
        %4954 = vmatpush1.msra.mxu0 0.0
        %4955 = vmatprep.subr.mxu0 0.0
        %4956 = vmatpush1.msra.mxu0 0.0
        %4957 = vmatprep.subr.mxu0 0.0
        %4958 = vmatpush1.msra.mxu0 0.0
        %4959 = vmatprep.subr.mxu0 0.0
        %4960 = vmatpush1.msra.mxu0 0.0
        %4961 = vmatprep.subr.mxu0 0.0
        %4962 = vmatpush1.msra.mxu0 0.0
        %4963 = vmatprep.subr.mxu0 0.0
        %4964 = vmatpush1.msra.mxu0 0.0
        %4965 = vmatprep.subr.mxu0 0.0
        %4966 = vmatpush1.msra.mxu0 0.0
        %4967 = vmatprep.mubr.f32.mxu0 0.0
        %4968 = vmatmul.mubr.f32.gmra.mrb[0].mxu0 %v4712
        %v4969 = vpop.f32.mrb[0].mxu0
        %v4970 = vadd.f32 0.0, %v4969
        %v4971 = vpop.f32.mrb[0].mxu0
        %4972 = vmatprep.mubr.f32.mxu0 0.0
        %4973 = vmatmul.mubr.f32.gmra.mrb[0].mxu0 %v4715
        %v4974 = vpop.f32.mrb[0].mxu0
        %v4975 = vadd.f32 0.0, %v4974
        %v4976 = vpop.f32.mrb[0].mxu0
        %4977 = vmatprep.mubr.f32.mxu0 0.0
        %4978 = vmatmul.mubr.f32.gmra.mrb[0].mxu0 %v4718
        %v4979 = vpop.f32.mrb[0].mxu0
        %v4980 = vadd.f32 0.0, %v4979
        %v4981 = vpop.f32.mrb[0].mxu0
        %4982 = vmatprep.mubr.f32.mxu0 0.0
        %4983 = vmatmul.mubr.f32.gmra.mrb[0].mxu0 %v4721
        %v4984 = vpop.f32.mrb[0].mxu0
        %v4985 = vadd.f32 0.0, %v4984
        %v4986 = vpop.f32.mrb[0].mxu0
        %4987 = vmatprep.mubr.f32.mxu0 0.0
        %4988 = vmatmul.mubr.f32.gmra.mrb[0].mxu0 %v4724
        %v4989 = vpop.f32.mrb[0].mxu0
        %v4990 = vadd.f32 0.0, %v4989
        %v4991 = vpop.f32.mrb[0].mxu0
        %4992 = vmatprep.mubr.f32.mxu0 0.0
        %4993 = vmatmul.mubr.f32.gmra.mrb[0].mxu0 %v4727
        %v4994 = vpop.f32.mrb[0].mxu0
        %v4995 = vadd.f32 0.0, %v4994
        %v4996 = vpop.f32.mrb[0].mxu0
        %4997 = vmatprep.mubr.f32.mxu0 0.0
        %4998 = vmatmul.mubr.f32.gmra.mrb[0].mxu0 %v4730
        %v4999 = vpop.f32.mrb[0].mxu0
        %v5000 = vadd.f32 0.0, %v4999
        %v5001 = vpop.f32.mrb[0].mxu0
        %5002 = vmatprep.mubr.f32.mxu0 0.0
        %5003 = vmatmul.mubr.f32.gmra.mrb[0].mxu0 %v4733
        %v5004 = vpop.f32.mrb[0].mxu0
        %v5005 = vadd.f32 0.0, %v5004
        %v5006 = vpop.f32.mrb[0].mxu0
        %5007 = vmatprep.mubr.f32.mxu0 0.0
        %5008 = vmatmul.mubr.f32.gmra.mrb[0].mxu0 %v4736
        %v5009 = vpop.f32.mrb[0].mxu0
        %v5010 = vadd.f32 0.0, %v5009
        %v5011 = vpop.f32.mrb[0].mxu0
        %5012 = vmatprep.mubr.f32.mxu0 0.0
        %5013 = vmatmul.mubr.f32.gmra.mrb[0].mxu0 %v4739
        %v5014 = vpop.f32.mrb[0].mxu0
        %v5015 = vadd.f32 0.0, %v5014
        %v5016 = vpop.f32.mrb[0].mxu0
        %5017 = vmatprep.mubr.f32.mxu0 0.0
        %5018 = vmatmul.mubr.f32.gmra.mrb[0].mxu0 %v4742
        %v5019 = vpop.f32.mrb[0].mxu0
        %v5020 = vadd.f32 0.0, %v5019
        %v5021 = vpop.f32.mrb[0].mxu0
        %5022 = vmatprep.mubr.f32.mxu0 0.0
        %5023 = vmatmul.mubr.f32.gmra.mrb[0].mxu0 %v4745
        %v5024 = vpop.f32.mrb[0].mxu0
        %v5025 = vadd.f32 0.0, %v5024
        %v5026 = vpop.f32.mrb[0].mxu0
        %5027 = vmatprep.mubr.f32.mxu0 0.0
        %5028 = vmatmul.mubr.f32.gmra.mrb[0].mxu0 %v4748
        %v5029 = vpop.f32.mrb[0].mxu0
        %v5030 = vadd.f32 0.0, %v5029
        %v5031 = vpop.f32.mrb[0].mxu0
        %5032 = vmatprep.mubr.f32.mxu0 0.0
        %5033 = vmatmul.mubr.f32.gmra.mrb[0].mxu0 %v4751
        %v5034 = vpop.f32.mrb[0].mxu0
        %v5035 = vadd.f32 0.0, %v5034
        %v5036 = vpop.f32.mrb[0].mxu0
        %5037 = vmatprep.mubr.f32.mxu0 0.0
        %5038 = vmatmul.mubr.f32.gmra.mrb[0].mxu0 %v4754
        %v5039 = vpop.f32.mrb[0].mxu0
        %v5040 = vadd.f32 0.0, %v5039
        %v5041 = vpop.f32.mrb[0].mxu0
        %5042 = vmatprep.mubr.f32.mxu0 0.0
        %5043 = vmatmul.mubr.f32.gmra.mrb[0].mxu0 %v4757
        %v5044 = vpop.f32.mrb[0].mxu0
        %v5045 = vadd.f32 0.0, %v5044
        %v5046 = vpop.f32.mrb[0].mxu0
        %5047 = vmatprep.mubr.f32.mxu0 0.0
        %5048 = vmatmul.mubr.f32.gmra.mrb[0].mxu0 %v4760
        %v5049 = vpop.f32.mrb[0].mxu0
        %v5050 = vadd.f32 0.0, %v5049
        %v5051 = vpop.f32.mrb[0].mxu0
        %5052 = vmatprep.mubr.f32.mxu0 0.0
        %5053 = vmatmul.mubr.f32.gmra.mrb[0].mxu0 %v4763
        %v5054 = vpop.f32.mrb[0].mxu0
        %v5055 = vadd.f32 0.0, %v5054
        %v5056 = vpop.f32.mrb[0].mxu0
        %5057 = vmatprep.mubr.f32.mxu0 0.0
        %5058 = vmatmul.mubr.f32.gmra.mrb[0].mxu0 %v4766
        %v5059 = vpop.f32.mrb[0].mxu0
        %v5060 = vadd.f32 0.0, %v5059
        %v5061 = vpop.f32.mrb[0].mxu0
        %5062 = vmatprep.mubr.f32.mxu0 0.0
        %5063 = vmatmul.mubr.f32.gmra.mrb[0].mxu0 %v4769
        %v5064 = vpop.f32.mrb[0].mxu0
        %v5065 = vadd.f32 0.0, %v5064
        %v5066 = vpop.f32.mrb[0].mxu0
        %5067 = vmatprep.mubr.f32.mxu0 0.0
        %5068 = vmatmul.mubr.f32.gmra.mrb[0].mxu0 %v4772
        %v5069 = vpop.f32.mrb[0].mxu0
        %v5070 = vadd.f32 0.0, %v5069
        %v5071 = vpop.f32.mrb[0].mxu0
        %5072 = vmatprep.mubr.f32.mxu0 0.0
        %5073 = vmatmul.mubr.f32.gmra.mrb[0].mxu0 %v4775
        %v5074 = vpop.f32.mrb[0].mxu0
        %v5075 = vadd.f32 0.0, %v5074
        %v5076 = vpop.f32.mrb[0].mxu0
        %5077 = vmatprep.mubr.f32.mxu0 0.0
        %5078 = vmatmul.mubr.f32.gmra.mrb[0].mxu0 %v4778
        %v5079 = vpop.f32.mrb[0].mxu0
        %v5080 = vadd.f32 0.0, %v5079
        %v5081 = vpop.f32.mrb[0].mxu0
        %5082 = vmatprep.mubr.f32.mxu0 0.0
        %5083 = vmatmul.mubr.f32.gmra.mrb[0].mxu0 %v4781
        %v5084 = vpop.f32.mrb[0].mxu0
        %v5085 = vadd.f32 0.0, %v5084
        %v5086 = vpop.f32.mrb[0].mxu0
        %5087 = vmatprep.mubr.f32.mxu0 0.0
        %5088 = vmatmul.mubr.f32.gmra.mrb[0].mxu0 %v4784
        %v5089 = vpop.f32.mrb[0].mxu0
        %v5090 = vadd.f32 0.0, %v5089
        %v5091 = vpop.f32.mrb[0].mxu0
        %5092 = vmatprep.mubr.f32.mxu0 0.0
        %5093 = vmatmul.mubr.f32.gmra.mrb[0].mxu0 %v4787
        %v5094 = vpop.f32.mrb[0].mxu0
        %v5095 = vadd.f32 0.0, %v5094
        %v5096 = vpop.f32.mrb[0].mxu0
        %5097 = vmatprep.mubr.f32.mxu0 0.0
        %5098 = vmatmul.mubr.f32.gmra.mrb[0].mxu0 %v4790
        %v5099 = vpop.f32.mrb[0].mxu0
        %v5100 = vadd.f32 0.0, %v5099
        %v5101 = vpop.f32.mrb[0].mxu0
        %5102 = vmatprep.mubr.f32.mxu0 0.0
        %5103 = vmatmul.mubr.f32.gmra.mrb[0].mxu0 %v4793
        %v5104 = vpop.f32.mrb[0].mxu0
        %v5105 = vadd.f32 0.0, %v5104
        %v5106 = vpop.f32.mrb[0].mxu0
        %5107 = vmatprep.mubr.f32.mxu0 0.0
        %5108 = vmatmul.mubr.f32.gmra.mrb[0].mxu0 %v4796
        %v5109 = vpop.f32.mrb[0].mxu0
        %v5110 = vadd.f32 0.0, %v5109
        %v5111 = vpop.f32.mrb[0].mxu0
        %5112 = vmatprep.mubr.f32.mxu0 0.0
        %5113 = vmatmul.mubr.f32.gmra.mrb[0].mxu0 %v4799
        %v5114 = vpop.f32.mrb[0].mxu0
        %v5115 = vadd.f32 0.0, %v5114
        %v5116 = vpop.f32.mrb[0].mxu0
        %5117 = vmatprep.mubr.f32.mxu0 0.0
        %5118 = vmatmul.mubr.f32.gmra.mrb[0].mxu0 %v4802
        %v5119 = vpop.f32.mrb[0].mxu0
        %v5120 = vadd.f32 0.0, %v5119
        %v5121 = vpop.f32.mrb[0].mxu0
        %5122 = vmatprep.mubr.f32.mxu0 0.0
        %5123 = vmatmul.mubr.f32.gmra.mrb[0].mxu0 %v4805
        %v5124 = vpop.f32.mrb[0].mxu0
        %v5125 = vadd.f32 0.0, %v5124
        %v5126 = vpop.f32.mrb[0].mxu0
        %5127 = vmatprep.mubr.f32.mxu0 0.0
        %5128 = vmatmul.mubr.f32.gmra.mrb[0].mxu0 %v4808
        %v5129 = vpop.f32.mrb[0].mxu0
        %v5130 = vadd.f32 0.0, %v5129
        %v5131 = vpop.f32.mrb[0].mxu0
        %5132 = vmatprep.mubr.f32.mxu0 0.0
        %5133 = vmatmul.mubr.f32.gmra.mrb[0].mxu0 %v4811
        %v5134 = vpop.f32.mrb[0].mxu0
        %v5135 = vadd.f32 0.0, %v5134
        %v5136 = vpop.f32.mrb[0].mxu0
        %5137 = vmatprep.mubr.f32.mxu0 0.0
        %5138 = vmatmul.mubr.f32.gmra.mrb[0].mxu0 %v4814
        %v5139 = vpop.f32.mrb[0].mxu0
        %v5140 = vadd.f32 0.0, %v5139
        %v5141 = vpop.f32.mrb[0].mxu0
        %5142 = vmatprep.mubr.f32.mxu0 0.0
        %5143 = vmatmul.mubr.f32.gmra.mrb[0].mxu0 %v4817
        %v5144 = vpop.f32.mrb[0].mxu0
        %v5145 = vadd.f32 0.0, %v5144
        %v5146 = vpop.f32.mrb[0].mxu0
        %5147 = vmatprep.mubr.f32.mxu0 0.0
        %5148 = vmatmul.mubr.f32.gmra.mrb[0].mxu0 %v4820
        %v5149 = vpop.f32.mrb[0].mxu0
        %v5150 = vadd.f32 0.0, %v5149
        %v5151 = vpop.f32.mrb[0].mxu0
        %5152 = vmatprep.mubr.f32.mxu0 0.0
        %5153 = vmatmul.mubr.f32.gmra.mrb[0].mxu0 %v4823
        %v5154 = vpop.f32.mrb[0].mxu0
        %v5155 = vadd.f32 0.0, %v5154
        %v5156 = vpop.f32.mrb[0].mxu0
        %5157 = vmatprep.mubr.f32.mxu0 0.0
        %5158 = vmatmul.mubr.f32.gmra.mrb[0].mxu0 %v4826
        %v5159 = vpop.f32.mrb[0].mxu0
        %v5160 = vadd.f32 0.0, %v5159
        %v5161 = vpop.f32.mrb[0].mxu0
        %5162 = vmatprep.mubr.f32.mxu0 0.0
        %5163 = vmatmul.mubr.f32.gmra.mrb[0].mxu0 %v4829
        %v5164 = vpop.f32.mrb[0].mxu0
        %v5165 = vadd.f32 0.0, %v5164
        %v5166 = vpop.f32.mrb[0].mxu0
        %5167 = vmatprep.mubr.f32.mxu0 0.0
        %5168 = vmatmul.mubr.f32.gmra.mrb[0].mxu0 %v4832
        %v5169 = vpop.f32.mrb[0].mxu0
        %v5170 = vadd.f32 0.0, %v5169
        %v5171 = vpop.f32.mrb[0].mxu0
        %5172 = vmatprep.mubr.f32.mxu0 0.0
        %5173 = vmatmul.mubr.f32.gmra.mrb[0].mxu0 %v4835
        %v5174 = vpop.f32.mrb[0].mxu0
        %v5175 = vadd.f32 0.0, %v5174
        %v5176 = vpop.f32.mrb[0].mxu0
        %5177 = vmatprep.mubr.f32.mxu0 0.0
        %5178 = vmatmul.mubr.f32.gmra.mrb[0].mxu0 %v4838
        %v5179 = vpop.f32.mrb[0].mxu0
        %v5180 = vadd.f32 0.0, %v5179
        %v5181 = vpop.f32.mrb[0].mxu0
        %5182 = vmatprep.mubr.f32.mxu0 0.0
        %5183 = vmatmul.mubr.f32.gmra.mrb[0].mxu0 %v4841
        %v5184 = vpop.f32.mrb[0].mxu0
        %v5185 = vadd.f32 0.0, %v5184
        %v5186 = vpop.f32.mrb[0].mxu0
        %5187 = vmatprep.mubr.f32.mxu0 0.0
        %5188 = vmatmul.mubr.f32.gmra.mrb[0].mxu0 %v4844
        %v5189 = vpop.f32.mrb[0].mxu0
        %v5190 = vadd.f32 0.0, %v5189
        %v5191 = vpop.f32.mrb[0].mxu0
        %5192 = vmatprep.mubr.f32.mxu0 0.0
        %5193 = vmatmul.mubr.f32.gmra.mrb[0].mxu0 %v4847
        %v5194 = vpop.f32.mrb[0].mxu0
        %v5195 = vadd.f32 0.0, %v5194
        %v5196 = vpop.f32.mrb[0].mxu0
        %5197 = vmatprep.mubr.f32.mxu0 0.0
        %5198 = vmatmul.mubr.f32.gmra.mrb[0].mxu0 %v4850
        %v5199 = vpop.f32.mrb[0].mxu0
        %v5200 = vadd.f32 0.0, %v5199
        %v5201 = vpop.f32.mrb[0].mxu0
        %5202 = vmatprep.mubr.f32.mxu0 0.0
        %5203 = vmatmul.mubr.f32.gmra.mrb[0].mxu0 %v4853
        %v5204 = vpop.f32.mrb[0].mxu0
        %v5205 = vadd.f32 0.0, %v5204
        %v5206 = vpop.f32.mrb[0].mxu0
        %5207 = vmatprep.mubr.f32.mxu0 0.0
        %5208 = vmatmul.mubr.f32.gmra.mrb[0].mxu0 %v4856
        %v5209 = vpop.f32.mrb[0].mxu0
        %v5210 = vadd.f32 0.0, %v5209
        %v5211 = vpop.f32.mrb[0].mxu0
        %5212 = vmatprep.mubr.f32.mxu0 0.0
        %5213 = vmatmul.mubr.f32.gmra.mrb[0].mxu0 %v4859
        %v5214 = vpop.f32.mrb[0].mxu0
        %v5215 = vadd.f32 0.0, %v5214
        %v5216 = vpop.f32.mrb[0].mxu0
        %5217 = vmatprep.mubr.f32.mxu0 0.0
        %5218 = vmatmul.mubr.f32.gmra.mrb[0].mxu0 %v4862
        %v5219 = vpop.f32.mrb[0].mxu0
        %v5220 = vadd.f32 0.0, %v5219
        %v5221 = vpop.f32.mrb[0].mxu0
        %5222 = vmatprep.mubr.f32.mxu0 0.0
        %5223 = vmatmul.mubr.f32.gmra.mrb[0].mxu0 %v4865
        %v5224 = vpop.f32.mrb[0].mxu0
        %v5225 = vadd.f32 0.0, %v5224
        %v5226 = vpop.f32.mrb[0].mxu0
        %5227 = vmatprep.mubr.f32.mxu0 0.0
        %5228 = vmatmul.mubr.f32.gmra.mrb[0].mxu0 %v4868
        %v5229 = vpop.f32.mrb[0].mxu0
        %v5230 = vadd.f32 0.0, %v5229
        %v5231 = vpop.f32.mrb[0].mxu0
        %5232 = vmatprep.mubr.f32.mxu0 0.0
        %5233 = vmatmul.mubr.f32.gmra.mrb[0].mxu0 %v4871
        %v5234 = vpop.f32.mrb[0].mxu0
        %v5235 = vadd.f32 0.0, %v5234
        %v5236 = vpop.f32.mrb[0].mxu0
        %5237 = vmatprep.mubr.f32.mxu0 0.0
        %5238 = vmatmul.mubr.f32.gmra.mrb[0].mxu0 %v4874
        %v5239 = vpop.f32.mrb[0].mxu0
        %v5240 = vadd.f32 0.0, %v5239
        %v5241 = vpop.f32.mrb[0].mxu0
        %5242 = vmatprep.mubr.f32.mxu0 0.0
        %5243 = vmatmul.mubr.f32.gmra.mrb[0].mxu0 %v4877
        %v5244 = vpop.f32.mrb[0].mxu0
        %v5245 = vadd.f32 0.0, %v5244
        %v5246 = vpop.f32.mrb[0].mxu0
        %5247 = vmatprep.mubr.f32.mxu0 0.0
        %5248 = vmatmul.mubr.f32.gmra.mrb[0].mxu0 %v4880
        %v5249 = vpop.f32.mrb[0].mxu0
        %v5250 = vadd.f32 0.0, %v5249
        %v5251 = vpop.f32.mrb[0].mxu0
        %5252 = vmatprep.mubr.f32.mxu0 0.0
        %5253 = vmatmul.mubr.f32.gmra.mrb[0].mxu0 %v4883
        %v5254 = vpop.f32.mrb[0].mxu0
        %v5255 = vadd.f32 0.0, %v5254
        %v5256 = vpop.f32.mrb[0].mxu0
        %5257 = vmatprep.mubr.f32.mxu0 0.0
        %5258 = vmatmul.mubr.f32.gmra.mrb[0].mxu0 %v4886
        %v5259 = vpop.f32.mrb[0].mxu0
        %v5260 = vadd.f32 0.0, %v5259
        %v5261 = vpop.f32.mrb[0].mxu0
        %5262 = vmatprep.mubr.f32.mxu0 0.0
        %5263 = vmatmul.mubr.f32.gmra.mrb[0].mxu0 %v4889
        %v5264 = vpop.f32.mrb[0].mxu0
        %v5265 = vadd.f32 0.0, %v5264
        %v5266 = vpop.f32.mrb[0].mxu0
        %5267 = vmatprep.mubr.f32.mxu0 0.0
        %5268 = vmatmul.mubr.f32.gmra.mrb[0].mxu0 %v4892
        %v5269 = vpop.f32.mrb[0].mxu0
        %v5270 = vadd.f32 0.0, %v5269
        %v5271 = vpop.f32.mrb[0].mxu0
        %5272 = vmatprep.mubr.f32.mxu0 0.0
        %5273 = vmatmul.mubr.f32.gmra.mrb[0].mxu0 %v4895
        %v5274 = vpop.f32.mrb[0].mxu0
        %v5275 = vadd.f32 0.0, %v5274
        %v5276 = vpop.f32.mrb[0].mxu0
        %5277 = vmatprep.mubr.f32.mxu0 0.0
        %5278 = vmatmul.mubr.f32.gmra.mrb[0].mxu0 %v4898
        %v5279 = vpop.f32.mrb[0].mxu0
        %v5280 = vadd.f32 0.0, %v5279
        %v5281 = vpop.f32.mrb[0].mxu0
        %5282 = vmatprep.mubr.f32.mxu0 0.0
        %5283 = vmatmul.mubr.f32.gmra.mrb[0].mxu0 %v4901
        %v5284 = vpop.f32.mrb[0].mxu0
        %v5285 = vadd.f32 0.0, %v5284
        %v5286 = vpop.f32.mrb[0].mxu0
        %5287 = vdwg.mxu0
        %v5288 = vadd.f32 %v4036, %v4970
        %v5289 = vadd.f32 %v4037, %v4975
        %v5290 = vadd.f32 %v4038, %v4980
        %v5291 = vadd.f32 %v4039, %v4985
        %v5292 = vadd.f32 %v4040, %v4990
        %v5293 = vadd.f32 %v4041, %v4995
        %v5294 = vadd.f32 %v4042, %v5000
        %v5295 = vadd.f32 %v4043, %v5005
        %v5296 = vadd.f32 %v4044, %v5010
        %v5297 = vadd.f32 %v4045, %v5015
        %v5298 = vadd.f32 %v4046, %v5020
        %v5299 = vadd.f32 %v4047, %v5025
        %v5300 = vadd.f32 %v4048, %v5030
        %v5301 = vadd.f32 %v4049, %v5035
        %v5302 = vadd.f32 %v4050, %v5040
        %v5303 = vadd.f32 %v4051, %v5045
        %v5304 = vadd.f32 %v4052, %v5050
        %v5305 = vadd.f32 %v4053, %v5055
        %v5306 = vadd.f32 %v4054, %v5060
        %v5307 = vadd.f32 %v4055, %v5065
        %v5308 = vadd.f32 %v4056, %v5070
        %v5309 = vadd.f32 %v4057, %v5075
        %v5310 = vadd.f32 %v4058, %v5080
        %v5311 = vadd.f32 %v4059, %v5085
        %v5312 = vadd.f32 %v4060, %v5090
        %v5313 = vadd.f32 %v4061, %v5095
        %v5314 = vadd.f32 %v4062, %v5100
        %v5315 = vadd.f32 %v4063, %v5105
        %v5316 = vadd.f32 %v4064, %v5110
        %v5317 = vadd.f32 %v4065, %v5115
        %v5318 = vadd.f32 %v4066, %v5120
        %v5319 = vadd.f32 %v4067, %v5125
        %v5320 = vadd.f32 %v4068, %v5130
        %v5321 = vadd.f32 %v4069, %v5135
        %v5322 = vadd.f32 %v4070, %v5140
        %v5323 = vadd.f32 %v4071, %v5145
        %v5324 = vadd.f32 %v4072, %v5150
        %v5325 = vadd.f32 %v4073, %v5155
        %v5326 = vadd.f32 %v4074, %v5160
        %v5327 = vadd.f32 %v4075, %v5165
        %v5328 = vadd.f32 %v4076, %v5170
        %v5329 = vadd.f32 %v4077, %v5175
        %v5330 = vadd.f32 %v4078, %v5180
        %v5331 = vadd.f32 %v4079, %v5185
        %v5332 = vadd.f32 %v4080, %v5190
        %v5333 = vadd.f32 %v4081, %v5195
        %v5334 = vadd.f32 %v4082, %v5200
        %v5335 = vadd.f32 %v4083, %v5205
        %v5336 = vadd.f32 %v4084, %v5210
        %v5337 = vadd.f32 %v4085, %v5215
        %v5338 = vadd.f32 %v4086, %v5220
        %v5339 = vadd.f32 %v4087, %v5225
        %v5340 = vadd.f32 %v4088, %v5230
        %v5341 = vadd.f32 %v4089, %v5235
        %v5342 = vadd.f32 %v4090, %v5240
        %v5343 = vadd.f32 %v4091, %v5245
        %v5344 = vadd.f32 %v4092, %v5250
        %v5345 = vadd.f32 %v4093, %v5255
        %v5346 = vadd.f32 %v4094, %v5260
        %v5347 = vadd.f32 %v4095, %v5265
        %v5348 = vadd.f32 %v4096, %v5270
        %v5349 = vadd.f32 %v4097, %v5275
        %v5350 = vadd.f32 %v4098, %v5280
        %v5351 = vadd.f32 %v4099, %v5285
        %v5352 = vld [vmem:[#allocation2] sm:$0xff]
        %v5353 = vld [vmem:[#allocation2 + $0x8] sm:$0xff]
        %v5354 = vld [vmem:[#allocation2 + $0x10] sm:$0xff]
        %v5355 = vld [vmem:[#allocation2 + $0x18] sm:$0xff]
        %v5356 = vld [vmem:[#allocation2 + $0x20] sm:$0xff]
        %v5357 = vld [vmem:[#allocation2 + $0x28] sm:$0xff]
        %v5358 = vld [vmem:[#allocation2 + $0x30] sm:$0xff]
        %v5359 = vld [vmem:[#allocation2 + $0x38] sm:$0xff]
        %v5360 = vld [vmem:[#allocation2 + $0x40] sm:$0xff]
        %v5361 = vld [vmem:[#allocation2 + $0x48] sm:$0xff]
        %v5362 = vld [vmem:[#allocation2 + $0x50] sm:$0xff]
        %v5363 = vld [vmem:[#allocation2 + $0x58] sm:$0xff]
        %v5364 = vld [vmem:[#allocation2 + $0x60] sm:$0xff]
        %v5365 = vld [vmem:[#allocation2 + $0x68] sm:$0xff]
        %v5366 = vld [vmem:[#allocation2 + $0x70] sm:$0xff]
        %v5367 = vld [vmem:[#allocation2 + $0x78] sm:$0xff]
        %v5368 = vld [vmem:[#allocation2 + $0x80] sm:$0xff]
        %v5369 = vld [vmem:[#allocation2 + $0x88] sm:$0xff]
        %v5370 = vld [vmem:[#allocation2 + $0x90] sm:$0xff]
        %v5371 = vld [vmem:[#allocation2 + $0x98] sm:$0xff]
        %v5372 = vld [vmem:[#allocation2 + $0xa0] sm:$0xff]
        %v5373 = vld [vmem:[#allocation2 + $0xa8] sm:$0xff]
        %v5374 = vld [vmem:[#allocation2 + $0xb0] sm:$0xff]
        %v5375 = vld [vmem:[#allocation2 + $0xb8] sm:$0xff]
        %v5376 = vld [vmem:[#allocation2 + $0xc0] sm:$0xff]
        %v5377 = vld [vmem:[#allocation2 + $0xc8] sm:$0xff]
        %v5378 = vld [vmem:[#allocation2 + $0xd0] sm:$0xff]
        %v5379 = vld [vmem:[#allocation2 + $0xd8] sm:$0xff]
        %v5380 = vld [vmem:[#allocation2 + $0xe0] sm:$0xff]
        %v5381 = vld [vmem:[#allocation2 + $0xe8] sm:$0xff]
        %v5382 = vld [vmem:[#allocation2 + $0xf0] sm:$0xff]
        %v5383 = vld [vmem:[#allocation2 + $0xf8] sm:$0xff]
        %v5384 = vld [vmem:[#allocation2 + $0x100] sm:$0xff]
        %v5385 = vld [vmem:[#allocation2 + $0x108] sm:$0xff]
        %v5386 = vld [vmem:[#allocation2 + $0x110] sm:$0xff]
        %v5387 = vld [vmem:[#allocation2 + $0x118] sm:$0xff]
        %v5388 = vld [vmem:[#allocation2 + $0x120] sm:$0xff]
        %v5389 = vld [vmem:[#allocation2 + $0x128] sm:$0xff]
        %v5390 = vld [vmem:[#allocation2 + $0x130] sm:$0xff]
        %v5391 = vld [vmem:[#allocation2 + $0x138] sm:$0xff]
        %v5392 = vld [vmem:[#allocation2 + $0x140] sm:$0xff]
        %v5393 = vld [vmem:[#allocation2 + $0x148] sm:$0xff]
        %v5394 = vld [vmem:[#allocation2 + $0x150] sm:$0xff]
        %v5395 = vld [vmem:[#allocation2 + $0x158] sm:$0xff]
        %v5396 = vld [vmem:[#allocation2 + $0x160] sm:$0xff]
        %v5397 = vld [vmem:[#allocation2 + $0x168] sm:$0xff]
        %v5398 = vld [vmem:[#allocation2 + $0x170] sm:$0xff]
        %v5399 = vld [vmem:[#allocation2 + $0x178] sm:$0xff]
        %v5400 = vld [vmem:[#allocation2 + $0x180] sm:$0xff]
        %v5401 = vld [vmem:[#allocation2 + $0x188] sm:$0xff]
        %v5402 = vld [vmem:[#allocation2 + $0x190] sm:$0xff]
        %v5403 = vld [vmem:[#allocation2 + $0x198] sm:$0xff]
        %v5404 = vld [vmem:[#allocation2 + $0x1a0] sm:$0xff]
        %v5405 = vld [vmem:[#allocation2 + $0x1a8] sm:$0xff]
        %v5406 = vld [vmem:[#allocation2 + $0x1b0] sm:$0xff]
        %v5407 = vld [vmem:[#allocation2 + $0x1b8] sm:$0xff]
        %v5408 = vld [vmem:[#allocation2 + $0x1c0] sm:$0xff]
        %v5409 = vld [vmem:[#allocation2 + $0x1c8] sm:$0xff]
        %v5410 = vld [vmem:[#allocation2 + $0x1d0] sm:$0xff]
        %v5411 = vld [vmem:[#allocation2 + $0x1d8] sm:$0xff]
        %v5412 = vld [vmem:[#allocation2 + $0x1e0] sm:$0xff]
        %v5413 = vld [vmem:[#allocation2 + $0x1e8] sm:$0xff]
        %v5414 = vld [vmem:[#allocation2 + $0x1f0] sm:$0xff]
        %v5415 = vld [vmem:[#allocation2 + $0x1f8] sm:$0xff]
        %v5416 = vld [vmem:[#allocation2 + $0x200] sm:$0xff]
        %v5417 = vld [vmem:[#allocation2 + $0x208] sm:$0xff]
        %v5418 = vld [vmem:[#allocation2 + $0x210] sm:$0xff]
        %v5419 = vld [vmem:[#allocation2 + $0x218] sm:$0xff]
        %v5420 = vld [vmem:[#allocation2 + $0x220] sm:$0xff]
        %v5421 = vld [vmem:[#allocation2 + $0x228] sm:$0xff]
        %v5422 = vld [vmem:[#allocation2 + $0x230] sm:$0xff]
        %v5423 = vld [vmem:[#allocation2 + $0x238] sm:$0xff]
        %v5424 = vld [vmem:[#allocation2 + $0x240] sm:$0xff]
        %v5425 = vld [vmem:[#allocation2 + $0x248] sm:$0xff]
        %v5426 = vld [vmem:[#allocation2 + $0x250] sm:$0xff]
        %v5427 = vld [vmem:[#allocation2 + $0x258] sm:$0xff]
        %v5428 = vld [vmem:[#allocation2 + $0x260] sm:$0xff]
        %v5429 = vld [vmem:[#allocation2 + $0x268] sm:$0xff]
        %v5430 = vld [vmem:[#allocation2 + $0x270] sm:$0xff]
        %v5431 = vld [vmem:[#allocation2 + $0x278] sm:$0xff]
        %v5432 = vld [vmem:[#allocation2 + $0x280] sm:$0xff]
        %v5433 = vld [vmem:[#allocation2 + $0x288] sm:$0xff]
        %v5434 = vld [vmem:[#allocation2 + $0x290] sm:$0xff]
        %v5435 = vld [vmem:[#allocation2 + $0x298] sm:$0xff]
        %v5436 = vld [vmem:[#allocation2 + $0x2a0] sm:$0xff]
        %v5437 = vld [vmem:[#allocation2 + $0x2a8] sm:$0xff]
        %v5438 = vld [vmem:[#allocation2 + $0x2b0] sm:$0xff]
        %v5439 = vld [vmem:[#allocation2 + $0x2b8] sm:$0xff]
        %v5440 = vld [vmem:[#allocation2 + $0x2c0] sm:$0xff]
        %v5441 = vld [vmem:[#allocation2 + $0x2c8] sm:$0xff]
        %v5442 = vld [vmem:[#allocation2 + $0x2d0] sm:$0xff]
        %v5443 = vld [vmem:[#allocation2 + $0x2d8] sm:$0xff]
        %v5444 = vld [vmem:[#allocation2 + $0x2e0] sm:$0xff]
        %v5445 = vld [vmem:[#allocation2 + $0x2e8] sm:$0xff]
        %v5446 = vld [vmem:[#allocation2 + $0x2f0] sm:$0xff]
        %v5447 = vld [vmem:[#allocation2 + $0x2f8] sm:$0xff]
        %v5448 = vld [vmem:[#allocation2 + $0x300] sm:$0xff]
        %v5449 = vld [vmem:[#allocation2 + $0x308] sm:$0xff]
        %v5450 = vld [vmem:[#allocation2 + $0x310] sm:$0xff]
        %v5451 = vld [vmem:[#allocation2 + $0x318] sm:$0xff]
        %v5452 = vld [vmem:[#allocation2 + $0x320] sm:$0xff]
        %v5453 = vld [vmem:[#allocation2 + $0x328] sm:$0xff]
        %v5454 = vld [vmem:[#allocation2 + $0x330] sm:$0xff]
        %v5455 = vld [vmem:[#allocation2 + $0x338] sm:$0xff]
        %v5456 = vld [vmem:[#allocation2 + $0x340] sm:$0xff]
        %v5457 = vld [vmem:[#allocation2 + $0x348] sm:$0xff]
        %v5458 = vld [vmem:[#allocation2 + $0x350] sm:$0xff]
        %v5459 = vld [vmem:[#allocation2 + $0x358] sm:$0xff]
        %v5460 = vld [vmem:[#allocation2 + $0x360] sm:$0xff]
        %v5461 = vld [vmem:[#allocation2 + $0x368] sm:$0xff]
        %v5462 = vld [vmem:[#allocation2 + $0x370] sm:$0xff]
        %v5463 = vld [vmem:[#allocation2 + $0x378] sm:$0xff]
        %v5464 = vld [vmem:[#allocation2 + $0x380] sm:$0xff]
        %v5465 = vld [vmem:[#allocation2 + $0x388] sm:$0xff]
        %v5466 = vld [vmem:[#allocation2 + $0x390] sm:$0xff]
        %v5467 = vld [vmem:[#allocation2 + $0x398] sm:$0xff]
        %v5468 = vld [vmem:[#allocation2 + $0x3a0] sm:$0xff]
        %v5469 = vld [vmem:[#allocation2 + $0x3a8] sm:$0xff]
        %v5470 = vld [vmem:[#allocation2 + $0x3b0] sm:$0xff]
        %v5471 = vld [vmem:[#allocation2 + $0x3b8] sm:$0xff]
        %v5472 = vld [vmem:[#allocation2 + $0x3c0] sm:$0xff]
        %v5473 = vld [vmem:[#allocation2 + $0x3c8] sm:$0xff]
        %v5474 = vld [vmem:[#allocation2 + $0x3d0] sm:$0xff]
        %v5475 = vld [vmem:[#allocation2 + $0x3d8] sm:$0xff]
        %v5476 = vld [vmem:[#allocation2 + $0x3e0] sm:$0xff]
        %v5477 = vld [vmem:[#allocation2 + $0x3e8] sm:$0xff]
        %v5478 = vld [vmem:[#allocation2 + $0x3f0] sm:$0xff]
        %v5479 = vld [vmem:[#allocation2 + $0x3f8] sm:$0xff]
        %v5480 = vld [vmem:[#allocation2 + $0x400] sm:$0xff]
        %v5481 = vld [vmem:[#allocation2 + $0x408] sm:$0xff]
        %v5482 = vld [vmem:[#allocation2 + $0x410] sm:$0xff]
        %v5483 = vld [vmem:[#allocation2 + $0x418] sm:$0xff]
        %v5484 = vld [vmem:[#allocation2 + $0x420] sm:$0xff]
        %v5485 = vld [vmem:[#allocation2 + $0x428] sm:$0xff]
        %v5486 = vld [vmem:[#allocation2 + $0x430] sm:$0xff]
        %v5487 = vld [vmem:[#allocation2 + $0x438] sm:$0xff]
        %v5488 = vld [vmem:[#allocation2 + $0x440] sm:$0xff]
        %v5489 = vld [vmem:[#allocation2 + $0x448] sm:$0xff]
        %v5490 = vld [vmem:[#allocation2 + $0x450] sm:$0xff]
        %v5491 = vld [vmem:[#allocation2 + $0x458] sm:$0xff]
        %v5492 = vld [vmem:[#allocation2 + $0x460] sm:$0xff]
        %v5493 = vld [vmem:[#allocation2 + $0x468] sm:$0xff]
        %v5494 = vld [vmem:[#allocation2 + $0x470] sm:$0xff]
        %v5495 = vld [vmem:[#allocation2 + $0x478] sm:$0xff]
        %v5496 = vld [vmem:[#allocation2 + $0x480] sm:$0xff]
        %v5497 = vld [vmem:[#allocation2 + $0x488] sm:$0xff]
        %v5498 = vld [vmem:[#allocation2 + $0x490] sm:$0xff]
        %v5499 = vld [vmem:[#allocation2 + $0x498] sm:$0xff]
        %v5500 = vld [vmem:[#allocation2 + $0x4a0] sm:$0xff]
        %v5501 = vld [vmem:[#allocation2 + $0x4a8] sm:$0xff]
        %v5502 = vld [vmem:[#allocation2 + $0x4b0] sm:$0xff]
        %v5503 = vld [vmem:[#allocation2 + $0x4b8] sm:$0xff]
        %v5504 = vld [vmem:[#allocation2 + $0x4c0] sm:$0xff]
        %v5505 = vld [vmem:[#allocation2 + $0x4c8] sm:$0xff]
        %v5506 = vld [vmem:[#allocation2 + $0x4d0] sm:$0xff]
        %v5507 = vld [vmem:[#allocation2 + $0x4d8] sm:$0xff]
        %v5508 = vld [vmem:[#allocation2 + $0x4e0] sm:$0xff]
        %v5509 = vld [vmem:[#allocation2 + $0x4e8] sm:$0xff]
        %v5510 = vld [vmem:[#allocation2 + $0x4f0] sm:$0xff]
        %v5511 = vld [vmem:[#allocation2 + $0x4f8] sm:$0xff]
        %v5512 = vld [vmem:[#allocation2 + $0x500] sm:$0xff]
        %v5513 = vld [vmem:[#allocation2 + $0x508] sm:$0xff]
        %v5514 = vld [vmem:[#allocation2 + $0x510] sm:$0xff]
        %v5515 = vld [vmem:[#allocation2 + $0x518] sm:$0xff]
        %v5516 = vld [vmem:[#allocation2 + $0x520] sm:$0xff]
        %v5517 = vld [vmem:[#allocation2 + $0x528] sm:$0xff]
        %v5518 = vld [vmem:[#allocation2 + $0x530] sm:$0xff]
        %v5519 = vld [vmem:[#allocation2 + $0x538] sm:$0xff]
        %v5520 = vld [vmem:[#allocation2 + $0x540] sm:$0xff]
        %v5521 = vld [vmem:[#allocation2 + $0x548] sm:$0xff]
        %v5522 = vld [vmem:[#allocation2 + $0x550] sm:$0xff]
        %v5523 = vld [vmem:[#allocation2 + $0x558] sm:$0xff]
        %v5524 = vld [vmem:[#allocation2 + $0x560] sm:$0xff]
        %v5525 = vld [vmem:[#allocation2 + $0x568] sm:$0xff]
        %v5526 = vld [vmem:[#allocation2 + $0x570] sm:$0xff]
        %v5527 = vld [vmem:[#allocation2 + $0x578] sm:$0xff]
        %v5528 = vld [vmem:[#allocation2 + $0x580] sm:$0xff]
        %v5529 = vld [vmem:[#allocation2 + $0x588] sm:$0xff]
        %v5530 = vld [vmem:[#allocation2 + $0x590] sm:$0xff]
        %v5531 = vld [vmem:[#allocation2 + $0x598] sm:$0xff]
        %v5532 = vld [vmem:[#allocation2 + $0x5a0] sm:$0xff]
        %v5533 = vld [vmem:[#allocation2 + $0x5a8] sm:$0xff]
        %v5534 = vld [vmem:[#allocation2 + $0x5b0] sm:$0xff]
        %v5535 = vld [vmem:[#allocation2 + $0x5b8] sm:$0xff]
        %v5536 = vld [vmem:[#allocation2 + $0x5c0] sm:$0xff]
        %v5537 = vld [vmem:[#allocation2 + $0x5c8] sm:$0xff]
        %v5538 = vld [vmem:[#allocation2 + $0x5d0] sm:$0xff]
        %v5539 = vld [vmem:[#allocation2 + $0x5d8] sm:$0xff]
        %v5540 = vld [vmem:[#allocation2 + $0x5e0] sm:$0xff]
        %v5541 = vld [vmem:[#allocation2 + $0x5e8] sm:$0xff]
        %v5542 = vld [vmem:[#allocation2 + $0x5f0] sm:$0xff]
        %v5543 = vld [vmem:[#allocation2 + $0x5f8] sm:$0xff]
        %v5544 = vld [vmem:[#allocation2 + $0x600] sm:$0xff]
        %v5545 = vld [vmem:[#allocation2 + $0x608] sm:$0xff]
        %v5546 = vld [vmem:[#allocation2 + $0x610] sm:$0xff]
        %v5547 = vld [vmem:[#allocation2 + $0x618] sm:$0xff]
        %v5548 = vld [vmem:[#allocation2 + $0x620] sm:$0xff]
        %v5549 = vld [vmem:[#allocation2 + $0x628] sm:$0xff]
        %v5550 = vld [vmem:[#allocation2 + $0x630] sm:$0xff]
        %v5551 = vld [vmem:[#allocation2 + $0x638] sm:$0xff]
        %v5552 = vld [vmem:[#allocation2 + $0x640] sm:$0xff]
        %v5553 = vld [vmem:[#allocation2 + $0x648] sm:$0xff]
        %v5554 = vld [vmem:[#allocation2 + $0x650] sm:$0xff]
        %v5555 = vld [vmem:[#allocation2 + $0x658] sm:$0xff]
        %v5556 = vld [vmem:[#allocation2 + $0x660] sm:$0xff]
        %v5557 = vld [vmem:[#allocation2 + $0x668] sm:$0xff]
        %v5558 = vld [vmem:[#allocation2 + $0x670] sm:$0xff]
        %v5559 = vld [vmem:[#allocation2 + $0x678] sm:$0xff]
        %v5560 = vld [vmem:[#allocation2 + $0x680] sm:$0xff]
        %v5561 = vld [vmem:[#allocation2 + $0x688] sm:$0xff]
        %v5562 = vld [vmem:[#allocation2 + $0x690] sm:$0xff]
        %v5563 = vld [vmem:[#allocation2 + $0x698] sm:$0xff]
        %v5564 = vld [vmem:[#allocation2 + $0x6a0] sm:$0xff]
        %v5565 = vld [vmem:[#allocation2 + $0x6a8] sm:$0xff]
        %v5566 = vld [vmem:[#allocation2 + $0x6b0] sm:$0xff]
        %v5567 = vld [vmem:[#allocation2 + $0x6b8] sm:$0xff]
        %v5568 = vld [vmem:[#allocation2 + $0x6c0] sm:$0xff]
        %v5569 = vld [vmem:[#allocation2 + $0x6c8] sm:$0xff]
        %v5570 = vld [vmem:[#allocation2 + $0x6d0] sm:$0xff]
        %v5571 = vld [vmem:[#allocation2 + $0x6d8] sm:$0xff]
        %v5572 = vld [vmem:[#allocation2 + $0x6e0] sm:$0xff]
        %v5573 = vld [vmem:[#allocation2 + $0x6e8] sm:$0xff]
        %v5574 = vld [vmem:[#allocation2 + $0x6f0] sm:$0xff]
        %v5575 = vld [vmem:[#allocation2 + $0x6f8] sm:$0xff]
        %v5576 = vld [vmem:[#allocation2 + $0x700] sm:$0xff]
        %v5577 = vld [vmem:[#allocation2 + $0x708] sm:$0xff]
        %v5578 = vld [vmem:[#allocation2 + $0x710] sm:$0xff]
        %v5579 = vld [vmem:[#allocation2 + $0x718] sm:$0xff]
        %v5580 = vld [vmem:[#allocation2 + $0x720] sm:$0xff]
        %v5581 = vld [vmem:[#allocation2 + $0x728] sm:$0xff]
        %v5582 = vld [vmem:[#allocation2 + $0x730] sm:$0xff]
        %v5583 = vld [vmem:[#allocation2 + $0x738] sm:$0xff]
        %v5584 = vld [vmem:[#allocation2 + $0x740] sm:$0xff]
        %v5585 = vld [vmem:[#allocation2 + $0x748] sm:$0xff]
        %v5586 = vld [vmem:[#allocation2 + $0x750] sm:$0xff]
        %v5587 = vld [vmem:[#allocation2 + $0x758] sm:$0xff]
        %v5588 = vld [vmem:[#allocation2 + $0x760] sm:$0xff]
        %v5589 = vld [vmem:[#allocation2 + $0x768] sm:$0xff]
        %v5590 = vld [vmem:[#allocation2 + $0x770] sm:$0xff]
        %v5591 = vld [vmem:[#allocation2 + $0x778] sm:$0xff]
        %v5592 = vld [vmem:[#allocation2 + $0x780] sm:$0xff]
        %v5593 = vld [vmem:[#allocation2 + $0x788] sm:$0xff]
        %v5594 = vld [vmem:[#allocation2 + $0x790] sm:$0xff]
        %v5595 = vld [vmem:[#allocation2 + $0x798] sm:$0xff]
        %v5596 = vld [vmem:[#allocation2 + $0x7a0] sm:$0xff]
        %v5597 = vld [vmem:[#allocation2 + $0x7a8] sm:$0xff]
        %v5598 = vld [vmem:[#allocation2 + $0x7b0] sm:$0xff]
        %v5599 = vld [vmem:[#allocation2 + $0x7b8] sm:$0xff]
        %v5600 = vld [vmem:[#allocation2 + $0x7c0] sm:$0xff]
        %v5601 = vld [vmem:[#allocation2 + $0x7c8] sm:$0xff]
        %v5602 = vld [vmem:[#allocation2 + $0x7d0] sm:$0xff]
        %v5603 = vld [vmem:[#allocation2 + $0x7d8] sm:$0xff]
        %v5604 = vld [vmem:[#allocation2 + $0x7e0] sm:$0xff]
        %v5605 = vld [vmem:[#allocation2 + $0x7e8] sm:$0xff]
        %v5606 = vld [vmem:[#allocation2 + $0x7f0] sm:$0xff]
        %v5607 = vld [vmem:[#allocation2 + $0x7f8] sm:$0xff]
        %5608 = vmatprep.subr.mxu0 0.0
        %5609 = vmatpush1.msra.mxu0 %v5288
        %5610 = vmatprep.subr.mxu0 0.0
        %5611 = vmatpush1.msra.mxu0 %v5289
        %5612 = vmatprep.subr.mxu0 0.0
        %5613 = vmatpush1.msra.mxu0 %v5290
        %5614 = vmatprep.subr.mxu0 0.0
        %5615 = vmatpush1.msra.mxu0 %v5291
        %5616 = vmatprep.subr.mxu0 0.0
        %5617 = vmatpush1.msra.mxu0 %v5292
        %5618 = vmatprep.subr.mxu0 0.0
        %5619 = vmatpush1.msra.mxu0 %v5293
        %5620 = vmatprep.subr.mxu0 0.0
        %5621 = vmatpush1.msra.mxu0 %v5294
        %5622 = vmatprep.subr.mxu0 0.0
        %5623 = vmatpush1.msra.mxu0 %v5295
        %5624 = vmatprep.subr.mxu0 0.0
        %5625 = vmatpush1.msra.mxu0 %v5296
        %5626 = vmatprep.subr.mxu0 0.0
        %5627 = vmatpush1.msra.mxu0 %v5297
        %5628 = vmatprep.subr.mxu0 0.0
        %5629 = vmatpush1.msra.mxu0 %v5298
        %5630 = vmatprep.subr.mxu0 0.0
        %5631 = vmatpush1.msra.mxu0 %v5299
        %5632 = vmatprep.subr.mxu0 0.0
        %5633 = vmatpush1.msra.mxu0 %v5300
        %5634 = vmatprep.subr.mxu0 0.0
        %5635 = vmatpush1.msra.mxu0 %v5301
        %5636 = vmatprep.subr.mxu0 0.0
        %5637 = vmatpush1.msra.mxu0 %v5302
        %5638 = vmatprep.subr.mxu0 0.0
        %5639 = vmatpush1.msra.mxu0 %v5303
        %5640 = vmatprep.subr.mxu0 0.0
        %5641 = vmatpush1.msra.mxu0 %v5304
        %5642 = vmatprep.subr.mxu0 0.0
        %5643 = vmatpush1.msra.mxu0 %v5305
        %5644 = vmatprep.subr.mxu0 0.0
        %5645 = vmatpush1.msra.mxu0 %v5306
        %5646 = vmatprep.subr.mxu0 0.0
        %5647 = vmatpush1.msra.mxu0 %v5307
        %5648 = vmatprep.subr.mxu0 0.0
        %5649 = vmatpush1.msra.mxu0 %v5308
        %5650 = vmatprep.subr.mxu0 0.0
        %5651 = vmatpush1.msra.mxu0 %v5309
        %5652 = vmatprep.subr.mxu0 0.0
        %5653 = vmatpush1.msra.mxu0 %v5310
        %5654 = vmatprep.subr.mxu0 0.0
        %5655 = vmatpush1.msra.mxu0 %v5311
        %5656 = vmatprep.subr.mxu0 0.0
        %5657 = vmatpush1.msra.mxu0 %v5312
        %5658 = vmatprep.subr.mxu0 0.0
        %5659 = vmatpush1.msra.mxu0 %v5313
        %5660 = vmatprep.subr.mxu0 0.0
        %5661 = vmatpush1.msra.mxu0 %v5314
        %5662 = vmatprep.subr.mxu0 0.0
        %5663 = vmatpush1.msra.mxu0 %v5315
        %5664 = vmatprep.subr.mxu0 0.0
        %5665 = vmatpush1.msra.mxu0 %v5316
        %5666 = vmatprep.subr.mxu0 0.0
        %5667 = vmatpush1.msra.mxu0 %v5317
        %5668 = vmatprep.subr.mxu0 0.0
        %5669 = vmatpush1.msra.mxu0 %v5318
        %5670 = vmatprep.subr.mxu0 0.0
        %5671 = vmatpush1.msra.mxu0 %v5319
        %5672 = vmatprep.mubr.f32.mxu0 %v5353
        %5673 = vmatmul.mubr.f32.gmra.mrb[0].mxu0 %v5352
        %v5674 = vpop.f32.mrb[0].mxu0
        %v5675 = vadd.f32 0.0, %v5674
        %v5676 = vpop.f32.mrb[0].mxu0
        %5677 = vmatprep.mubr.f32.mxu0 %v5357
        %5678 = vmatmul.mubr.f32.gmra.mrb[0].mxu0 %v5356
        %v5679 = vpop.f32.mrb[0].mxu0
        %v5680 = vadd.f32 0.0, %v5679
        %v5681 = vpop.f32.mrb[0].mxu0
        %5682 = vmatprep.mubr.f32.mxu0 %v5361
        %5683 = vmatmul.mubr.f32.gmra.mrb[0].mxu0 %v5360
        %v5684 = vpop.f32.mrb[0].mxu0
        %v5685 = vadd.f32 0.0, %v5684
        %v5686 = vpop.f32.mrb[0].mxu0
        %5687 = vmatprep.mubr.f32.mxu0 %v5365
        %5688 = vmatmul.mubr.f32.gmra.mrb[0].mxu0 %v5364
        %v5689 = vpop.f32.mrb[0].mxu0
        %v5690 = vadd.f32 0.0, %v5689
        %v5691 = vpop.f32.mrb[0].mxu0
        %5692 = vmatprep.mubr.f32.mxu0 %v5369
        %5693 = vmatmul.mubr.f32.gmra.mrb[0].mxu0 %v5368
        %v5694 = vpop.f32.mrb[0].mxu0
        %v5695 = vadd.f32 0.0, %v5694
        %v5696 = vpop.f32.mrb[0].mxu0
        %5697 = vmatprep.mubr.f32.mxu0 %v5373
        %5698 = vmatmul.mubr.f32.gmra.mrb[0].mxu0 %v5372
        %v5699 = vpop.f32.mrb[0].mxu0
        %v5700 = vadd.f32 0.0, %v5699
        %v5701 = vpop.f32.mrb[0].mxu0
        %5702 = vmatprep.mubr.f32.mxu0 %v5377
        %5703 = vmatmul.mubr.f32.gmra.mrb[0].mxu0 %v5376
        %v5704 = vpop.f32.mrb[0].mxu0
        %v5705 = vadd.f32 0.0, %v5704
        %v5706 = vpop.f32.mrb[0].mxu0
        %5707 = vmatprep.mubr.f32.mxu0 %v5381
        %5708 = vmatmul.mubr.f32.gmra.mrb[0].mxu0 %v5380
        %v5709 = vpop.f32.mrb[0].mxu0
        %v5710 = vadd.f32 0.0, %v5709
        %v5711 = vpop.f32.mrb[0].mxu0
        %5712 = vmatprep.mubr.f32.mxu0 %v5385
        %5713 = vmatmul.mubr.f32.gmra.mrb[0].mxu0 %v5384
        %v5714 = vpop.f32.mrb[0].mxu0
        %v5715 = vadd.f32 0.0, %v5714
        %v5716 = vpop.f32.mrb[0].mxu0
        %5717 = vmatprep.mubr.f32.mxu0 %v5389
        %5718 = vmatmul.mubr.f32.gmra.mrb[0].mxu0 %v5388
        %v5719 = vpop.f32.mrb[0].mxu0
        %v5720 = vadd.f32 0.0, %v5719
        %v5721 = vpop.f32.mrb[0].mxu0
        %5722 = vmatprep.mubr.f32.mxu0 %v5393
        %5723 = vmatmul.mubr.f32.gmra.mrb[0].mxu0 %v5392
        %v5724 = vpop.f32.mrb[0].mxu0
        %v5725 = vadd.f32 0.0, %v5724
        %v5726 = vpop.f32.mrb[0].mxu0
        %5727 = vmatprep.mubr.f32.mxu0 %v5397
        %5728 = vmatmul.mubr.f32.gmra.mrb[0].mxu0 %v5396
        %v5729 = vpop.f32.mrb[0].mxu0
        %v5730 = vadd.f32 0.0, %v5729
        %v5731 = vpop.f32.mrb[0].mxu0
        %5732 = vmatprep.mubr.f32.mxu0 %v5401
        %5733 = vmatmul.mubr.f32.gmra.mrb[0].mxu0 %v5400
        %v5734 = vpop.f32.mrb[0].mxu0
        %v5735 = vadd.f32 0.0, %v5734
        %v5736 = vpop.f32.mrb[0].mxu0
        %5737 = vmatprep.mubr.f32.mxu0 %v5405
        %5738 = vmatmul.mubr.f32.gmra.mrb[0].mxu0 %v5404
        %v5739 = vpop.f32.mrb[0].mxu0
        %v5740 = vadd.f32 0.0, %v5739
        %v5741 = vpop.f32.mrb[0].mxu0
        %5742 = vmatprep.mubr.f32.mxu0 %v5409
        %5743 = vmatmul.mubr.f32.gmra.mrb[0].mxu0 %v5408
        %v5744 = vpop.f32.mrb[0].mxu0
        %v5745 = vadd.f32 0.0, %v5744
        %v5746 = vpop.f32.mrb[0].mxu0
        %5747 = vmatprep.mubr.f32.mxu0 %v5413
        %5748 = vmatmul.mubr.f32.gmra.mrb[0].mxu0 %v5412
        %v5749 = vpop.f32.mrb[0].mxu0
        %v5750 = vadd.f32 0.0, %v5749
        %v5751 = vpop.f32.mrb[0].mxu0
        %5752 = vmatprep.mubr.f32.mxu0 %v5417
        %5753 = vmatmul.mubr.f32.gmra.mrb[0].mxu0 %v5416
        %v5754 = vpop.f32.mrb[0].mxu0
        %v5755 = vadd.f32 0.0, %v5754
        %v5756 = vpop.f32.mrb[0].mxu0
        %5757 = vmatprep.mubr.f32.mxu0 %v5421
        %5758 = vmatmul.mubr.f32.gmra.mrb[0].mxu0 %v5420
        %v5759 = vpop.f32.mrb[0].mxu0
        %v5760 = vadd.f32 0.0, %v5759
        %v5761 = vpop.f32.mrb[0].mxu0
        %5762 = vmatprep.mubr.f32.mxu0 %v5425
        %5763 = vmatmul.mubr.f32.gmra.mrb[0].mxu0 %v5424
        %v5764 = vpop.f32.mrb[0].mxu0
        %v5765 = vadd.f32 0.0, %v5764
        %v5766 = vpop.f32.mrb[0].mxu0
        %5767 = vmatprep.mubr.f32.mxu0 %v5429
        %5768 = vmatmul.mubr.f32.gmra.mrb[0].mxu0 %v5428
        %v5769 = vpop.f32.mrb[0].mxu0
        %v5770 = vadd.f32 0.0, %v5769
        %v5771 = vpop.f32.mrb[0].mxu0
        %5772 = vmatprep.mubr.f32.mxu0 %v5433
        %5773 = vmatmul.mubr.f32.gmra.mrb[0].mxu0 %v5432
        %v5774 = vpop.f32.mrb[0].mxu0
        %v5775 = vadd.f32 0.0, %v5774
        %v5776 = vpop.f32.mrb[0].mxu0
        %5777 = vmatprep.mubr.f32.mxu0 %v5437
        %5778 = vmatmul.mubr.f32.gmra.mrb[0].mxu0 %v5436
        %v5779 = vpop.f32.mrb[0].mxu0
        %v5780 = vadd.f32 0.0, %v5779
        %v5781 = vpop.f32.mrb[0].mxu0
        %5782 = vmatprep.mubr.f32.mxu0 %v5441
        %5783 = vmatmul.mubr.f32.gmra.mrb[0].mxu0 %v5440
        %v5784 = vpop.f32.mrb[0].mxu0
        %v5785 = vadd.f32 0.0, %v5784
        %v5786 = vpop.f32.mrb[0].mxu0
        %5787 = vmatprep.mubr.f32.mxu0 %v5445
        %5788 = vmatmul.mubr.f32.gmra.mrb[0].mxu0 %v5444
        %v5789 = vpop.f32.mrb[0].mxu0
        %v5790 = vadd.f32 0.0, %v5789
        %v5791 = vpop.f32.mrb[0].mxu0
        %5792 = vmatprep.mubr.f32.mxu0 %v5449
        %5793 = vmatmul.mubr.f32.gmra.mrb[0].mxu0 %v5448
        %v5794 = vpop.f32.mrb[0].mxu0
        %v5795 = vadd.f32 0.0, %v5794
        %v5796 = vpop.f32.mrb[0].mxu0
        %5797 = vmatprep.mubr.f32.mxu0 %v5453
        %5798 = vmatmul.mubr.f32.gmra.mrb[0].mxu0 %v5452
        %v5799 = vpop.f32.mrb[0].mxu0
        %v5800 = vadd.f32 0.0, %v5799
        %v5801 = vpop.f32.mrb[0].mxu0
        %5802 = vmatprep.mubr.f32.mxu0 %v5457
        %5803 = vmatmul.mubr.f32.gmra.mrb[0].mxu0 %v5456
        %v5804 = vpop.f32.mrb[0].mxu0
        %v5805 = vadd.f32 0.0, %v5804
        %v5806 = vpop.f32.mrb[0].mxu0
        %5807 = vmatprep.mubr.f32.mxu0 %v5461
        %5808 = vmatmul.mubr.f32.gmra.mrb[0].mxu0 %v5460
        %v5809 = vpop.f32.mrb[0].mxu0
        %v5810 = vadd.f32 0.0, %v5809
        %v5811 = vpop.f32.mrb[0].mxu0
        %5812 = vmatprep.mubr.f32.mxu0 %v5465
        %5813 = vmatmul.mubr.f32.gmra.mrb[0].mxu0 %v5464
        %v5814 = vpop.f32.mrb[0].mxu0
        %v5815 = vadd.f32 0.0, %v5814
        %v5816 = vpop.f32.mrb[0].mxu0
        %5817 = vmatprep.mubr.f32.mxu0 %v5469
        %5818 = vmatmul.mubr.f32.gmra.mrb[0].mxu0 %v5468
        %v5819 = vpop.f32.mrb[0].mxu0
        %v5820 = vadd.f32 0.0, %v5819
        %v5821 = vpop.f32.mrb[0].mxu0
        %5822 = vmatprep.mubr.f32.mxu0 %v5473
        %5823 = vmatmul.mubr.f32.gmra.mrb[0].mxu0 %v5472
        %v5824 = vpop.f32.mrb[0].mxu0
        %v5825 = vadd.f32 0.0, %v5824
        %v5826 = vpop.f32.mrb[0].mxu0
        %5827 = vmatprep.mubr.f32.mxu0 %v5477
        %5828 = vmatmul.mubr.f32.gmra.mrb[0].mxu0 %v5476
        %v5829 = vpop.f32.mrb[0].mxu0
        %v5830 = vadd.f32 0.0, %v5829
        %v5831 = vpop.f32.mrb[0].mxu0
        %5832 = vmatprep.mubr.f32.mxu0 %v5481
        %5833 = vmatmul.mubr.f32.gmra.mrb[0].mxu0 %v5480
        %v5834 = vpop.f32.mrb[0].mxu0
        %v5835 = vadd.f32 0.0, %v5834
        %v5836 = vpop.f32.mrb[0].mxu0
        %5837 = vmatprep.mubr.f32.mxu0 %v5485
        %5838 = vmatmul.mubr.f32.gmra.mrb[0].mxu0 %v5484
        %v5839 = vpop.f32.mrb[0].mxu0
        %v5840 = vadd.f32 0.0, %v5839
        %v5841 = vpop.f32.mrb[0].mxu0
        %5842 = vmatprep.mubr.f32.mxu0 %v5489
        %5843 = vmatmul.mubr.f32.gmra.mrb[0].mxu0 %v5488
        %v5844 = vpop.f32.mrb[0].mxu0
        %v5845 = vadd.f32 0.0, %v5844
        %v5846 = vpop.f32.mrb[0].mxu0
        %5847 = vmatprep.mubr.f32.mxu0 %v5493
        %5848 = vmatmul.mubr.f32.gmra.mrb[0].mxu0 %v5492
        %v5849 = vpop.f32.mrb[0].mxu0
        %v5850 = vadd.f32 0.0, %v5849
        %v5851 = vpop.f32.mrb[0].mxu0
        %5852 = vmatprep.mubr.f32.mxu0 %v5497
        %5853 = vmatmul.mubr.f32.gmra.mrb[0].mxu0 %v5496
        %v5854 = vpop.f32.mrb[0].mxu0
        %v5855 = vadd.f32 0.0, %v5854
        %v5856 = vpop.f32.mrb[0].mxu0
        %5857 = vmatprep.mubr.f32.mxu0 %v5501
        %5858 = vmatmul.mubr.f32.gmra.mrb[0].mxu0 %v5500
        %v5859 = vpop.f32.mrb[0].mxu0
        %v5860 = vadd.f32 0.0, %v5859
        %v5861 = vpop.f32.mrb[0].mxu0
        %5862 = vmatprep.mubr.f32.mxu0 %v5505
        %5863 = vmatmul.mubr.f32.gmra.mrb[0].mxu0 %v5504
        %v5864 = vpop.f32.mrb[0].mxu0
        %v5865 = vadd.f32 0.0, %v5864
        %v5866 = vpop.f32.mrb[0].mxu0
        %5867 = vmatprep.mubr.f32.mxu0 %v5509
        %5868 = vmatmul.mubr.f32.gmra.mrb[0].mxu0 %v5508
        %v5869 = vpop.f32.mrb[0].mxu0
        %v5870 = vadd.f32 0.0, %v5869
        %v5871 = vpop.f32.mrb[0].mxu0
        %5872 = vmatprep.mubr.f32.mxu0 %v5513
        %5873 = vmatmul.mubr.f32.gmra.mrb[0].mxu0 %v5512
        %v5874 = vpop.f32.mrb[0].mxu0
        %v5875 = vadd.f32 0.0, %v5874
        %v5876 = vpop.f32.mrb[0].mxu0
        %5877 = vmatprep.mubr.f32.mxu0 %v5517
        %5878 = vmatmul.mubr.f32.gmra.mrb[0].mxu0 %v5516
        %v5879 = vpop.f32.mrb[0].mxu0
        %v5880 = vadd.f32 0.0, %v5879
        %v5881 = vpop.f32.mrb[0].mxu0
        %5882 = vmatprep.mubr.f32.mxu0 %v5521
        %5883 = vmatmul.mubr.f32.gmra.mrb[0].mxu0 %v5520
        %v5884 = vpop.f32.mrb[0].mxu0
        %v5885 = vadd.f32 0.0, %v5884
        %v5886 = vpop.f32.mrb[0].mxu0
        %5887 = vmatprep.mubr.f32.mxu0 %v5525
        %5888 = vmatmul.mubr.f32.gmra.mrb[0].mxu0 %v5524
        %v5889 = vpop.f32.mrb[0].mxu0
        %v5890 = vadd.f32 0.0, %v5889
        %v5891 = vpop.f32.mrb[0].mxu0
        %5892 = vmatprep.mubr.f32.mxu0 %v5529
        %5893 = vmatmul.mubr.f32.gmra.mrb[0].mxu0 %v5528
        %v5894 = vpop.f32.mrb[0].mxu0
        %v5895 = vadd.f32 0.0, %v5894
        %v5896 = vpop.f32.mrb[0].mxu0
        %5897 = vmatprep.mubr.f32.mxu0 %v5533
        %5898 = vmatmul.mubr.f32.gmra.mrb[0].mxu0 %v5532
        %v5899 = vpop.f32.mrb[0].mxu0
        %v5900 = vadd.f32 0.0, %v5899
        %v5901 = vpop.f32.mrb[0].mxu0
        %5902 = vmatprep.mubr.f32.mxu0 %v5537
        %5903 = vmatmul.mubr.f32.gmra.mrb[0].mxu0 %v5536
        %v5904 = vpop.f32.mrb[0].mxu0
        %v5905 = vadd.f32 0.0, %v5904
        %v5906 = vpop.f32.mrb[0].mxu0
        %5907 = vmatprep.mubr.f32.mxu0 %v5541
        %5908 = vmatmul.mubr.f32.gmra.mrb[0].mxu0 %v5540
        %v5909 = vpop.f32.mrb[0].mxu0
        %v5910 = vadd.f32 0.0, %v5909
        %v5911 = vpop.f32.mrb[0].mxu0
        %5912 = vmatprep.mubr.f32.mxu0 %v5545
        %5913 = vmatmul.mubr.f32.gmra.mrb[0].mxu0 %v5544
        %v5914 = vpop.f32.mrb[0].mxu0
        %v5915 = vadd.f32 0.0, %v5914
        %v5916 = vpop.f32.mrb[0].mxu0
        %5917 = vmatprep.mubr.f32.mxu0 %v5549
        %5918 = vmatmul.mubr.f32.gmra.mrb[0].mxu0 %v5548
        %v5919 = vpop.f32.mrb[0].mxu0
        %v5920 = vadd.f32 0.0, %v5919
        %v5921 = vpop.f32.mrb[0].mxu0
        %5922 = vmatprep.mubr.f32.mxu0 %v5553
        %5923 = vmatmul.mubr.f32.gmra.mrb[0].mxu0 %v5552
        %v5924 = vpop.f32.mrb[0].mxu0
        %v5925 = vadd.f32 0.0, %v5924
        %v5926 = vpop.f32.mrb[0].mxu0
        %5927 = vmatprep.mubr.f32.mxu0 %v5557
        %5928 = vmatmul.mubr.f32.gmra.mrb[0].mxu0 %v5556
        %v5929 = vpop.f32.mrb[0].mxu0
        %v5930 = vadd.f32 0.0, %v5929
        %v5931 = vpop.f32.mrb[0].mxu0
        %5932 = vmatprep.mubr.f32.mxu0 %v5561
        %5933 = vmatmul.mubr.f32.gmra.mrb[0].mxu0 %v5560
        %v5934 = vpop.f32.mrb[0].mxu0
        %v5935 = vadd.f32 0.0, %v5934
        %v5936 = vpop.f32.mrb[0].mxu0
        %5937 = vmatprep.mubr.f32.mxu0 %v5565
        %5938 = vmatmul.mubr.f32.gmra.mrb[0].mxu0 %v5564
        %v5939 = vpop.f32.mrb[0].mxu0
        %v5940 = vadd.f32 0.0, %v5939
        %v5941 = vpop.f32.mrb[0].mxu0
        %5942 = vmatprep.mubr.f32.mxu0 %v5569
        %5943 = vmatmul.mubr.f32.gmra.mrb[0].mxu0 %v5568
        %v5944 = vpop.f32.mrb[0].mxu0
        %v5945 = vadd.f32 0.0, %v5944
        %v5946 = vpop.f32.mrb[0].mxu0
        %5947 = vmatprep.mubr.f32.mxu0 %v5573
        %5948 = vmatmul.mubr.f32.gmra.mrb[0].mxu0 %v5572
        %v5949 = vpop.f32.mrb[0].mxu0
        %v5950 = vadd.f32 0.0, %v5949
        %v5951 = vpop.f32.mrb[0].mxu0
        %5952 = vmatprep.mubr.f32.mxu0 %v5577
        %5953 = vmatmul.mubr.f32.gmra.mrb[0].mxu0 %v5576
        %v5954 = vpop.f32.mrb[0].mxu0
        %v5955 = vadd.f32 0.0, %v5954
        %v5956 = vpop.f32.mrb[0].mxu0
        %5957 = vmatprep.mubr.f32.mxu0 %v5581
        %5958 = vmatmul.mubr.f32.gmra.mrb[0].mxu0 %v5580
        %v5959 = vpop.f32.mrb[0].mxu0
        %v5960 = vadd.f32 0.0, %v5959
        %v5961 = vpop.f32.mrb[0].mxu0
        %5962 = vmatprep.mubr.f32.mxu0 %v5585
        %5963 = vmatmul.mubr.f32.gmra.mrb[0].mxu0 %v5584
        %v5964 = vpop.f32.mrb[0].mxu0
        %v5965 = vadd.f32 0.0, %v5964
        %v5966 = vpop.f32.mrb[0].mxu0
        %5967 = vmatprep.mubr.f32.mxu0 %v5589
        %5968 = vmatmul.mubr.f32.gmra.mrb[0].mxu0 %v5588
        %v5969 = vpop.f32.mrb[0].mxu0
        %v5970 = vadd.f32 0.0, %v5969
        %v5971 = vpop.f32.mrb[0].mxu0
        %5972 = vmatprep.mubr.f32.mxu0 %v5593
        %5973 = vmatmul.mubr.f32.gmra.mrb[0].mxu0 %v5592
        %v5974 = vpop.f32.mrb[0].mxu0
        %v5975 = vadd.f32 0.0, %v5974
        %v5976 = vpop.f32.mrb[0].mxu0
        %5977 = vmatprep.mubr.f32.mxu0 %v5597
        %5978 = vmatmul.mubr.f32.gmra.mrb[0].mxu0 %v5596
        %v5979 = vpop.f32.mrb[0].mxu0
        %v5980 = vadd.f32 0.0, %v5979
        %v5981 = vpop.f32.mrb[0].mxu0
        %5982 = vmatprep.mubr.f32.mxu0 %v5601
        %5983 = vmatmul.mubr.f32.gmra.mrb[0].mxu0 %v5600
        %v5984 = vpop.f32.mrb[0].mxu0
        %v5985 = vadd.f32 0.0, %v5984
        %v5986 = vpop.f32.mrb[0].mxu0
        %5987 = vmatprep.mubr.f32.mxu0 %v5605
        %5988 = vmatmul.mubr.f32.gmra.mrb[0].mxu0 %v5604
        %v5989 = vpop.f32.mrb[0].mxu0
        %v5990 = vadd.f32 0.0, %v5989
        %v5991 = vpop.f32.mrb[0].mxu0
        %5992 = vdwg.mxu0
        %5993 = vmatprep.subr.mxu0 0.0
        %5994 = vmatpush1.msra.mxu0 %v5320
        %5995 = vmatprep.subr.mxu0 0.0
        %5996 = vmatpush1.msra.mxu0 %v5321
        %5997 = vmatprep.subr.mxu0 0.0
        %5998 = vmatpush1.msra.mxu0 %v5322
        %5999 = vmatprep.subr.mxu0 0.0
        %6000 = vmatpush1.msra.mxu0 %v5323
        %6001 = vmatprep.subr.mxu0 0.0
        %6002 = vmatpush1.msra.mxu0 %v5324
        %6003 = vmatprep.subr.mxu0 0.0
        %6004 = vmatpush1.msra.mxu0 %v5325
        %6005 = vmatprep.subr.mxu0 0.0
        %6006 = vmatpush1.msra.mxu0 %v5326
        %6007 = vmatprep.subr.mxu0 0.0
        %6008 = vmatpush1.msra.mxu0 %v5327
        %6009 = vmatprep.subr.mxu0 0.0
        %6010 = vmatpush1.msra.mxu0 %v5328
        %6011 = vmatprep.subr.mxu0 0.0
        %6012 = vmatpush1.msra.mxu0 %v5329
        %6013 = vmatprep.subr.mxu0 0.0
        %6014 = vmatpush1.msra.mxu0 %v5330
        %6015 = vmatprep.subr.mxu0 0.0
        %6016 = vmatpush1.msra.mxu0 %v5331
        %6017 = vmatprep.subr.mxu0 0.0
        %6018 = vmatpush1.msra.mxu0 %v5332
        %6019 = vmatprep.subr.mxu0 0.0
        %6020 = vmatpush1.msra.mxu0 %v5333
        %6021 = vmatprep.subr.mxu0 0.0
        %6022 = vmatpush1.msra.mxu0 %v5334
        %6023 = vmatprep.subr.mxu0 0.0
        %6024 = vmatpush1.msra.mxu0 %v5335
        %6025 = vmatprep.subr.mxu0 0.0
        %6026 = vmatpush1.msra.mxu0 %v5336
        %6027 = vmatprep.subr.mxu0 0.0
        %6028 = vmatpush1.msra.mxu0 %v5337
        %6029 = vmatprep.subr.mxu0 0.0
        %6030 = vmatpush1.msra.mxu0 %v5338
        %6031 = vmatprep.subr.mxu0 0.0
        %6032 = vmatpush1.msra.mxu0 %v5339
        %6033 = vmatprep.subr.mxu0 0.0
        %6034 = vmatpush1.msra.mxu0 %v5340
        %6035 = vmatprep.subr.mxu0 0.0
        %6036 = vmatpush1.msra.mxu0 %v5341
        %6037 = vmatprep.subr.mxu0 0.0
        %6038 = vmatpush1.msra.mxu0 %v5342
        %6039 = vmatprep.subr.mxu0 0.0
        %6040 = vmatpush1.msra.mxu0 %v5343
        %6041 = vmatprep.subr.mxu0 0.0
        %6042 = vmatpush1.msra.mxu0 %v5344
        %6043 = vmatprep.subr.mxu0 0.0
        %6044 = vmatpush1.msra.mxu0 %v5345
        %6045 = vmatprep.subr.mxu0 0.0
        %6046 = vmatpush1.msra.mxu0 %v5346
        %6047 = vmatprep.subr.mxu0 0.0
        %6048 = vmatpush1.msra.mxu0 %v5347
        %6049 = vmatprep.subr.mxu0 0.0
        %6050 = vmatpush1.msra.mxu0 %v5348
        %6051 = vmatprep.subr.mxu0 0.0
        %6052 = vmatpush1.msra.mxu0 %v5349
        %6053 = vmatprep.subr.mxu0 0.0
        %6054 = vmatpush1.msra.mxu0 %v5350
        %6055 = vmatprep.subr.mxu0 0.0
        %6056 = vmatpush1.msra.mxu0 %v5351
        %6057 = vmatprep.mubr.f32.mxu0 %v5355
        %6058 = vmatmul.mubr.f32.gmra.mrb[0].mxu0 %v5354
        %v6059 = vpop.f32.mrb[0].mxu0
        %v6060 = vadd.f32 %v5675, %v6059
        %v6061 = vpop.f32.mrb[0].mxu0
        %6062 = vmatprep.mubr.f32.mxu0 %v5359
        %6063 = vmatmul.mubr.f32.gmra.mrb[0].mxu0 %v5358
        %v6064 = vpop.f32.mrb[0].mxu0
        %v6065 = vadd.f32 %v5680, %v6064
        %v6066 = vpop.f32.mrb[0].mxu0
        %6067 = vmatprep.mubr.f32.mxu0 %v5363
        %6068 = vmatmul.mubr.f32.gmra.mrb[0].mxu0 %v5362
        %v6069 = vpop.f32.mrb[0].mxu0
        %v6070 = vadd.f32 %v5685, %v6069
        %v6071 = vpop.f32.mrb[0].mxu0
        %6072 = vmatprep.mubr.f32.mxu0 %v5367
        %6073 = vmatmul.mubr.f32.gmra.mrb[0].mxu0 %v5366
        %v6074 = vpop.f32.mrb[0].mxu0
        %v6075 = vadd.f32 %v5690, %v6074
        %v6076 = vpop.f32.mrb[0].mxu0
        %6077 = vmatprep.mubr.f32.mxu0 %v5371
        %6078 = vmatmul.mubr.f32.gmra.mrb[0].mxu0 %v5370
        %v6079 = vpop.f32.mrb[0].mxu0
        %v6080 = vadd.f32 %v5695, %v6079
        %v6081 = vpop.f32.mrb[0].mxu0
        %6082 = vmatprep.mubr.f32.mxu0 %v5375
        %6083 = vmatmul.mubr.f32.gmra.mrb[0].mxu0 %v5374
        %v6084 = vpop.f32.mrb[0].mxu0
        %v6085 = vadd.f32 %v5700, %v6084
        %v6086 = vpop.f32.mrb[0].mxu0
        %6087 = vmatprep.mubr.f32.mxu0 %v5379
        %6088 = vmatmul.mubr.f32.gmra.mrb[0].mxu0 %v5378
        %v6089 = vpop.f32.mrb[0].mxu0
        %v6090 = vadd.f32 %v5705, %v6089
        %v6091 = vpop.f32.mrb[0].mxu0
        %6092 = vmatprep.mubr.f32.mxu0 %v5383
        %6093 = vmatmul.mubr.f32.gmra.mrb[0].mxu0 %v5382
        %v6094 = vpop.f32.mrb[0].mxu0
        %v6095 = vadd.f32 %v5710, %v6094
        %v6096 = vpop.f32.mrb[0].mxu0
        %6097 = vmatprep.mubr.f32.mxu0 %v5387
        %6098 = vmatmul.mubr.f32.gmra.mrb[0].mxu0 %v5386
        %v6099 = vpop.f32.mrb[0].mxu0
        %v6100 = vadd.f32 %v5715, %v6099
        %v6101 = vpop.f32.mrb[0].mxu0
        %6102 = vmatprep.mubr.f32.mxu0 %v5391
        %6103 = vmatmul.mubr.f32.gmra.mrb[0].mxu0 %v5390
        %v6104 = vpop.f32.mrb[0].mxu0
        %v6105 = vadd.f32 %v5720, %v6104
        %v6106 = vpop.f32.mrb[0].mxu0
        %6107 = vmatprep.mubr.f32.mxu0 %v5395
        %6108 = vmatmul.mubr.f32.gmra.mrb[0].mxu0 %v5394
        %v6109 = vpop.f32.mrb[0].mxu0
        %v6110 = vadd.f32 %v5725, %v6109
        %v6111 = vpop.f32.mrb[0].mxu0
        %6112 = vmatprep.mubr.f32.mxu0 %v5399
        %6113 = vmatmul.mubr.f32.gmra.mrb[0].mxu0 %v5398
        %v6114 = vpop.f32.mrb[0].mxu0
        %v6115 = vadd.f32 %v5730, %v6114
        %v6116 = vpop.f32.mrb[0].mxu0
        %6117 = vmatprep.mubr.f32.mxu0 %v5403
        %6118 = vmatmul.mubr.f32.gmra.mrb[0].mxu0 %v5402
        %v6119 = vpop.f32.mrb[0].mxu0
        %v6120 = vadd.f32 %v5735, %v6119
        %v6121 = vpop.f32.mrb[0].mxu0
        %6122 = vmatprep.mubr.f32.mxu0 %v5407
        %6123 = vmatmul.mubr.f32.gmra.mrb[0].mxu0 %v5406
        %v6124 = vpop.f32.mrb[0].mxu0
        %v6125 = vadd.f32 %v5740, %v6124
        %v6126 = vpop.f32.mrb[0].mxu0
        %6127 = vmatprep.mubr.f32.mxu0 %v5411
        %6128 = vmatmul.mubr.f32.gmra.mrb[0].mxu0 %v5410
        %v6129 = vpop.f32.mrb[0].mxu0
        %v6130 = vadd.f32 %v5745, %v6129
        %v6131 = vpop.f32.mrb[0].mxu0
        %6132 = vmatprep.mubr.f32.mxu0 %v5415
        %6133 = vmatmul.mubr.f32.gmra.mrb[0].mxu0 %v5414
        %v6134 = vpop.f32.mrb[0].mxu0
        %v6135 = vadd.f32 %v5750, %v6134
        %v6136 = vpop.f32.mrb[0].mxu0
        %6137 = vmatprep.mubr.f32.mxu0 %v5419
        %6138 = vmatmul.mubr.f32.gmra.mrb[0].mxu0 %v5418
        %v6139 = vpop.f32.mrb[0].mxu0
        %v6140 = vadd.f32 %v5755, %v6139
        %v6141 = vpop.f32.mrb[0].mxu0
        %6142 = vmatprep.mubr.f32.mxu0 %v5423
        %6143 = vmatmul.mubr.f32.gmra.mrb[0].mxu0 %v5422
        %v6144 = vpop.f32.mrb[0].mxu0
        %v6145 = vadd.f32 %v5760, %v6144
        %v6146 = vpop.f32.mrb[0].mxu0
        %6147 = vmatprep.mubr.f32.mxu0 %v5427
        %6148 = vmatmul.mubr.f32.gmra.mrb[0].mxu0 %v5426
        %v6149 = vpop.f32.mrb[0].mxu0
        %v6150 = vadd.f32 %v5765, %v6149
        %v6151 = vpop.f32.mrb[0].mxu0
        %6152 = vmatprep.mubr.f32.mxu0 %v5431
        %6153 = vmatmul.mubr.f32.gmra.mrb[0].mxu0 %v5430
        %v6154 = vpop.f32.mrb[0].mxu0
        %v6155 = vadd.f32 %v5770, %v6154
        %v6156 = vpop.f32.mrb[0].mxu0
        %6157 = vmatprep.mubr.f32.mxu0 %v5435
        %6158 = vmatmul.mubr.f32.gmra.mrb[0].mxu0 %v5434
        %v6159 = vpop.f32.mrb[0].mxu0
        %v6160 = vadd.f32 %v5775, %v6159
        %v6161 = vpop.f32.mrb[0].mxu0
        %6162 = vmatprep.mubr.f32.mxu0 %v5439
        %6163 = vmatmul.mubr.f32.gmra.mrb[0].mxu0 %v5438
        %v6164 = vpop.f32.mrb[0].mxu0
        %v6165 = vadd.f32 %v5780, %v6164
        %v6166 = vpop.f32.mrb[0].mxu0
        %6167 = vmatprep.mubr.f32.mxu0 %v5443
        %6168 = vmatmul.mubr.f32.gmra.mrb[0].mxu0 %v5442
        %v6169 = vpop.f32.mrb[0].mxu0
        %v6170 = vadd.f32 %v5785, %v6169
        %v6171 = vpop.f32.mrb[0].mxu0
        %6172 = vmatprep.mubr.f32.mxu0 %v5447
        %6173 = vmatmul.mubr.f32.gmra.mrb[0].mxu0 %v5446
        %v6174 = vpop.f32.mrb[0].mxu0
        %v6175 = vadd.f32 %v5790, %v6174
        %v6176 = vpop.f32.mrb[0].mxu0
        %6177 = vmatprep.mubr.f32.mxu0 %v5451
        %6178 = vmatmul.mubr.f32.gmra.mrb[0].mxu0 %v5450
        %v6179 = vpop.f32.mrb[0].mxu0
        %v6180 = vadd.f32 %v5795, %v6179
        %v6181 = vpop.f32.mrb[0].mxu0
        %6182 = vmatprep.mubr.f32.mxu0 %v5455
        %6183 = vmatmul.mubr.f32.gmra.mrb[0].mxu0 %v5454
        %v6184 = vpop.f32.mrb[0].mxu0
        %v6185 = vadd.f32 %v5800, %v6184
        %v6186 = vpop.f32.mrb[0].mxu0
        %6187 = vmatprep.mubr.f32.mxu0 %v5459
        %6188 = vmatmul.mubr.f32.gmra.mrb[0].mxu0 %v5458
        %v6189 = vpop.f32.mrb[0].mxu0
        %v6190 = vadd.f32 %v5805, %v6189
        %v6191 = vpop.f32.mrb[0].mxu0
        %6192 = vmatprep.mubr.f32.mxu0 %v5463
        %6193 = vmatmul.mubr.f32.gmra.mrb[0].mxu0 %v5462
        %v6194 = vpop.f32.mrb[0].mxu0
        %v6195 = vadd.f32 %v5810, %v6194
        %v6196 = vpop.f32.mrb[0].mxu0
        %6197 = vmatprep.mubr.f32.mxu0 %v5467
        %6198 = vmatmul.mubr.f32.gmra.mrb[0].mxu0 %v5466
        %v6199 = vpop.f32.mrb[0].mxu0
        %v6200 = vadd.f32 %v5815, %v6199
        %v6201 = vpop.f32.mrb[0].mxu0
        %6202 = vmatprep.mubr.f32.mxu0 %v5471
        %6203 = vmatmul.mubr.f32.gmra.mrb[0].mxu0 %v5470
        %v6204 = vpop.f32.mrb[0].mxu0
        %v6205 = vadd.f32 %v5820, %v6204
        %v6206 = vpop.f32.mrb[0].mxu0
        %6207 = vmatprep.mubr.f32.mxu0 %v5475
        %6208 = vmatmul.mubr.f32.gmra.mrb[0].mxu0 %v5474
        %v6209 = vpop.f32.mrb[0].mxu0
        %v6210 = vadd.f32 %v5825, %v6209
        %v6211 = vpop.f32.mrb[0].mxu0
        %6212 = vmatprep.mubr.f32.mxu0 %v5479
        %6213 = vmatmul.mubr.f32.gmra.mrb[0].mxu0 %v5478
        %v6214 = vpop.f32.mrb[0].mxu0
        %v6215 = vadd.f32 %v5830, %v6214
        %v6216 = vpop.f32.mrb[0].mxu0
        %6217 = vmatprep.mubr.f32.mxu0 %v5483
        %6218 = vmatmul.mubr.f32.gmra.mrb[0].mxu0 %v5482
        %v6219 = vpop.f32.mrb[0].mxu0
        %v6220 = vadd.f32 %v5835, %v6219
        %v6221 = vpop.f32.mrb[0].mxu0
        %6222 = vmatprep.mubr.f32.mxu0 %v5487
        %6223 = vmatmul.mubr.f32.gmra.mrb[0].mxu0 %v5486
        %v6224 = vpop.f32.mrb[0].mxu0
        %v6225 = vadd.f32 %v5840, %v6224
        %v6226 = vpop.f32.mrb[0].mxu0
        %6227 = vmatprep.mubr.f32.mxu0 %v5491
        %6228 = vmatmul.mubr.f32.gmra.mrb[0].mxu0 %v5490
        %v6229 = vpop.f32.mrb[0].mxu0
        %v6230 = vadd.f32 %v5845, %v6229
        %v6231 = vpop.f32.mrb[0].mxu0
        %6232 = vmatprep.mubr.f32.mxu0 %v5495
        %6233 = vmatmul.mubr.f32.gmra.mrb[0].mxu0 %v5494
        %v6234 = vpop.f32.mrb[0].mxu0
        %v6235 = vadd.f32 %v5850, %v6234
        %v6236 = vpop.f32.mrb[0].mxu0
        %6237 = vmatprep.mubr.f32.mxu0 %v5499
        %6238 = vmatmul.mubr.f32.gmra.mrb[0].mxu0 %v5498
        %v6239 = vpop.f32.mrb[0].mxu0
        %v6240 = vadd.f32 %v5855, %v6239
        %v6241 = vpop.f32.mrb[0].mxu0
        %6242 = vmatprep.mubr.f32.mxu0 %v5503
        %6243 = vmatmul.mubr.f32.gmra.mrb[0].mxu0 %v5502
        %v6244 = vpop.f32.mrb[0].mxu0
        %v6245 = vadd.f32 %v5860, %v6244
        %v6246 = vpop.f32.mrb[0].mxu0
        %6247 = vmatprep.mubr.f32.mxu0 %v5507
        %6248 = vmatmul.mubr.f32.gmra.mrb[0].mxu0 %v5506
        %v6249 = vpop.f32.mrb[0].mxu0
        %v6250 = vadd.f32 %v5865, %v6249
        %v6251 = vpop.f32.mrb[0].mxu0
        %6252 = vmatprep.mubr.f32.mxu0 %v5511
        %6253 = vmatmul.mubr.f32.gmra.mrb[0].mxu0 %v5510
        %v6254 = vpop.f32.mrb[0].mxu0
        %v6255 = vadd.f32 %v5870, %v6254
        %v6256 = vpop.f32.mrb[0].mxu0
        %6257 = vmatprep.mubr.f32.mxu0 %v5515
        %6258 = vmatmul.mubr.f32.gmra.mrb[0].mxu0 %v5514
        %v6259 = vpop.f32.mrb[0].mxu0
        %v6260 = vadd.f32 %v5875, %v6259
        %v6261 = vpop.f32.mrb[0].mxu0
        %6262 = vmatprep.mubr.f32.mxu0 %v5519
        %6263 = vmatmul.mubr.f32.gmra.mrb[0].mxu0 %v5518
        %v6264 = vpop.f32.mrb[0].mxu0
        %v6265 = vadd.f32 %v5880, %v6264
        %v6266 = vpop.f32.mrb[0].mxu0
        %6267 = vmatprep.mubr.f32.mxu0 %v5523
        %6268 = vmatmul.mubr.f32.gmra.mrb[0].mxu0 %v5522
        %v6269 = vpop.f32.mrb[0].mxu0
        %v6270 = vadd.f32 %v5885, %v6269
        %v6271 = vpop.f32.mrb[0].mxu0
        %6272 = vmatprep.mubr.f32.mxu0 %v5527
        %6273 = vmatmul.mubr.f32.gmra.mrb[0].mxu0 %v5526
        %v6274 = vpop.f32.mrb[0].mxu0
        %v6275 = vadd.f32 %v5890, %v6274
        %v6276 = vpop.f32.mrb[0].mxu0
        %6277 = vmatprep.mubr.f32.mxu0 %v5531
        %6278 = vmatmul.mubr.f32.gmra.mrb[0].mxu0 %v5530
        %v6279 = vpop.f32.mrb[0].mxu0
        %v6280 = vadd.f32 %v5895, %v6279
        %v6281 = vpop.f32.mrb[0].mxu0
        %6282 = vmatprep.mubr.f32.mxu0 %v5535
        %6283 = vmatmul.mubr.f32.gmra.mrb[0].mxu0 %v5534
        %v6284 = vpop.f32.mrb[0].mxu0
        %v6285 = vadd.f32 %v5900, %v6284
        %v6286 = vpop.f32.mrb[0].mxu0
        %6287 = vmatprep.mubr.f32.mxu0 %v5539
        %6288 = vmatmul.mubr.f32.gmra.mrb[0].mxu0 %v5538
        %v6289 = vpop.f32.mrb[0].mxu0
        %v6290 = vadd.f32 %v5905, %v6289
        %v6291 = vpop.f32.mrb[0].mxu0
        %6292 = vmatprep.mubr.f32.mxu0 %v5543
        %6293 = vmatmul.mubr.f32.gmra.mrb[0].mxu0 %v5542
        %v6294 = vpop.f32.mrb[0].mxu0
        %v6295 = vadd.f32 %v5910, %v6294
        %v6296 = vpop.f32.mrb[0].mxu0
        %6297 = vmatprep.mubr.f32.mxu0 %v5547
        %6298 = vmatmul.mubr.f32.gmra.mrb[0].mxu0 %v5546
        %v6299 = vpop.f32.mrb[0].mxu0
        %v6300 = vadd.f32 %v5915, %v6299
        %v6301 = vpop.f32.mrb[0].mxu0
        %6302 = vmatprep.mubr.f32.mxu0 %v5551
        %6303 = vmatmul.mubr.f32.gmra.mrb[0].mxu0 %v5550
        %v6304 = vpop.f32.mrb[0].mxu0
        %v6305 = vadd.f32 %v5920, %v6304
        %v6306 = vpop.f32.mrb[0].mxu0
        %6307 = vmatprep.mubr.f32.mxu0 %v5555
        %6308 = vmatmul.mubr.f32.gmra.mrb[0].mxu0 %v5554
        %v6309 = vpop.f32.mrb[0].mxu0
        %v6310 = vadd.f32 %v5925, %v6309
        %v6311 = vpop.f32.mrb[0].mxu0
        %6312 = vmatprep.mubr.f32.mxu0 %v5559
        %6313 = vmatmul.mubr.f32.gmra.mrb[0].mxu0 %v5558
        %v6314 = vpop.f32.mrb[0].mxu0
        %v6315 = vadd.f32 %v5930, %v6314
        %v6316 = vpop.f32.mrb[0].mxu0
        %6317 = vmatprep.mubr.f32.mxu0 %v5563
        %6318 = vmatmul.mubr.f32.gmra.mrb[0].mxu0 %v5562
        %v6319 = vpop.f32.mrb[0].mxu0
        %v6320 = vadd.f32 %v5935, %v6319
        %v6321 = vpop.f32.mrb[0].mxu0
        %6322 = vmatprep.mubr.f32.mxu0 %v5567
        %6323 = vmatmul.mubr.f32.gmra.mrb[0].mxu0 %v5566
        %v6324 = vpop.f32.mrb[0].mxu0
        %v6325 = vadd.f32 %v5940, %v6324
        %v6326 = vpop.f32.mrb[0].mxu0
        %6327 = vmatprep.mubr.f32.mxu0 %v5571
        %6328 = vmatmul.mubr.f32.gmra.mrb[0].mxu0 %v5570
        %v6329 = vpop.f32.mrb[0].mxu0
        %v6330 = vadd.f32 %v5945, %v6329
        %v6331 = vpop.f32.mrb[0].mxu0
        %6332 = vmatprep.mubr.f32.mxu0 %v5575
        %6333 = vmatmul.mubr.f32.gmra.mrb[0].mxu0 %v5574
        %v6334 = vpop.f32.mrb[0].mxu0
        %v6335 = vadd.f32 %v5950, %v6334
        %v6336 = vpop.f32.mrb[0].mxu0
        %6337 = vmatprep.mubr.f32.mxu0 %v5579
        %6338 = vmatmul.mubr.f32.gmra.mrb[0].mxu0 %v5578
        %v6339 = vpop.f32.mrb[0].mxu0
        %v6340 = vadd.f32 %v5955, %v6339
        %v6341 = vpop.f32.mrb[0].mxu0
        %6342 = vmatprep.mubr.f32.mxu0 %v5583
        %6343 = vmatmul.mubr.f32.gmra.mrb[0].mxu0 %v5582
        %v6344 = vpop.f32.mrb[0].mxu0
        %v6345 = vadd.f32 %v5960, %v6344
        %v6346 = vpop.f32.mrb[0].mxu0
        %6347 = vmatprep.mubr.f32.mxu0 %v5587
        %6348 = vmatmul.mubr.f32.gmra.mrb[0].mxu0 %v5586
        %v6349 = vpop.f32.mrb[0].mxu0
        %v6350 = vadd.f32 %v5965, %v6349
        %v6351 = vpop.f32.mrb[0].mxu0
        %6352 = vmatprep.mubr.f32.mxu0 %v5591
        %6353 = vmatmul.mubr.f32.gmra.mrb[0].mxu0 %v5590
        %v6354 = vpop.f32.mrb[0].mxu0
        %v6355 = vadd.f32 %v5970, %v6354
        %v6356 = vpop.f32.mrb[0].mxu0
        %6357 = vmatprep.mubr.f32.mxu0 %v5595
        %6358 = vmatmul.mubr.f32.gmra.mrb[0].mxu0 %v5594
        %v6359 = vpop.f32.mrb[0].mxu0
        %v6360 = vadd.f32 %v5975, %v6359
        %v6361 = vpop.f32.mrb[0].mxu0
        %6362 = vmatprep.mubr.f32.mxu0 %v5599
        %6363 = vmatmul.mubr.f32.gmra.mrb[0].mxu0 %v5598
        %v6364 = vpop.f32.mrb[0].mxu0
        %v6365 = vadd.f32 %v5980, %v6364
        %v6366 = vpop.f32.mrb[0].mxu0
        %6367 = vmatprep.mubr.f32.mxu0 %v5603
        %6368 = vmatmul.mubr.f32.gmra.mrb[0].mxu0 %v5602
        %v6369 = vpop.f32.mrb[0].mxu0
        %v6370 = vadd.f32 %v5985, %v6369
        %v6371 = vpop.f32.mrb[0].mxu0
        %6372 = vmatprep.mubr.f32.mxu0 %v5607
        %6373 = vmatmul.mubr.f32.gmra.mrb[0].mxu0 %v5606
        %v6374 = vpop.f32.mrb[0].mxu0
        %v6375 = vadd.f32 %v5990, %v6374
        %v6376 = vpop.f32.mrb[0].mxu0
        %6377 = vdwg.mxu0
        %v6378 = vld [vmem:[%s4] sm:$0x1]
        %v6379 = vld [vmem:[%s4 + $0x1] sm:$0x1]
        %v6380 = vld [vmem:[%s4 + $0x2] sm:$0x1]
        %v6381 = vld [vmem:[%s4 + $0x3] sm:$0x1]
        %v6382 = vld [vmem:[%s4 + $0x4] sm:$0x1]
        %v6383 = vld [vmem:[%s4 + $0x5] sm:$0x1]
        %v6384 = vld [vmem:[%s4 + $0x6] sm:$0x1]
        %v6385 = vld [vmem:[%s4 + $0x7] sm:$0x1]
        %v6394 = vlaneseq
        %v6395 = vshrl.u32 %v6394, 7
        %v6396 = vsub.s32 0, %v6395
        %v6397 = vrot.slane %v6378, %v6396
        %v6398 = vlaneseq
        %v6399 = vshrl.u32 %v6398, 7
        %v6400 = vsub.s32 0, %v6399
        %v6401 = vrot.slane %v6379, %v6400
        %v6402 = vlaneseq
        %v6403 = vshrl.u32 %v6402, 7
        %v6404 = vsub.s32 0, %v6403
        %v6405 = vrot.slane %v6380, %v6404
        %v6406 = vlaneseq
        %v6407 = vshrl.u32 %v6406, 7
        %v6408 = vsub.s32 0, %v6407
        %v6409 = vrot.slane %v6381, %v6408
        %v6410 = vlaneseq
        %v6411 = vshrl.u32 %v6410, 7
        %v6412 = vsub.s32 0, %v6411
        %v6413 = vrot.slane %v6382, %v6412
        %v6414 = vlaneseq
        %v6415 = vshrl.u32 %v6414, 7
        %v6416 = vsub.s32 0, %v6415
        %v6417 = vrot.slane %v6383, %v6416
        %v6418 = vlaneseq
        %v6419 = vshrl.u32 %v6418, 7
        %v6420 = vsub.s32 0, %v6419
        %v6421 = vrot.slane %v6384, %v6420
        %v6422 = vlaneseq
        %v6423 = vshrl.u32 %v6422, 7
        %v6424 = vsub.s32 0, %v6423
        %v6425 = vrot.slane %v6385, %v6424
        %6426 = vset.pattern.permute.xlu0 0
        %6427 = vperm.xlu0 %6426, %v6397
        %v6428 = vpop.permute.xlu0 %6427
        %6430 = vset.pattern.permute.xlu0 0
        %6431 = vperm.xlu0 %6430, %v6401
        %v6432 = vpop.permute.xlu0 %6431
        %6434 = vset.pattern.permute.xlu0 0
        %6435 = vperm.xlu0 %6434, %v6405
        %v6436 = vpop.permute.xlu0 %6435
        %6438 = vset.pattern.permute.xlu0 0
        %6439 = vperm.xlu0 %6438, %v6409
        %v6440 = vpop.permute.xlu0 %6439
        %6442 = vset.pattern.permute.xlu0 0
        %6443 = vperm.xlu0 %6442, %v6413
        %v6444 = vpop.permute.xlu0 %6443
        %6446 = vset.pattern.permute.xlu0 0
        %6447 = vperm.xlu0 %6446, %v6417
        %v6448 = vpop.permute.xlu0 %6447
        %6450 = vset.pattern.permute.xlu0 0
        %6451 = vperm.xlu0 %6450, %v6421
        %v6452 = vpop.permute.xlu0 %6451
        %6454 = vset.pattern.permute.xlu0 0
        %6455 = vperm.xlu0 %6454, %v6425
        %v6456 = vpop.permute.xlu0 %6455
        %v6458 = vadd.f32 %v6060, %v6428
        %v6459 = vadd.f32 %v6065, %v6428
        %v6460 = vadd.f32 %v6070, %v6428
        %v6461 = vadd.f32 %v6075, %v6428
        %v6462 = vadd.f32 %v6080, %v6428
        %v6463 = vadd.f32 %v6085, %v6428
        %v6464 = vadd.f32 %v6090, %v6428
        %v6465 = vadd.f32 %v6095, %v6428
        %v6466 = vadd.f32 %v6100, %v6432
        %v6467 = vadd.f32 %v6105, %v6432
        %v6468 = vadd.f32 %v6110, %v6432
        %v6469 = vadd.f32 %v6115, %v6432
        %v6470 = vadd.f32 %v6120, %v6432
        %v6471 = vadd.f32 %v6125, %v6432
        %v6472 = vadd.f32 %v6130, %v6432
        %v6473 = vadd.f32 %v6135, %v6432
        %v6474 = vadd.f32 %v6140, %v6436
        %v6475 = vadd.f32 %v6145, %v6436
        %v6476 = vadd.f32 %v6150, %v6436
        %v6477 = vadd.f32 %v6155, %v6436
        %v6478 = vadd.f32 %v6160, %v6436
        %v6479 = vadd.f32 %v6165, %v6436
        %v6480 = vadd.f32 %v6170, %v6436
        %v6481 = vadd.f32 %v6175, %v6436
        %v6482 = vadd.f32 %v6180, %v6440
        %v6483 = vadd.f32 %v6185, %v6440
        %v6484 = vadd.f32 %v6190, %v6440
        %v6485 = vadd.f32 %v6195, %v6440
        %v6486 = vadd.f32 %v6200, %v6440
        %v6487 = vadd.f32 %v6205, %v6440
        %v6488 = vadd.f32 %v6210, %v6440
        %v6489 = vadd.f32 %v6215, %v6440
        %v6490 = vadd.f32 %v6220, %v6444
        %v6491 = vadd.f32 %v6225, %v6444
        %v6492 = vadd.f32 %v6230, %v6444
        %v6493 = vadd.f32 %v6235, %v6444
        %v6494 = vadd.f32 %v6240, %v6444
        %v6495 = vadd.f32 %v6245, %v6444
        %v6496 = vadd.f32 %v6250, %v6444
        %v6497 = vadd.f32 %v6255, %v6444
        %v6498 = vadd.f32 %v6260, %v6448
        %v6499 = vadd.f32 %v6265, %v6448
        %v6500 = vadd.f32 %v6270, %v6448
        %v6501 = vadd.f32 %v6275, %v6448
        %v6502 = vadd.f32 %v6280, %v6448
        %v6503 = vadd.f32 %v6285, %v6448
        %v6504 = vadd.f32 %v6290, %v6448
        %v6505 = vadd.f32 %v6295, %v6448
        %v6506 = vadd.f32 %v6300, %v6452
        %v6507 = vadd.f32 %v6305, %v6452
        %v6508 = vadd.f32 %v6310, %v6452
        %v6509 = vadd.f32 %v6315, %v6452
        %v6510 = vadd.f32 %v6320, %v6452
        %v6511 = vadd.f32 %v6325, %v6452
        %v6512 = vadd.f32 %v6330, %v6452
        %v6513 = vadd.f32 %v6335, %v6452
        %v6514 = vadd.f32 %v6340, %v6456
        %v6515 = vadd.f32 %v6345, %v6456
        %v6516 = vadd.f32 %v6350, %v6456
        %v6517 = vadd.f32 %v6355, %v6456
        %v6518 = vadd.f32 %v6360, %v6456
        %v6519 = vadd.f32 %v6365, %v6456
        %v6520 = vadd.f32 %v6370, %v6456
        %v6521 = vadd.f32 %v6375, %v6456
        %vm6522 = vcmask 523264
        %6523 = vst.msk [vmem:[%s232] sm:$0xff] %vm6522, %v6458
        %6524 = vst.msk [vmem:[%s232 + $0x8] sm:$0xff] %vm6522, %v6459
        %6525 = vst.msk [vmem:[%s232 + $0x10] sm:$0xff] %vm6522, %v6460
        %6526 = vst.msk [vmem:[%s232 + $0x18] sm:$0xff] %vm6522, %v6461
        %6527 = vst.msk [vmem:[%s232 + $0x20] sm:$0xff] %vm6522, %v6462
        %6528 = vst.msk [vmem:[%s232 + $0x28] sm:$0xff] %vm6522, %v6463
        %6529 = vst.msk [vmem:[%s232 + $0x30] sm:$0xff] %vm6522, %v6464
        %6530 = vst.msk [vmem:[%s232 + $0x38] sm:$0xff] %vm6522, %v6465
        %6531 = vst.msk [vmem:[%s232 + $0x40] sm:$0xff] %vm6522, %v6466
        %6532 = vst.msk [vmem:[%s232 + $0x48] sm:$0xff] %vm6522, %v6467
        %6533 = vst.msk [vmem:[%s232 + $0x50] sm:$0xff] %vm6522, %v6468
        %6534 = vst.msk [vmem:[%s232 + $0x58] sm:$0xff] %vm6522, %v6469
        %6535 = vst.msk [vmem:[%s232 + $0x60] sm:$0xff] %vm6522, %v6470
        %6536 = vst.msk [vmem:[%s232 + $0x68] sm:$0xff] %vm6522, %v6471
        %6537 = vst.msk [vmem:[%s232 + $0x70] sm:$0xff] %vm6522, %v6472
        %6538 = vst.msk [vmem:[%s232 + $0x78] sm:$0xff] %vm6522, %v6473
        %6539 = vst.msk [vmem:[%s232 + $0x80] sm:$0xff] %vm6522, %v6474
        %6540 = vst.msk [vmem:[%s232 + $0x88] sm:$0xff] %vm6522, %v6475
        %6541 = vst.msk [vmem:[%s232 + $0x90] sm:$0xff] %vm6522, %v6476
        %6542 = vst.msk [vmem:[%s232 + $0x98] sm:$0xff] %vm6522, %v6477
        %6543 = vst.msk [vmem:[%s232 + $0xa0] sm:$0xff] %vm6522, %v6478
        %6544 = vst.msk [vmem:[%s232 + $0xa8] sm:$0xff] %vm6522, %v6479
        %6545 = vst.msk [vmem:[%s232 + $0xb0] sm:$0xff] %vm6522, %v6480
        %6546 = vst.msk [vmem:[%s232 + $0xb8] sm:$0xff] %vm6522, %v6481
        %6547 = vst.msk [vmem:[%s232 + $0xc0] sm:$0xff] %vm6522, %v6482
        %6548 = vst.msk [vmem:[%s232 + $0xc8] sm:$0xff] %vm6522, %v6483
        %6549 = vst.msk [vmem:[%s232 + $0xd0] sm:$0xff] %vm6522, %v6484
        %6550 = vst.msk [vmem:[%s232 + $0xd8] sm:$0xff] %vm6522, %v6485
        %6551 = vst.msk [vmem:[%s232 + $0xe0] sm:$0xff] %vm6522, %v6486
        %6552 = vst.msk [vmem:[%s232 + $0xe8] sm:$0xff] %vm6522, %v6487
        %6553 = vst.msk [vmem:[%s232 + $0xf0] sm:$0xff] %vm6522, %v6488
        %6554 = vst.msk [vmem:[%s232 + $0xf8] sm:$0xff] %vm6522, %v6489
        %6555 = vst.msk [vmem:[%s232 + $0x100] sm:$0xff] %vm6522, %v6490
        %6556 = vst.msk [vmem:[%s232 + $0x108] sm:$0xff] %vm6522, %v6491
        %6557 = vst.msk [vmem:[%s232 + $0x110] sm:$0xff] %vm6522, %v6492
        %6558 = vst.msk [vmem:[%s232 + $0x118] sm:$0xff] %vm6522, %v6493
        %6559 = vst.msk [vmem:[%s232 + $0x120] sm:$0xff] %vm6522, %v6494
        %6560 = vst.msk [vmem:[%s232 + $0x128] sm:$0xff] %vm6522, %v6495
        %6561 = vst.msk [vmem:[%s232 + $0x130] sm:$0xff] %vm6522, %v6496
        %6562 = vst.msk [vmem:[%s232 + $0x138] sm:$0xff] %vm6522, %v6497
        %6563 = vst.msk [vmem:[%s232 + $0x140] sm:$0xff] %vm6522, %v6498
        %6564 = vst.msk [vmem:[%s232 + $0x148] sm:$0xff] %vm6522, %v6499
        %6565 = vst.msk [vmem:[%s232 + $0x150] sm:$0xff] %vm6522, %v6500
        %6566 = vst.msk [vmem:[%s232 + $0x158] sm:$0xff] %vm6522, %v6501
        %6567 = vst.msk [vmem:[%s232 + $0x160] sm:$0xff] %vm6522, %v6502
        %6568 = vst.msk [vmem:[%s232 + $0x168] sm:$0xff] %vm6522, %v6503
        %6569 = vst.msk [vmem:[%s232 + $0x170] sm:$0xff] %vm6522, %v6504
        %6570 = vst.msk [vmem:[%s232 + $0x178] sm:$0xff] %vm6522, %v6505
        %6571 = vst.msk [vmem:[%s232 + $0x180] sm:$0xff] %vm6522, %v6506
        %6572 = vst.msk [vmem:[%s232 + $0x188] sm:$0xff] %vm6522, %v6507
        %6573 = vst.msk [vmem:[%s232 + $0x190] sm:$0xff] %vm6522, %v6508
        %6574 = vst.msk [vmem:[%s232 + $0x198] sm:$0xff] %vm6522, %v6509
        %6575 = vst.msk [vmem:[%s232 + $0x1a0] sm:$0xff] %vm6522, %v6510
        %6576 = vst.msk [vmem:[%s232 + $0x1a8] sm:$0xff] %vm6522, %v6511
        %6577 = vst.msk [vmem:[%s232 + $0x1b0] sm:$0xff] %vm6522, %v6512
        %6578 = vst.msk [vmem:[%s232 + $0x1b8] sm:$0xff] %vm6522, %v6513
        %6579 = vst.msk [vmem:[%s232 + $0x1c0] sm:$0xff] %vm6522, %v6514
        %6580 = vst.msk [vmem:[%s232 + $0x1c8] sm:$0xff] %vm6522, %v6515
        %6581 = vst.msk [vmem:[%s232 + $0x1d0] sm:$0xff] %vm6522, %v6516
        %6582 = vst.msk [vmem:[%s232 + $0x1d8] sm:$0xff] %vm6522, %v6517
        %6583 = vst.msk [vmem:[%s232 + $0x1e0] sm:$0xff] %vm6522, %v6518
        %6584 = vst.msk [vmem:[%s232 + $0x1e8] sm:$0xff] %vm6522, %v6519
        %6585 = vst.msk [vmem:[%s232 + $0x1f0] sm:$0xff] %vm6522, %v6520
        %6586 = vst.msk [vmem:[%s232 + $0x1f8] sm:$0xff] %vm6522, %v6521
        %s6587 = sand.u32 %s138, 1
        %s6588 = scalar_lea.sflag [#allocation4], %s6587
        %s6589 = sand.u32 %s138, 1
        %s6590 = smul.addr %s6589, 512
        %s6591 = scalar_lea.vmem [#allocation5], %s6590
        // Predicated region
        $region45: #{keypoint_rcnn_predictor_forward.1} parent=39 // pred_check
          %p6592 = pneg %p148
        $region46: #{keypoint_rcnn_predictor_forward.1} parent=39 // pred_check_branch
          %6594 = sbr.rel (%p6592) target = $region48
        $region47: #{keypoint_rcnn_predictor_forward.1} parent=39 // pred_region
          %s6596 = ssub.s32 8192, 8192
          %6597 = vsyncadd %s6588, %s6596
          %s6598 = smul.addr %s20, 64
          %s6599 = smul.addr %s6598, 128
          %s6600 = scalar_lea.hbm %s5, %s6599
          %s6601 = sshll.u32 %s6591, 4
          %s6602 = int_to_ptr.vmem [resolvable:$true] %s6601
          %6607 = dma.vmem_to_hbm [thread:$0]  %s6602, 8192, %s6600, %s6588, 128, 128, 8
        $region48: #{keypoint_rcnn_predictor_forward.1} parent=39 // pred_fallthru
          _
      $region40: #{keypoint_rcnn_predictor_forward.1} parent=5 // pred_fallthru
        _
      %p6608 = scmp.le.s32.totalorder 2, %s15
      // Predicated region
      $region49: #{keypoint_rcnn_predictor_forward.1} parent=5 // pred_check
        %p6609 = pneg %p6608
      $region50: #{keypoint_rcnn_predictor_forward.1} parent=5 // pred_check_branch
        %6611 = sbr.rel (%p6609) target = $region52
      $region51: #{keypoint_rcnn_predictor_forward.1} parent=5 // pred_region
        %s6612 = ssub.s32 %s15, 2
        // Predicated region
        $region53: #{keypoint_rcnn_predictor_forward.1} parent=51 // pred_check
          %p6613 = pneg %p154
        $region54: #{keypoint_rcnn_predictor_forward.1} parent=51 // pred_check_branch
          %6615 = sbr.rel (%p6613) target = $region56
        $region55: #{keypoint_rcnn_predictor_forward.1} parent=51 // pred_region
          %s6616 = sand.u32 %s139, 1
          %s6617 = scalar_lea.sflag [#allocation4], %s6616
          %s6618 = sand.u32 %s139, 1
          %s6619 = smul.addr %s6618, 512
          %s6620 = scalar_lea.vmem [#allocation5], %s6619
          %6621 = dma.done %s6617, 8192
        $region56: #{keypoint_rcnn_predictor_forward.1} parent=51 // pred_fallthru
          _
      $region52: #{keypoint_rcnn_predictor_forward.1} parent=5 // pred_fallthru
        _
    $region6: #{keypoint_rcnn_predictor_forward.1} parent=1 // loop_footer
      %s19 = sadd.s32 1, %s15
    $region7: #{keypoint_rcnn_predictor_forward.1} parent=1 // loop_footer_branch
      %14 = sbr.rel target = $region3
    $region8: #{keypoint_rcnn_predictor_forward.1} parent=1 // loop_exit
      _
    %6622 = vsyncpa [#allocation3], 1
    %s6623 = scalar_lea.sflag [#allocation3], 1
    %6624 = vsyncpa %s6623, 1
    %6625 = vsyncpa [#allocation4], 1
    %s6626 = scalar_lea.sflag [#allocation4], 1
    %6627 = vsyncpa %s6626, 1

</llo_original>
